<compile_context>
chip_gen: v7x
topology: tpu7x:2x2x1
jax: 0.10.0
libtpu: 0.0.40
codegen_flags: <defaults>
</compile_context>

<pallas_src>
import functools

import jax
import jax.numpy as jnp
from jax.experimental import pallas as pl
from jax.experimental.pallas import tpu as pltpu


# ----------------------------------------------------------------------------
# Chip-generation configuration (queried once at import time).
# ----------------------------------------------------------------------------
def _tpu_config():
    kind = ""
    try:
        kind = (getattr(jax.devices()[0], "device_kind", "") or "").lower()
    except Exception:
        pass
    if "v7" in kind:
        # 2 TensorCores, bf16 VALU, only 64 MiB physical VMEM per TC.
        return dict(num_tc=2, l1_bf16=True, cap=2048, vmem_limit=48 * 1024 * 1024)
    if "v6" in kind:
        # 1 TensorCore, bf16 VALU, 128 MiB VMEM.
        return dict(num_tc=1, l1_bf16=True, cap=2048, vmem_limit=64 * 1024 * 1024)
    # v5e / others: 1 TC assumed, f32-only VPU path (conservative & correct everywhere).
    return dict(num_tc=1, l1_bf16=False, cap=2048, vmem_limit=64 * 1024 * 1024)


_CFG = _tpu_config()


# ----------------------------------------------------------------------------
# Kernel
# ----------------------------------------------------------------------------
def mlp_kernel(x_ref, w1_ref, b1_ref, w2_ref, b2_ref, w3_ref, b3_ref,
               w4t_ref, b4_ref, o_ref, *, l1_bf16):
    # ---- Layer 1: Linear(in_dim -> 1024) + ReLU (VPU broadcast-MAC, K is tiny) ----
    x = x_ref[...]                                    # (blk, in_dim)
    if l1_bf16:
        x = x.astype(jnp.bfloat16)                    # w1/b1 already bf16 (pre-cast)
    w1 = w1_ref[...]                                  # (in_dim, 1024)
    in_dim = w1.shape[0]                              # static (== 4)
    h = b1_ref[...] + x[:, 0:1] * w1[0:1, :]          # (blk, 1024)
    for k in range(1, in_dim):                        # static unroll
        h = h + x[:, k:k + 1] * w1[k:k + 1, :]
    h = jnp.maximum(h, 0.0)

    # ---- Layers 2 & 3: bf16 MXU matmuls, f32 accumulation, f32 elementwise --------
    lhs = h if l1_bf16 else h.astype(jnp.bfloat16)
    h = jnp.dot(lhs, w2_ref[...],
                preferred_element_type=jnp.float32)   # (blk, 256) f32
    h = jnp.maximum(h + b2_ref[...], 0.0)
    h = jnp.dot(h.astype(jnp.bfloat16), w3_ref[...],
                preferred_element_type=jnp.float32)   # (blk, 128) f32
    h = jnp.maximum(h + b3_ref[...], 0.0)

    # ---- Layer 4: Linear(128 -> 1) + Sigmoid (VPU multiply + lane reduce) ---------
    z = jnp.sum(h * w4t_ref[...], axis=-1, keepdims=True) + b4_ref[...]
    o_ref[...] = jax.nn.sigmoid(z)                    # (blk, 1) f32


# ----------------------------------------------------------------------------
# Batch tiling
# ----------------------------------------------------------------------------
def _pick_block_b(B, num_tc, cap):
    """Per-chip batch tile.

    1 TC (v5e/v6e): one grid step when B <= cap (the grid is a serial loop).
    2 TCs (v7x):    exactly 2 balanced steps at small B, even step count at large B.
    """
    if B <= 16:
        return B
    if num_tc >= 2:
        steps = max(2, -(-B // cap))
        if steps % 2:
            steps += 1
        blk = -(-B // steps)
        blk = max(8, -(-blk // 8) * 8)                # multiple of 8 sublanes
        return min(blk, B)
    # single TensorCore
    if B <= cap:
        return B                                      # one grid step
    return max(8, (cap // 8) * 8)


# ----------------------------------------------------------------------------
# Forward
# ----------------------------------------------------------------------------
@jax.jit
def mlp_forward(x, p):
    """x: (B, input_dim) float32; p: preprocessed params from preprocess_params()."""
    B, in_dim = x.shape
    out_dim = p["w4t"].shape[0]
    block_b = _pick_block_b(B, _CFG["num_tc"], _CFG["cap"])

    def batch_spec(feat):
        return pl.BlockSpec((block_b, feat), lambda i: (i, 0))

    def whole(arr):
        # full-array block, resident / replicated across the batch grid
        return pl.BlockSpec(arr.shape, lambda i: (0, 0))

    kernel = functools.partial(mlp_kernel, l1_bf16=_CFG["l1_bf16"])

    return pl.pallas_call(
        kernel,
        out_shape=jax.ShapeDtypeStruct((B, out_dim), jnp.float32),
        grid_spec=pltpu.PrefetchScalarGridSpec(
            num_scalar_prefetch=0,
            grid=(pl.cdiv(B, block_b),),
            in_specs=[
                batch_spec(in_dim),
                whole(p["w1"]), whole(p["b1"]),
                whole(p["w2"]), whole(p["b2"]),
                whole(p["w3"]), whole(p["b3"]),
                whole(p["w4t"]), whole(p["b4"]),
            ],
            out_specs=batch_spec(out_dim),
        ),
        compiler_params=pltpu.CompilerParams(
            dimension_semantics=("parallel",),
            vmem_limit_bytes=_CFG["vmem_limit"]),
    )(x, p["w1"], p["b1"], p["w2"], p["b2"], p["w3"], p["b3"], p["w4t"], p["b4"])


# ----------------------------------------------------------------------------
# Params
# ----------------------------------------------------------------------------
def init_params(key, input_dim=4, output_dim=1):
    """Deterministic init matching nn.Linear shapes (weights stored as (in, out))."""
    dims = [input_dim, 1024, 256, 128, output_dim]
    params = {}
    for idx in range(4):
        fan_in, fan_out = dims[idx], dims[idx + 1]
        key, kw, kb = jax.random.split(key, 3)
        bound = 1.0 / jnp.sqrt(fan_in)
        params[f"w{idx+1}"] = jax.random.uniform(
            kw, (fan_in, fan_out), jnp.float32, -bound, bound)
        params[f"b{idx+1}"] = jax.random.uniform(
            kb, (1, fan_out), jnp.float32, -bound, bound)
    return params


def preprocess_params(params, l1_bf16):
    """ONE-TIME weight preprocessing, hoisted out of the per-call forward path."""
    p = {}
    if l1_bf16:
        p["w1"] = params["w1"].astype(jnp.bfloat16)
        p["b1"] = params["b1"].astype(jnp.bfloat16)
    else:
        p["w1"] = params["w1"]
        p["b1"] = params["b1"]
    p["w2"] = params["w2"].astype(jnp.bfloat16)
    p["b2"] = params["b2"]
    p["w3"] = params["w3"].astype(jnp.bfloat16)
    p["b3"] = params["b3"]
    p["w4t"] = jnp.transpose(params["w4"])            # (out_dim, 128)
    p["b4"] = params["b4"]
    return jax.tree_util.tree_map(jax.block_until_ready, p)


def mlp_reference(x, params):
    h = jnp.maximum(x @ params["w1"] + params["b1"], 0.0)
    h = jnp.maximum(h @ params["w2"] + params["b2"], 0.0)
    h = jnp.maximum(h @ params["w3"] + params["b3"], 0.0)
    return jax.nn.sigmoid(h @ params["w4"] + params["b4"])


if __name__ == "__main__":
    key = jax.random.PRNGKey(0)
    key, kx1, kx2 = jax.random.split(key, 3)

    input_dim, output_dim = 4, 1
    params = init_params(key, input_dim, output_dim)
    prepped = preprocess_params(params, _CFG["l1_bf16"])   # hoisted, done once

    # Test 1: B = 512 (divisible tile sizes on every chip generation).
    B1 = 512
    x1 = jax.random.normal(kx1, (B1, input_dim), jnp.float32)
    y1 = mlp_forward(x1, prepped)
    jax.block_until_ready(y1)
    assert y1.shape == (B1, output_dim)
    assert jnp.allclose(y1, mlp_reference(x1, params), atol=3e-2, rtol=3e-2)

    # Test 2: B = 100 (exercises the padded/clipped tail block on multi-step grids).
    B2 = 100
    x2 = jax.random.normal(kx2, (B2, input_dim), jnp.float32)
    y2 = mlp_forward(x2, prepped)
    jax.block_until_ready(y2)
    assert y2.shape == (B2, output_dim)
    assert jnp.allclose(y2, mlp_reference(x2, params), atol=3e-2, rtol=3e-2)

    print("KERNEL_OK")
</pallas_src>

<mosaic_0001>
module attributes {stable_mosaic.version = 11 : i64} {
  func.func @mlp_kernel(%arg0: i32, %arg1: memref<512x4xf32, #tpu.memory_space<vmem>>, %arg2: memref<4x1024xf32, #tpu.memory_space<vmem>>, %arg3: memref<1x1024xf32, #tpu.memory_space<vmem>>, %arg4: memref<1024x256xbf16, #tpu.memory_space<vmem>>, %arg5: memref<1x256xf32, #tpu.memory_space<vmem>>, %arg6: memref<256x128xbf16, #tpu.memory_space<vmem>>, %arg7: memref<1x128xf32, #tpu.memory_space<vmem>>, %arg8: memref<1x128xf32, #tpu.memory_space<vmem>>, %arg9: memref<1x1xf32, #tpu.memory_space<vmem>>, %arg10: memref<512x1xf32, #tpu.memory_space<vmem>>) attributes {dimension_semantics = [#tpu.dimension_semantics<parallel>], iteration_bounds = array<i64: 1>, scalar_prefetch = 0 : i64, scratch_operands = 0 : i64, tpu.core_type = #tpu.core_type<tc>, window_params = [{transform_indices = @transform_0, window_bounds = array<i64: 512, 4>}, {pipeline_mode = #tpu.pipeline_mode<synchronous>, transform_indices = @transform_1, window_bounds = array<i64: 4, 1024>}, {pipeline_mode = #tpu.pipeline_mode<synchronous>, transform_indices = @transform_2, window_bounds = array<i64: 1, 1024>}, {pipeline_mode = #tpu.pipeline_mode<synchronous>, transform_indices = @transform_3, window_bounds = array<i64: 1024, 256>}, {pipeline_mode = #tpu.pipeline_mode<synchronous>, transform_indices = @transform_4, window_bounds = array<i64: 1, 256>}, {pipeline_mode = #tpu.pipeline_mode<synchronous>, transform_indices = @transform_5, window_bounds = array<i64: 256, 128>}, {pipeline_mode = #tpu.pipeline_mode<synchronous>, transform_indices = @transform_6, window_bounds = array<i64: 1, 128>}, {pipeline_mode = #tpu.pipeline_mode<synchronous>, transform_indices = @transform_7, window_bounds = array<i64: 1, 128>}, {pipeline_mode = #tpu.pipeline_mode<synchronous>, transform_indices = @transform_8, window_bounds = array<i64: 1, 1>}, {transform_indices = @transform_9, window_bounds = array<i64: 512, 1>}]} {
    %c0 = arith.constant 0 : index
    %c0_0 = arith.constant 0 : index
    %0 = vector.load %arg1[%c0, %c0_0] : memref<512x4xf32, #tpu.memory_space<vmem>>, vector<512x4xf32>
    %c0_1 = arith.constant 0 : index
    %c0_2 = arith.constant 0 : index
    %1 = vector.load %arg2[%c0_1, %c0_2] : memref<4x1024xf32, #tpu.memory_space<vmem>>, vector<4x1024xf32>
    %c0_3 = arith.constant 0 : index
    %c0_4 = arith.constant 0 : index
    %2 = vector.load %arg3[%c0_3, %c0_4] : memref<1x1024xf32, #tpu.memory_space<vmem>>, vector<1x1024xf32>
    %3 = vector.extract_strided_slice %0 {offsets = [0, 0], sizes = [512, 1], strides = [1, 1]} : vector<512x4xf32> to vector<512x1xf32>
    %4 = vector.extract_strided_slice %1 {offsets = [0, 0], sizes = [1, 1024], strides = [1, 1]} : vector<4x1024xf32> to vector<1x1024xf32>
    %5 = vector.broadcast %3 : vector<512x1xf32> to vector<512x1024xf32>
    %6 = vector.broadcast %4 : vector<1x1024xf32> to vector<512x1024xf32>
    %7 = arith.mulf %5, %6 : vector<512x1024xf32>
    %8 = vector.broadcast %2 : vector<1x1024xf32> to vector<512x1024xf32>
    %9 = arith.addf %8, %7 : vector<512x1024xf32>
    %10 = vector.extract_strided_slice %0 {offsets = [0, 1], sizes = [512, 1], strides = [1, 1]} : vector<512x4xf32> to vector<512x1xf32>
    %11 = vector.extract_strided_slice %1 {offsets = [1, 0], sizes = [1, 1024], strides = [1, 1]} : vector<4x1024xf32> to vector<1x1024xf32>
    %12 = vector.broadcast %10 : vector<512x1xf32> to vector<512x1024xf32>
    %13 = vector.broadcast %11 : vector<1x1024xf32> to vector<512x1024xf32>
    %14 = arith.mulf %12, %13 : vector<512x1024xf32>
    %15 = arith.addf %9, %14 : vector<512x1024xf32>
    %16 = vector.extract_strided_slice %0 {offsets = [0, 2], sizes = [512, 1], strides = [1, 1]} : vector<512x4xf32> to vector<512x1xf32>
    %17 = vector.extract_strided_slice %1 {offsets = [2, 0], sizes = [1, 1024], strides = [1, 1]} : vector<4x1024xf32> to vector<1x1024xf32>
    %18 = vector.broadcast %16 : vector<512x1xf32> to vector<512x1024xf32>
    %19 = vector.broadcast %17 : vector<1x1024xf32> to vector<512x1024xf32>
    %20 = arith.mulf %18, %19 : vector<512x1024xf32>
    %21 = arith.addf %15, %20 : vector<512x1024xf32>
    %22 = vector.extract_strided_slice %0 {offsets = [0, 3], sizes = [512, 1], strides = [1, 1]} : vector<512x4xf32> to vector<512x1xf32>
    %23 = vector.extract_strided_slice %1 {offsets = [3, 0], sizes = [1, 1024], strides = [1, 1]} : vector<4x1024xf32> to vector<1x1024xf32>
    %24 = vector.broadcast %22 : vector<512x1xf32> to vector<512x1024xf32>
    %25 = vector.broadcast %23 : vector<1x1024xf32> to vector<512x1024xf32>
    %26 = arith.mulf %24, %25 : vector<512x1024xf32>
    %27 = arith.addf %21, %26 : vector<512x1024xf32>
    %cst = arith.constant 0.000000e+00 : f32
    %28 = vector.broadcast %cst : f32 to vector<512x1024xf32>
    %29 = arith.maximumf %27, %28 : vector<512x1024xf32>
    %30 = arith.truncf %29 : vector<512x1024xf32> to vector<512x1024xbf16>
    %c0_5 = arith.constant 0 : index
    %c0_6 = arith.constant 0 : index
    %31 = vector.load %arg4[%c0_5, %c0_6] : memref<1024x256xbf16, #tpu.memory_space<vmem>>, vector<1024x256xbf16>
    %cst_7 = arith.constant dense<0.000000e+00> : vector<512x256xf32>
    %32 = tpu.matmul %30, %31, %cst_7 {dimension_numbers = #tpu.dot_dimension_numbers<[1], [0], [0], [1], [0, 0, 1, 1], [], []>} : vector<512x1024xbf16>, vector<1024x256xbf16>, vector<512x256xf32> -> vector<512x256xf32>
    %c0_8 = arith.constant 0 : index
    %c0_9 = arith.constant 0 : index
    %33 = vector.load %arg5[%c0_8, %c0_9] : memref<1x256xf32, #tpu.memory_space<vmem>>, vector<1x256xf32>
    %34 = vector.broadcast %33 : vector<1x256xf32> to vector<512x256xf32>
    %35 = arith.addf %32, %34 : vector<512x256xf32>
    %cst_10 = arith.constant 0.000000e+00 : f32
    %36 = vector.broadcast %cst_10 : f32 to vector<512x256xf32>
    %37 = arith.maximumf %35, %36 : vector<512x256xf32>
    %38 = arith.truncf %37 : vector<512x256xf32> to vector<512x256xbf16>
    %c0_11 = arith.constant 0 : index
    %c0_12 = arith.constant 0 : index
    %39 = vector.load %arg6[%c0_11, %c0_12] : memref<256x128xbf16, #tpu.memory_space<vmem>>, vector<256x128xbf16>
    %cst_13 = arith.constant dense<0.000000e+00> : vector<512x128xf32>
    %40 = tpu.matmul %38, %39, %cst_13 {dimension_numbers = #tpu.dot_dimension_numbers<[1], [0], [0], [1], [0, 0, 1, 1], [], []>} : vector<512x256xbf16>, vector<256x128xbf16>, vector<512x128xf32> -> vector<512x128xf32>
    %c0_14 = arith.constant 0 : index
    %c0_15 = arith.constant 0 : index
    %41 = vector.load %arg7[%c0_14, %c0_15] : memref<1x128xf32, #tpu.memory_space<vmem>>, vector<1x128xf32>
    %42 = vector.broadcast %41 : vector<1x128xf32> to vector<512x128xf32>
    %43 = arith.addf %40, %42 : vector<512x128xf32>
    %cst_16 = arith.constant 0.000000e+00 : f32
    %44 = vector.broadcast %cst_16 : f32 to vector<512x128xf32>
    %45 = arith.maximumf %43, %44 : vector<512x128xf32>
    %c0_17 = arith.constant 0 : index
    %c0_18 = arith.constant 0 : index
    %46 = vector.load %arg8[%c0_17, %c0_18] : memref<1x128xf32, #tpu.memory_space<vmem>>, vector<1x128xf32>
    %47 = vector.broadcast %46 : vector<1x128xf32> to vector<512x128xf32>
    %48 = arith.mulf %45, %47 : vector<512x128xf32>
    %cst_19 = arith.constant dense<0.000000e+00> : vector<512xf32>
    %49 = vector.multi_reduction <add>, %48, %cst_19 [1] : vector<512x128xf32> to vector<512xf32>
    %50 = vector.shape_cast %49 : vector<512xf32> to vector<512x1xf32>
    %c0_20 = arith.constant 0 : index
    %c0_21 = arith.constant 0 : index
    %51 = vector.load %arg9[%c0_20, %c0_21] : memref<1x1xf32, #tpu.memory_space<vmem>>, vector<1x1xf32>
    %52 = vector.broadcast %51 : vector<1x1xf32> to vector<512x1xf32>
    %53 = arith.addf %50, %52 : vector<512x1xf32>
    %54 = arith.negf %53 : vector<512x1xf32>
    %55 = math.exp %54 : vector<512x1xf32>
    %cst_22 = arith.constant 1.000000e+00 : f32
    %56 = vector.broadcast %cst_22 : f32 to vector<512x1xf32>
    %57 = arith.addf %56, %55 : vector<512x1xf32>
    %58 = arith.divf %56, %57 : vector<512x1xf32>
    %c0_23 = arith.constant 0 : index
    %c0_24 = arith.constant 0 : index
    %59 = vector.load %arg10[%c0_23, %c0_24] : memref<512x1xf32, #tpu.memory_space<vmem>>, vector<512x1xf32>
    tpu.vector_store %arg10[%c0_23, %c0_24], %58 {strides = array<i32>} : memref<512x1xf32, #tpu.memory_space<vmem>>, vector<512x1xf32>,
    return
  }
  func.func @transform_0(%arg0: i32) -> (i32, i32) {
    %c0_i32 = arith.constant 0 : i32
    %c0_i32_0 = arith.constant 0 : i32
    return %arg0, %c0_i32 : i32, i32
  }
  func.func @transform_1(%arg0: i32) -> (i32, i32) {
    %c0_i32 = arith.constant 0 : i32
    %c0_i32_0 = arith.constant 0 : i32
    %c0_i32_1 = arith.constant 0 : i32
    return %c0_i32, %c0_i32_0 : i32, i32
  }
  func.func @transform_2(%arg0: i32) -> (i32, i32) {
    %c0_i32 = arith.constant 0 : i32
    %c0_i32_0 = arith.constant 0 : i32
    %c0_i32_1 = arith.constant 0 : i32
    return %c0_i32, %c0_i32_0 : i32, i32
  }
  func.func @transform_3(%arg0: i32) -> (i32, i32) {
    %c0_i32 = arith.constant 0 : i32
    %c0_i32_0 = arith.constant 0 : i32
    %c0_i32_1 = arith.constant 0 : i32
    return %c0_i32, %c0_i32_0 : i32, i32
  }
  func.func @transform_4(%arg0: i32) -> (i32, i32) {
    %c0_i32 = arith.constant 0 : i32
    %c0_i32_0 = arith.constant 0 : i32
    %c0_i32_1 = arith.constant 0 : i32
    return %c0_i32, %c0_i32_0 : i32, i32
  }
  func.func @transform_5(%arg0: i32) -> (i32, i32) {
    %c0_i32 = arith.constant 0 : i32
    %c0_i32_0 = arith.constant 0 : i32
    %c0_i32_1 = arith.constant 0 : i32
    return %c0_i32, %c0_i32_0 : i32, i32
  }
  func.func @transform_6(%arg0: i32) -> (i32, i32) {
    %c0_i32 = arith.constant 0 : i32
    %c0_i32_0 = arith.constant 0 : i32
    %c0_i32_1 = arith.constant 0 : i32
    return %c0_i32, %c0_i32_0 : i32, i32
  }
  func.func @transform_7(%arg0: i32) -> (i32, i32) {
    %c0_i32 = arith.constant 0 : i32
    %c0_i32_0 = arith.constant 0 : i32
    %c0_i32_1 = arith.constant 0 : i32
    return %c0_i32, %c0_i32_0 : i32, i32
  }
  func.func @transform_8(%arg0: i32) -> (i32, i32) {
    %c0_i32 = arith.constant 0 : i32
    %c0_i32_0 = arith.constant 0 : i32
    %c0_i32_1 = arith.constant 0 : i32
    return %c0_i32, %c0_i32_0 : i32, i32
  }
  func.func @transform_9(%arg0: i32) -> (i32, i32) {
    %c0_i32 = arith.constant 0 : i32
    %c0_i32_0 = arith.constant 0 : i32
    return %arg0, %c0_i32 : i32, i32
  }
}

</mosaic_0001>

<llo_original>
// kernel: mlp_forward.1
$region0: #{mlp_forward.1}
  #allocation0 [shape = 'u32[]', space=smem, size = 0x4, offset = 0x4, fixed_abs, tag = 'smem constant byte address 0x4 - core index']
  #allocation1 [shape = 'u32[144,128]{1,0:T(1,128)}', space=vmem, size = 0x12000, scoped, tag = 'internal scratch']
  #allocation2 [shape = 'f32[1,1]{1,0:T(1,128)S(1)}', space=vmem, size = 0x200, scoped, tag = 'scoped memory for mlp_forward.1']
  %s0 = inlined_call_operand.hbm [shape: f32[512,4], index: 0, kind: input, shape index: {}]
  %s1 = inlined_call_operand.hbm [shape: f32[4,1024], index: 1, kind: input, shape index: {}]
  %s2 = inlined_call_operand.hbm [shape: f32[1,1024], index: 2, kind: input, shape index: {}]
  %s3 = inlined_call_operand.hbm [shape: bf16[1024,256], index: 3, kind: input, shape index: {}]
  %s4 = inlined_call_operand.hbm [shape: f32[1,256], index: 4, kind: input, shape index: {}]
  %s5 = inlined_call_operand.hbm [shape: bf16[256,128], index: 5, kind: input, shape index: {}]
  %s6 = inlined_call_operand.hbm [shape: f32[1,128], index: 6, kind: input, shape index: {}]
  %s7 = inlined_call_operand.hbm [shape: f32[1,128], index: 7, kind: input, shape index: {}]
  %s8 = inlined_call_operand.<no memory space> [shape: f32[1,1], index: 8, kind: input, shape index: {}]
  %s9 = inlined_call_operand.hbm [shape: f32[512,1], index: 9, kind: output, shape index: {}]
  %s10 = sld [smem:[#allocation0]]
  $region78: #{mlp_forward.1} parent=0
    _
  %s12 = ssub.s32 1, %s10
  %s13 = scalar_select 0, %s12, %s10
  %v14 = vstv %s8
  %15 = vst [vmem:[#allocation2] sm:$0x1] %v14
  $region1: #{mlp_forward.1} parent=0
    #allocation3 [shape = 'u8[262144]{0}', space=vmem, size = 0x40000, scoped, tag = 'input window, operand 0, single buffered']
    #allocation4 [shape = 's32[1]{0}', space=sflag, size = 0x4, scoped, tag = 'scoped memory for mlp_forward.1']
    #allocation5 [shape = 's32[1]{0}', space=sflag, size = 0x4, scoped, tag = 'scoped memory for mlp_forward.1']
    #allocation6 [shape = 'u8[16384]{0}', space=vmem, size = 0x4000, scoped, tag = 'input window, operand 1, single buffered']
    #allocation7 [shape = 's32[1]{0}', space=sflag, size = 0x4, scoped, tag = 'scoped memory for mlp_forward.1']
    #allocation8 [shape = 'u8[4096]{0}', space=vmem, size = 0x1000, scoped, tag = 'input window, operand 2, single buffered']
    #allocation9 [shape = 'u8[524288]{0}', space=vmem, size = 0x80000, scoped, tag = 'input window, operand 3, single buffered']
    #allocation10 [shape = 's32[1]{0}', space=sflag, size = 0x4, scoped, tag = 'scoped memory for mlp_forward.1']
    #allocation11 [shape = 'u8[1024]{0}', space=vmem, size = 0x400, scoped, tag = 'input window, operand 4, single buffered']
    #allocation12 [shape = 'u8[65536]{0}', space=vmem, size = 0x10000, scoped, tag = 'input window, operand 5, single buffered']
    #allocation13 [shape = 's32[1]{0}', space=sflag, size = 0x4, scoped, tag = 'scoped memory for mlp_forward.1']
    #allocation14 [shape = 'u8[512]{0}', space=vmem, size = 0x400, scoped, tag = 'input window, operand 6, single buffered']
    #allocation15 [shape = 'u8[512]{0}', space=vmem, size = 0x400, scoped, tag = 'input window, operand 7, single buffered']
    #allocation16 [shape = 's32[1]{0}', space=sflag, size = 0x4, scoped, tag = 'scoped memory for mlp_forward.1']
    #allocation17 [shape = 'u8[262144]{0}', space=vmem, size = 0x40000, scoped, tag = 'output window, operand 0, single buffered']
    %16 = vsyncpa [#allocation4], 0
    %17 = vsyncpa [#allocation7], 0
    %18 = vsyncpa [#allocation10], 0
    %19 = vsyncpa [#allocation13], 0
    %20 = vsyncpa [#allocation16], 0
    %21 = vsyncpa [#allocation5], 0
    // Predicated region
    $region2: #{mlp_forward.1} parent=1 // pred_check
      _
    $region3: #{mlp_forward.1} parent=1 // pred_check_branch
      %23 = sbr.rel (0) target = $region5
    $region4: #{mlp_forward.1} parent=1 // pred_region
      %s25 = ssub.s32 8192, 8192
      %26 = vsyncadd [#allocation4], %s25
      %s27 = sshll.u32 [#allocation3], 4
      %s28 = int_to_ptr.vmem [resolvable:$true] %s27
      %33 = dma.hbm_to_vmem [thread:$0]  %s0, 8192, %s28, [#allocation4], 128, 128, 8
    $region5: #{mlp_forward.1} parent=1 // pred_fallthru
      _
    // Predicated region
    $region6: #{mlp_forward.1} parent=1 // pred_check
      _
    $region7: #{mlp_forward.1} parent=1 // pred_check_branch
      %35 = sbr.rel (0) target = $region9
    $region8: #{mlp_forward.1} parent=1 // pred_region
      %s37 = ssub.s32 512, 512
      %38 = vsyncadd [#allocation7], %s37
      %s40 = sshll.u32 [#allocation6], 4
      %s41 = int_to_ptr.vmem [resolvable:$true] %s40
      %43 = dma.hbm_to_vmem [thread:$0]  %s1, 512, %s41, [#allocation7]
    $region9: #{mlp_forward.1} parent=1 // pred_fallthru
      _
    // Predicated region
    $region10: #{mlp_forward.1} parent=1 // pred_check
      _
    $region11: #{mlp_forward.1} parent=1 // pred_check_branch
      %45 = sbr.rel (0) target = $region13
    $region12: #{mlp_forward.1} parent=1 // pred_region
      %s47 = ssub.s32 128, 128
      %48 = vsyncadd [#allocation7], %s47
      %s50 = sshll.u32 [#allocation8], 4
      %s51 = int_to_ptr.vmem [resolvable:$true] %s50
      %53 = dma.hbm_to_vmem [thread:$0]  %s2, 128, %s51, [#allocation7]
    $region13: #{mlp_forward.1} parent=1 // pred_fallthru
      _
    // Predicated region
    $region14: #{mlp_forward.1} parent=1 // pred_check
      _
    $region15: #{mlp_forward.1} parent=1 // pred_check_branch
      %55 = sbr.rel (0) target = $region17
    $region16: #{mlp_forward.1} parent=1 // pred_region
      %s57 = ssub.s32 16384, 16384
      %58 = vsyncadd [#allocation10], %s57
      %s59 = sshll.u32 [#allocation9], 4
      %s60 = int_to_ptr.vmem [resolvable:$true] %s59
      %65 = dma.hbm_to_vmem [thread:$0]  %s3, 16384, %s60, [#allocation10], 128, 128, 8
    $region17: #{mlp_forward.1} parent=1 // pred_fallthru
      _
    // Predicated region
    $region18: #{mlp_forward.1} parent=1 // pred_check
      _
    $region19: #{mlp_forward.1} parent=1 // pred_check_branch
      %67 = sbr.rel (0) target = $region21
    $region20: #{mlp_forward.1} parent=1 // pred_region
      %s69 = ssub.s32 32, 32
      %70 = vsyncadd [#allocation10], %s69
      %s72 = sshll.u32 [#allocation11], 4
      %s73 = int_to_ptr.vmem [resolvable:$true] %s72
      %75 = dma.hbm_to_vmem [thread:$0]  %s4, 32, %s73, [#allocation10]
    $region21: #{mlp_forward.1} parent=1 // pred_fallthru
      _
    // Predicated region
    $region22: #{mlp_forward.1} parent=1 // pred_check
      _
    $region23: #{mlp_forward.1} parent=1 // pred_check_branch
      %77 = sbr.rel (0) target = $region25
    $region24: #{mlp_forward.1} parent=1 // pred_region
      %s79 = ssub.s32 2048, 2048
      %80 = vsyncadd [#allocation13], %s79
      %s81 = sshll.u32 [#allocation12], 4
      %s82 = int_to_ptr.vmem [resolvable:$true] %s81
      %87 = dma.hbm_to_vmem [thread:$0]  %s5, 2048, %s82, [#allocation13], 64, 64, 4
    $region25: #{mlp_forward.1} parent=1 // pred_fallthru
      _
    // Predicated region
    $region26: #{mlp_forward.1} parent=1 // pred_check
      _
    $region27: #{mlp_forward.1} parent=1 // pred_check_branch
      %89 = sbr.rel (0) target = $region29
    $region28: #{mlp_forward.1} parent=1 // pred_region
      %s91 = ssub.s32 16, 16
      %92 = vsyncadd [#allocation13], %s91
      %s94 = sshll.u32 [#allocation14], 4
      %s95 = int_to_ptr.vmem [resolvable:$true] %s94
      %97 = dma.hbm_to_vmem [thread:$0]  %s6, 16, %s95, [#allocation13]
    $region29: #{mlp_forward.1} parent=1 // pred_fallthru
      _
    // Predicated region
    $region30: #{mlp_forward.1} parent=1 // pred_check
      _
    $region31: #{mlp_forward.1} parent=1 // pred_check_branch
      %99 = sbr.rel (0) target = $region33
    $region32: #{mlp_forward.1} parent=1 // pred_region
      %s101 = ssub.s32 16, 16
      %102 = vsyncadd [#allocation16], %s101
      %s104 = sshll.u32 [#allocation15], 4
      %s105 = int_to_ptr.vmem [resolvable:$true] %s104
      %107 = dma.hbm_to_vmem [thread:$0]  %s7, 16, %s105, [#allocation16]
    $region33: #{mlp_forward.1} parent=1 // pred_fallthru
      _
    // Predicated region
    $region34: #{mlp_forward.1} parent=1 // pred_check
      _
    $region35: #{mlp_forward.1} parent=1 // pred_check_branch
      %109 = sbr.rel (0) target = $region37
    $region36: #{mlp_forward.1} parent=1 // pred_region
      _
    $region37: #{mlp_forward.1} parent=1 // pred_fallthru
      _
    // Predicated region
    $region38: #{mlp_forward.1} parent=1 // pred_check
      _
    $region39: #{mlp_forward.1} parent=1 // pred_check_branch
      %111 = sbr.rel (0) target = $region41
    $region40: #{mlp_forward.1} parent=1 // pred_region
      %112 = dma.done [#allocation4], 8192
    $region41: #{mlp_forward.1} parent=1 // pred_fallthru
      _
    // Predicated region
    $region42: #{mlp_forward.1} parent=1 // pred_check
      _
    $region43: #{mlp_forward.1} parent=1 // pred_check_branch
      %114 = sbr.rel (0) target = $region45
    $region44: #{mlp_forward.1} parent=1 // pred_region
      %115 = dma.done [#allocation7], 512
    $region45: #{mlp_forward.1} parent=1 // pred_fallthru
      _
    // Predicated region
    $region46: #{mlp_forward.1} parent=1 // pred_check
      _
    $region47: #{mlp_forward.1} parent=1 // pred_check_branch
      %117 = sbr.rel (0) target = $region49
    $region48: #{mlp_forward.1} parent=1 // pred_region
      %118 = dma.done [#allocation7], 128
    $region49: #{mlp_forward.1} parent=1 // pred_fallthru
      _
    // Predicated region
    $region50: #{mlp_forward.1} parent=1 // pred_check
      _
    $region51: #{mlp_forward.1} parent=1 // pred_check_branch
      %120 = sbr.rel (0) target = $region53
    $region52: #{mlp_forward.1} parent=1 // pred_region
      %121 = dma.done [#allocation10], 16384
    $region53: #{mlp_forward.1} parent=1 // pred_fallthru
      _
    // Predicated region
    $region54: #{mlp_forward.1} parent=1 // pred_check
      _
    $region55: #{mlp_forward.1} parent=1 // pred_check_branch
      %123 = sbr.rel (0) target = $region57
    $region56: #{mlp_forward.1} parent=1 // pred_region
      %124 = dma.done [#allocation10], 32
    $region57: #{mlp_forward.1} parent=1 // pred_fallthru
      _
    // Predicated region
    $region58: #{mlp_forward.1} parent=1 // pred_check
      _
    $region59: #{mlp_forward.1} parent=1 // pred_check_branch
      %126 = sbr.rel (0) target = $region61
    $region60: #{mlp_forward.1} parent=1 // pred_region
      %127 = dma.done [#allocation13], 2048
    $region61: #{mlp_forward.1} parent=1 // pred_fallthru
      _
    // Predicated region
    $region62: #{mlp_forward.1} parent=1 // pred_check
      _
    $region63: #{mlp_forward.1} parent=1 // pred_check_branch
      %129 = sbr.rel (0) target = $region65
    $region64: #{mlp_forward.1} parent=1 // pred_region
      %130 = dma.done [#allocation13], 16
    $region65: #{mlp_forward.1} parent=1 // pred_fallthru
      _
    // Predicated region
    $region66: #{mlp_forward.1} parent=1 // pred_check
      _
    $region67: #{mlp_forward.1} parent=1 // pred_check_branch
      %132 = sbr.rel (0) target = $region69
    $region68: #{mlp_forward.1} parent=1 // pred_region
      %133 = dma.done [#allocation16], 16
    $region69: #{mlp_forward.1} parent=1 // pred_fallthru
      _
    %v135 = vld [vmem:[#allocation3] sm:$0xff]
    %v136 = vld [vmem:[#allocation3 + $0x8] sm:$0xff]
    %v137 = vld [vmem:[#allocation3 + $0x10] sm:$0xff]
    %v138 = vld [vmem:[#allocation3 + $0x18] sm:$0xff]
    %v139 = vld [vmem:[#allocation3 + $0x20] sm:$0xff]
    %v140 = vld [vmem:[#allocation3 + $0x28] sm:$0xff]
    %v141 = vld [vmem:[#allocation3 + $0x30] sm:$0xff]
    %v142 = vld [vmem:[#allocation3 + $0x38] sm:$0xff]
    %v143 = vld [vmem:[#allocation3 + $0x40] sm:$0xff]
    %v144 = vld [vmem:[#allocation3 + $0x48] sm:$0xff]
    %v145 = vld [vmem:[#allocation3 + $0x50] sm:$0xff]
    %v146 = vld [vmem:[#allocation3 + $0x58] sm:$0xff]
    %v147 = vld [vmem:[#allocation3 + $0x60] sm:$0xff]
    %v148 = vld [vmem:[#allocation3 + $0x68] sm:$0xff]
    %v149 = vld [vmem:[#allocation3 + $0x70] sm:$0xff]
    %v150 = vld [vmem:[#allocation3 + $0x78] sm:$0xff]
    %v151 = vld [vmem:[#allocation3 + $0x80] sm:$0xff]
    %v152 = vld [vmem:[#allocation3 + $0x88] sm:$0xff]
    %v153 = vld [vmem:[#allocation3 + $0x90] sm:$0xff]
    %v154 = vld [vmem:[#allocation3 + $0x98] sm:$0xff]
    %v155 = vld [vmem:[#allocation3 + $0xa0] sm:$0xff]
    %v156 = vld [vmem:[#allocation3 + $0xa8] sm:$0xff]
    %v157 = vld [vmem:[#allocation3 + $0xb0] sm:$0xff]
    %v158 = vld [vmem:[#allocation3 + $0xb8] sm:$0xff]
    %v159 = vld [vmem:[#allocation3 + $0xc0] sm:$0xff]
    %v160 = vld [vmem:[#allocation3 + $0xc8] sm:$0xff]
    %v161 = vld [vmem:[#allocation3 + $0xd0] sm:$0xff]
    %v162 = vld [vmem:[#allocation3 + $0xd8] sm:$0xff]
    %v163 = vld [vmem:[#allocation3 + $0xe0] sm:$0xff]
    %v164 = vld [vmem:[#allocation3 + $0xe8] sm:$0xff]
    %v165 = vld [vmem:[#allocation3 + $0xf0] sm:$0xff]
    %v166 = vld [vmem:[#allocation3 + $0xf8] sm:$0xff]
    %v167 = vld [vmem:[#allocation3 + $0x100] sm:$0xff]
    %v168 = vld [vmem:[#allocation3 + $0x108] sm:$0xff]
    %v169 = vld [vmem:[#allocation3 + $0x110] sm:$0xff]
    %v170 = vld [vmem:[#allocation3 + $0x118] sm:$0xff]
    %v171 = vld [vmem:[#allocation3 + $0x120] sm:$0xff]
    %v172 = vld [vmem:[#allocation3 + $0x128] sm:$0xff]
    %v173 = vld [vmem:[#allocation3 + $0x130] sm:$0xff]
    %v174 = vld [vmem:[#allocation3 + $0x138] sm:$0xff]
    %v175 = vld [vmem:[#allocation3 + $0x140] sm:$0xff]
    %v176 = vld [vmem:[#allocation3 + $0x148] sm:$0xff]
    %v177 = vld [vmem:[#allocation3 + $0x150] sm:$0xff]
    %v178 = vld [vmem:[#allocation3 + $0x158] sm:$0xff]
    %v179 = vld [vmem:[#allocation3 + $0x160] sm:$0xff]
    %v180 = vld [vmem:[#allocation3 + $0x168] sm:$0xff]
    %v181 = vld [vmem:[#allocation3 + $0x170] sm:$0xff]
    %v182 = vld [vmem:[#allocation3 + $0x178] sm:$0xff]
    %v183 = vld [vmem:[#allocation3 + $0x180] sm:$0xff]
    %v184 = vld [vmem:[#allocation3 + $0x188] sm:$0xff]
    %v185 = vld [vmem:[#allocation3 + $0x190] sm:$0xff]
    %v186 = vld [vmem:[#allocation3 + $0x198] sm:$0xff]
    %v187 = vld [vmem:[#allocation3 + $0x1a0] sm:$0xff]
    %v188 = vld [vmem:[#allocation3 + $0x1a8] sm:$0xff]
    %v189 = vld [vmem:[#allocation3 + $0x1b0] sm:$0xff]
    %v190 = vld [vmem:[#allocation3 + $0x1b8] sm:$0xff]
    %v191 = vld [vmem:[#allocation3 + $0x1c0] sm:$0xff]
    %v192 = vld [vmem:[#allocation3 + $0x1c8] sm:$0xff]
    %v193 = vld [vmem:[#allocation3 + $0x1d0] sm:$0xff]
    %v194 = vld [vmem:[#allocation3 + $0x1d8] sm:$0xff]
    %v195 = vld [vmem:[#allocation3 + $0x1e0] sm:$0xff]
    %v196 = vld [vmem:[#allocation3 + $0x1e8] sm:$0xff]
    %v197 = vld [vmem:[#allocation3 + $0x1f0] sm:$0xff]
    %v198 = vld [vmem:[#allocation3 + $0x1f8] sm:$0xff]
    %v199 = vld [vmem:[#allocation6] sm:$0xff]
    %v200 = vld [vmem:[#allocation6 + $0x8] sm:$0xff]
    %v201 = vld [vmem:[#allocation6 + $0x10] sm:$0xff]
    %v202 = vld [vmem:[#allocation6 + $0x18] sm:$0xff]
    %v203 = vld [vmem:[#allocation8] sm:$0xff]
    %205 = vset.pattern.permute.xlu0 0
    %206 = vperm.xlu0 %205, %v135
    %v207 = vpop.permute.xlu0 %206
    %210 = vset.pattern.permute.xlu0 0
    %211 = vperm.xlu0 %210, %v136
    %v212 = vpop.permute.xlu0 %211
    %215 = vset.pattern.permute.xlu0 0
    %216 = vperm.xlu0 %215, %v137
    %v217 = vpop.permute.xlu0 %216
    %220 = vset.pattern.permute.xlu0 0
    %221 = vperm.xlu0 %220, %v138
    %v222 = vpop.permute.xlu0 %221
    %225 = vset.pattern.permute.xlu0 0
    %226 = vperm.xlu0 %225, %v139
    %v227 = vpop.permute.xlu0 %226
    %230 = vset.pattern.permute.xlu0 0
    %231 = vperm.xlu0 %230, %v140
    %v232 = vpop.permute.xlu0 %231
    %235 = vset.pattern.permute.xlu0 0
    %236 = vperm.xlu0 %235, %v141
    %v237 = vpop.permute.xlu0 %236
    %240 = vset.pattern.permute.xlu0 0
    %241 = vperm.xlu0 %240, %v142
    %v242 = vpop.permute.xlu0 %241
    %245 = vset.pattern.permute.xlu0 0
    %246 = vperm.xlu0 %245, %v143
    %v247 = vpop.permute.xlu0 %246
    %250 = vset.pattern.permute.xlu0 0
    %251 = vperm.xlu0 %250, %v144
    %v252 = vpop.permute.xlu0 %251
    %255 = vset.pattern.permute.xlu0 0
    %256 = vperm.xlu0 %255, %v145
    %v257 = vpop.permute.xlu0 %256
    %260 = vset.pattern.permute.xlu0 0
    %261 = vperm.xlu0 %260, %v146
    %v262 = vpop.permute.xlu0 %261
    %265 = vset.pattern.permute.xlu0 0
    %266 = vperm.xlu0 %265, %v147
    %v267 = vpop.permute.xlu0 %266
    %270 = vset.pattern.permute.xlu0 0
    %271 = vperm.xlu0 %270, %v148
    %v272 = vpop.permute.xlu0 %271
    %275 = vset.pattern.permute.xlu0 0
    %276 = vperm.xlu0 %275, %v149
    %v277 = vpop.permute.xlu0 %276
    %280 = vset.pattern.permute.xlu0 0
    %281 = vperm.xlu0 %280, %v150
    %v282 = vpop.permute.xlu0 %281
    %285 = vset.pattern.permute.xlu0 0
    %286 = vperm.xlu0 %285, %v151
    %v287 = vpop.permute.xlu0 %286
    %290 = vset.pattern.permute.xlu0 0
    %291 = vperm.xlu0 %290, %v152
    %v292 = vpop.permute.xlu0 %291
    %295 = vset.pattern.permute.xlu0 0
    %296 = vperm.xlu0 %295, %v153
    %v297 = vpop.permute.xlu0 %296
    %300 = vset.pattern.permute.xlu0 0
    %301 = vperm.xlu0 %300, %v154
    %v302 = vpop.permute.xlu0 %301
    %305 = vset.pattern.permute.xlu0 0
    %306 = vperm.xlu0 %305, %v155
    %v307 = vpop.permute.xlu0 %306
    %310 = vset.pattern.permute.xlu0 0
    %311 = vperm.xlu0 %310, %v156
    %v312 = vpop.permute.xlu0 %311
    %315 = vset.pattern.permute.xlu0 0
    %316 = vperm.xlu0 %315, %v157
    %v317 = vpop.permute.xlu0 %316
    %320 = vset.pattern.permute.xlu0 0
    %321 = vperm.xlu0 %320, %v158
    %v322 = vpop.permute.xlu0 %321
    %325 = vset.pattern.permute.xlu0 0
    %326 = vperm.xlu0 %325, %v159
    %v327 = vpop.permute.xlu0 %326
    %330 = vset.pattern.permute.xlu0 0
    %331 = vperm.xlu0 %330, %v160
    %v332 = vpop.permute.xlu0 %331
    %335 = vset.pattern.permute.xlu0 0
    %336 = vperm.xlu0 %335, %v161
    %v337 = vpop.permute.xlu0 %336
    %340 = vset.pattern.permute.xlu0 0
    %341 = vperm.xlu0 %340, %v162
    %v342 = vpop.permute.xlu0 %341
    %345 = vset.pattern.permute.xlu0 0
    %346 = vperm.xlu0 %345, %v163
    %v347 = vpop.permute.xlu0 %346
    %350 = vset.pattern.permute.xlu0 0
    %351 = vperm.xlu0 %350, %v164
    %v352 = vpop.permute.xlu0 %351
    %355 = vset.pattern.permute.xlu0 0
    %356 = vperm.xlu0 %355, %v165
    %v357 = vpop.permute.xlu0 %356
    %360 = vset.pattern.permute.xlu0 0
    %361 = vperm.xlu0 %360, %v166
    %v362 = vpop.permute.xlu0 %361
    %365 = vset.pattern.permute.xlu0 0
    %366 = vperm.xlu0 %365, %v167
    %v367 = vpop.permute.xlu0 %366
    %370 = vset.pattern.permute.xlu0 0
    %371 = vperm.xlu0 %370, %v168
    %v372 = vpop.permute.xlu0 %371
    %375 = vset.pattern.permute.xlu0 0
    %376 = vperm.xlu0 %375, %v169
    %v377 = vpop.permute.xlu0 %376
    %380 = vset.pattern.permute.xlu0 0
    %381 = vperm.xlu0 %380, %v170
    %v382 = vpop.permute.xlu0 %381
    %385 = vset.pattern.permute.xlu0 0
    %386 = vperm.xlu0 %385, %v171
    %v387 = vpop.permute.xlu0 %386
    %390 = vset.pattern.permute.xlu0 0
    %391 = vperm.xlu0 %390, %v172
    %v392 = vpop.permute.xlu0 %391
    %395 = vset.pattern.permute.xlu0 0
    %396 = vperm.xlu0 %395, %v173
    %v397 = vpop.permute.xlu0 %396
    %400 = vset.pattern.permute.xlu0 0
    %401 = vperm.xlu0 %400, %v174
    %v402 = vpop.permute.xlu0 %401
    %405 = vset.pattern.permute.xlu0 0
    %406 = vperm.xlu0 %405, %v175
    %v407 = vpop.permute.xlu0 %406
    %410 = vset.pattern.permute.xlu0 0
    %411 = vperm.xlu0 %410, %v176
    %v412 = vpop.permute.xlu0 %411
    %415 = vset.pattern.permute.xlu0 0
    %416 = vperm.xlu0 %415, %v177
    %v417 = vpop.permute.xlu0 %416
    %420 = vset.pattern.permute.xlu0 0
    %421 = vperm.xlu0 %420, %v178
    %v422 = vpop.permute.xlu0 %421
    %425 = vset.pattern.permute.xlu0 0
    %426 = vperm.xlu0 %425, %v179
    %v427 = vpop.permute.xlu0 %426
    %430 = vset.pattern.permute.xlu0 0
    %431 = vperm.xlu0 %430, %v180
    %v432 = vpop.permute.xlu0 %431
    %435 = vset.pattern.permute.xlu0 0
    %436 = vperm.xlu0 %435, %v181
    %v437 = vpop.permute.xlu0 %436
    %440 = vset.pattern.permute.xlu0 0
    %441 = vperm.xlu0 %440, %v182
    %v442 = vpop.permute.xlu0 %441
    %445 = vset.pattern.permute.xlu0 0
    %446 = vperm.xlu0 %445, %v183
    %v447 = vpop.permute.xlu0 %446
    %450 = vset.pattern.permute.xlu0 0
    %451 = vperm.xlu0 %450, %v184
    %v452 = vpop.permute.xlu0 %451
    %455 = vset.pattern.permute.xlu0 0
    %456 = vperm.xlu0 %455, %v185
    %v457 = vpop.permute.xlu0 %456
    %460 = vset.pattern.permute.xlu0 0
    %461 = vperm.xlu0 %460, %v186
    %v462 = vpop.permute.xlu0 %461
    %465 = vset.pattern.permute.xlu0 0
    %466 = vperm.xlu0 %465, %v187
    %v467 = vpop.permute.xlu0 %466
    %470 = vset.pattern.permute.xlu0 0
    %471 = vperm.xlu0 %470, %v188
    %v472 = vpop.permute.xlu0 %471
    %475 = vset.pattern.permute.xlu0 0
    %476 = vperm.xlu0 %475, %v189
    %v477 = vpop.permute.xlu0 %476
    %480 = vset.pattern.permute.xlu0 0
    %481 = vperm.xlu0 %480, %v190
    %v482 = vpop.permute.xlu0 %481
    %485 = vset.pattern.permute.xlu0 0
    %486 = vperm.xlu0 %485, %v191
    %v487 = vpop.permute.xlu0 %486
    %490 = vset.pattern.permute.xlu0 0
    %491 = vperm.xlu0 %490, %v192
    %v492 = vpop.permute.xlu0 %491
    %495 = vset.pattern.permute.xlu0 0
    %496 = vperm.xlu0 %495, %v193
    %v497 = vpop.permute.xlu0 %496
    %500 = vset.pattern.permute.xlu0 0
    %501 = vperm.xlu0 %500, %v194
    %v502 = vpop.permute.xlu0 %501
    %505 = vset.pattern.permute.xlu0 0
    %506 = vperm.xlu0 %505, %v195
    %v507 = vpop.permute.xlu0 %506
    %510 = vset.pattern.permute.xlu0 0
    %511 = vperm.xlu0 %510, %v196
    %v512 = vpop.permute.xlu0 %511
    %515 = vset.pattern.permute.xlu0 0
    %516 = vperm.xlu0 %515, %v197
    %v517 = vpop.permute.xlu0 %516
    %520 = vset.pattern.permute.xlu0 0
    %521 = vperm.xlu0 %520, %v198
    %v522 = vpop.permute.xlu0 %521
    %v528 = vlaneseq
    %v529 = vshrl.u32 %v528, 7
    %v530 = vsub.s32 0, %v529
    %v531 = vrot.slane %v199, %v530
    %v532 = vlaneseq
    %v533 = vshrl.u32 %v532, 7
    %v534 = vsub.s32 4, %v533
    %v535 = vrot.slane %v199, %v534
    %v536 = vlaneseq
    %v537 = vshrl.u32 %v536, 7
    %v538 = vsub.s32 0, %v537
    %v539 = vrot.slane %v200, %v538
    %v540 = vlaneseq
    %v541 = vshrl.u32 %v540, 7
    %v542 = vsub.s32 4, %v541
    %v543 = vrot.slane %v200, %v542
    %v544 = vlaneseq
    %v545 = vshrl.u32 %v544, 7
    %v546 = vsub.s32 0, %v545
    %v547 = vrot.slane %v201, %v546
    %v548 = vlaneseq
    %v549 = vshrl.u32 %v548, 7
    %v550 = vsub.s32 4, %v549
    %v551 = vrot.slane %v201, %v550
    %v552 = vlaneseq
    %v553 = vshrl.u32 %v552, 7
    %v554 = vsub.s32 0, %v553
    %v555 = vrot.slane %v202, %v554
    %v556 = vlaneseq
    %v557 = vshrl.u32 %v556, 7
    %v558 = vsub.s32 4, %v557
    %v559 = vrot.slane %v202, %v558
    %v568 = vlaneseq
    %v569 = vshrl.u32 %v568, 7
    %v570 = vsub.s32 0, %v569
    %v571 = vrot.slane %v531, %v570
    %v572 = vlaneseq
    %v573 = vshrl.u32 %v572, 7
    %v574 = vsub.s32 0, %v573
    %v575 = vrot.slane %v535, %v574
    %v576 = vlaneseq
    %v577 = vshrl.u32 %v576, 7
    %v578 = vsub.s32 0, %v577
    %v579 = vrot.slane %v539, %v578
    %v580 = vlaneseq
    %v581 = vshrl.u32 %v580, 7
    %v582 = vsub.s32 0, %v581
    %v583 = vrot.slane %v543, %v582
    %v584 = vlaneseq
    %v585 = vshrl.u32 %v584, 7
    %v586 = vsub.s32 0, %v585
    %v587 = vrot.slane %v547, %v586
    %v588 = vlaneseq
    %v589 = vshrl.u32 %v588, 7
    %v590 = vsub.s32 0, %v589
    %v591 = vrot.slane %v551, %v590
    %v592 = vlaneseq
    %v593 = vshrl.u32 %v592, 7
    %v594 = vsub.s32 0, %v593
    %v595 = vrot.slane %v555, %v594
    %v596 = vlaneseq
    %v597 = vshrl.u32 %v596, 7
    %v598 = vsub.s32 0, %v597
    %v599 = vrot.slane %v559, %v598
    %v600 = vmul.f32 %v207, %v571
    %v601 = vmul.f32 %v207, %v575
    %v602 = vmul.f32 %v207, %v579
    %v603 = vmul.f32 %v207, %v583
    %v604 = vmul.f32 %v207, %v587
    %v605 = vmul.f32 %v207, %v591
    %v606 = vmul.f32 %v207, %v595
    %v607 = vmul.f32 %v207, %v599
    %v608 = vmul.f32 %v212, %v571
    %v609 = vmul.f32 %v212, %v575
    %v610 = vmul.f32 %v212, %v579
    %v611 = vmul.f32 %v212, %v583
    %v612 = vmul.f32 %v212, %v587
    %v613 = vmul.f32 %v212, %v591
    %v614 = vmul.f32 %v212, %v595
    %v615 = vmul.f32 %v212, %v599
    %v616 = vmul.f32 %v217, %v571
    %v617 = vmul.f32 %v217, %v575
    %v618 = vmul.f32 %v217, %v579
    %v619 = vmul.f32 %v217, %v583
    %v620 = vmul.f32 %v217, %v587
    %v621 = vmul.f32 %v217, %v591
    %v622 = vmul.f32 %v217, %v595
    %v623 = vmul.f32 %v217, %v599
    %v624 = vmul.f32 %v222, %v571
    %v625 = vmul.f32 %v222, %v575
    %v626 = vmul.f32 %v222, %v579
    %v627 = vmul.f32 %v222, %v583
    %v628 = vmul.f32 %v222, %v587
    %v629 = vmul.f32 %v222, %v591
    %v630 = vmul.f32 %v222, %v595
    %v631 = vmul.f32 %v222, %v599
    %v632 = vmul.f32 %v227, %v571
    %v633 = vmul.f32 %v227, %v575
    %v634 = vmul.f32 %v227, %v579
    %v635 = vmul.f32 %v227, %v583
    %v636 = vmul.f32 %v227, %v587
    %v637 = vmul.f32 %v227, %v591
    %v638 = vmul.f32 %v227, %v595
    %v639 = vmul.f32 %v227, %v599
    %v640 = vmul.f32 %v232, %v571
    %v641 = vmul.f32 %v232, %v575
    %v642 = vmul.f32 %v232, %v579
    %v643 = vmul.f32 %v232, %v583
    %v644 = vmul.f32 %v232, %v587
    %v645 = vmul.f32 %v232, %v591
    %v646 = vmul.f32 %v232, %v595
    %v647 = vmul.f32 %v232, %v599
    %v648 = vmul.f32 %v237, %v571
    %v649 = vmul.f32 %v237, %v575
    %v650 = vmul.f32 %v237, %v579
    %v651 = vmul.f32 %v237, %v583
    %v652 = vmul.f32 %v237, %v587
    %v653 = vmul.f32 %v237, %v591
    %v654 = vmul.f32 %v237, %v595
    %v655 = vmul.f32 %v237, %v599
    %v656 = vmul.f32 %v242, %v571
    %v657 = vmul.f32 %v242, %v575
    %v658 = vmul.f32 %v242, %v579
    %v659 = vmul.f32 %v242, %v583
    %v660 = vmul.f32 %v242, %v587
    %v661 = vmul.f32 %v242, %v591
    %v662 = vmul.f32 %v242, %v595
    %v663 = vmul.f32 %v242, %v599
    %v664 = vmul.f32 %v247, %v571
    %v665 = vmul.f32 %v247, %v575
    %v666 = vmul.f32 %v247, %v579
    %v667 = vmul.f32 %v247, %v583
    %v668 = vmul.f32 %v247, %v587
    %v669 = vmul.f32 %v247, %v591
    %v670 = vmul.f32 %v247, %v595
    %v671 = vmul.f32 %v247, %v599
    %v672 = vmul.f32 %v252, %v571
    %v673 = vmul.f32 %v252, %v575
    %v674 = vmul.f32 %v252, %v579
    %v675 = vmul.f32 %v252, %v583
    %v676 = vmul.f32 %v252, %v587
    %v677 = vmul.f32 %v252, %v591
    %v678 = vmul.f32 %v252, %v595
    %v679 = vmul.f32 %v252, %v599
    %v680 = vmul.f32 %v257, %v571
    %v681 = vmul.f32 %v257, %v575
    %v682 = vmul.f32 %v257, %v579
    %v683 = vmul.f32 %v257, %v583
    %v684 = vmul.f32 %v257, %v587
    %v685 = vmul.f32 %v257, %v591
    %v686 = vmul.f32 %v257, %v595
    %v687 = vmul.f32 %v257, %v599
    %v688 = vmul.f32 %v262, %v571
    %v689 = vmul.f32 %v262, %v575
    %v690 = vmul.f32 %v262, %v579
    %v691 = vmul.f32 %v262, %v583
    %v692 = vmul.f32 %v262, %v587
    %v693 = vmul.f32 %v262, %v591
    %v694 = vmul.f32 %v262, %v595
    %v695 = vmul.f32 %v262, %v599
    %v696 = vmul.f32 %v267, %v571
    %v697 = vmul.f32 %v267, %v575
    %v698 = vmul.f32 %v267, %v579
    %v699 = vmul.f32 %v267, %v583
    %v700 = vmul.f32 %v267, %v587
    %v701 = vmul.f32 %v267, %v591
    %v702 = vmul.f32 %v267, %v595
    %v703 = vmul.f32 %v267, %v599
    %v704 = vmul.f32 %v272, %v571
    %v705 = vmul.f32 %v272, %v575
    %v706 = vmul.f32 %v272, %v579
    %v707 = vmul.f32 %v272, %v583
    %v708 = vmul.f32 %v272, %v587
    %v709 = vmul.f32 %v272, %v591
    %v710 = vmul.f32 %v272, %v595
    %v711 = vmul.f32 %v272, %v599
    %v712 = vmul.f32 %v277, %v571
    %v713 = vmul.f32 %v277, %v575
    %v714 = vmul.f32 %v277, %v579
    %v715 = vmul.f32 %v277, %v583
    %v716 = vmul.f32 %v277, %v587
    %v717 = vmul.f32 %v277, %v591
    %v718 = vmul.f32 %v277, %v595
    %v719 = vmul.f32 %v277, %v599
    %v720 = vmul.f32 %v282, %v571
    %v721 = vmul.f32 %v282, %v575
    %v722 = vmul.f32 %v282, %v579
    %v723 = vmul.f32 %v282, %v583
    %v724 = vmul.f32 %v282, %v587
    %v725 = vmul.f32 %v282, %v591
    %v726 = vmul.f32 %v282, %v595
    %v727 = vmul.f32 %v282, %v599
    %v728 = vmul.f32 %v287, %v571
    %v729 = vmul.f32 %v287, %v575
    %v730 = vmul.f32 %v287, %v579
    %v731 = vmul.f32 %v287, %v583
    %v732 = vmul.f32 %v287, %v587
    %v733 = vmul.f32 %v287, %v591
    %v734 = vmul.f32 %v287, %v595
    %v735 = vmul.f32 %v287, %v599
    %v736 = vmul.f32 %v292, %v571
    %v737 = vmul.f32 %v292, %v575
    %v738 = vmul.f32 %v292, %v579
    %v739 = vmul.f32 %v292, %v583
    %v740 = vmul.f32 %v292, %v587
    %v741 = vmul.f32 %v292, %v591
    %v742 = vmul.f32 %v292, %v595
    %v743 = vmul.f32 %v292, %v599
    %v744 = vmul.f32 %v297, %v571
    %v745 = vmul.f32 %v297, %v575
    %v746 = vmul.f32 %v297, %v579
    %v747 = vmul.f32 %v297, %v583
    %v748 = vmul.f32 %v297, %v587
    %v749 = vmul.f32 %v297, %v591
    %v750 = vmul.f32 %v297, %v595
    %v751 = vmul.f32 %v297, %v599
    %v752 = vmul.f32 %v302, %v571
    %v753 = vmul.f32 %v302, %v575
    %v754 = vmul.f32 %v302, %v579
    %v755 = vmul.f32 %v302, %v583
    %v756 = vmul.f32 %v302, %v587
    %v757 = vmul.f32 %v302, %v591
    %v758 = vmul.f32 %v302, %v595
    %v759 = vmul.f32 %v302, %v599
    %v760 = vmul.f32 %v307, %v571
    %v761 = vmul.f32 %v307, %v575
    %v762 = vmul.f32 %v307, %v579
    %v763 = vmul.f32 %v307, %v583
    %v764 = vmul.f32 %v307, %v587
    %v765 = vmul.f32 %v307, %v591
    %v766 = vmul.f32 %v307, %v595
    %v767 = vmul.f32 %v307, %v599
    %v768 = vmul.f32 %v312, %v571
    %v769 = vmul.f32 %v312, %v575
    %v770 = vmul.f32 %v312, %v579
    %v771 = vmul.f32 %v312, %v583
    %v772 = vmul.f32 %v312, %v587
    %v773 = vmul.f32 %v312, %v591
    %v774 = vmul.f32 %v312, %v595
    %v775 = vmul.f32 %v312, %v599
    %v776 = vmul.f32 %v317, %v571
    %v777 = vmul.f32 %v317, %v575
    %v778 = vmul.f32 %v317, %v579
    %v779 = vmul.f32 %v317, %v583
    %v780 = vmul.f32 %v317, %v587
    %v781 = vmul.f32 %v317, %v591
    %v782 = vmul.f32 %v317, %v595
    %v783 = vmul.f32 %v317, %v599
    %v784 = vmul.f32 %v322, %v571
    %v785 = vmul.f32 %v322, %v575
    %v786 = vmul.f32 %v322, %v579
    %v787 = vmul.f32 %v322, %v583
    %v788 = vmul.f32 %v322, %v587
    %v789 = vmul.f32 %v322, %v591
    %v790 = vmul.f32 %v322, %v595
    %v791 = vmul.f32 %v322, %v599
    %v792 = vmul.f32 %v327, %v571
    %v793 = vmul.f32 %v327, %v575
    %v794 = vmul.f32 %v327, %v579
    %v795 = vmul.f32 %v327, %v583
    %v796 = vmul.f32 %v327, %v587
    %v797 = vmul.f32 %v327, %v591
    %v798 = vmul.f32 %v327, %v595
    %v799 = vmul.f32 %v327, %v599
    %v800 = vmul.f32 %v332, %v571
    %v801 = vmul.f32 %v332, %v575
    %v802 = vmul.f32 %v332, %v579
    %v803 = vmul.f32 %v332, %v583
    %v804 = vmul.f32 %v332, %v587
    %v805 = vmul.f32 %v332, %v591
    %v806 = vmul.f32 %v332, %v595
    %v807 = vmul.f32 %v332, %v599
    %v808 = vmul.f32 %v337, %v571
    %v809 = vmul.f32 %v337, %v575
    %v810 = vmul.f32 %v337, %v579
    %v811 = vmul.f32 %v337, %v583
    %v812 = vmul.f32 %v337, %v587
    %v813 = vmul.f32 %v337, %v591
    %v814 = vmul.f32 %v337, %v595
    %v815 = vmul.f32 %v337, %v599
    %v816 = vmul.f32 %v342, %v571
    %v817 = vmul.f32 %v342, %v575
    %v818 = vmul.f32 %v342, %v579
    %v819 = vmul.f32 %v342, %v583
    %v820 = vmul.f32 %v342, %v587
    %v821 = vmul.f32 %v342, %v591
    %v822 = vmul.f32 %v342, %v595
    %v823 = vmul.f32 %v342, %v599
    %v824 = vmul.f32 %v347, %v571
    %v825 = vmul.f32 %v347, %v575
    %v826 = vmul.f32 %v347, %v579
    %v827 = vmul.f32 %v347, %v583
    %v828 = vmul.f32 %v347, %v587
    %v829 = vmul.f32 %v347, %v591
    %v830 = vmul.f32 %v347, %v595
    %v831 = vmul.f32 %v347, %v599
    %v832 = vmul.f32 %v352, %v571
    %v833 = vmul.f32 %v352, %v575
    %v834 = vmul.f32 %v352, %v579
    %v835 = vmul.f32 %v352, %v583
    %v836 = vmul.f32 %v352, %v587
    %v837 = vmul.f32 %v352, %v591
    %v838 = vmul.f32 %v352, %v595
    %v839 = vmul.f32 %v352, %v599
    %v840 = vmul.f32 %v357, %v571
    %v841 = vmul.f32 %v357, %v575
    %v842 = vmul.f32 %v357, %v579
    %v843 = vmul.f32 %v357, %v583
    %v844 = vmul.f32 %v357, %v587
    %v845 = vmul.f32 %v357, %v591
    %v846 = vmul.f32 %v357, %v595
    %v847 = vmul.f32 %v357, %v599
    %v848 = vmul.f32 %v362, %v571
    %v849 = vmul.f32 %v362, %v575
    %v850 = vmul.f32 %v362, %v579
    %v851 = vmul.f32 %v362, %v583
    %v852 = vmul.f32 %v362, %v587
    %v853 = vmul.f32 %v362, %v591
    %v854 = vmul.f32 %v362, %v595
    %v855 = vmul.f32 %v362, %v599
    %v856 = vmul.f32 %v367, %v571
    %v857 = vmul.f32 %v367, %v575
    %v858 = vmul.f32 %v367, %v579
    %v859 = vmul.f32 %v367, %v583
    %v860 = vmul.f32 %v367, %v587
    %v861 = vmul.f32 %v367, %v591
    %v862 = vmul.f32 %v367, %v595
    %v863 = vmul.f32 %v367, %v599
    %v864 = vmul.f32 %v372, %v571
    %v865 = vmul.f32 %v372, %v575
    %v866 = vmul.f32 %v372, %v579
    %v867 = vmul.f32 %v372, %v583
    %v868 = vmul.f32 %v372, %v587
    %v869 = vmul.f32 %v372, %v591
    %v870 = vmul.f32 %v372, %v595
    %v871 = vmul.f32 %v372, %v599
    %v872 = vmul.f32 %v377, %v571
    %v873 = vmul.f32 %v377, %v575
    %v874 = vmul.f32 %v377, %v579
    %v875 = vmul.f32 %v377, %v583
    %v876 = vmul.f32 %v377, %v587
    %v877 = vmul.f32 %v377, %v591
    %v878 = vmul.f32 %v377, %v595
    %v879 = vmul.f32 %v377, %v599
    %v880 = vmul.f32 %v382, %v571
    %v881 = vmul.f32 %v382, %v575
    %v882 = vmul.f32 %v382, %v579
    %v883 = vmul.f32 %v382, %v583
    %v884 = vmul.f32 %v382, %v587
    %v885 = vmul.f32 %v382, %v591
    %v886 = vmul.f32 %v382, %v595
    %v887 = vmul.f32 %v382, %v599
    %v888 = vmul.f32 %v387, %v571
    %v889 = vmul.f32 %v387, %v575
    %v890 = vmul.f32 %v387, %v579
    %v891 = vmul.f32 %v387, %v583
    %v892 = vmul.f32 %v387, %v587
    %v893 = vmul.f32 %v387, %v591
    %v894 = vmul.f32 %v387, %v595
    %v895 = vmul.f32 %v387, %v599
    %v896 = vmul.f32 %v392, %v571
    %v897 = vmul.f32 %v392, %v575
    %v898 = vmul.f32 %v392, %v579
    %v899 = vmul.f32 %v392, %v583
    %v900 = vmul.f32 %v392, %v587
    %v901 = vmul.f32 %v392, %v591
    %v902 = vmul.f32 %v392, %v595
    %v903 = vmul.f32 %v392, %v599
    %v904 = vmul.f32 %v397, %v571
    %v905 = vmul.f32 %v397, %v575
    %v906 = vmul.f32 %v397, %v579
    %v907 = vmul.f32 %v397, %v583
    %v908 = vmul.f32 %v397, %v587
    %v909 = vmul.f32 %v397, %v591
    %v910 = vmul.f32 %v397, %v595
    %v911 = vmul.f32 %v397, %v599
    %v912 = vmul.f32 %v402, %v571
    %v913 = vmul.f32 %v402, %v575
    %v914 = vmul.f32 %v402, %v579
    %v915 = vmul.f32 %v402, %v583
    %v916 = vmul.f32 %v402, %v587
    %v917 = vmul.f32 %v402, %v591
    %v918 = vmul.f32 %v402, %v595
    %v919 = vmul.f32 %v402, %v599
    %v920 = vmul.f32 %v407, %v571
    %v921 = vmul.f32 %v407, %v575
    %v922 = vmul.f32 %v407, %v579
    %v923 = vmul.f32 %v407, %v583
    %v924 = vmul.f32 %v407, %v587
    %v925 = vmul.f32 %v407, %v591
    %v926 = vmul.f32 %v407, %v595
    %v927 = vmul.f32 %v407, %v599
    %v928 = vmul.f32 %v412, %v571
    %v929 = vmul.f32 %v412, %v575
    %v930 = vmul.f32 %v412, %v579
    %v931 = vmul.f32 %v412, %v583
    %v932 = vmul.f32 %v412, %v587
    %v933 = vmul.f32 %v412, %v591
    %v934 = vmul.f32 %v412, %v595
    %v935 = vmul.f32 %v412, %v599
    %v936 = vmul.f32 %v417, %v571
    %v937 = vmul.f32 %v417, %v575
    %v938 = vmul.f32 %v417, %v579
    %v939 = vmul.f32 %v417, %v583
    %v940 = vmul.f32 %v417, %v587
    %v941 = vmul.f32 %v417, %v591
    %v942 = vmul.f32 %v417, %v595
    %v943 = vmul.f32 %v417, %v599
    %v944 = vmul.f32 %v422, %v571
    %v945 = vmul.f32 %v422, %v575
    %v946 = vmul.f32 %v422, %v579
    %v947 = vmul.f32 %v422, %v583
    %v948 = vmul.f32 %v422, %v587
    %v949 = vmul.f32 %v422, %v591
    %v950 = vmul.f32 %v422, %v595
    %v951 = vmul.f32 %v422, %v599
    %v952 = vmul.f32 %v427, %v571
    %v953 = vmul.f32 %v427, %v575
    %v954 = vmul.f32 %v427, %v579
    %v955 = vmul.f32 %v427, %v583
    %v956 = vmul.f32 %v427, %v587
    %v957 = vmul.f32 %v427, %v591
    %v958 = vmul.f32 %v427, %v595
    %v959 = vmul.f32 %v427, %v599
    %v960 = vmul.f32 %v432, %v571
    %v961 = vmul.f32 %v432, %v575
    %v962 = vmul.f32 %v432, %v579
    %v963 = vmul.f32 %v432, %v583
    %v964 = vmul.f32 %v432, %v587
    %v965 = vmul.f32 %v432, %v591
    %v966 = vmul.f32 %v432, %v595
    %v967 = vmul.f32 %v432, %v599
    %v968 = vmul.f32 %v437, %v571
    %v969 = vmul.f32 %v437, %v575
    %v970 = vmul.f32 %v437, %v579
    %v971 = vmul.f32 %v437, %v583
    %v972 = vmul.f32 %v437, %v587
    %v973 = vmul.f32 %v437, %v591
    %v974 = vmul.f32 %v437, %v595
    %v975 = vmul.f32 %v437, %v599
    %v976 = vmul.f32 %v442, %v571
    %v977 = vmul.f32 %v442, %v575
    %v978 = vmul.f32 %v442, %v579
    %v979 = vmul.f32 %v442, %v583
    %v980 = vmul.f32 %v442, %v587
    %v981 = vmul.f32 %v442, %v591
    %v982 = vmul.f32 %v442, %v595
    %v983 = vmul.f32 %v442, %v599
    %v984 = vmul.f32 %v447, %v571
    %v985 = vmul.f32 %v447, %v575
    %v986 = vmul.f32 %v447, %v579
    %v987 = vmul.f32 %v447, %v583
    %v988 = vmul.f32 %v447, %v587
    %v989 = vmul.f32 %v447, %v591
    %v990 = vmul.f32 %v447, %v595
    %v991 = vmul.f32 %v447, %v599
    %v992 = vmul.f32 %v452, %v571
    %v993 = vmul.f32 %v452, %v575
    %v994 = vmul.f32 %v452, %v579
    %v995 = vmul.f32 %v452, %v583
    %v996 = vmul.f32 %v452, %v587
    %v997 = vmul.f32 %v452, %v591
    %v998 = vmul.f32 %v452, %v595
    %v999 = vmul.f32 %v452, %v599
    %v1000 = vmul.f32 %v457, %v571
    %v1001 = vmul.f32 %v457, %v575
    %v1002 = vmul.f32 %v457, %v579
    %v1003 = vmul.f32 %v457, %v583
    %v1004 = vmul.f32 %v457, %v587
    %v1005 = vmul.f32 %v457, %v591
    %v1006 = vmul.f32 %v457, %v595
    %v1007 = vmul.f32 %v457, %v599
    %v1008 = vmul.f32 %v462, %v571
    %v1009 = vmul.f32 %v462, %v575
    %v1010 = vmul.f32 %v462, %v579
    %v1011 = vmul.f32 %v462, %v583
    %v1012 = vmul.f32 %v462, %v587
    %v1013 = vmul.f32 %v462, %v591
    %v1014 = vmul.f32 %v462, %v595
    %v1015 = vmul.f32 %v462, %v599
    %v1016 = vmul.f32 %v467, %v571
    %v1017 = vmul.f32 %v467, %v575
    %v1018 = vmul.f32 %v467, %v579
    %v1019 = vmul.f32 %v467, %v583
    %v1020 = vmul.f32 %v467, %v587
    %v1021 = vmul.f32 %v467, %v591
    %v1022 = vmul.f32 %v467, %v595
    %v1023 = vmul.f32 %v467, %v599
    %v1024 = vmul.f32 %v472, %v571
    %v1025 = vmul.f32 %v472, %v575
    %v1026 = vmul.f32 %v472, %v579
    %v1027 = vmul.f32 %v472, %v583
    %v1028 = vmul.f32 %v472, %v587
    %v1029 = vmul.f32 %v472, %v591
    %v1030 = vmul.f32 %v472, %v595
    %v1031 = vmul.f32 %v472, %v599
    %v1032 = vmul.f32 %v477, %v571
    %v1033 = vmul.f32 %v477, %v575
    %v1034 = vmul.f32 %v477, %v579
    %v1035 = vmul.f32 %v477, %v583
    %v1036 = vmul.f32 %v477, %v587
    %v1037 = vmul.f32 %v477, %v591
    %v1038 = vmul.f32 %v477, %v595
    %v1039 = vmul.f32 %v477, %v599
    %v1040 = vmul.f32 %v482, %v571
    %v1041 = vmul.f32 %v482, %v575
    %v1042 = vmul.f32 %v482, %v579
    %v1043 = vmul.f32 %v482, %v583
    %v1044 = vmul.f32 %v482, %v587
    %v1045 = vmul.f32 %v482, %v591
    %v1046 = vmul.f32 %v482, %v595
    %v1047 = vmul.f32 %v482, %v599
    %v1048 = vmul.f32 %v487, %v571
    %v1049 = vmul.f32 %v487, %v575
    %v1050 = vmul.f32 %v487, %v579
    %v1051 = vmul.f32 %v487, %v583
    %v1052 = vmul.f32 %v487, %v587
    %v1053 = vmul.f32 %v487, %v591
    %v1054 = vmul.f32 %v487, %v595
    %v1055 = vmul.f32 %v487, %v599
    %v1056 = vmul.f32 %v492, %v571
    %v1057 = vmul.f32 %v492, %v575
    %v1058 = vmul.f32 %v492, %v579
    %v1059 = vmul.f32 %v492, %v583
    %v1060 = vmul.f32 %v492, %v587
    %v1061 = vmul.f32 %v492, %v591
    %v1062 = vmul.f32 %v492, %v595
    %v1063 = vmul.f32 %v492, %v599
    %v1064 = vmul.f32 %v497, %v571
    %v1065 = vmul.f32 %v497, %v575
    %v1066 = vmul.f32 %v497, %v579
    %v1067 = vmul.f32 %v497, %v583
    %v1068 = vmul.f32 %v497, %v587
    %v1069 = vmul.f32 %v497, %v591
    %v1070 = vmul.f32 %v497, %v595
    %v1071 = vmul.f32 %v497, %v599
    %v1072 = vmul.f32 %v502, %v571
    %v1073 = vmul.f32 %v502, %v575
    %v1074 = vmul.f32 %v502, %v579
    %v1075 = vmul.f32 %v502, %v583
    %v1076 = vmul.f32 %v502, %v587
    %v1077 = vmul.f32 %v502, %v591
    %v1078 = vmul.f32 %v502, %v595
    %v1079 = vmul.f32 %v502, %v599
    %v1080 = vmul.f32 %v507, %v571
    %v1081 = vmul.f32 %v507, %v575
    %v1082 = vmul.f32 %v507, %v579
    %v1083 = vmul.f32 %v507, %v583
    %v1084 = vmul.f32 %v507, %v587
    %v1085 = vmul.f32 %v507, %v591
    %v1086 = vmul.f32 %v507, %v595
    %v1087 = vmul.f32 %v507, %v599
    %v1088 = vmul.f32 %v512, %v571
    %v1089 = vmul.f32 %v512, %v575
    %v1090 = vmul.f32 %v512, %v579
    %v1091 = vmul.f32 %v512, %v583
    %v1092 = vmul.f32 %v512, %v587
    %v1093 = vmul.f32 %v512, %v591
    %v1094 = vmul.f32 %v512, %v595
    %v1095 = vmul.f32 %v512, %v599
    %v1096 = vmul.f32 %v517, %v571
    %v1097 = vmul.f32 %v517, %v575
    %v1098 = vmul.f32 %v517, %v579
    %v1099 = vmul.f32 %v517, %v583
    %v1100 = vmul.f32 %v517, %v587
    %v1101 = vmul.f32 %v517, %v591
    %v1102 = vmul.f32 %v517, %v595
    %v1103 = vmul.f32 %v517, %v599
    %v1104 = vmul.f32 %v522, %v571
    %v1105 = vmul.f32 %v522, %v575
    %v1106 = vmul.f32 %v522, %v579
    %v1107 = vmul.f32 %v522, %v583
    %v1108 = vmul.f32 %v522, %v587
    %v1109 = vmul.f32 %v522, %v591
    %v1110 = vmul.f32 %v522, %v595
    %v1111 = vmul.f32 %v522, %v599
    %v1113 = vlaneseq
    %v1114 = vshrl.u32 %v1113, 7
    %v1115 = vsub.s32 0, %v1114
    %v1116 = vrot.slane %v203, %v1115
    %v1117 = vlaneseq
    %v1118 = vshrl.u32 %v1117, 7
    %v1119 = vsub.s32 1, %v1118
    %v1120 = vrot.slane %v203, %v1119
    %v1121 = vlaneseq
    %v1122 = vshrl.u32 %v1121, 7
    %v1123 = vsub.s32 2, %v1122
    %v1124 = vrot.slane %v203, %v1123
    %v1125 = vlaneseq
    %v1126 = vshrl.u32 %v1125, 7
    %v1127 = vsub.s32 3, %v1126
    %v1128 = vrot.slane %v203, %v1127
    %v1129 = vlaneseq
    %v1130 = vshrl.u32 %v1129, 7
    %v1131 = vsub.s32 4, %v1130
    %v1132 = vrot.slane %v203, %v1131
    %v1133 = vlaneseq
    %v1134 = vshrl.u32 %v1133, 7
    %v1135 = vsub.s32 5, %v1134
    %v1136 = vrot.slane %v203, %v1135
    %v1137 = vlaneseq
    %v1138 = vshrl.u32 %v1137, 7
    %v1139 = vsub.s32 6, %v1138
    %v1140 = vrot.slane %v203, %v1139
    %v1141 = vlaneseq
    %v1142 = vshrl.u32 %v1141, 7
    %v1143 = vsub.s32 7, %v1142
    %v1144 = vrot.slane %v203, %v1143
    %v1153 = vadd.f32 %v1116, %v600
    %v1154 = vadd.f32 %v1120, %v601
    %v1155 = vadd.f32 %v1124, %v602
    %v1156 = vadd.f32 %v1128, %v603
    %v1157 = vadd.f32 %v1132, %v604
    %v1158 = vadd.f32 %v1136, %v605
    %v1159 = vadd.f32 %v1140, %v606
    %v1160 = vadd.f32 %v1144, %v607
    %v1161 = vadd.f32 %v1116, %v608
    %v1162 = vadd.f32 %v1120, %v609
    %v1163 = vadd.f32 %v1124, %v610
    %v1164 = vadd.f32 %v1128, %v611
    %v1165 = vadd.f32 %v1132, %v612
    %v1166 = vadd.f32 %v1136, %v613
    %v1167 = vadd.f32 %v1140, %v614
    %v1168 = vadd.f32 %v1144, %v615
    %v1169 = vadd.f32 %v1116, %v616
    %v1170 = vadd.f32 %v1120, %v617
    %v1171 = vadd.f32 %v1124, %v618
    %v1172 = vadd.f32 %v1128, %v619
    %v1173 = vadd.f32 %v1132, %v620
    %v1174 = vadd.f32 %v1136, %v621
    %v1175 = vadd.f32 %v1140, %v622
    %v1176 = vadd.f32 %v1144, %v623
    %v1177 = vadd.f32 %v1116, %v624
    %v1178 = vadd.f32 %v1120, %v625
    %v1179 = vadd.f32 %v1124, %v626
    %v1180 = vadd.f32 %v1128, %v627
    %v1181 = vadd.f32 %v1132, %v628
    %v1182 = vadd.f32 %v1136, %v629
    %v1183 = vadd.f32 %v1140, %v630
    %v1184 = vadd.f32 %v1144, %v631
    %v1185 = vadd.f32 %v1116, %v632
    %v1186 = vadd.f32 %v1120, %v633
    %v1187 = vadd.f32 %v1124, %v634
    %v1188 = vadd.f32 %v1128, %v635
    %v1189 = vadd.f32 %v1132, %v636
    %v1190 = vadd.f32 %v1136, %v637
    %v1191 = vadd.f32 %v1140, %v638
    %v1192 = vadd.f32 %v1144, %v639
    %v1193 = vadd.f32 %v1116, %v640
    %v1194 = vadd.f32 %v1120, %v641
    %v1195 = vadd.f32 %v1124, %v642
    %v1196 = vadd.f32 %v1128, %v643
    %v1197 = vadd.f32 %v1132, %v644
    %v1198 = vadd.f32 %v1136, %v645
    %v1199 = vadd.f32 %v1140, %v646
    %v1200 = vadd.f32 %v1144, %v647
    %v1201 = vadd.f32 %v1116, %v648
    %v1202 = vadd.f32 %v1120, %v649
    %v1203 = vadd.f32 %v1124, %v650
    %v1204 = vadd.f32 %v1128, %v651
    %v1205 = vadd.f32 %v1132, %v652
    %v1206 = vadd.f32 %v1136, %v653
    %v1207 = vadd.f32 %v1140, %v654
    %v1208 = vadd.f32 %v1144, %v655
    %v1209 = vadd.f32 %v1116, %v656
    %v1210 = vadd.f32 %v1120, %v657
    %v1211 = vadd.f32 %v1124, %v658
    %v1212 = vadd.f32 %v1128, %v659
    %v1213 = vadd.f32 %v1132, %v660
    %v1214 = vadd.f32 %v1136, %v661
    %v1215 = vadd.f32 %v1140, %v662
    %v1216 = vadd.f32 %v1144, %v663
    %v1217 = vadd.f32 %v1116, %v664
    %v1218 = vadd.f32 %v1120, %v665
    %v1219 = vadd.f32 %v1124, %v666
    %v1220 = vadd.f32 %v1128, %v667
    %v1221 = vadd.f32 %v1132, %v668
    %v1222 = vadd.f32 %v1136, %v669
    %v1223 = vadd.f32 %v1140, %v670
    %v1224 = vadd.f32 %v1144, %v671
    %v1225 = vadd.f32 %v1116, %v672
    %v1226 = vadd.f32 %v1120, %v673
    %v1227 = vadd.f32 %v1124, %v674
    %v1228 = vadd.f32 %v1128, %v675
    %v1229 = vadd.f32 %v1132, %v676
    %v1230 = vadd.f32 %v1136, %v677
    %v1231 = vadd.f32 %v1140, %v678
    %v1232 = vadd.f32 %v1144, %v679
    %v1233 = vadd.f32 %v1116, %v680
    %v1234 = vadd.f32 %v1120, %v681
    %v1235 = vadd.f32 %v1124, %v682
    %v1236 = vadd.f32 %v1128, %v683
    %v1237 = vadd.f32 %v1132, %v684
    %v1238 = vadd.f32 %v1136, %v685
    %v1239 = vadd.f32 %v1140, %v686
    %v1240 = vadd.f32 %v1144, %v687
    %v1241 = vadd.f32 %v1116, %v688
    %v1242 = vadd.f32 %v1120, %v689
    %v1243 = vadd.f32 %v1124, %v690
    %v1244 = vadd.f32 %v1128, %v691
    %v1245 = vadd.f32 %v1132, %v692
    %v1246 = vadd.f32 %v1136, %v693
    %v1247 = vadd.f32 %v1140, %v694
    %v1248 = vadd.f32 %v1144, %v695
    %v1249 = vadd.f32 %v1116, %v696
    %v1250 = vadd.f32 %v1120, %v697
    %v1251 = vadd.f32 %v1124, %v698
    %v1252 = vadd.f32 %v1128, %v699
    %v1253 = vadd.f32 %v1132, %v700
    %v1254 = vadd.f32 %v1136, %v701
    %v1255 = vadd.f32 %v1140, %v702
    %v1256 = vadd.f32 %v1144, %v703
    %v1257 = vadd.f32 %v1116, %v704
    %v1258 = vadd.f32 %v1120, %v705
    %v1259 = vadd.f32 %v1124, %v706
    %v1260 = vadd.f32 %v1128, %v707
    %v1261 = vadd.f32 %v1132, %v708
    %v1262 = vadd.f32 %v1136, %v709
    %v1263 = vadd.f32 %v1140, %v710
    %v1264 = vadd.f32 %v1144, %v711
    %v1265 = vadd.f32 %v1116, %v712
    %v1266 = vadd.f32 %v1120, %v713
    %v1267 = vadd.f32 %v1124, %v714
    %v1268 = vadd.f32 %v1128, %v715
    %v1269 = vadd.f32 %v1132, %v716
    %v1270 = vadd.f32 %v1136, %v717
    %v1271 = vadd.f32 %v1140, %v718
    %v1272 = vadd.f32 %v1144, %v719
    %v1273 = vadd.f32 %v1116, %v720
    %v1274 = vadd.f32 %v1120, %v721
    %v1275 = vadd.f32 %v1124, %v722
    %v1276 = vadd.f32 %v1128, %v723
    %v1277 = vadd.f32 %v1132, %v724
    %v1278 = vadd.f32 %v1136, %v725
    %v1279 = vadd.f32 %v1140, %v726
    %v1280 = vadd.f32 %v1144, %v727
    %v1281 = vadd.f32 %v1116, %v728
    %v1282 = vadd.f32 %v1120, %v729
    %v1283 = vadd.f32 %v1124, %v730
    %v1284 = vadd.f32 %v1128, %v731
    %v1285 = vadd.f32 %v1132, %v732
    %v1286 = vadd.f32 %v1136, %v733
    %v1287 = vadd.f32 %v1140, %v734
    %v1288 = vadd.f32 %v1144, %v735
    %v1289 = vadd.f32 %v1116, %v736
    %v1290 = vadd.f32 %v1120, %v737
    %v1291 = vadd.f32 %v1124, %v738
    %v1292 = vadd.f32 %v1128, %v739
    %v1293 = vadd.f32 %v1132, %v740
    %v1294 = vadd.f32 %v1136, %v741
    %v1295 = vadd.f32 %v1140, %v742
    %v1296 = vadd.f32 %v1144, %v743
    %v1297 = vadd.f32 %v1116, %v744
    %v1298 = vadd.f32 %v1120, %v745
    %v1299 = vadd.f32 %v1124, %v746
    %v1300 = vadd.f32 %v1128, %v747
    %v1301 = vadd.f32 %v1132, %v748
    %v1302 = vadd.f32 %v1136, %v749
    %v1303 = vadd.f32 %v1140, %v750
    %v1304 = vadd.f32 %v1144, %v751
    %v1305 = vadd.f32 %v1116, %v752
    %v1306 = vadd.f32 %v1120, %v753
    %v1307 = vadd.f32 %v1124, %v754
    %v1308 = vadd.f32 %v1128, %v755
    %v1309 = vadd.f32 %v1132, %v756
    %v1310 = vadd.f32 %v1136, %v757
    %v1311 = vadd.f32 %v1140, %v758
    %v1312 = vadd.f32 %v1144, %v759
    %v1313 = vadd.f32 %v1116, %v760
    %v1314 = vadd.f32 %v1120, %v761
    %v1315 = vadd.f32 %v1124, %v762
    %v1316 = vadd.f32 %v1128, %v763
    %v1317 = vadd.f32 %v1132, %v764
    %v1318 = vadd.f32 %v1136, %v765
    %v1319 = vadd.f32 %v1140, %v766
    %v1320 = vadd.f32 %v1144, %v767
    %v1321 = vadd.f32 %v1116, %v768
    %v1322 = vadd.f32 %v1120, %v769
    %v1323 = vadd.f32 %v1124, %v770
    %v1324 = vadd.f32 %v1128, %v771
    %v1325 = vadd.f32 %v1132, %v772
    %v1326 = vadd.f32 %v1136, %v773
    %v1327 = vadd.f32 %v1140, %v774
    %v1328 = vadd.f32 %v1144, %v775
    %v1329 = vadd.f32 %v1116, %v776
    %v1330 = vadd.f32 %v1120, %v777
    %v1331 = vadd.f32 %v1124, %v778
    %v1332 = vadd.f32 %v1128, %v779
    %v1333 = vadd.f32 %v1132, %v780
    %v1334 = vadd.f32 %v1136, %v781
    %v1335 = vadd.f32 %v1140, %v782
    %v1336 = vadd.f32 %v1144, %v783
    %v1337 = vadd.f32 %v1116, %v784
    %v1338 = vadd.f32 %v1120, %v785
    %v1339 = vadd.f32 %v1124, %v786
    %v1340 = vadd.f32 %v1128, %v787
    %v1341 = vadd.f32 %v1132, %v788
    %v1342 = vadd.f32 %v1136, %v789
    %v1343 = vadd.f32 %v1140, %v790
    %v1344 = vadd.f32 %v1144, %v791
    %v1345 = vadd.f32 %v1116, %v792
    %v1346 = vadd.f32 %v1120, %v793
    %v1347 = vadd.f32 %v1124, %v794
    %v1348 = vadd.f32 %v1128, %v795
    %v1349 = vadd.f32 %v1132, %v796
    %v1350 = vadd.f32 %v1136, %v797
    %v1351 = vadd.f32 %v1140, %v798
    %v1352 = vadd.f32 %v1144, %v799
    %v1353 = vadd.f32 %v1116, %v800
    %v1354 = vadd.f32 %v1120, %v801
    %v1355 = vadd.f32 %v1124, %v802
    %v1356 = vadd.f32 %v1128, %v803
    %v1357 = vadd.f32 %v1132, %v804
    %v1358 = vadd.f32 %v1136, %v805
    %v1359 = vadd.f32 %v1140, %v806
    %v1360 = vadd.f32 %v1144, %v807
    %v1361 = vadd.f32 %v1116, %v808
    %v1362 = vadd.f32 %v1120, %v809
    %v1363 = vadd.f32 %v1124, %v810
    %v1364 = vadd.f32 %v1128, %v811
    %v1365 = vadd.f32 %v1132, %v812
    %v1366 = vadd.f32 %v1136, %v813
    %v1367 = vadd.f32 %v1140, %v814
    %v1368 = vadd.f32 %v1144, %v815
    %v1369 = vadd.f32 %v1116, %v816
    %v1370 = vadd.f32 %v1120, %v817
    %v1371 = vadd.f32 %v1124, %v818
    %v1372 = vadd.f32 %v1128, %v819
    %v1373 = vadd.f32 %v1132, %v820
    %v1374 = vadd.f32 %v1136, %v821
    %v1375 = vadd.f32 %v1140, %v822
    %v1376 = vadd.f32 %v1144, %v823
    %v1377 = vadd.f32 %v1116, %v824
    %v1378 = vadd.f32 %v1120, %v825
    %v1379 = vadd.f32 %v1124, %v826
    %v1380 = vadd.f32 %v1128, %v827
    %v1381 = vadd.f32 %v1132, %v828
    %v1382 = vadd.f32 %v1136, %v829
    %v1383 = vadd.f32 %v1140, %v830
    %v1384 = vadd.f32 %v1144, %v831
    %v1385 = vadd.f32 %v1116, %v832
    %v1386 = vadd.f32 %v1120, %v833
    %v1387 = vadd.f32 %v1124, %v834
    %v1388 = vadd.f32 %v1128, %v835
    %v1389 = vadd.f32 %v1132, %v836
    %v1390 = vadd.f32 %v1136, %v837
    %v1391 = vadd.f32 %v1140, %v838
    %v1392 = vadd.f32 %v1144, %v839
    %v1393 = vadd.f32 %v1116, %v840
    %v1394 = vadd.f32 %v1120, %v841
    %v1395 = vadd.f32 %v1124, %v842
    %v1396 = vadd.f32 %v1128, %v843
    %v1397 = vadd.f32 %v1132, %v844
    %v1398 = vadd.f32 %v1136, %v845
    %v1399 = vadd.f32 %v1140, %v846
    %v1400 = vadd.f32 %v1144, %v847
    %v1401 = vadd.f32 %v1116, %v848
    %v1402 = vadd.f32 %v1120, %v849
    %v1403 = vadd.f32 %v1124, %v850
    %v1404 = vadd.f32 %v1128, %v851
    %v1405 = vadd.f32 %v1132, %v852
    %v1406 = vadd.f32 %v1136, %v853
    %v1407 = vadd.f32 %v1140, %v854
    %v1408 = vadd.f32 %v1144, %v855
    %v1409 = vadd.f32 %v1116, %v856
    %v1410 = vadd.f32 %v1120, %v857
    %v1411 = vadd.f32 %v1124, %v858
    %v1412 = vadd.f32 %v1128, %v859
    %v1413 = vadd.f32 %v1132, %v860
    %v1414 = vadd.f32 %v1136, %v861
    %v1415 = vadd.f32 %v1140, %v862
    %v1416 = vadd.f32 %v1144, %v863
    %v1417 = vadd.f32 %v1116, %v864
    %v1418 = vadd.f32 %v1120, %v865
    %v1419 = vadd.f32 %v1124, %v866
    %v1420 = vadd.f32 %v1128, %v867
    %v1421 = vadd.f32 %v1132, %v868
    %v1422 = vadd.f32 %v1136, %v869
    %v1423 = vadd.f32 %v1140, %v870
    %v1424 = vadd.f32 %v1144, %v871
    %v1425 = vadd.f32 %v1116, %v872
    %v1426 = vadd.f32 %v1120, %v873
    %v1427 = vadd.f32 %v1124, %v874
    %v1428 = vadd.f32 %v1128, %v875
    %v1429 = vadd.f32 %v1132, %v876
    %v1430 = vadd.f32 %v1136, %v877
    %v1431 = vadd.f32 %v1140, %v878
    %v1432 = vadd.f32 %v1144, %v879
    %v1433 = vadd.f32 %v1116, %v880
    %v1434 = vadd.f32 %v1120, %v881
    %v1435 = vadd.f32 %v1124, %v882
    %v1436 = vadd.f32 %v1128, %v883
    %v1437 = vadd.f32 %v1132, %v884
    %v1438 = vadd.f32 %v1136, %v885
    %v1439 = vadd.f32 %v1140, %v886
    %v1440 = vadd.f32 %v1144, %v887
    %v1441 = vadd.f32 %v1116, %v888
    %v1442 = vadd.f32 %v1120, %v889
    %v1443 = vadd.f32 %v1124, %v890
    %v1444 = vadd.f32 %v1128, %v891
    %v1445 = vadd.f32 %v1132, %v892
    %v1446 = vadd.f32 %v1136, %v893
    %v1447 = vadd.f32 %v1140, %v894
    %v1448 = vadd.f32 %v1144, %v895
    %v1449 = vadd.f32 %v1116, %v896
    %v1450 = vadd.f32 %v1120, %v897
    %v1451 = vadd.f32 %v1124, %v898
    %v1452 = vadd.f32 %v1128, %v899
    %v1453 = vadd.f32 %v1132, %v900
    %v1454 = vadd.f32 %v1136, %v901
    %v1455 = vadd.f32 %v1140, %v902
    %v1456 = vadd.f32 %v1144, %v903
    %v1457 = vadd.f32 %v1116, %v904
    %v1458 = vadd.f32 %v1120, %v905
    %v1459 = vadd.f32 %v1124, %v906
    %v1460 = vadd.f32 %v1128, %v907
    %v1461 = vadd.f32 %v1132, %v908
    %v1462 = vadd.f32 %v1136, %v909
    %v1463 = vadd.f32 %v1140, %v910
    %v1464 = vadd.f32 %v1144, %v911
    %v1465 = vadd.f32 %v1116, %v912
    %v1466 = vadd.f32 %v1120, %v913
    %v1467 = vadd.f32 %v1124, %v914
    %v1468 = vadd.f32 %v1128, %v915
    %v1469 = vadd.f32 %v1132, %v916
    %v1470 = vadd.f32 %v1136, %v917
    %v1471 = vadd.f32 %v1140, %v918
    %v1472 = vadd.f32 %v1144, %v919
    %v1473 = vadd.f32 %v1116, %v920
    %v1474 = vadd.f32 %v1120, %v921
    %v1475 = vadd.f32 %v1124, %v922
    %v1476 = vadd.f32 %v1128, %v923
    %v1477 = vadd.f32 %v1132, %v924
    %v1478 = vadd.f32 %v1136, %v925
    %v1479 = vadd.f32 %v1140, %v926
    %v1480 = vadd.f32 %v1144, %v927
    %v1481 = vadd.f32 %v1116, %v928
    %v1482 = vadd.f32 %v1120, %v929
    %v1483 = vadd.f32 %v1124, %v930
    %v1484 = vadd.f32 %v1128, %v931
    %v1485 = vadd.f32 %v1132, %v932
    %v1486 = vadd.f32 %v1136, %v933
    %v1487 = vadd.f32 %v1140, %v934
    %v1488 = vadd.f32 %v1144, %v935
    %v1489 = vadd.f32 %v1116, %v936
    %v1490 = vadd.f32 %v1120, %v937
    %v1491 = vadd.f32 %v1124, %v938
    %v1492 = vadd.f32 %v1128, %v939
    %v1493 = vadd.f32 %v1132, %v940
    %v1494 = vadd.f32 %v1136, %v941
    %v1495 = vadd.f32 %v1140, %v942
    %v1496 = vadd.f32 %v1144, %v943
    %v1497 = vadd.f32 %v1116, %v944
    %v1498 = vadd.f32 %v1120, %v945
    %v1499 = vadd.f32 %v1124, %v946
    %v1500 = vadd.f32 %v1128, %v947
    %v1501 = vadd.f32 %v1132, %v948
    %v1502 = vadd.f32 %v1136, %v949
    %v1503 = vadd.f32 %v1140, %v950
    %v1504 = vadd.f32 %v1144, %v951
    %v1505 = vadd.f32 %v1116, %v952
    %v1506 = vadd.f32 %v1120, %v953
    %v1507 = vadd.f32 %v1124, %v954
    %v1508 = vadd.f32 %v1128, %v955
    %v1509 = vadd.f32 %v1132, %v956
    %v1510 = vadd.f32 %v1136, %v957
    %v1511 = vadd.f32 %v1140, %v958
    %v1512 = vadd.f32 %v1144, %v959
    %v1513 = vadd.f32 %v1116, %v960
    %v1514 = vadd.f32 %v1120, %v961
    %v1515 = vadd.f32 %v1124, %v962
    %v1516 = vadd.f32 %v1128, %v963
    %v1517 = vadd.f32 %v1132, %v964
    %v1518 = vadd.f32 %v1136, %v965
    %v1519 = vadd.f32 %v1140, %v966
    %v1520 = vadd.f32 %v1144, %v967
    %v1521 = vadd.f32 %v1116, %v968
    %v1522 = vadd.f32 %v1120, %v969
    %v1523 = vadd.f32 %v1124, %v970
    %v1524 = vadd.f32 %v1128, %v971
    %v1525 = vadd.f32 %v1132, %v972
    %v1526 = vadd.f32 %v1136, %v973
    %v1527 = vadd.f32 %v1140, %v974
    %v1528 = vadd.f32 %v1144, %v975
    %v1529 = vadd.f32 %v1116, %v976
    %v1530 = vadd.f32 %v1120, %v977
    %v1531 = vadd.f32 %v1124, %v978
    %v1532 = vadd.f32 %v1128, %v979
    %v1533 = vadd.f32 %v1132, %v980
    %v1534 = vadd.f32 %v1136, %v981
    %v1535 = vadd.f32 %v1140, %v982
    %v1536 = vadd.f32 %v1144, %v983
    %v1537 = vadd.f32 %v1116, %v984
    %v1538 = vadd.f32 %v1120, %v985
    %v1539 = vadd.f32 %v1124, %v986
    %v1540 = vadd.f32 %v1128, %v987
    %v1541 = vadd.f32 %v1132, %v988
    %v1542 = vadd.f32 %v1136, %v989
    %v1543 = vadd.f32 %v1140, %v990
    %v1544 = vadd.f32 %v1144, %v991
    %v1545 = vadd.f32 %v1116, %v992
    %v1546 = vadd.f32 %v1120, %v993
    %v1547 = vadd.f32 %v1124, %v994
    %v1548 = vadd.f32 %v1128, %v995
    %v1549 = vadd.f32 %v1132, %v996
    %v1550 = vadd.f32 %v1136, %v997
    %v1551 = vadd.f32 %v1140, %v998
    %v1552 = vadd.f32 %v1144, %v999
    %v1553 = vadd.f32 %v1116, %v1000
    %v1554 = vadd.f32 %v1120, %v1001
    %v1555 = vadd.f32 %v1124, %v1002
    %v1556 = vadd.f32 %v1128, %v1003
    %v1557 = vadd.f32 %v1132, %v1004
    %v1558 = vadd.f32 %v1136, %v1005
    %v1559 = vadd.f32 %v1140, %v1006
    %v1560 = vadd.f32 %v1144, %v1007
    %v1561 = vadd.f32 %v1116, %v1008
    %v1562 = vadd.f32 %v1120, %v1009
    %v1563 = vadd.f32 %v1124, %v1010
    %v1564 = vadd.f32 %v1128, %v1011
    %v1565 = vadd.f32 %v1132, %v1012
    %v1566 = vadd.f32 %v1136, %v1013
    %v1567 = vadd.f32 %v1140, %v1014
    %v1568 = vadd.f32 %v1144, %v1015
    %v1569 = vadd.f32 %v1116, %v1016
    %v1570 = vadd.f32 %v1120, %v1017
    %v1571 = vadd.f32 %v1124, %v1018
    %v1572 = vadd.f32 %v1128, %v1019
    %v1573 = vadd.f32 %v1132, %v1020
    %v1574 = vadd.f32 %v1136, %v1021
    %v1575 = vadd.f32 %v1140, %v1022
    %v1576 = vadd.f32 %v1144, %v1023
    %v1577 = vadd.f32 %v1116, %v1024
    %v1578 = vadd.f32 %v1120, %v1025
    %v1579 = vadd.f32 %v1124, %v1026
    %v1580 = vadd.f32 %v1128, %v1027
    %v1581 = vadd.f32 %v1132, %v1028
    %v1582 = vadd.f32 %v1136, %v1029
    %v1583 = vadd.f32 %v1140, %v1030
    %v1584 = vadd.f32 %v1144, %v1031
    %v1585 = vadd.f32 %v1116, %v1032
    %v1586 = vadd.f32 %v1120, %v1033
    %v1587 = vadd.f32 %v1124, %v1034
    %v1588 = vadd.f32 %v1128, %v1035
    %v1589 = vadd.f32 %v1132, %v1036
    %v1590 = vadd.f32 %v1136, %v1037
    %v1591 = vadd.f32 %v1140, %v1038
    %v1592 = vadd.f32 %v1144, %v1039
    %v1593 = vadd.f32 %v1116, %v1040
    %v1594 = vadd.f32 %v1120, %v1041
    %v1595 = vadd.f32 %v1124, %v1042
    %v1596 = vadd.f32 %v1128, %v1043
    %v1597 = vadd.f32 %v1132, %v1044
    %v1598 = vadd.f32 %v1136, %v1045
    %v1599 = vadd.f32 %v1140, %v1046
    %v1600 = vadd.f32 %v1144, %v1047
    %v1601 = vadd.f32 %v1116, %v1048
    %v1602 = vadd.f32 %v1120, %v1049
    %v1603 = vadd.f32 %v1124, %v1050
    %v1604 = vadd.f32 %v1128, %v1051
    %v1605 = vadd.f32 %v1132, %v1052
    %v1606 = vadd.f32 %v1136, %v1053
    %v1607 = vadd.f32 %v1140, %v1054
    %v1608 = vadd.f32 %v1144, %v1055
    %v1609 = vadd.f32 %v1116, %v1056
    %v1610 = vadd.f32 %v1120, %v1057
    %v1611 = vadd.f32 %v1124, %v1058
    %v1612 = vadd.f32 %v1128, %v1059
    %v1613 = vadd.f32 %v1132, %v1060
    %v1614 = vadd.f32 %v1136, %v1061
    %v1615 = vadd.f32 %v1140, %v1062
    %v1616 = vadd.f32 %v1144, %v1063
    %v1617 = vadd.f32 %v1116, %v1064
    %v1618 = vadd.f32 %v1120, %v1065
    %v1619 = vadd.f32 %v1124, %v1066
    %v1620 = vadd.f32 %v1128, %v1067
    %v1621 = vadd.f32 %v1132, %v1068
    %v1622 = vadd.f32 %v1136, %v1069
    %v1623 = vadd.f32 %v1140, %v1070
    %v1624 = vadd.f32 %v1144, %v1071
    %v1625 = vadd.f32 %v1116, %v1072
    %v1626 = vadd.f32 %v1120, %v1073
    %v1627 = vadd.f32 %v1124, %v1074
    %v1628 = vadd.f32 %v1128, %v1075
    %v1629 = vadd.f32 %v1132, %v1076
    %v1630 = vadd.f32 %v1136, %v1077
    %v1631 = vadd.f32 %v1140, %v1078
    %v1632 = vadd.f32 %v1144, %v1079
    %v1633 = vadd.f32 %v1116, %v1080
    %v1634 = vadd.f32 %v1120, %v1081
    %v1635 = vadd.f32 %v1124, %v1082
    %v1636 = vadd.f32 %v1128, %v1083
    %v1637 = vadd.f32 %v1132, %v1084
    %v1638 = vadd.f32 %v1136, %v1085
    %v1639 = vadd.f32 %v1140, %v1086
    %v1640 = vadd.f32 %v1144, %v1087
    %v1641 = vadd.f32 %v1116, %v1088
    %v1642 = vadd.f32 %v1120, %v1089
    %v1643 = vadd.f32 %v1124, %v1090
    %v1644 = vadd.f32 %v1128, %v1091
    %v1645 = vadd.f32 %v1132, %v1092
    %v1646 = vadd.f32 %v1136, %v1093
    %v1647 = vadd.f32 %v1140, %v1094
    %v1648 = vadd.f32 %v1144, %v1095
    %v1649 = vadd.f32 %v1116, %v1096
    %v1650 = vadd.f32 %v1120, %v1097
    %v1651 = vadd.f32 %v1124, %v1098
    %v1652 = vadd.f32 %v1128, %v1099
    %v1653 = vadd.f32 %v1132, %v1100
    %v1654 = vadd.f32 %v1136, %v1101
    %v1655 = vadd.f32 %v1140, %v1102
    %v1656 = vadd.f32 %v1144, %v1103
    %v1657 = vadd.f32 %v1116, %v1104
    %v1658 = vadd.f32 %v1120, %v1105
    %v1659 = vadd.f32 %v1124, %v1106
    %v1660 = vadd.f32 %v1128, %v1107
    %v1661 = vadd.f32 %v1132, %v1108
    %v1662 = vadd.f32 %v1136, %v1109
    %v1663 = vadd.f32 %v1140, %v1110
    %v1664 = vadd.f32 %v1144, %v1111
    %1665 = vset.pattern.permute.xlu0 1
    %1666 = vperm.xlu0 %1665, %v135
    %v1667 = vpop.permute.xlu0 %1666
    %1669 = vset.pattern.permute.xlu0 1
    %1670 = vperm.xlu0 %1669, %v136
    %v1671 = vpop.permute.xlu0 %1670
    %1673 = vset.pattern.permute.xlu0 1
    %1674 = vperm.xlu0 %1673, %v137
    %v1675 = vpop.permute.xlu0 %1674
    %1677 = vset.pattern.permute.xlu0 1
    %1678 = vperm.xlu0 %1677, %v138
    %v1679 = vpop.permute.xlu0 %1678
    %1681 = vset.pattern.permute.xlu0 1
    %1682 = vperm.xlu0 %1681, %v139
    %v1683 = vpop.permute.xlu0 %1682
    %1685 = vset.pattern.permute.xlu0 1
    %1686 = vperm.xlu0 %1685, %v140
    %v1687 = vpop.permute.xlu0 %1686
    %1689 = vset.pattern.permute.xlu0 1
    %1690 = vperm.xlu0 %1689, %v141
    %v1691 = vpop.permute.xlu0 %1690
    %1693 = vset.pattern.permute.xlu0 1
    %1694 = vperm.xlu0 %1693, %v142
    %v1695 = vpop.permute.xlu0 %1694
    %1697 = vset.pattern.permute.xlu0 1
    %1698 = vperm.xlu0 %1697, %v143
    %v1699 = vpop.permute.xlu0 %1698
    %1701 = vset.pattern.permute.xlu0 1
    %1702 = vperm.xlu0 %1701, %v144
    %v1703 = vpop.permute.xlu0 %1702
    %1705 = vset.pattern.permute.xlu0 1
    %1706 = vperm.xlu0 %1705, %v145
    %v1707 = vpop.permute.xlu0 %1706
    %1709 = vset.pattern.permute.xlu0 1
    %1710 = vperm.xlu0 %1709, %v146
    %v1711 = vpop.permute.xlu0 %1710
    %1713 = vset.pattern.permute.xlu0 1
    %1714 = vperm.xlu0 %1713, %v147
    %v1715 = vpop.permute.xlu0 %1714
    %1717 = vset.pattern.permute.xlu0 1
    %1718 = vperm.xlu0 %1717, %v148
    %v1719 = vpop.permute.xlu0 %1718
    %1721 = vset.pattern.permute.xlu0 1
    %1722 = vperm.xlu0 %1721, %v149
    %v1723 = vpop.permute.xlu0 %1722
    %1725 = vset.pattern.permute.xlu0 1
    %1726 = vperm.xlu0 %1725, %v150
    %v1727 = vpop.permute.xlu0 %1726
    %1729 = vset.pattern.permute.xlu0 1
    %1730 = vperm.xlu0 %1729, %v151
    %v1731 = vpop.permute.xlu0 %1730
    %1733 = vset.pattern.permute.xlu0 1
    %1734 = vperm.xlu0 %1733, %v152
    %v1735 = vpop.permute.xlu0 %1734
    %1737 = vset.pattern.permute.xlu0 1
    %1738 = vperm.xlu0 %1737, %v153
    %v1739 = vpop.permute.xlu0 %1738
    %1741 = vset.pattern.permute.xlu0 1
    %1742 = vperm.xlu0 %1741, %v154
    %v1743 = vpop.permute.xlu0 %1742
    %1745 = vset.pattern.permute.xlu0 1
    %1746 = vperm.xlu0 %1745, %v155
    %v1747 = vpop.permute.xlu0 %1746
    %1749 = vset.pattern.permute.xlu0 1
    %1750 = vperm.xlu0 %1749, %v156
    %v1751 = vpop.permute.xlu0 %1750
    %1753 = vset.pattern.permute.xlu0 1
    %1754 = vperm.xlu0 %1753, %v157
    %v1755 = vpop.permute.xlu0 %1754
    %1757 = vset.pattern.permute.xlu0 1
    %1758 = vperm.xlu0 %1757, %v158
    %v1759 = vpop.permute.xlu0 %1758
    %1761 = vset.pattern.permute.xlu0 1
    %1762 = vperm.xlu0 %1761, %v159
    %v1763 = vpop.permute.xlu0 %1762
    %1765 = vset.pattern.permute.xlu0 1
    %1766 = vperm.xlu0 %1765, %v160
    %v1767 = vpop.permute.xlu0 %1766
    %1769 = vset.pattern.permute.xlu0 1
    %1770 = vperm.xlu0 %1769, %v161
    %v1771 = vpop.permute.xlu0 %1770
    %1773 = vset.pattern.permute.xlu0 1
    %1774 = vperm.xlu0 %1773, %v162
    %v1775 = vpop.permute.xlu0 %1774
    %1777 = vset.pattern.permute.xlu0 1
    %1778 = vperm.xlu0 %1777, %v163
    %v1779 = vpop.permute.xlu0 %1778
    %1781 = vset.pattern.permute.xlu0 1
    %1782 = vperm.xlu0 %1781, %v164
    %v1783 = vpop.permute.xlu0 %1782
    %1785 = vset.pattern.permute.xlu0 1
    %1786 = vperm.xlu0 %1785, %v165
    %v1787 = vpop.permute.xlu0 %1786
    %1789 = vset.pattern.permute.xlu0 1
    %1790 = vperm.xlu0 %1789, %v166
    %v1791 = vpop.permute.xlu0 %1790
    %1793 = vset.pattern.permute.xlu0 1
    %1794 = vperm.xlu0 %1793, %v167
    %v1795 = vpop.permute.xlu0 %1794
    %1797 = vset.pattern.permute.xlu0 1
    %1798 = vperm.xlu0 %1797, %v168
    %v1799 = vpop.permute.xlu0 %1798
    %1801 = vset.pattern.permute.xlu0 1
    %1802 = vperm.xlu0 %1801, %v169
    %v1803 = vpop.permute.xlu0 %1802
    %1805 = vset.pattern.permute.xlu0 1
    %1806 = vperm.xlu0 %1805, %v170
    %v1807 = vpop.permute.xlu0 %1806
    %1809 = vset.pattern.permute.xlu0 1
    %1810 = vperm.xlu0 %1809, %v171
    %v1811 = vpop.permute.xlu0 %1810
    %1813 = vset.pattern.permute.xlu0 1
    %1814 = vperm.xlu0 %1813, %v172
    %v1815 = vpop.permute.xlu0 %1814
    %1817 = vset.pattern.permute.xlu0 1
    %1818 = vperm.xlu0 %1817, %v173
    %v1819 = vpop.permute.xlu0 %1818
    %1821 = vset.pattern.permute.xlu0 1
    %1822 = vperm.xlu0 %1821, %v174
    %v1823 = vpop.permute.xlu0 %1822
    %1825 = vset.pattern.permute.xlu0 1
    %1826 = vperm.xlu0 %1825, %v175
    %v1827 = vpop.permute.xlu0 %1826
    %1829 = vset.pattern.permute.xlu0 1
    %1830 = vperm.xlu0 %1829, %v176
    %v1831 = vpop.permute.xlu0 %1830
    %1833 = vset.pattern.permute.xlu0 1
    %1834 = vperm.xlu0 %1833, %v177
    %v1835 = vpop.permute.xlu0 %1834
    %1837 = vset.pattern.permute.xlu0 1
    %1838 = vperm.xlu0 %1837, %v178
    %v1839 = vpop.permute.xlu0 %1838
    %1841 = vset.pattern.permute.xlu0 1
    %1842 = vperm.xlu0 %1841, %v179
    %v1843 = vpop.permute.xlu0 %1842
    %1845 = vset.pattern.permute.xlu0 1
    %1846 = vperm.xlu0 %1845, %v180
    %v1847 = vpop.permute.xlu0 %1846
    %1849 = vset.pattern.permute.xlu0 1
    %1850 = vperm.xlu0 %1849, %v181
    %v1851 = vpop.permute.xlu0 %1850
    %1853 = vset.pattern.permute.xlu0 1
    %1854 = vperm.xlu0 %1853, %v182
    %v1855 = vpop.permute.xlu0 %1854
    %1857 = vset.pattern.permute.xlu0 1
    %1858 = vperm.xlu0 %1857, %v183
    %v1859 = vpop.permute.xlu0 %1858
    %1861 = vset.pattern.permute.xlu0 1
    %1862 = vperm.xlu0 %1861, %v184
    %v1863 = vpop.permute.xlu0 %1862
    %1865 = vset.pattern.permute.xlu0 1
    %1866 = vperm.xlu0 %1865, %v185
    %v1867 = vpop.permute.xlu0 %1866
    %1869 = vset.pattern.permute.xlu0 1
    %1870 = vperm.xlu0 %1869, %v186
    %v1871 = vpop.permute.xlu0 %1870
    %1873 = vset.pattern.permute.xlu0 1
    %1874 = vperm.xlu0 %1873, %v187
    %v1875 = vpop.permute.xlu0 %1874
    %1877 = vset.pattern.permute.xlu0 1
    %1878 = vperm.xlu0 %1877, %v188
    %v1879 = vpop.permute.xlu0 %1878
    %1881 = vset.pattern.permute.xlu0 1
    %1882 = vperm.xlu0 %1881, %v189
    %v1883 = vpop.permute.xlu0 %1882
    %1885 = vset.pattern.permute.xlu0 1
    %1886 = vperm.xlu0 %1885, %v190
    %v1887 = vpop.permute.xlu0 %1886
    %1889 = vset.pattern.permute.xlu0 1
    %1890 = vperm.xlu0 %1889, %v191
    %v1891 = vpop.permute.xlu0 %1890
    %1893 = vset.pattern.permute.xlu0 1
    %1894 = vperm.xlu0 %1893, %v192
    %v1895 = vpop.permute.xlu0 %1894
    %1897 = vset.pattern.permute.xlu0 1
    %1898 = vperm.xlu0 %1897, %v193
    %v1899 = vpop.permute.xlu0 %1898
    %1901 = vset.pattern.permute.xlu0 1
    %1902 = vperm.xlu0 %1901, %v194
    %v1903 = vpop.permute.xlu0 %1902
    %1905 = vset.pattern.permute.xlu0 1
    %1906 = vperm.xlu0 %1905, %v195
    %v1907 = vpop.permute.xlu0 %1906
    %1909 = vset.pattern.permute.xlu0 1
    %1910 = vperm.xlu0 %1909, %v196
    %v1911 = vpop.permute.xlu0 %1910
    %1913 = vset.pattern.permute.xlu0 1
    %1914 = vperm.xlu0 %1913, %v197
    %v1915 = vpop.permute.xlu0 %1914
    %1917 = vset.pattern.permute.xlu0 1
    %1918 = vperm.xlu0 %1917, %v198
    %v1919 = vpop.permute.xlu0 %1918
    %v1921 = vlaneseq
    %v1922 = vshrl.u32 %v1921, 7
    %v1923 = vsub.s32 1, %v1922
    %v1924 = vrot.slane %v199, %v1923
    %v1925 = vlaneseq
    %v1926 = vshrl.u32 %v1925, 7
    %v1927 = vsub.s32 5, %v1926
    %v1928 = vrot.slane %v199, %v1927
    %v1929 = vlaneseq
    %v1930 = vshrl.u32 %v1929, 7
    %v1931 = vsub.s32 1, %v1930
    %v1932 = vrot.slane %v200, %v1931
    %v1933 = vlaneseq
    %v1934 = vshrl.u32 %v1933, 7
    %v1935 = vsub.s32 5, %v1934
    %v1936 = vrot.slane %v200, %v1935
    %v1937 = vlaneseq
    %v1938 = vshrl.u32 %v1937, 7
    %v1939 = vsub.s32 1, %v1938
    %v1940 = vrot.slane %v201, %v1939
    %v1941 = vlaneseq
    %v1942 = vshrl.u32 %v1941, 7
    %v1943 = vsub.s32 5, %v1942
    %v1944 = vrot.slane %v201, %v1943
    %v1945 = vlaneseq
    %v1946 = vshrl.u32 %v1945, 7
    %v1947 = vsub.s32 1, %v1946
    %v1948 = vrot.slane %v202, %v1947
    %v1949 = vlaneseq
    %v1950 = vshrl.u32 %v1949, 7
    %v1951 = vsub.s32 5, %v1950
    %v1952 = vrot.slane %v202, %v1951
    %v1961 = vlaneseq
    %v1962 = vshrl.u32 %v1961, 7
    %v1963 = vsub.s32 1, %v1962
    %v1964 = vrot.slane %v1924, %v1963
    %v1965 = vlaneseq
    %v1966 = vshrl.u32 %v1965, 7
    %v1967 = vsub.s32 1, %v1966
    %v1968 = vrot.slane %v1928, %v1967
    %v1969 = vlaneseq
    %v1970 = vshrl.u32 %v1969, 7
    %v1971 = vsub.s32 1, %v1970
    %v1972 = vrot.slane %v1932, %v1971
    %v1973 = vlaneseq
    %v1974 = vshrl.u32 %v1973, 7
    %v1975 = vsub.s32 1, %v1974
    %v1976 = vrot.slane %v1936, %v1975
    %v1977 = vlaneseq
    %v1978 = vshrl.u32 %v1977, 7
    %v1979 = vsub.s32 1, %v1978
    %v1980 = vrot.slane %v1940, %v1979
    %v1981 = vlaneseq
    %v1982 = vshrl.u32 %v1981, 7
    %v1983 = vsub.s32 1, %v1982
    %v1984 = vrot.slane %v1944, %v1983
    %v1985 = vlaneseq
    %v1986 = vshrl.u32 %v1985, 7
    %v1987 = vsub.s32 1, %v1986
    %v1988 = vrot.slane %v1948, %v1987
    %v1989 = vlaneseq
    %v1990 = vshrl.u32 %v1989, 7
    %v1991 = vsub.s32 1, %v1990
    %v1992 = vrot.slane %v1952, %v1991
    %v1993 = vmul.f32 %v1667, %v1964
    %v1994 = vmul.f32 %v1667, %v1968
    %v1995 = vmul.f32 %v1667, %v1972
    %v1996 = vmul.f32 %v1667, %v1976
    %v1997 = vmul.f32 %v1667, %v1980
    %v1998 = vmul.f32 %v1667, %v1984
    %v1999 = vmul.f32 %v1667, %v1988
    %v2000 = vmul.f32 %v1667, %v1992
    %v2001 = vmul.f32 %v1671, %v1964
    %v2002 = vmul.f32 %v1671, %v1968
    %v2003 = vmul.f32 %v1671, %v1972
    %v2004 = vmul.f32 %v1671, %v1976
    %v2005 = vmul.f32 %v1671, %v1980
    %v2006 = vmul.f32 %v1671, %v1984
    %v2007 = vmul.f32 %v1671, %v1988
    %v2008 = vmul.f32 %v1671, %v1992
    %v2009 = vmul.f32 %v1675, %v1964
    %v2010 = vmul.f32 %v1675, %v1968
    %v2011 = vmul.f32 %v1675, %v1972
    %v2012 = vmul.f32 %v1675, %v1976
    %v2013 = vmul.f32 %v1675, %v1980
    %v2014 = vmul.f32 %v1675, %v1984
    %v2015 = vmul.f32 %v1675, %v1988
    %v2016 = vmul.f32 %v1675, %v1992
    %v2017 = vmul.f32 %v1679, %v1964
    %v2018 = vmul.f32 %v1679, %v1968
    %v2019 = vmul.f32 %v1679, %v1972
    %v2020 = vmul.f32 %v1679, %v1976
    %v2021 = vmul.f32 %v1679, %v1980
    %v2022 = vmul.f32 %v1679, %v1984
    %v2023 = vmul.f32 %v1679, %v1988
    %v2024 = vmul.f32 %v1679, %v1992
    %v2025 = vmul.f32 %v1683, %v1964
    %v2026 = vmul.f32 %v1683, %v1968
    %v2027 = vmul.f32 %v1683, %v1972
    %v2028 = vmul.f32 %v1683, %v1976
    %v2029 = vmul.f32 %v1683, %v1980
    %v2030 = vmul.f32 %v1683, %v1984
    %v2031 = vmul.f32 %v1683, %v1988
    %v2032 = vmul.f32 %v1683, %v1992
    %v2033 = vmul.f32 %v1687, %v1964
    %v2034 = vmul.f32 %v1687, %v1968
    %v2035 = vmul.f32 %v1687, %v1972
    %v2036 = vmul.f32 %v1687, %v1976
    %v2037 = vmul.f32 %v1687, %v1980
    %v2038 = vmul.f32 %v1687, %v1984
    %v2039 = vmul.f32 %v1687, %v1988
    %v2040 = vmul.f32 %v1687, %v1992
    %v2041 = vmul.f32 %v1691, %v1964
    %v2042 = vmul.f32 %v1691, %v1968
    %v2043 = vmul.f32 %v1691, %v1972
    %v2044 = vmul.f32 %v1691, %v1976
    %v2045 = vmul.f32 %v1691, %v1980
    %v2046 = vmul.f32 %v1691, %v1984
    %v2047 = vmul.f32 %v1691, %v1988
    %v2048 = vmul.f32 %v1691, %v1992
    %v2049 = vmul.f32 %v1695, %v1964
    %v2050 = vmul.f32 %v1695, %v1968
    %v2051 = vmul.f32 %v1695, %v1972
    %v2052 = vmul.f32 %v1695, %v1976
    %v2053 = vmul.f32 %v1695, %v1980
    %v2054 = vmul.f32 %v1695, %v1984
    %v2055 = vmul.f32 %v1695, %v1988
    %v2056 = vmul.f32 %v1695, %v1992
    %v2057 = vmul.f32 %v1699, %v1964
    %v2058 = vmul.f32 %v1699, %v1968
    %v2059 = vmul.f32 %v1699, %v1972
    %v2060 = vmul.f32 %v1699, %v1976
    %v2061 = vmul.f32 %v1699, %v1980
    %v2062 = vmul.f32 %v1699, %v1984
    %v2063 = vmul.f32 %v1699, %v1988
    %v2064 = vmul.f32 %v1699, %v1992
    %v2065 = vmul.f32 %v1703, %v1964
    %v2066 = vmul.f32 %v1703, %v1968
    %v2067 = vmul.f32 %v1703, %v1972
    %v2068 = vmul.f32 %v1703, %v1976
    %v2069 = vmul.f32 %v1703, %v1980
    %v2070 = vmul.f32 %v1703, %v1984
    %v2071 = vmul.f32 %v1703, %v1988
    %v2072 = vmul.f32 %v1703, %v1992
    %v2073 = vmul.f32 %v1707, %v1964
    %v2074 = vmul.f32 %v1707, %v1968
    %v2075 = vmul.f32 %v1707, %v1972
    %v2076 = vmul.f32 %v1707, %v1976
    %v2077 = vmul.f32 %v1707, %v1980
    %v2078 = vmul.f32 %v1707, %v1984
    %v2079 = vmul.f32 %v1707, %v1988
    %v2080 = vmul.f32 %v1707, %v1992
    %v2081 = vmul.f32 %v1711, %v1964
    %v2082 = vmul.f32 %v1711, %v1968
    %v2083 = vmul.f32 %v1711, %v1972
    %v2084 = vmul.f32 %v1711, %v1976
    %v2085 = vmul.f32 %v1711, %v1980
    %v2086 = vmul.f32 %v1711, %v1984
    %v2087 = vmul.f32 %v1711, %v1988
    %v2088 = vmul.f32 %v1711, %v1992
    %v2089 = vmul.f32 %v1715, %v1964
    %v2090 = vmul.f32 %v1715, %v1968
    %v2091 = vmul.f32 %v1715, %v1972
    %v2092 = vmul.f32 %v1715, %v1976
    %v2093 = vmul.f32 %v1715, %v1980
    %v2094 = vmul.f32 %v1715, %v1984
    %v2095 = vmul.f32 %v1715, %v1988
    %v2096 = vmul.f32 %v1715, %v1992
    %v2097 = vmul.f32 %v1719, %v1964
    %v2098 = vmul.f32 %v1719, %v1968
    %v2099 = vmul.f32 %v1719, %v1972
    %v2100 = vmul.f32 %v1719, %v1976
    %v2101 = vmul.f32 %v1719, %v1980
    %v2102 = vmul.f32 %v1719, %v1984
    %v2103 = vmul.f32 %v1719, %v1988
    %v2104 = vmul.f32 %v1719, %v1992
    %v2105 = vmul.f32 %v1723, %v1964
    %v2106 = vmul.f32 %v1723, %v1968
    %v2107 = vmul.f32 %v1723, %v1972
    %v2108 = vmul.f32 %v1723, %v1976
    %v2109 = vmul.f32 %v1723, %v1980
    %v2110 = vmul.f32 %v1723, %v1984
    %v2111 = vmul.f32 %v1723, %v1988
    %v2112 = vmul.f32 %v1723, %v1992
    %v2113 = vmul.f32 %v1727, %v1964
    %v2114 = vmul.f32 %v1727, %v1968
    %v2115 = vmul.f32 %v1727, %v1972
    %v2116 = vmul.f32 %v1727, %v1976
    %v2117 = vmul.f32 %v1727, %v1980
    %v2118 = vmul.f32 %v1727, %v1984
    %v2119 = vmul.f32 %v1727, %v1988
    %v2120 = vmul.f32 %v1727, %v1992
    %v2121 = vmul.f32 %v1731, %v1964
    %v2122 = vmul.f32 %v1731, %v1968
    %v2123 = vmul.f32 %v1731, %v1972
    %v2124 = vmul.f32 %v1731, %v1976
    %v2125 = vmul.f32 %v1731, %v1980
    %v2126 = vmul.f32 %v1731, %v1984
    %v2127 = vmul.f32 %v1731, %v1988
    %v2128 = vmul.f32 %v1731, %v1992
    %v2129 = vmul.f32 %v1735, %v1964
    %v2130 = vmul.f32 %v1735, %v1968
    %v2131 = vmul.f32 %v1735, %v1972
    %v2132 = vmul.f32 %v1735, %v1976
    %v2133 = vmul.f32 %v1735, %v1980
    %v2134 = vmul.f32 %v1735, %v1984
    %v2135 = vmul.f32 %v1735, %v1988
    %v2136 = vmul.f32 %v1735, %v1992
    %v2137 = vmul.f32 %v1739, %v1964
    %v2138 = vmul.f32 %v1739, %v1968
    %v2139 = vmul.f32 %v1739, %v1972
    %v2140 = vmul.f32 %v1739, %v1976
    %v2141 = vmul.f32 %v1739, %v1980
    %v2142 = vmul.f32 %v1739, %v1984
    %v2143 = vmul.f32 %v1739, %v1988
    %v2144 = vmul.f32 %v1739, %v1992
    %v2145 = vmul.f32 %v1743, %v1964
    %v2146 = vmul.f32 %v1743, %v1968
    %v2147 = vmul.f32 %v1743, %v1972
    %v2148 = vmul.f32 %v1743, %v1976
    %v2149 = vmul.f32 %v1743, %v1980
    %v2150 = vmul.f32 %v1743, %v1984
    %v2151 = vmul.f32 %v1743, %v1988
    %v2152 = vmul.f32 %v1743, %v1992
    %v2153 = vmul.f32 %v1747, %v1964
    %v2154 = vmul.f32 %v1747, %v1968
    %v2155 = vmul.f32 %v1747, %v1972
    %v2156 = vmul.f32 %v1747, %v1976
    %v2157 = vmul.f32 %v1747, %v1980
    %v2158 = vmul.f32 %v1747, %v1984
    %v2159 = vmul.f32 %v1747, %v1988
    %v2160 = vmul.f32 %v1747, %v1992
    %v2161 = vmul.f32 %v1751, %v1964
    %v2162 = vmul.f32 %v1751, %v1968
    %v2163 = vmul.f32 %v1751, %v1972
    %v2164 = vmul.f32 %v1751, %v1976
    %v2165 = vmul.f32 %v1751, %v1980
    %v2166 = vmul.f32 %v1751, %v1984
    %v2167 = vmul.f32 %v1751, %v1988
    %v2168 = vmul.f32 %v1751, %v1992
    %v2169 = vmul.f32 %v1755, %v1964
    %v2170 = vmul.f32 %v1755, %v1968
    %v2171 = vmul.f32 %v1755, %v1972
    %v2172 = vmul.f32 %v1755, %v1976
    %v2173 = vmul.f32 %v1755, %v1980
    %v2174 = vmul.f32 %v1755, %v1984
    %v2175 = vmul.f32 %v1755, %v1988
    %v2176 = vmul.f32 %v1755, %v1992
    %v2177 = vmul.f32 %v1759, %v1964
    %v2178 = vmul.f32 %v1759, %v1968
    %v2179 = vmul.f32 %v1759, %v1972
    %v2180 = vmul.f32 %v1759, %v1976
    %v2181 = vmul.f32 %v1759, %v1980
    %v2182 = vmul.f32 %v1759, %v1984
    %v2183 = vmul.f32 %v1759, %v1988
    %v2184 = vmul.f32 %v1759, %v1992
    %v2185 = vmul.f32 %v1763, %v1964
    %v2186 = vmul.f32 %v1763, %v1968
    %v2187 = vmul.f32 %v1763, %v1972
    %v2188 = vmul.f32 %v1763, %v1976
    %v2189 = vmul.f32 %v1763, %v1980
    %v2190 = vmul.f32 %v1763, %v1984
    %v2191 = vmul.f32 %v1763, %v1988
    %v2192 = vmul.f32 %v1763, %v1992
    %v2193 = vmul.f32 %v1767, %v1964
    %v2194 = vmul.f32 %v1767, %v1968
    %v2195 = vmul.f32 %v1767, %v1972
    %v2196 = vmul.f32 %v1767, %v1976
    %v2197 = vmul.f32 %v1767, %v1980
    %v2198 = vmul.f32 %v1767, %v1984
    %v2199 = vmul.f32 %v1767, %v1988
    %v2200 = vmul.f32 %v1767, %v1992
    %v2201 = vmul.f32 %v1771, %v1964
    %v2202 = vmul.f32 %v1771, %v1968
    %v2203 = vmul.f32 %v1771, %v1972
    %v2204 = vmul.f32 %v1771, %v1976
    %v2205 = vmul.f32 %v1771, %v1980
    %v2206 = vmul.f32 %v1771, %v1984
    %v2207 = vmul.f32 %v1771, %v1988
    %v2208 = vmul.f32 %v1771, %v1992
    %v2209 = vmul.f32 %v1775, %v1964
    %v2210 = vmul.f32 %v1775, %v1968
    %v2211 = vmul.f32 %v1775, %v1972
    %v2212 = vmul.f32 %v1775, %v1976
    %v2213 = vmul.f32 %v1775, %v1980
    %v2214 = vmul.f32 %v1775, %v1984
    %v2215 = vmul.f32 %v1775, %v1988
    %v2216 = vmul.f32 %v1775, %v1992
    %v2217 = vmul.f32 %v1779, %v1964
    %v2218 = vmul.f32 %v1779, %v1968
    %v2219 = vmul.f32 %v1779, %v1972
    %v2220 = vmul.f32 %v1779, %v1976
    %v2221 = vmul.f32 %v1779, %v1980
    %v2222 = vmul.f32 %v1779, %v1984
    %v2223 = vmul.f32 %v1779, %v1988
    %v2224 = vmul.f32 %v1779, %v1992
    %v2225 = vmul.f32 %v1783, %v1964
    %v2226 = vmul.f32 %v1783, %v1968
    %v2227 = vmul.f32 %v1783, %v1972
    %v2228 = vmul.f32 %v1783, %v1976
    %v2229 = vmul.f32 %v1783, %v1980
    %v2230 = vmul.f32 %v1783, %v1984
    %v2231 = vmul.f32 %v1783, %v1988
    %v2232 = vmul.f32 %v1783, %v1992
    %v2233 = vmul.f32 %v1787, %v1964
    %v2234 = vmul.f32 %v1787, %v1968
    %v2235 = vmul.f32 %v1787, %v1972
    %v2236 = vmul.f32 %v1787, %v1976
    %v2237 = vmul.f32 %v1787, %v1980
    %v2238 = vmul.f32 %v1787, %v1984
    %v2239 = vmul.f32 %v1787, %v1988
    %v2240 = vmul.f32 %v1787, %v1992
    %v2241 = vmul.f32 %v1791, %v1964
    %v2242 = vmul.f32 %v1791, %v1968
    %v2243 = vmul.f32 %v1791, %v1972
    %v2244 = vmul.f32 %v1791, %v1976
    %v2245 = vmul.f32 %v1791, %v1980
    %v2246 = vmul.f32 %v1791, %v1984
    %v2247 = vmul.f32 %v1791, %v1988
    %v2248 = vmul.f32 %v1791, %v1992
    %v2249 = vmul.f32 %v1795, %v1964
    %v2250 = vmul.f32 %v1795, %v1968
    %v2251 = vmul.f32 %v1795, %v1972
    %v2252 = vmul.f32 %v1795, %v1976
    %v2253 = vmul.f32 %v1795, %v1980
    %v2254 = vmul.f32 %v1795, %v1984
    %v2255 = vmul.f32 %v1795, %v1988
    %v2256 = vmul.f32 %v1795, %v1992
    %v2257 = vmul.f32 %v1799, %v1964
    %v2258 = vmul.f32 %v1799, %v1968
    %v2259 = vmul.f32 %v1799, %v1972
    %v2260 = vmul.f32 %v1799, %v1976
    %v2261 = vmul.f32 %v1799, %v1980
    %v2262 = vmul.f32 %v1799, %v1984
    %v2263 = vmul.f32 %v1799, %v1988
    %v2264 = vmul.f32 %v1799, %v1992
    %v2265 = vmul.f32 %v1803, %v1964
    %v2266 = vmul.f32 %v1803, %v1968
    %v2267 = vmul.f32 %v1803, %v1972
    %v2268 = vmul.f32 %v1803, %v1976
    %v2269 = vmul.f32 %v1803, %v1980
    %v2270 = vmul.f32 %v1803, %v1984
    %v2271 = vmul.f32 %v1803, %v1988
    %v2272 = vmul.f32 %v1803, %v1992
    %v2273 = vmul.f32 %v1807, %v1964
    %v2274 = vmul.f32 %v1807, %v1968
    %v2275 = vmul.f32 %v1807, %v1972
    %v2276 = vmul.f32 %v1807, %v1976
    %v2277 = vmul.f32 %v1807, %v1980
    %v2278 = vmul.f32 %v1807, %v1984
    %v2279 = vmul.f32 %v1807, %v1988
    %v2280 = vmul.f32 %v1807, %v1992
    %v2281 = vmul.f32 %v1811, %v1964
    %v2282 = vmul.f32 %v1811, %v1968
    %v2283 = vmul.f32 %v1811, %v1972
    %v2284 = vmul.f32 %v1811, %v1976
    %v2285 = vmul.f32 %v1811, %v1980
    %v2286 = vmul.f32 %v1811, %v1984
    %v2287 = vmul.f32 %v1811, %v1988
    %v2288 = vmul.f32 %v1811, %v1992
    %v2289 = vmul.f32 %v1815, %v1964
    %v2290 = vmul.f32 %v1815, %v1968
    %v2291 = vmul.f32 %v1815, %v1972
    %v2292 = vmul.f32 %v1815, %v1976
    %v2293 = vmul.f32 %v1815, %v1980
    %v2294 = vmul.f32 %v1815, %v1984
    %v2295 = vmul.f32 %v1815, %v1988
    %v2296 = vmul.f32 %v1815, %v1992
    %v2297 = vmul.f32 %v1819, %v1964
    %v2298 = vmul.f32 %v1819, %v1968
    %v2299 = vmul.f32 %v1819, %v1972
    %v2300 = vmul.f32 %v1819, %v1976
    %v2301 = vmul.f32 %v1819, %v1980
    %v2302 = vmul.f32 %v1819, %v1984
    %v2303 = vmul.f32 %v1819, %v1988
    %v2304 = vmul.f32 %v1819, %v1992
    %v2305 = vmul.f32 %v1823, %v1964
    %v2306 = vmul.f32 %v1823, %v1968
    %v2307 = vmul.f32 %v1823, %v1972
    %v2308 = vmul.f32 %v1823, %v1976
    %v2309 = vmul.f32 %v1823, %v1980
    %v2310 = vmul.f32 %v1823, %v1984
    %v2311 = vmul.f32 %v1823, %v1988
    %v2312 = vmul.f32 %v1823, %v1992
    %v2313 = vmul.f32 %v1827, %v1964
    %v2314 = vmul.f32 %v1827, %v1968
    %v2315 = vmul.f32 %v1827, %v1972
    %v2316 = vmul.f32 %v1827, %v1976
    %v2317 = vmul.f32 %v1827, %v1980
    %v2318 = vmul.f32 %v1827, %v1984
    %v2319 = vmul.f32 %v1827, %v1988
    %v2320 = vmul.f32 %v1827, %v1992
    %v2321 = vmul.f32 %v1831, %v1964
    %v2322 = vmul.f32 %v1831, %v1968
    %v2323 = vmul.f32 %v1831, %v1972
    %v2324 = vmul.f32 %v1831, %v1976
    %v2325 = vmul.f32 %v1831, %v1980
    %v2326 = vmul.f32 %v1831, %v1984
    %v2327 = vmul.f32 %v1831, %v1988
    %v2328 = vmul.f32 %v1831, %v1992
    %v2329 = vmul.f32 %v1835, %v1964
    %v2330 = vmul.f32 %v1835, %v1968
    %v2331 = vmul.f32 %v1835, %v1972
    %v2332 = vmul.f32 %v1835, %v1976
    %v2333 = vmul.f32 %v1835, %v1980
    %v2334 = vmul.f32 %v1835, %v1984
    %v2335 = vmul.f32 %v1835, %v1988
    %v2336 = vmul.f32 %v1835, %v1992
    %v2337 = vmul.f32 %v1839, %v1964
    %v2338 = vmul.f32 %v1839, %v1968
    %v2339 = vmul.f32 %v1839, %v1972
    %v2340 = vmul.f32 %v1839, %v1976
    %v2341 = vmul.f32 %v1839, %v1980
    %v2342 = vmul.f32 %v1839, %v1984
    %v2343 = vmul.f32 %v1839, %v1988
    %v2344 = vmul.f32 %v1839, %v1992
    %v2345 = vmul.f32 %v1843, %v1964
    %v2346 = vmul.f32 %v1843, %v1968
    %v2347 = vmul.f32 %v1843, %v1972
    %v2348 = vmul.f32 %v1843, %v1976
    %v2349 = vmul.f32 %v1843, %v1980
    %v2350 = vmul.f32 %v1843, %v1984
    %v2351 = vmul.f32 %v1843, %v1988
    %v2352 = vmul.f32 %v1843, %v1992
    %v2353 = vmul.f32 %v1847, %v1964
    %v2354 = vmul.f32 %v1847, %v1968
    %v2355 = vmul.f32 %v1847, %v1972
    %v2356 = vmul.f32 %v1847, %v1976
    %v2357 = vmul.f32 %v1847, %v1980
    %v2358 = vmul.f32 %v1847, %v1984
    %v2359 = vmul.f32 %v1847, %v1988
    %v2360 = vmul.f32 %v1847, %v1992
    %v2361 = vmul.f32 %v1851, %v1964
    %v2362 = vmul.f32 %v1851, %v1968
    %v2363 = vmul.f32 %v1851, %v1972
    %v2364 = vmul.f32 %v1851, %v1976
    %v2365 = vmul.f32 %v1851, %v1980
    %v2366 = vmul.f32 %v1851, %v1984
    %v2367 = vmul.f32 %v1851, %v1988
    %v2368 = vmul.f32 %v1851, %v1992
    %v2369 = vmul.f32 %v1855, %v1964
    %v2370 = vmul.f32 %v1855, %v1968
    %v2371 = vmul.f32 %v1855, %v1972
    %v2372 = vmul.f32 %v1855, %v1976
    %v2373 = vmul.f32 %v1855, %v1980
    %v2374 = vmul.f32 %v1855, %v1984
    %v2375 = vmul.f32 %v1855, %v1988
    %v2376 = vmul.f32 %v1855, %v1992
    %v2377 = vmul.f32 %v1859, %v1964
    %v2378 = vmul.f32 %v1859, %v1968
    %v2379 = vmul.f32 %v1859, %v1972
    %v2380 = vmul.f32 %v1859, %v1976
    %v2381 = vmul.f32 %v1859, %v1980
    %v2382 = vmul.f32 %v1859, %v1984
    %v2383 = vmul.f32 %v1859, %v1988
    %v2384 = vmul.f32 %v1859, %v1992
    %v2385 = vmul.f32 %v1863, %v1964
    %v2386 = vmul.f32 %v1863, %v1968
    %v2387 = vmul.f32 %v1863, %v1972
    %v2388 = vmul.f32 %v1863, %v1976
    %v2389 = vmul.f32 %v1863, %v1980
    %v2390 = vmul.f32 %v1863, %v1984
    %v2391 = vmul.f32 %v1863, %v1988
    %v2392 = vmul.f32 %v1863, %v1992
    %v2393 = vmul.f32 %v1867, %v1964
    %v2394 = vmul.f32 %v1867, %v1968
    %v2395 = vmul.f32 %v1867, %v1972
    %v2396 = vmul.f32 %v1867, %v1976
    %v2397 = vmul.f32 %v1867, %v1980
    %v2398 = vmul.f32 %v1867, %v1984
    %v2399 = vmul.f32 %v1867, %v1988
    %v2400 = vmul.f32 %v1867, %v1992
    %v2401 = vmul.f32 %v1871, %v1964
    %v2402 = vmul.f32 %v1871, %v1968
    %v2403 = vmul.f32 %v1871, %v1972
    %v2404 = vmul.f32 %v1871, %v1976
    %v2405 = vmul.f32 %v1871, %v1980
    %v2406 = vmul.f32 %v1871, %v1984
    %v2407 = vmul.f32 %v1871, %v1988
    %v2408 = vmul.f32 %v1871, %v1992
    %v2409 = vmul.f32 %v1875, %v1964
    %v2410 = vmul.f32 %v1875, %v1968
    %v2411 = vmul.f32 %v1875, %v1972
    %v2412 = vmul.f32 %v1875, %v1976
    %v2413 = vmul.f32 %v1875, %v1980
    %v2414 = vmul.f32 %v1875, %v1984
    %v2415 = vmul.f32 %v1875, %v1988
    %v2416 = vmul.f32 %v1875, %v1992
    %v2417 = vmul.f32 %v1879, %v1964
    %v2418 = vmul.f32 %v1879, %v1968
    %v2419 = vmul.f32 %v1879, %v1972
    %v2420 = vmul.f32 %v1879, %v1976
    %v2421 = vmul.f32 %v1879, %v1980
    %v2422 = vmul.f32 %v1879, %v1984
    %v2423 = vmul.f32 %v1879, %v1988
    %v2424 = vmul.f32 %v1879, %v1992
    %v2425 = vmul.f32 %v1883, %v1964
    %v2426 = vmul.f32 %v1883, %v1968
    %v2427 = vmul.f32 %v1883, %v1972
    %v2428 = vmul.f32 %v1883, %v1976
    %v2429 = vmul.f32 %v1883, %v1980
    %v2430 = vmul.f32 %v1883, %v1984
    %v2431 = vmul.f32 %v1883, %v1988
    %v2432 = vmul.f32 %v1883, %v1992
    %v2433 = vmul.f32 %v1887, %v1964
    %v2434 = vmul.f32 %v1887, %v1968
    %v2435 = vmul.f32 %v1887, %v1972
    %v2436 = vmul.f32 %v1887, %v1976
    %v2437 = vmul.f32 %v1887, %v1980
    %v2438 = vmul.f32 %v1887, %v1984
    %v2439 = vmul.f32 %v1887, %v1988
    %v2440 = vmul.f32 %v1887, %v1992
    %v2441 = vmul.f32 %v1891, %v1964
    %v2442 = vmul.f32 %v1891, %v1968
    %v2443 = vmul.f32 %v1891, %v1972
    %v2444 = vmul.f32 %v1891, %v1976
    %v2445 = vmul.f32 %v1891, %v1980
    %v2446 = vmul.f32 %v1891, %v1984
    %v2447 = vmul.f32 %v1891, %v1988
    %v2448 = vmul.f32 %v1891, %v1992
    %v2449 = vmul.f32 %v1895, %v1964
    %v2450 = vmul.f32 %v1895, %v1968
    %v2451 = vmul.f32 %v1895, %v1972
    %v2452 = vmul.f32 %v1895, %v1976
    %v2453 = vmul.f32 %v1895, %v1980
    %v2454 = vmul.f32 %v1895, %v1984
    %v2455 = vmul.f32 %v1895, %v1988
    %v2456 = vmul.f32 %v1895, %v1992
    %v2457 = vmul.f32 %v1899, %v1964
    %v2458 = vmul.f32 %v1899, %v1968
    %v2459 = vmul.f32 %v1899, %v1972
    %v2460 = vmul.f32 %v1899, %v1976
    %v2461 = vmul.f32 %v1899, %v1980
    %v2462 = vmul.f32 %v1899, %v1984
    %v2463 = vmul.f32 %v1899, %v1988
    %v2464 = vmul.f32 %v1899, %v1992
    %v2465 = vmul.f32 %v1903, %v1964
    %v2466 = vmul.f32 %v1903, %v1968
    %v2467 = vmul.f32 %v1903, %v1972
    %v2468 = vmul.f32 %v1903, %v1976
    %v2469 = vmul.f32 %v1903, %v1980
    %v2470 = vmul.f32 %v1903, %v1984
    %v2471 = vmul.f32 %v1903, %v1988
    %v2472 = vmul.f32 %v1903, %v1992
    %v2473 = vmul.f32 %v1907, %v1964
    %v2474 = vmul.f32 %v1907, %v1968
    %v2475 = vmul.f32 %v1907, %v1972
    %v2476 = vmul.f32 %v1907, %v1976
    %v2477 = vmul.f32 %v1907, %v1980
    %v2478 = vmul.f32 %v1907, %v1984
    %v2479 = vmul.f32 %v1907, %v1988
    %v2480 = vmul.f32 %v1907, %v1992
    %v2481 = vmul.f32 %v1911, %v1964
    %v2482 = vmul.f32 %v1911, %v1968
    %v2483 = vmul.f32 %v1911, %v1972
    %v2484 = vmul.f32 %v1911, %v1976
    %v2485 = vmul.f32 %v1911, %v1980
    %v2486 = vmul.f32 %v1911, %v1984
    %v2487 = vmul.f32 %v1911, %v1988
    %v2488 = vmul.f32 %v1911, %v1992
    %v2489 = vmul.f32 %v1915, %v1964
    %v2490 = vmul.f32 %v1915, %v1968
    %v2491 = vmul.f32 %v1915, %v1972
    %v2492 = vmul.f32 %v1915, %v1976
    %v2493 = vmul.f32 %v1915, %v1980
    %v2494 = vmul.f32 %v1915, %v1984
    %v2495 = vmul.f32 %v1915, %v1988
    %v2496 = vmul.f32 %v1915, %v1992
    %v2497 = vmul.f32 %v1919, %v1964
    %v2498 = vmul.f32 %v1919, %v1968
    %v2499 = vmul.f32 %v1919, %v1972
    %v2500 = vmul.f32 %v1919, %v1976
    %v2501 = vmul.f32 %v1919, %v1980
    %v2502 = vmul.f32 %v1919, %v1984
    %v2503 = vmul.f32 %v1919, %v1988
    %v2504 = vmul.f32 %v1919, %v1992
    %v2505 = vadd.f32 %v1153, %v1993
    %v2506 = vadd.f32 %v1154, %v1994
    %v2507 = vadd.f32 %v1155, %v1995
    %v2508 = vadd.f32 %v1156, %v1996
    %v2509 = vadd.f32 %v1157, %v1997
    %v2510 = vadd.f32 %v1158, %v1998
    %v2511 = vadd.f32 %v1159, %v1999
    %v2512 = vadd.f32 %v1160, %v2000
    %v2513 = vadd.f32 %v1161, %v2001
    %v2514 = vadd.f32 %v1162, %v2002
    %v2515 = vadd.f32 %v1163, %v2003
    %v2516 = vadd.f32 %v1164, %v2004
    %v2517 = vadd.f32 %v1165, %v2005
    %v2518 = vadd.f32 %v1166, %v2006
    %v2519 = vadd.f32 %v1167, %v2007
    %v2520 = vadd.f32 %v1168, %v2008
    %v2521 = vadd.f32 %v1169, %v2009
    %v2522 = vadd.f32 %v1170, %v2010
    %v2523 = vadd.f32 %v1171, %v2011
    %v2524 = vadd.f32 %v1172, %v2012
    %v2525 = vadd.f32 %v1173, %v2013
    %v2526 = vadd.f32 %v1174, %v2014
    %v2527 = vadd.f32 %v1175, %v2015
    %v2528 = vadd.f32 %v1176, %v2016
    %v2529 = vadd.f32 %v1177, %v2017
    %v2530 = vadd.f32 %v1178, %v2018
    %v2531 = vadd.f32 %v1179, %v2019
    %v2532 = vadd.f32 %v1180, %v2020
    %v2533 = vadd.f32 %v1181, %v2021
    %v2534 = vadd.f32 %v1182, %v2022
    %v2535 = vadd.f32 %v1183, %v2023
    %v2536 = vadd.f32 %v1184, %v2024
    %v2537 = vadd.f32 %v1185, %v2025
    %v2538 = vadd.f32 %v1186, %v2026
    %v2539 = vadd.f32 %v1187, %v2027
    %v2540 = vadd.f32 %v1188, %v2028
    %v2541 = vadd.f32 %v1189, %v2029
    %v2542 = vadd.f32 %v1190, %v2030
    %v2543 = vadd.f32 %v1191, %v2031
    %v2544 = vadd.f32 %v1192, %v2032
    %v2545 = vadd.f32 %v1193, %v2033
    %v2546 = vadd.f32 %v1194, %v2034
    %v2547 = vadd.f32 %v1195, %v2035
    %v2548 = vadd.f32 %v1196, %v2036
    %v2549 = vadd.f32 %v1197, %v2037
    %v2550 = vadd.f32 %v1198, %v2038
    %v2551 = vadd.f32 %v1199, %v2039
    %v2552 = vadd.f32 %v1200, %v2040
    %v2553 = vadd.f32 %v1201, %v2041
    %v2554 = vadd.f32 %v1202, %v2042
    %v2555 = vadd.f32 %v1203, %v2043
    %v2556 = vadd.f32 %v1204, %v2044
    %v2557 = vadd.f32 %v1205, %v2045
    %v2558 = vadd.f32 %v1206, %v2046
    %v2559 = vadd.f32 %v1207, %v2047
    %v2560 = vadd.f32 %v1208, %v2048
    %v2561 = vadd.f32 %v1209, %v2049
    %v2562 = vadd.f32 %v1210, %v2050
    %v2563 = vadd.f32 %v1211, %v2051
    %v2564 = vadd.f32 %v1212, %v2052
    %v2565 = vadd.f32 %v1213, %v2053
    %v2566 = vadd.f32 %v1214, %v2054
    %v2567 = vadd.f32 %v1215, %v2055
    %v2568 = vadd.f32 %v1216, %v2056
    %v2569 = vadd.f32 %v1217, %v2057
    %v2570 = vadd.f32 %v1218, %v2058
    %v2571 = vadd.f32 %v1219, %v2059
    %v2572 = vadd.f32 %v1220, %v2060
    %v2573 = vadd.f32 %v1221, %v2061
    %v2574 = vadd.f32 %v1222, %v2062
    %v2575 = vadd.f32 %v1223, %v2063
    %v2576 = vadd.f32 %v1224, %v2064
    %v2577 = vadd.f32 %v1225, %v2065
    %v2578 = vadd.f32 %v1226, %v2066
    %v2579 = vadd.f32 %v1227, %v2067
    %v2580 = vadd.f32 %v1228, %v2068
    %v2581 = vadd.f32 %v1229, %v2069
    %v2582 = vadd.f32 %v1230, %v2070
    %v2583 = vadd.f32 %v1231, %v2071
    %v2584 = vadd.f32 %v1232, %v2072
    %v2585 = vadd.f32 %v1233, %v2073
    %v2586 = vadd.f32 %v1234, %v2074
    %v2587 = vadd.f32 %v1235, %v2075
    %v2588 = vadd.f32 %v1236, %v2076
    %v2589 = vadd.f32 %v1237, %v2077
    %v2590 = vadd.f32 %v1238, %v2078
    %v2591 = vadd.f32 %v1239, %v2079
    %v2592 = vadd.f32 %v1240, %v2080
    %v2593 = vadd.f32 %v1241, %v2081
    %v2594 = vadd.f32 %v1242, %v2082
    %v2595 = vadd.f32 %v1243, %v2083
    %v2596 = vadd.f32 %v1244, %v2084
    %v2597 = vadd.f32 %v1245, %v2085
    %v2598 = vadd.f32 %v1246, %v2086
    %v2599 = vadd.f32 %v1247, %v2087
    %v2600 = vadd.f32 %v1248, %v2088
    %v2601 = vadd.f32 %v1249, %v2089
    %v2602 = vadd.f32 %v1250, %v2090
    %v2603 = vadd.f32 %v1251, %v2091
    %v2604 = vadd.f32 %v1252, %v2092
    %v2605 = vadd.f32 %v1253, %v2093
    %v2606 = vadd.f32 %v1254, %v2094
    %v2607 = vadd.f32 %v1255, %v2095
    %v2608 = vadd.f32 %v1256, %v2096
    %v2609 = vadd.f32 %v1257, %v2097
    %v2610 = vadd.f32 %v1258, %v2098
    %v2611 = vadd.f32 %v1259, %v2099
    %v2612 = vadd.f32 %v1260, %v2100
    %v2613 = vadd.f32 %v1261, %v2101
    %v2614 = vadd.f32 %v1262, %v2102
    %v2615 = vadd.f32 %v1263, %v2103
    %v2616 = vadd.f32 %v1264, %v2104
    %v2617 = vadd.f32 %v1265, %v2105
    %v2618 = vadd.f32 %v1266, %v2106
    %v2619 = vadd.f32 %v1267, %v2107
    %v2620 = vadd.f32 %v1268, %v2108
    %v2621 = vadd.f32 %v1269, %v2109
    %v2622 = vadd.f32 %v1270, %v2110
    %v2623 = vadd.f32 %v1271, %v2111
    %v2624 = vadd.f32 %v1272, %v2112
    %v2625 = vadd.f32 %v1273, %v2113
    %v2626 = vadd.f32 %v1274, %v2114
    %v2627 = vadd.f32 %v1275, %v2115
    %v2628 = vadd.f32 %v1276, %v2116
    %v2629 = vadd.f32 %v1277, %v2117
    %v2630 = vadd.f32 %v1278, %v2118
    %v2631 = vadd.f32 %v1279, %v2119
    %v2632 = vadd.f32 %v1280, %v2120
    %v2633 = vadd.f32 %v1281, %v2121
    %v2634 = vadd.f32 %v1282, %v2122
    %v2635 = vadd.f32 %v1283, %v2123
    %v2636 = vadd.f32 %v1284, %v2124
    %v2637 = vadd.f32 %v1285, %v2125
    %v2638 = vadd.f32 %v1286, %v2126
    %v2639 = vadd.f32 %v1287, %v2127
    %v2640 = vadd.f32 %v1288, %v2128
    %v2641 = vadd.f32 %v1289, %v2129
    %v2642 = vadd.f32 %v1290, %v2130
    %v2643 = vadd.f32 %v1291, %v2131
    %v2644 = vadd.f32 %v1292, %v2132
    %v2645 = vadd.f32 %v1293, %v2133
    %v2646 = vadd.f32 %v1294, %v2134
    %v2647 = vadd.f32 %v1295, %v2135
    %v2648 = vadd.f32 %v1296, %v2136
    %v2649 = vadd.f32 %v1297, %v2137
    %v2650 = vadd.f32 %v1298, %v2138
    %v2651 = vadd.f32 %v1299, %v2139
    %v2652 = vadd.f32 %v1300, %v2140
    %v2653 = vadd.f32 %v1301, %v2141
    %v2654 = vadd.f32 %v1302, %v2142
    %v2655 = vadd.f32 %v1303, %v2143
    %v2656 = vadd.f32 %v1304, %v2144
    %v2657 = vadd.f32 %v1305, %v2145
    %v2658 = vadd.f32 %v1306, %v2146
    %v2659 = vadd.f32 %v1307, %v2147
    %v2660 = vadd.f32 %v1308, %v2148
    %v2661 = vadd.f32 %v1309, %v2149
    %v2662 = vadd.f32 %v1310, %v2150
    %v2663 = vadd.f32 %v1311, %v2151
    %v2664 = vadd.f32 %v1312, %v2152
    %v2665 = vadd.f32 %v1313, %v2153
    %v2666 = vadd.f32 %v1314, %v2154
    %v2667 = vadd.f32 %v1315, %v2155
    %v2668 = vadd.f32 %v1316, %v2156
    %v2669 = vadd.f32 %v1317, %v2157
    %v2670 = vadd.f32 %v1318, %v2158
    %v2671 = vadd.f32 %v1319, %v2159
    %v2672 = vadd.f32 %v1320, %v2160
    %v2673 = vadd.f32 %v1321, %v2161
    %v2674 = vadd.f32 %v1322, %v2162
    %v2675 = vadd.f32 %v1323, %v2163
    %v2676 = vadd.f32 %v1324, %v2164
    %v2677 = vadd.f32 %v1325, %v2165
    %v2678 = vadd.f32 %v1326, %v2166
    %v2679 = vadd.f32 %v1327, %v2167
    %v2680 = vadd.f32 %v1328, %v2168
    %v2681 = vadd.f32 %v1329, %v2169
    %v2682 = vadd.f32 %v1330, %v2170
    %v2683 = vadd.f32 %v1331, %v2171
    %v2684 = vadd.f32 %v1332, %v2172
    %v2685 = vadd.f32 %v1333, %v2173
    %v2686 = vadd.f32 %v1334, %v2174
    %v2687 = vadd.f32 %v1335, %v2175
    %v2688 = vadd.f32 %v1336, %v2176
    %v2689 = vadd.f32 %v1337, %v2177
    %v2690 = vadd.f32 %v1338, %v2178
    %v2691 = vadd.f32 %v1339, %v2179
    %v2692 = vadd.f32 %v1340, %v2180
    %v2693 = vadd.f32 %v1341, %v2181
    %v2694 = vadd.f32 %v1342, %v2182
    %v2695 = vadd.f32 %v1343, %v2183
    %v2696 = vadd.f32 %v1344, %v2184
    %v2697 = vadd.f32 %v1345, %v2185
    %v2698 = vadd.f32 %v1346, %v2186
    %v2699 = vadd.f32 %v1347, %v2187
    %v2700 = vadd.f32 %v1348, %v2188
    %v2701 = vadd.f32 %v1349, %v2189
    %v2702 = vadd.f32 %v1350, %v2190
    %v2703 = vadd.f32 %v1351, %v2191
    %v2704 = vadd.f32 %v1352, %v2192
    %v2705 = vadd.f32 %v1353, %v2193
    %v2706 = vadd.f32 %v1354, %v2194
    %v2707 = vadd.f32 %v1355, %v2195
    %v2708 = vadd.f32 %v1356, %v2196
    %v2709 = vadd.f32 %v1357, %v2197
    %v2710 = vadd.f32 %v1358, %v2198
    %v2711 = vadd.f32 %v1359, %v2199
    %v2712 = vadd.f32 %v1360, %v2200
    %v2713 = vadd.f32 %v1361, %v2201
    %v2714 = vadd.f32 %v1362, %v2202
    %v2715 = vadd.f32 %v1363, %v2203
    %v2716 = vadd.f32 %v1364, %v2204
    %v2717 = vadd.f32 %v1365, %v2205
    %v2718 = vadd.f32 %v1366, %v2206
    %v2719 = vadd.f32 %v1367, %v2207
    %v2720 = vadd.f32 %v1368, %v2208
    %v2721 = vadd.f32 %v1369, %v2209
    %v2722 = vadd.f32 %v1370, %v2210
    %v2723 = vadd.f32 %v1371, %v2211
    %v2724 = vadd.f32 %v1372, %v2212
    %v2725 = vadd.f32 %v1373, %v2213
    %v2726 = vadd.f32 %v1374, %v2214
    %v2727 = vadd.f32 %v1375, %v2215
    %v2728 = vadd.f32 %v1376, %v2216
    %v2729 = vadd.f32 %v1377, %v2217
    %v2730 = vadd.f32 %v1378, %v2218
    %v2731 = vadd.f32 %v1379, %v2219
    %v2732 = vadd.f32 %v1380, %v2220
    %v2733 = vadd.f32 %v1381, %v2221
    %v2734 = vadd.f32 %v1382, %v2222
    %v2735 = vadd.f32 %v1383, %v2223
    %v2736 = vadd.f32 %v1384, %v2224
    %v2737 = vadd.f32 %v1385, %v2225
    %v2738 = vadd.f32 %v1386, %v2226
    %v2739 = vadd.f32 %v1387, %v2227
    %v2740 = vadd.f32 %v1388, %v2228
    %v2741 = vadd.f32 %v1389, %v2229
    %v2742 = vadd.f32 %v1390, %v2230
    %v2743 = vadd.f32 %v1391, %v2231
    %v2744 = vadd.f32 %v1392, %v2232
    %v2745 = vadd.f32 %v1393, %v2233
    %v2746 = vadd.f32 %v1394, %v2234
    %v2747 = vadd.f32 %v1395, %v2235
    %v2748 = vadd.f32 %v1396, %v2236
    %v2749 = vadd.f32 %v1397, %v2237
    %v2750 = vadd.f32 %v1398, %v2238
    %v2751 = vadd.f32 %v1399, %v2239
    %v2752 = vadd.f32 %v1400, %v2240
    %v2753 = vadd.f32 %v1401, %v2241
    %v2754 = vadd.f32 %v1402, %v2242
    %v2755 = vadd.f32 %v1403, %v2243
    %v2756 = vadd.f32 %v1404, %v2244
    %v2757 = vadd.f32 %v1405, %v2245
    %v2758 = vadd.f32 %v1406, %v2246
    %v2759 = vadd.f32 %v1407, %v2247
    %v2760 = vadd.f32 %v1408, %v2248
    %v2761 = vadd.f32 %v1409, %v2249
    %v2762 = vadd.f32 %v1410, %v2250
    %v2763 = vadd.f32 %v1411, %v2251
    %v2764 = vadd.f32 %v1412, %v2252
    %v2765 = vadd.f32 %v1413, %v2253
    %v2766 = vadd.f32 %v1414, %v2254
    %v2767 = vadd.f32 %v1415, %v2255
    %v2768 = vadd.f32 %v1416, %v2256
    %v2769 = vadd.f32 %v1417, %v2257
    %v2770 = vadd.f32 %v1418, %v2258
    %v2771 = vadd.f32 %v1419, %v2259
    %v2772 = vadd.f32 %v1420, %v2260
    %v2773 = vadd.f32 %v1421, %v2261
    %v2774 = vadd.f32 %v1422, %v2262
    %v2775 = vadd.f32 %v1423, %v2263
    %v2776 = vadd.f32 %v1424, %v2264
    %v2777 = vadd.f32 %v1425, %v2265
    %v2778 = vadd.f32 %v1426, %v2266
    %v2779 = vadd.f32 %v1427, %v2267
    %v2780 = vadd.f32 %v1428, %v2268
    %v2781 = vadd.f32 %v1429, %v2269
    %v2782 = vadd.f32 %v1430, %v2270
    %v2783 = vadd.f32 %v1431, %v2271
    %v2784 = vadd.f32 %v1432, %v2272
    %v2785 = vadd.f32 %v1433, %v2273
    %v2786 = vadd.f32 %v1434, %v2274
    %v2787 = vadd.f32 %v1435, %v2275
    %v2788 = vadd.f32 %v1436, %v2276
    %v2789 = vadd.f32 %v1437, %v2277
    %v2790 = vadd.f32 %v1438, %v2278
    %v2791 = vadd.f32 %v1439, %v2279
    %v2792 = vadd.f32 %v1440, %v2280
    %v2793 = vadd.f32 %v1441, %v2281
    %v2794 = vadd.f32 %v1442, %v2282
    %v2795 = vadd.f32 %v1443, %v2283
    %v2796 = vadd.f32 %v1444, %v2284
    %v2797 = vadd.f32 %v1445, %v2285
    %v2798 = vadd.f32 %v1446, %v2286
    %v2799 = vadd.f32 %v1447, %v2287
    %v2800 = vadd.f32 %v1448, %v2288
    %v2801 = vadd.f32 %v1449, %v2289
    %v2802 = vadd.f32 %v1450, %v2290
    %v2803 = vadd.f32 %v1451, %v2291
    %v2804 = vadd.f32 %v1452, %v2292
    %v2805 = vadd.f32 %v1453, %v2293
    %v2806 = vadd.f32 %v1454, %v2294
    %v2807 = vadd.f32 %v1455, %v2295
    %v2808 = vadd.f32 %v1456, %v2296
    %v2809 = vadd.f32 %v1457, %v2297
    %v2810 = vadd.f32 %v1458, %v2298
    %v2811 = vadd.f32 %v1459, %v2299
    %v2812 = vadd.f32 %v1460, %v2300
    %v2813 = vadd.f32 %v1461, %v2301
    %v2814 = vadd.f32 %v1462, %v2302
    %v2815 = vadd.f32 %v1463, %v2303
    %v2816 = vadd.f32 %v1464, %v2304
    %v2817 = vadd.f32 %v1465, %v2305
    %v2818 = vadd.f32 %v1466, %v2306
    %v2819 = vadd.f32 %v1467, %v2307
    %v2820 = vadd.f32 %v1468, %v2308
    %v2821 = vadd.f32 %v1469, %v2309
    %v2822 = vadd.f32 %v1470, %v2310
    %v2823 = vadd.f32 %v1471, %v2311
    %v2824 = vadd.f32 %v1472, %v2312
    %v2825 = vadd.f32 %v1473, %v2313
    %v2826 = vadd.f32 %v1474, %v2314
    %v2827 = vadd.f32 %v1475, %v2315
    %v2828 = vadd.f32 %v1476, %v2316
    %v2829 = vadd.f32 %v1477, %v2317
    %v2830 = vadd.f32 %v1478, %v2318
    %v2831 = vadd.f32 %v1479, %v2319
    %v2832 = vadd.f32 %v1480, %v2320
    %v2833 = vadd.f32 %v1481, %v2321
    %v2834 = vadd.f32 %v1482, %v2322
    %v2835 = vadd.f32 %v1483, %v2323
    %v2836 = vadd.f32 %v1484, %v2324
    %v2837 = vadd.f32 %v1485, %v2325
    %v2838 = vadd.f32 %v1486, %v2326
    %v2839 = vadd.f32 %v1487, %v2327
    %v2840 = vadd.f32 %v1488, %v2328
    %v2841 = vadd.f32 %v1489, %v2329
    %v2842 = vadd.f32 %v1490, %v2330
    %v2843 = vadd.f32 %v1491, %v2331
    %v2844 = vadd.f32 %v1492, %v2332
    %v2845 = vadd.f32 %v1493, %v2333
    %v2846 = vadd.f32 %v1494, %v2334
    %v2847 = vadd.f32 %v1495, %v2335
    %v2848 = vadd.f32 %v1496, %v2336
    %v2849 = vadd.f32 %v1497, %v2337
    %v2850 = vadd.f32 %v1498, %v2338
    %v2851 = vadd.f32 %v1499, %v2339
    %v2852 = vadd.f32 %v1500, %v2340
    %v2853 = vadd.f32 %v1501, %v2341
    %v2854 = vadd.f32 %v1502, %v2342
    %v2855 = vadd.f32 %v1503, %v2343
    %v2856 = vadd.f32 %v1504, %v2344
    %v2857 = vadd.f32 %v1505, %v2345
    %v2858 = vadd.f32 %v1506, %v2346
    %v2859 = vadd.f32 %v1507, %v2347
    %v2860 = vadd.f32 %v1508, %v2348
    %v2861 = vadd.f32 %v1509, %v2349
    %v2862 = vadd.f32 %v1510, %v2350
    %v2863 = vadd.f32 %v1511, %v2351
    %v2864 = vadd.f32 %v1512, %v2352
    %v2865 = vadd.f32 %v1513, %v2353
    %v2866 = vadd.f32 %v1514, %v2354
    %v2867 = vadd.f32 %v1515, %v2355
    %v2868 = vadd.f32 %v1516, %v2356
    %v2869 = vadd.f32 %v1517, %v2357
    %v2870 = vadd.f32 %v1518, %v2358
    %v2871 = vadd.f32 %v1519, %v2359
    %v2872 = vadd.f32 %v1520, %v2360
    %v2873 = vadd.f32 %v1521, %v2361
    %v2874 = vadd.f32 %v1522, %v2362
    %v2875 = vadd.f32 %v1523, %v2363
    %v2876 = vadd.f32 %v1524, %v2364
    %v2877 = vadd.f32 %v1525, %v2365
    %v2878 = vadd.f32 %v1526, %v2366
    %v2879 = vadd.f32 %v1527, %v2367
    %v2880 = vadd.f32 %v1528, %v2368
    %v2881 = vadd.f32 %v1529, %v2369
    %v2882 = vadd.f32 %v1530, %v2370
    %v2883 = vadd.f32 %v1531, %v2371
    %v2884 = vadd.f32 %v1532, %v2372
    %v2885 = vadd.f32 %v1533, %v2373
    %v2886 = vadd.f32 %v1534, %v2374
    %v2887 = vadd.f32 %v1535, %v2375
    %v2888 = vadd.f32 %v1536, %v2376
    %v2889 = vadd.f32 %v1537, %v2377
    %v2890 = vadd.f32 %v1538, %v2378
    %v2891 = vadd.f32 %v1539, %v2379
    %v2892 = vadd.f32 %v1540, %v2380
    %v2893 = vadd.f32 %v1541, %v2381
    %v2894 = vadd.f32 %v1542, %v2382
    %v2895 = vadd.f32 %v1543, %v2383
    %v2896 = vadd.f32 %v1544, %v2384
    %v2897 = vadd.f32 %v1545, %v2385
    %v2898 = vadd.f32 %v1546, %v2386
    %v2899 = vadd.f32 %v1547, %v2387
    %v2900 = vadd.f32 %v1548, %v2388
    %v2901 = vadd.f32 %v1549, %v2389
    %v2902 = vadd.f32 %v1550, %v2390
    %v2903 = vadd.f32 %v1551, %v2391
    %v2904 = vadd.f32 %v1552, %v2392
    %v2905 = vadd.f32 %v1553, %v2393
    %v2906 = vadd.f32 %v1554, %v2394
    %v2907 = vadd.f32 %v1555, %v2395
    %v2908 = vadd.f32 %v1556, %v2396
    %v2909 = vadd.f32 %v1557, %v2397
    %v2910 = vadd.f32 %v1558, %v2398
    %v2911 = vadd.f32 %v1559, %v2399
    %v2912 = vadd.f32 %v1560, %v2400
    %v2913 = vadd.f32 %v1561, %v2401
    %v2914 = vadd.f32 %v1562, %v2402
    %v2915 = vadd.f32 %v1563, %v2403
    %v2916 = vadd.f32 %v1564, %v2404
    %v2917 = vadd.f32 %v1565, %v2405
    %v2918 = vadd.f32 %v1566, %v2406
    %v2919 = vadd.f32 %v1567, %v2407
    %v2920 = vadd.f32 %v1568, %v2408
    %v2921 = vadd.f32 %v1569, %v2409
    %v2922 = vadd.f32 %v1570, %v2410
    %v2923 = vadd.f32 %v1571, %v2411
    %v2924 = vadd.f32 %v1572, %v2412
    %v2925 = vadd.f32 %v1573, %v2413
    %v2926 = vadd.f32 %v1574, %v2414
    %v2927 = vadd.f32 %v1575, %v2415
    %v2928 = vadd.f32 %v1576, %v2416
    %v2929 = vadd.f32 %v1577, %v2417
    %v2930 = vadd.f32 %v1578, %v2418
    %v2931 = vadd.f32 %v1579, %v2419
    %v2932 = vadd.f32 %v1580, %v2420
    %v2933 = vadd.f32 %v1581, %v2421
    %v2934 = vadd.f32 %v1582, %v2422
    %v2935 = vadd.f32 %v1583, %v2423
    %v2936 = vadd.f32 %v1584, %v2424
    %v2937 = vadd.f32 %v1585, %v2425
    %v2938 = vadd.f32 %v1586, %v2426
    %v2939 = vadd.f32 %v1587, %v2427
    %v2940 = vadd.f32 %v1588, %v2428
    %v2941 = vadd.f32 %v1589, %v2429
    %v2942 = vadd.f32 %v1590, %v2430
    %v2943 = vadd.f32 %v1591, %v2431
    %v2944 = vadd.f32 %v1592, %v2432
    %v2945 = vadd.f32 %v1593, %v2433
    %v2946 = vadd.f32 %v1594, %v2434
    %v2947 = vadd.f32 %v1595, %v2435
    %v2948 = vadd.f32 %v1596, %v2436
    %v2949 = vadd.f32 %v1597, %v2437
    %v2950 = vadd.f32 %v1598, %v2438
    %v2951 = vadd.f32 %v1599, %v2439
    %v2952 = vadd.f32 %v1600, %v2440
    %v2953 = vadd.f32 %v1601, %v2441
    %v2954 = vadd.f32 %v1602, %v2442
    %v2955 = vadd.f32 %v1603, %v2443
    %v2956 = vadd.f32 %v1604, %v2444
    %v2957 = vadd.f32 %v1605, %v2445
    %v2958 = vadd.f32 %v1606, %v2446
    %v2959 = vadd.f32 %v1607, %v2447
    %v2960 = vadd.f32 %v1608, %v2448
    %v2961 = vadd.f32 %v1609, %v2449
    %v2962 = vadd.f32 %v1610, %v2450
    %v2963 = vadd.f32 %v1611, %v2451
    %v2964 = vadd.f32 %v1612, %v2452
    %v2965 = vadd.f32 %v1613, %v2453
    %v2966 = vadd.f32 %v1614, %v2454
    %v2967 = vadd.f32 %v1615, %v2455
    %v2968 = vadd.f32 %v1616, %v2456
    %v2969 = vadd.f32 %v1617, %v2457
    %v2970 = vadd.f32 %v1618, %v2458
    %v2971 = vadd.f32 %v1619, %v2459
    %v2972 = vadd.f32 %v1620, %v2460
    %v2973 = vadd.f32 %v1621, %v2461
    %v2974 = vadd.f32 %v1622, %v2462
    %v2975 = vadd.f32 %v1623, %v2463
    %v2976 = vadd.f32 %v1624, %v2464
    %v2977 = vadd.f32 %v1625, %v2465
    %v2978 = vadd.f32 %v1626, %v2466
    %v2979 = vadd.f32 %v1627, %v2467
    %v2980 = vadd.f32 %v1628, %v2468
    %v2981 = vadd.f32 %v1629, %v2469
    %v2982 = vadd.f32 %v1630, %v2470
    %v2983 = vadd.f32 %v1631, %v2471
    %v2984 = vadd.f32 %v1632, %v2472
    %v2985 = vadd.f32 %v1633, %v2473
    %v2986 = vadd.f32 %v1634, %v2474
    %v2987 = vadd.f32 %v1635, %v2475
    %v2988 = vadd.f32 %v1636, %v2476
    %v2989 = vadd.f32 %v1637, %v2477
    %v2990 = vadd.f32 %v1638, %v2478
    %v2991 = vadd.f32 %v1639, %v2479
    %v2992 = vadd.f32 %v1640, %v2480
    %v2993 = vadd.f32 %v1641, %v2481
    %v2994 = vadd.f32 %v1642, %v2482
    %v2995 = vadd.f32 %v1643, %v2483
    %v2996 = vadd.f32 %v1644, %v2484
    %v2997 = vadd.f32 %v1645, %v2485
    %v2998 = vadd.f32 %v1646, %v2486
    %v2999 = vadd.f32 %v1647, %v2487
    %v3000 = vadd.f32 %v1648, %v2488
    %v3001 = vadd.f32 %v1649, %v2489
    %v3002 = vadd.f32 %v1650, %v2490
    %v3003 = vadd.f32 %v1651, %v2491
    %v3004 = vadd.f32 %v1652, %v2492
    %v3005 = vadd.f32 %v1653, %v2493
    %v3006 = vadd.f32 %v1654, %v2494
    %v3007 = vadd.f32 %v1655, %v2495
    %v3008 = vadd.f32 %v1656, %v2496
    %v3009 = vadd.f32 %v1657, %v2497
    %v3010 = vadd.f32 %v1658, %v2498
    %v3011 = vadd.f32 %v1659, %v2499
    %v3012 = vadd.f32 %v1660, %v2500
    %v3013 = vadd.f32 %v1661, %v2501
    %v3014 = vadd.f32 %v1662, %v2502
    %v3015 = vadd.f32 %v1663, %v2503
    %v3016 = vadd.f32 %v1664, %v2504
    %3017 = vset.pattern.permute.xlu0 2
    %3018 = vperm.xlu0 %3017, %v135
    %v3019 = vpop.permute.xlu0 %3018
    %3021 = vset.pattern.permute.xlu0 2
    %3022 = vperm.xlu0 %3021, %v136
    %v3023 = vpop.permute.xlu0 %3022
    %3025 = vset.pattern.permute.xlu0 2
    %3026 = vperm.xlu0 %3025, %v137
    %v3027 = vpop.permute.xlu0 %3026
    %3029 = vset.pattern.permute.xlu0 2
    %3030 = vperm.xlu0 %3029, %v138
    %v3031 = vpop.permute.xlu0 %3030
    %3033 = vset.pattern.permute.xlu0 2
    %3034 = vperm.xlu0 %3033, %v139
    %v3035 = vpop.permute.xlu0 %3034
    %3037 = vset.pattern.permute.xlu0 2
    %3038 = vperm.xlu0 %3037, %v140
    %v3039 = vpop.permute.xlu0 %3038
    %3041 = vset.pattern.permute.xlu0 2
    %3042 = vperm.xlu0 %3041, %v141
    %v3043 = vpop.permute.xlu0 %3042
    %3045 = vset.pattern.permute.xlu0 2
    %3046 = vperm.xlu0 %3045, %v142
    %v3047 = vpop.permute.xlu0 %3046
    %3049 = vset.pattern.permute.xlu0 2
    %3050 = vperm.xlu0 %3049, %v143
    %v3051 = vpop.permute.xlu0 %3050
    %3053 = vset.pattern.permute.xlu0 2
    %3054 = vperm.xlu0 %3053, %v144
    %v3055 = vpop.permute.xlu0 %3054
    %3057 = vset.pattern.permute.xlu0 2
    %3058 = vperm.xlu0 %3057, %v145
    %v3059 = vpop.permute.xlu0 %3058
    %3061 = vset.pattern.permute.xlu0 2
    %3062 = vperm.xlu0 %3061, %v146
    %v3063 = vpop.permute.xlu0 %3062
    %3065 = vset.pattern.permute.xlu0 2
    %3066 = vperm.xlu0 %3065, %v147
    %v3067 = vpop.permute.xlu0 %3066
    %3069 = vset.pattern.permute.xlu0 2
    %3070 = vperm.xlu0 %3069, %v148
    %v3071 = vpop.permute.xlu0 %3070
    %3073 = vset.pattern.permute.xlu0 2
    %3074 = vperm.xlu0 %3073, %v149
    %v3075 = vpop.permute.xlu0 %3074
    %3077 = vset.pattern.permute.xlu0 2
    %3078 = vperm.xlu0 %3077, %v150
    %v3079 = vpop.permute.xlu0 %3078
    %3081 = vset.pattern.permute.xlu0 2
    %3082 = vperm.xlu0 %3081, %v151
    %v3083 = vpop.permute.xlu0 %3082
    %3085 = vset.pattern.permute.xlu0 2
    %3086 = vperm.xlu0 %3085, %v152
    %v3087 = vpop.permute.xlu0 %3086
    %3089 = vset.pattern.permute.xlu0 2
    %3090 = vperm.xlu0 %3089, %v153
    %v3091 = vpop.permute.xlu0 %3090
    %3093 = vset.pattern.permute.xlu0 2
    %3094 = vperm.xlu0 %3093, %v154
    %v3095 = vpop.permute.xlu0 %3094
    %3097 = vset.pattern.permute.xlu0 2
    %3098 = vperm.xlu0 %3097, %v155
    %v3099 = vpop.permute.xlu0 %3098
    %3101 = vset.pattern.permute.xlu0 2
    %3102 = vperm.xlu0 %3101, %v156
    %v3103 = vpop.permute.xlu0 %3102
    %3105 = vset.pattern.permute.xlu0 2
    %3106 = vperm.xlu0 %3105, %v157
    %v3107 = vpop.permute.xlu0 %3106
    %3109 = vset.pattern.permute.xlu0 2
    %3110 = vperm.xlu0 %3109, %v158
    %v3111 = vpop.permute.xlu0 %3110
    %3113 = vset.pattern.permute.xlu0 2
    %3114 = vperm.xlu0 %3113, %v159
    %v3115 = vpop.permute.xlu0 %3114
    %3117 = vset.pattern.permute.xlu0 2
    %3118 = vperm.xlu0 %3117, %v160
    %v3119 = vpop.permute.xlu0 %3118
    %3121 = vset.pattern.permute.xlu0 2
    %3122 = vperm.xlu0 %3121, %v161
    %v3123 = vpop.permute.xlu0 %3122
    %3125 = vset.pattern.permute.xlu0 2
    %3126 = vperm.xlu0 %3125, %v162
    %v3127 = vpop.permute.xlu0 %3126
    %3129 = vset.pattern.permute.xlu0 2
    %3130 = vperm.xlu0 %3129, %v163
    %v3131 = vpop.permute.xlu0 %3130
    %3133 = vset.pattern.permute.xlu0 2
    %3134 = vperm.xlu0 %3133, %v164
    %v3135 = vpop.permute.xlu0 %3134
    %3137 = vset.pattern.permute.xlu0 2
    %3138 = vperm.xlu0 %3137, %v165
    %v3139 = vpop.permute.xlu0 %3138
    %3141 = vset.pattern.permute.xlu0 2
    %3142 = vperm.xlu0 %3141, %v166
    %v3143 = vpop.permute.xlu0 %3142
    %3145 = vset.pattern.permute.xlu0 2
    %3146 = vperm.xlu0 %3145, %v167
    %v3147 = vpop.permute.xlu0 %3146
    %3149 = vset.pattern.permute.xlu0 2
    %3150 = vperm.xlu0 %3149, %v168
    %v3151 = vpop.permute.xlu0 %3150
    %3153 = vset.pattern.permute.xlu0 2
    %3154 = vperm.xlu0 %3153, %v169
    %v3155 = vpop.permute.xlu0 %3154
    %3157 = vset.pattern.permute.xlu0 2
    %3158 = vperm.xlu0 %3157, %v170
    %v3159 = vpop.permute.xlu0 %3158
    %3161 = vset.pattern.permute.xlu0 2
    %3162 = vperm.xlu0 %3161, %v171
    %v3163 = vpop.permute.xlu0 %3162
    %3165 = vset.pattern.permute.xlu0 2
    %3166 = vperm.xlu0 %3165, %v172
    %v3167 = vpop.permute.xlu0 %3166
    %3169 = vset.pattern.permute.xlu0 2
    %3170 = vperm.xlu0 %3169, %v173
    %v3171 = vpop.permute.xlu0 %3170
    %3173 = vset.pattern.permute.xlu0 2
    %3174 = vperm.xlu0 %3173, %v174
    %v3175 = vpop.permute.xlu0 %3174
    %3177 = vset.pattern.permute.xlu0 2
    %3178 = vperm.xlu0 %3177, %v175
    %v3179 = vpop.permute.xlu0 %3178
    %3181 = vset.pattern.permute.xlu0 2
    %3182 = vperm.xlu0 %3181, %v176
    %v3183 = vpop.permute.xlu0 %3182
    %3185 = vset.pattern.permute.xlu0 2
    %3186 = vperm.xlu0 %3185, %v177
    %v3187 = vpop.permute.xlu0 %3186
    %3189 = vset.pattern.permute.xlu0 2
    %3190 = vperm.xlu0 %3189, %v178
    %v3191 = vpop.permute.xlu0 %3190
    %3193 = vset.pattern.permute.xlu0 2
    %3194 = vperm.xlu0 %3193, %v179
    %v3195 = vpop.permute.xlu0 %3194
    %3197 = vset.pattern.permute.xlu0 2
    %3198 = vperm.xlu0 %3197, %v180
    %v3199 = vpop.permute.xlu0 %3198
    %3201 = vset.pattern.permute.xlu0 2
    %3202 = vperm.xlu0 %3201, %v181
    %v3203 = vpop.permute.xlu0 %3202
    %3205 = vset.pattern.permute.xlu0 2
    %3206 = vperm.xlu0 %3205, %v182
    %v3207 = vpop.permute.xlu0 %3206
    %3209 = vset.pattern.permute.xlu0 2
    %3210 = vperm.xlu0 %3209, %v183
    %v3211 = vpop.permute.xlu0 %3210
    %3213 = vset.pattern.permute.xlu0 2
    %3214 = vperm.xlu0 %3213, %v184
    %v3215 = vpop.permute.xlu0 %3214
    %3217 = vset.pattern.permute.xlu0 2
    %3218 = vperm.xlu0 %3217, %v185
    %v3219 = vpop.permute.xlu0 %3218
    %3221 = vset.pattern.permute.xlu0 2
    %3222 = vperm.xlu0 %3221, %v186
    %v3223 = vpop.permute.xlu0 %3222
    %3225 = vset.pattern.permute.xlu0 2
    %3226 = vperm.xlu0 %3225, %v187
    %v3227 = vpop.permute.xlu0 %3226
    %3229 = vset.pattern.permute.xlu0 2
    %3230 = vperm.xlu0 %3229, %v188
    %v3231 = vpop.permute.xlu0 %3230
    %3233 = vset.pattern.permute.xlu0 2
    %3234 = vperm.xlu0 %3233, %v189
    %v3235 = vpop.permute.xlu0 %3234
    %3237 = vset.pattern.permute.xlu0 2
    %3238 = vperm.xlu0 %3237, %v190
    %v3239 = vpop.permute.xlu0 %3238
    %3241 = vset.pattern.permute.xlu0 2
    %3242 = vperm.xlu0 %3241, %v191
    %v3243 = vpop.permute.xlu0 %3242
    %3245 = vset.pattern.permute.xlu0 2
    %3246 = vperm.xlu0 %3245, %v192
    %v3247 = vpop.permute.xlu0 %3246
    %3249 = vset.pattern.permute.xlu0 2
    %3250 = vperm.xlu0 %3249, %v193
    %v3251 = vpop.permute.xlu0 %3250
    %3253 = vset.pattern.permute.xlu0 2
    %3254 = vperm.xlu0 %3253, %v194
    %v3255 = vpop.permute.xlu0 %3254
    %3257 = vset.pattern.permute.xlu0 2
    %3258 = vperm.xlu0 %3257, %v195
    %v3259 = vpop.permute.xlu0 %3258
    %3261 = vset.pattern.permute.xlu0 2
    %3262 = vperm.xlu0 %3261, %v196
    %v3263 = vpop.permute.xlu0 %3262
    %3265 = vset.pattern.permute.xlu0 2
    %3266 = vperm.xlu0 %3265, %v197
    %v3267 = vpop.permute.xlu0 %3266
    %3269 = vset.pattern.permute.xlu0 2
    %3270 = vperm.xlu0 %3269, %v198
    %v3271 = vpop.permute.xlu0 %3270
    %v3273 = vlaneseq
    %v3274 = vshrl.u32 %v3273, 7
    %v3275 = vsub.s32 2, %v3274
    %v3276 = vrot.slane %v199, %v3275
    %v3277 = vlaneseq
    %v3278 = vshrl.u32 %v3277, 7
    %v3279 = vsub.s32 6, %v3278
    %v3280 = vrot.slane %v199, %v3279
    %v3281 = vlaneseq
    %v3282 = vshrl.u32 %v3281, 7
    %v3283 = vsub.s32 2, %v3282
    %v3284 = vrot.slane %v200, %v3283
    %v3285 = vlaneseq
    %v3286 = vshrl.u32 %v3285, 7
    %v3287 = vsub.s32 6, %v3286
    %v3288 = vrot.slane %v200, %v3287
    %v3289 = vlaneseq
    %v3290 = vshrl.u32 %v3289, 7
    %v3291 = vsub.s32 2, %v3290
    %v3292 = vrot.slane %v201, %v3291
    %v3293 = vlaneseq
    %v3294 = vshrl.u32 %v3293, 7
    %v3295 = vsub.s32 6, %v3294
    %v3296 = vrot.slane %v201, %v3295
    %v3297 = vlaneseq
    %v3298 = vshrl.u32 %v3297, 7
    %v3299 = vsub.s32 2, %v3298
    %v3300 = vrot.slane %v202, %v3299
    %v3301 = vlaneseq
    %v3302 = vshrl.u32 %v3301, 7
    %v3303 = vsub.s32 6, %v3302
    %v3304 = vrot.slane %v202, %v3303
    %v3313 = vlaneseq
    %v3314 = vshrl.u32 %v3313, 7
    %v3315 = vsub.s32 2, %v3314
    %v3316 = vrot.slane %v3276, %v3315
    %v3317 = vlaneseq
    %v3318 = vshrl.u32 %v3317, 7
    %v3319 = vsub.s32 2, %v3318
    %v3320 = vrot.slane %v3280, %v3319
    %v3321 = vlaneseq
    %v3322 = vshrl.u32 %v3321, 7
    %v3323 = vsub.s32 2, %v3322
    %v3324 = vrot.slane %v3284, %v3323
    %v3325 = vlaneseq
    %v3326 = vshrl.u32 %v3325, 7
    %v3327 = vsub.s32 2, %v3326
    %v3328 = vrot.slane %v3288, %v3327
    %v3329 = vlaneseq
    %v3330 = vshrl.u32 %v3329, 7
    %v3331 = vsub.s32 2, %v3330
    %v3332 = vrot.slane %v3292, %v3331
    %v3333 = vlaneseq
    %v3334 = vshrl.u32 %v3333, 7
    %v3335 = vsub.s32 2, %v3334
    %v3336 = vrot.slane %v3296, %v3335
    %v3337 = vlaneseq
    %v3338 = vshrl.u32 %v3337, 7
    %v3339 = vsub.s32 2, %v3338
    %v3340 = vrot.slane %v3300, %v3339
    %v3341 = vlaneseq
    %v3342 = vshrl.u32 %v3341, 7
    %v3343 = vsub.s32 2, %v3342
    %v3344 = vrot.slane %v3304, %v3343
    %v3345 = vmul.f32 %v3019, %v3316
    %v3346 = vmul.f32 %v3019, %v3320
    %v3347 = vmul.f32 %v3019, %v3324
    %v3348 = vmul.f32 %v3019, %v3328
    %v3349 = vmul.f32 %v3019, %v3332
    %v3350 = vmul.f32 %v3019, %v3336
    %v3351 = vmul.f32 %v3019, %v3340
    %v3352 = vmul.f32 %v3019, %v3344
    %v3353 = vmul.f32 %v3023, %v3316
    %v3354 = vmul.f32 %v3023, %v3320
    %v3355 = vmul.f32 %v3023, %v3324
    %v3356 = vmul.f32 %v3023, %v3328
    %v3357 = vmul.f32 %v3023, %v3332
    %v3358 = vmul.f32 %v3023, %v3336
    %v3359 = vmul.f32 %v3023, %v3340
    %v3360 = vmul.f32 %v3023, %v3344
    %v3361 = vmul.f32 %v3027, %v3316
    %v3362 = vmul.f32 %v3027, %v3320
    %v3363 = vmul.f32 %v3027, %v3324
    %v3364 = vmul.f32 %v3027, %v3328
    %v3365 = vmul.f32 %v3027, %v3332
    %v3366 = vmul.f32 %v3027, %v3336
    %v3367 = vmul.f32 %v3027, %v3340
    %v3368 = vmul.f32 %v3027, %v3344
    %v3369 = vmul.f32 %v3031, %v3316
    %v3370 = vmul.f32 %v3031, %v3320
    %v3371 = vmul.f32 %v3031, %v3324
    %v3372 = vmul.f32 %v3031, %v3328
    %v3373 = vmul.f32 %v3031, %v3332
    %v3374 = vmul.f32 %v3031, %v3336
    %v3375 = vmul.f32 %v3031, %v3340
    %v3376 = vmul.f32 %v3031, %v3344
    %v3377 = vmul.f32 %v3035, %v3316
    %v3378 = vmul.f32 %v3035, %v3320
    %v3379 = vmul.f32 %v3035, %v3324
    %v3380 = vmul.f32 %v3035, %v3328
    %v3381 = vmul.f32 %v3035, %v3332
    %v3382 = vmul.f32 %v3035, %v3336
    %v3383 = vmul.f32 %v3035, %v3340
    %v3384 = vmul.f32 %v3035, %v3344
    %v3385 = vmul.f32 %v3039, %v3316
    %v3386 = vmul.f32 %v3039, %v3320
    %v3387 = vmul.f32 %v3039, %v3324
    %v3388 = vmul.f32 %v3039, %v3328
    %v3389 = vmul.f32 %v3039, %v3332
    %v3390 = vmul.f32 %v3039, %v3336
    %v3391 = vmul.f32 %v3039, %v3340
    %v3392 = vmul.f32 %v3039, %v3344
    %v3393 = vmul.f32 %v3043, %v3316
    %v3394 = vmul.f32 %v3043, %v3320
    %v3395 = vmul.f32 %v3043, %v3324
    %v3396 = vmul.f32 %v3043, %v3328
    %v3397 = vmul.f32 %v3043, %v3332
    %v3398 = vmul.f32 %v3043, %v3336
    %v3399 = vmul.f32 %v3043, %v3340
    %v3400 = vmul.f32 %v3043, %v3344
    %v3401 = vmul.f32 %v3047, %v3316
    %v3402 = vmul.f32 %v3047, %v3320
    %v3403 = vmul.f32 %v3047, %v3324
    %v3404 = vmul.f32 %v3047, %v3328
    %v3405 = vmul.f32 %v3047, %v3332
    %v3406 = vmul.f32 %v3047, %v3336
    %v3407 = vmul.f32 %v3047, %v3340
    %v3408 = vmul.f32 %v3047, %v3344
    %v3409 = vmul.f32 %v3051, %v3316
    %v3410 = vmul.f32 %v3051, %v3320
    %v3411 = vmul.f32 %v3051, %v3324
    %v3412 = vmul.f32 %v3051, %v3328
    %v3413 = vmul.f32 %v3051, %v3332
    %v3414 = vmul.f32 %v3051, %v3336
    %v3415 = vmul.f32 %v3051, %v3340
    %v3416 = vmul.f32 %v3051, %v3344
    %v3417 = vmul.f32 %v3055, %v3316
    %v3418 = vmul.f32 %v3055, %v3320
    %v3419 = vmul.f32 %v3055, %v3324
    %v3420 = vmul.f32 %v3055, %v3328
    %v3421 = vmul.f32 %v3055, %v3332
    %v3422 = vmul.f32 %v3055, %v3336
    %v3423 = vmul.f32 %v3055, %v3340
    %v3424 = vmul.f32 %v3055, %v3344
    %v3425 = vmul.f32 %v3059, %v3316
    %v3426 = vmul.f32 %v3059, %v3320
    %v3427 = vmul.f32 %v3059, %v3324
    %v3428 = vmul.f32 %v3059, %v3328
    %v3429 = vmul.f32 %v3059, %v3332
    %v3430 = vmul.f32 %v3059, %v3336
    %v3431 = vmul.f32 %v3059, %v3340
    %v3432 = vmul.f32 %v3059, %v3344
    %v3433 = vmul.f32 %v3063, %v3316
    %v3434 = vmul.f32 %v3063, %v3320
    %v3435 = vmul.f32 %v3063, %v3324
    %v3436 = vmul.f32 %v3063, %v3328
    %v3437 = vmul.f32 %v3063, %v3332
    %v3438 = vmul.f32 %v3063, %v3336
    %v3439 = vmul.f32 %v3063, %v3340
    %v3440 = vmul.f32 %v3063, %v3344
    %v3441 = vmul.f32 %v3067, %v3316
    %v3442 = vmul.f32 %v3067, %v3320
    %v3443 = vmul.f32 %v3067, %v3324
    %v3444 = vmul.f32 %v3067, %v3328
    %v3445 = vmul.f32 %v3067, %v3332
    %v3446 = vmul.f32 %v3067, %v3336
    %v3447 = vmul.f32 %v3067, %v3340
    %v3448 = vmul.f32 %v3067, %v3344
    %v3449 = vmul.f32 %v3071, %v3316
    %v3450 = vmul.f32 %v3071, %v3320
    %v3451 = vmul.f32 %v3071, %v3324
    %v3452 = vmul.f32 %v3071, %v3328
    %v3453 = vmul.f32 %v3071, %v3332
    %v3454 = vmul.f32 %v3071, %v3336
    %v3455 = vmul.f32 %v3071, %v3340
    %v3456 = vmul.f32 %v3071, %v3344
    %v3457 = vmul.f32 %v3075, %v3316
    %v3458 = vmul.f32 %v3075, %v3320
    %v3459 = vmul.f32 %v3075, %v3324
    %v3460 = vmul.f32 %v3075, %v3328
    %v3461 = vmul.f32 %v3075, %v3332
    %v3462 = vmul.f32 %v3075, %v3336
    %v3463 = vmul.f32 %v3075, %v3340
    %v3464 = vmul.f32 %v3075, %v3344
    %v3465 = vmul.f32 %v3079, %v3316
    %v3466 = vmul.f32 %v3079, %v3320
    %v3467 = vmul.f32 %v3079, %v3324
    %v3468 = vmul.f32 %v3079, %v3328
    %v3469 = vmul.f32 %v3079, %v3332
    %v3470 = vmul.f32 %v3079, %v3336
    %v3471 = vmul.f32 %v3079, %v3340
    %v3472 = vmul.f32 %v3079, %v3344
    %v3473 = vmul.f32 %v3083, %v3316
    %v3474 = vmul.f32 %v3083, %v3320
    %v3475 = vmul.f32 %v3083, %v3324
    %v3476 = vmul.f32 %v3083, %v3328
    %v3477 = vmul.f32 %v3083, %v3332
    %v3478 = vmul.f32 %v3083, %v3336
    %v3479 = vmul.f32 %v3083, %v3340
    %v3480 = vmul.f32 %v3083, %v3344
    %v3481 = vmul.f32 %v3087, %v3316
    %v3482 = vmul.f32 %v3087, %v3320
    %v3483 = vmul.f32 %v3087, %v3324
    %v3484 = vmul.f32 %v3087, %v3328
    %v3485 = vmul.f32 %v3087, %v3332
    %v3486 = vmul.f32 %v3087, %v3336
    %v3487 = vmul.f32 %v3087, %v3340
    %v3488 = vmul.f32 %v3087, %v3344
    %v3489 = vmul.f32 %v3091, %v3316
    %v3490 = vmul.f32 %v3091, %v3320
    %v3491 = vmul.f32 %v3091, %v3324
    %v3492 = vmul.f32 %v3091, %v3328
    %v3493 = vmul.f32 %v3091, %v3332
    %v3494 = vmul.f32 %v3091, %v3336
    %v3495 = vmul.f32 %v3091, %v3340
    %v3496 = vmul.f32 %v3091, %v3344
    %v3497 = vmul.f32 %v3095, %v3316
    %v3498 = vmul.f32 %v3095, %v3320
    %v3499 = vmul.f32 %v3095, %v3324
    %v3500 = vmul.f32 %v3095, %v3328
    %v3501 = vmul.f32 %v3095, %v3332
    %v3502 = vmul.f32 %v3095, %v3336
    %v3503 = vmul.f32 %v3095, %v3340
    %v3504 = vmul.f32 %v3095, %v3344
    %v3505 = vmul.f32 %v3099, %v3316
    %v3506 = vmul.f32 %v3099, %v3320
    %v3507 = vmul.f32 %v3099, %v3324
    %v3508 = vmul.f32 %v3099, %v3328
    %v3509 = vmul.f32 %v3099, %v3332
    %v3510 = vmul.f32 %v3099, %v3336
    %v3511 = vmul.f32 %v3099, %v3340
    %v3512 = vmul.f32 %v3099, %v3344
    %v3513 = vmul.f32 %v3103, %v3316
    %v3514 = vmul.f32 %v3103, %v3320
    %v3515 = vmul.f32 %v3103, %v3324
    %v3516 = vmul.f32 %v3103, %v3328
    %v3517 = vmul.f32 %v3103, %v3332
    %v3518 = vmul.f32 %v3103, %v3336
    %v3519 = vmul.f32 %v3103, %v3340
    %v3520 = vmul.f32 %v3103, %v3344
    %v3521 = vmul.f32 %v3107, %v3316
    %v3522 = vmul.f32 %v3107, %v3320
    %v3523 = vmul.f32 %v3107, %v3324
    %v3524 = vmul.f32 %v3107, %v3328
    %v3525 = vmul.f32 %v3107, %v3332
    %v3526 = vmul.f32 %v3107, %v3336
    %v3527 = vmul.f32 %v3107, %v3340
    %v3528 = vmul.f32 %v3107, %v3344
    %v3529 = vmul.f32 %v3111, %v3316
    %v3530 = vmul.f32 %v3111, %v3320
    %v3531 = vmul.f32 %v3111, %v3324
    %v3532 = vmul.f32 %v3111, %v3328
    %v3533 = vmul.f32 %v3111, %v3332
    %v3534 = vmul.f32 %v3111, %v3336
    %v3535 = vmul.f32 %v3111, %v3340
    %v3536 = vmul.f32 %v3111, %v3344
    %v3537 = vmul.f32 %v3115, %v3316
    %v3538 = vmul.f32 %v3115, %v3320
    %v3539 = vmul.f32 %v3115, %v3324
    %v3540 = vmul.f32 %v3115, %v3328
    %v3541 = vmul.f32 %v3115, %v3332
    %v3542 = vmul.f32 %v3115, %v3336
    %v3543 = vmul.f32 %v3115, %v3340
    %v3544 = vmul.f32 %v3115, %v3344
    %v3545 = vmul.f32 %v3119, %v3316
    %v3546 = vmul.f32 %v3119, %v3320
    %v3547 = vmul.f32 %v3119, %v3324
    %v3548 = vmul.f32 %v3119, %v3328
    %v3549 = vmul.f32 %v3119, %v3332
    %v3550 = vmul.f32 %v3119, %v3336
    %v3551 = vmul.f32 %v3119, %v3340
    %v3552 = vmul.f32 %v3119, %v3344
    %v3553 = vmul.f32 %v3123, %v3316
    %v3554 = vmul.f32 %v3123, %v3320
    %v3555 = vmul.f32 %v3123, %v3324
    %v3556 = vmul.f32 %v3123, %v3328
    %v3557 = vmul.f32 %v3123, %v3332
    %v3558 = vmul.f32 %v3123, %v3336
    %v3559 = vmul.f32 %v3123, %v3340
    %v3560 = vmul.f32 %v3123, %v3344
    %v3561 = vmul.f32 %v3127, %v3316
    %v3562 = vmul.f32 %v3127, %v3320
    %v3563 = vmul.f32 %v3127, %v3324
    %v3564 = vmul.f32 %v3127, %v3328
    %v3565 = vmul.f32 %v3127, %v3332
    %v3566 = vmul.f32 %v3127, %v3336
    %v3567 = vmul.f32 %v3127, %v3340
    %v3568 = vmul.f32 %v3127, %v3344
    %v3569 = vmul.f32 %v3131, %v3316
    %v3570 = vmul.f32 %v3131, %v3320
    %v3571 = vmul.f32 %v3131, %v3324
    %v3572 = vmul.f32 %v3131, %v3328
    %v3573 = vmul.f32 %v3131, %v3332
    %v3574 = vmul.f32 %v3131, %v3336
    %v3575 = vmul.f32 %v3131, %v3340
    %v3576 = vmul.f32 %v3131, %v3344
    %v3577 = vmul.f32 %v3135, %v3316
    %v3578 = vmul.f32 %v3135, %v3320
    %v3579 = vmul.f32 %v3135, %v3324
    %v3580 = vmul.f32 %v3135, %v3328
    %v3581 = vmul.f32 %v3135, %v3332
    %v3582 = vmul.f32 %v3135, %v3336
    %v3583 = vmul.f32 %v3135, %v3340
    %v3584 = vmul.f32 %v3135, %v3344
    %v3585 = vmul.f32 %v3139, %v3316
    %v3586 = vmul.f32 %v3139, %v3320
    %v3587 = vmul.f32 %v3139, %v3324
    %v3588 = vmul.f32 %v3139, %v3328
    %v3589 = vmul.f32 %v3139, %v3332
    %v3590 = vmul.f32 %v3139, %v3336
    %v3591 = vmul.f32 %v3139, %v3340
    %v3592 = vmul.f32 %v3139, %v3344
    %v3593 = vmul.f32 %v3143, %v3316
    %v3594 = vmul.f32 %v3143, %v3320
    %v3595 = vmul.f32 %v3143, %v3324
    %v3596 = vmul.f32 %v3143, %v3328
    %v3597 = vmul.f32 %v3143, %v3332
    %v3598 = vmul.f32 %v3143, %v3336
    %v3599 = vmul.f32 %v3143, %v3340
    %v3600 = vmul.f32 %v3143, %v3344
    %v3601 = vmul.f32 %v3147, %v3316
    %v3602 = vmul.f32 %v3147, %v3320
    %v3603 = vmul.f32 %v3147, %v3324
    %v3604 = vmul.f32 %v3147, %v3328
    %v3605 = vmul.f32 %v3147, %v3332
    %v3606 = vmul.f32 %v3147, %v3336
    %v3607 = vmul.f32 %v3147, %v3340
    %v3608 = vmul.f32 %v3147, %v3344
    %v3609 = vmul.f32 %v3151, %v3316
    %v3610 = vmul.f32 %v3151, %v3320
    %v3611 = vmul.f32 %v3151, %v3324
    %v3612 = vmul.f32 %v3151, %v3328
    %v3613 = vmul.f32 %v3151, %v3332
    %v3614 = vmul.f32 %v3151, %v3336
    %v3615 = vmul.f32 %v3151, %v3340
    %v3616 = vmul.f32 %v3151, %v3344
    %v3617 = vmul.f32 %v3155, %v3316
    %v3618 = vmul.f32 %v3155, %v3320
    %v3619 = vmul.f32 %v3155, %v3324
    %v3620 = vmul.f32 %v3155, %v3328
    %v3621 = vmul.f32 %v3155, %v3332
    %v3622 = vmul.f32 %v3155, %v3336
    %v3623 = vmul.f32 %v3155, %v3340
    %v3624 = vmul.f32 %v3155, %v3344
    %v3625 = vmul.f32 %v3159, %v3316
    %v3626 = vmul.f32 %v3159, %v3320
    %v3627 = vmul.f32 %v3159, %v3324
    %v3628 = vmul.f32 %v3159, %v3328
    %v3629 = vmul.f32 %v3159, %v3332
    %v3630 = vmul.f32 %v3159, %v3336
    %v3631 = vmul.f32 %v3159, %v3340
    %v3632 = vmul.f32 %v3159, %v3344
    %v3633 = vmul.f32 %v3163, %v3316
    %v3634 = vmul.f32 %v3163, %v3320
    %v3635 = vmul.f32 %v3163, %v3324
    %v3636 = vmul.f32 %v3163, %v3328
    %v3637 = vmul.f32 %v3163, %v3332
    %v3638 = vmul.f32 %v3163, %v3336
    %v3639 = vmul.f32 %v3163, %v3340
    %v3640 = vmul.f32 %v3163, %v3344
    %v3641 = vmul.f32 %v3167, %v3316
    %v3642 = vmul.f32 %v3167, %v3320
    %v3643 = vmul.f32 %v3167, %v3324
    %v3644 = vmul.f32 %v3167, %v3328
    %v3645 = vmul.f32 %v3167, %v3332
    %v3646 = vmul.f32 %v3167, %v3336
    %v3647 = vmul.f32 %v3167, %v3340
    %v3648 = vmul.f32 %v3167, %v3344
    %v3649 = vmul.f32 %v3171, %v3316
    %v3650 = vmul.f32 %v3171, %v3320
    %v3651 = vmul.f32 %v3171, %v3324
    %v3652 = vmul.f32 %v3171, %v3328
    %v3653 = vmul.f32 %v3171, %v3332
    %v3654 = vmul.f32 %v3171, %v3336
    %v3655 = vmul.f32 %v3171, %v3340
    %v3656 = vmul.f32 %v3171, %v3344
    %v3657 = vmul.f32 %v3175, %v3316
    %v3658 = vmul.f32 %v3175, %v3320
    %v3659 = vmul.f32 %v3175, %v3324
    %v3660 = vmul.f32 %v3175, %v3328
    %v3661 = vmul.f32 %v3175, %v3332
    %v3662 = vmul.f32 %v3175, %v3336
    %v3663 = vmul.f32 %v3175, %v3340
    %v3664 = vmul.f32 %v3175, %v3344
    %v3665 = vmul.f32 %v3179, %v3316
    %v3666 = vmul.f32 %v3179, %v3320
    %v3667 = vmul.f32 %v3179, %v3324
    %v3668 = vmul.f32 %v3179, %v3328
    %v3669 = vmul.f32 %v3179, %v3332
    %v3670 = vmul.f32 %v3179, %v3336
    %v3671 = vmul.f32 %v3179, %v3340
    %v3672 = vmul.f32 %v3179, %v3344
    %v3673 = vmul.f32 %v3183, %v3316
    %v3674 = vmul.f32 %v3183, %v3320
    %v3675 = vmul.f32 %v3183, %v3324
    %v3676 = vmul.f32 %v3183, %v3328
    %v3677 = vmul.f32 %v3183, %v3332
    %v3678 = vmul.f32 %v3183, %v3336
    %v3679 = vmul.f32 %v3183, %v3340
    %v3680 = vmul.f32 %v3183, %v3344
    %v3681 = vmul.f32 %v3187, %v3316
    %v3682 = vmul.f32 %v3187, %v3320
    %v3683 = vmul.f32 %v3187, %v3324
    %v3684 = vmul.f32 %v3187, %v3328
    %v3685 = vmul.f32 %v3187, %v3332
    %v3686 = vmul.f32 %v3187, %v3336
    %v3687 = vmul.f32 %v3187, %v3340
    %v3688 = vmul.f32 %v3187, %v3344
    %v3689 = vmul.f32 %v3191, %v3316
    %v3690 = vmul.f32 %v3191, %v3320
    %v3691 = vmul.f32 %v3191, %v3324
    %v3692 = vmul.f32 %v3191, %v3328
    %v3693 = vmul.f32 %v3191, %v3332
    %v3694 = vmul.f32 %v3191, %v3336
    %v3695 = vmul.f32 %v3191, %v3340
    %v3696 = vmul.f32 %v3191, %v3344
    %v3697 = vmul.f32 %v3195, %v3316
    %v3698 = vmul.f32 %v3195, %v3320
    %v3699 = vmul.f32 %v3195, %v3324
    %v3700 = vmul.f32 %v3195, %v3328
    %v3701 = vmul.f32 %v3195, %v3332
    %v3702 = vmul.f32 %v3195, %v3336
    %v3703 = vmul.f32 %v3195, %v3340
    %v3704 = vmul.f32 %v3195, %v3344
    %v3705 = vmul.f32 %v3199, %v3316
    %v3706 = vmul.f32 %v3199, %v3320
    %v3707 = vmul.f32 %v3199, %v3324
    %v3708 = vmul.f32 %v3199, %v3328
    %v3709 = vmul.f32 %v3199, %v3332
    %v3710 = vmul.f32 %v3199, %v3336
    %v3711 = vmul.f32 %v3199, %v3340
    %v3712 = vmul.f32 %v3199, %v3344
    %v3713 = vmul.f32 %v3203, %v3316
    %v3714 = vmul.f32 %v3203, %v3320
    %v3715 = vmul.f32 %v3203, %v3324
    %v3716 = vmul.f32 %v3203, %v3328
    %v3717 = vmul.f32 %v3203, %v3332
    %v3718 = vmul.f32 %v3203, %v3336
    %v3719 = vmul.f32 %v3203, %v3340
    %v3720 = vmul.f32 %v3203, %v3344
    %v3721 = vmul.f32 %v3207, %v3316
    %v3722 = vmul.f32 %v3207, %v3320
    %v3723 = vmul.f32 %v3207, %v3324
    %v3724 = vmul.f32 %v3207, %v3328
    %v3725 = vmul.f32 %v3207, %v3332
    %v3726 = vmul.f32 %v3207, %v3336
    %v3727 = vmul.f32 %v3207, %v3340
    %v3728 = vmul.f32 %v3207, %v3344
    %v3729 = vmul.f32 %v3211, %v3316
    %v3730 = vmul.f32 %v3211, %v3320
    %v3731 = vmul.f32 %v3211, %v3324
    %v3732 = vmul.f32 %v3211, %v3328
    %v3733 = vmul.f32 %v3211, %v3332
    %v3734 = vmul.f32 %v3211, %v3336
    %v3735 = vmul.f32 %v3211, %v3340
    %v3736 = vmul.f32 %v3211, %v3344
    %v3737 = vmul.f32 %v3215, %v3316
    %v3738 = vmul.f32 %v3215, %v3320
    %v3739 = vmul.f32 %v3215, %v3324
    %v3740 = vmul.f32 %v3215, %v3328
    %v3741 = vmul.f32 %v3215, %v3332
    %v3742 = vmul.f32 %v3215, %v3336
    %v3743 = vmul.f32 %v3215, %v3340
    %v3744 = vmul.f32 %v3215, %v3344
    %v3745 = vmul.f32 %v3219, %v3316
    %v3746 = vmul.f32 %v3219, %v3320
    %v3747 = vmul.f32 %v3219, %v3324
    %v3748 = vmul.f32 %v3219, %v3328
    %v3749 = vmul.f32 %v3219, %v3332
    %v3750 = vmul.f32 %v3219, %v3336
    %v3751 = vmul.f32 %v3219, %v3340
    %v3752 = vmul.f32 %v3219, %v3344
    %v3753 = vmul.f32 %v3223, %v3316
    %v3754 = vmul.f32 %v3223, %v3320
    %v3755 = vmul.f32 %v3223, %v3324
    %v3756 = vmul.f32 %v3223, %v3328
    %v3757 = vmul.f32 %v3223, %v3332
    %v3758 = vmul.f32 %v3223, %v3336
    %v3759 = vmul.f32 %v3223, %v3340
    %v3760 = vmul.f32 %v3223, %v3344
    %v3761 = vmul.f32 %v3227, %v3316
    %v3762 = vmul.f32 %v3227, %v3320
    %v3763 = vmul.f32 %v3227, %v3324
    %v3764 = vmul.f32 %v3227, %v3328
    %v3765 = vmul.f32 %v3227, %v3332
    %v3766 = vmul.f32 %v3227, %v3336
    %v3767 = vmul.f32 %v3227, %v3340
    %v3768 = vmul.f32 %v3227, %v3344
    %v3769 = vmul.f32 %v3231, %v3316
    %v3770 = vmul.f32 %v3231, %v3320
    %v3771 = vmul.f32 %v3231, %v3324
    %v3772 = vmul.f32 %v3231, %v3328
    %v3773 = vmul.f32 %v3231, %v3332
    %v3774 = vmul.f32 %v3231, %v3336
    %v3775 = vmul.f32 %v3231, %v3340
    %v3776 = vmul.f32 %v3231, %v3344
    %v3777 = vmul.f32 %v3235, %v3316
    %v3778 = vmul.f32 %v3235, %v3320
    %v3779 = vmul.f32 %v3235, %v3324
    %v3780 = vmul.f32 %v3235, %v3328
    %v3781 = vmul.f32 %v3235, %v3332
    %v3782 = vmul.f32 %v3235, %v3336
    %v3783 = vmul.f32 %v3235, %v3340
    %v3784 = vmul.f32 %v3235, %v3344
    %v3785 = vmul.f32 %v3239, %v3316
    %v3786 = vmul.f32 %v3239, %v3320
    %v3787 = vmul.f32 %v3239, %v3324
    %v3788 = vmul.f32 %v3239, %v3328
    %v3789 = vmul.f32 %v3239, %v3332
    %v3790 = vmul.f32 %v3239, %v3336
    %v3791 = vmul.f32 %v3239, %v3340
    %v3792 = vmul.f32 %v3239, %v3344
    %v3793 = vmul.f32 %v3243, %v3316
    %v3794 = vmul.f32 %v3243, %v3320
    %v3795 = vmul.f32 %v3243, %v3324
    %v3796 = vmul.f32 %v3243, %v3328
    %v3797 = vmul.f32 %v3243, %v3332
    %v3798 = vmul.f32 %v3243, %v3336
    %v3799 = vmul.f32 %v3243, %v3340
    %v3800 = vmul.f32 %v3243, %v3344
    %v3801 = vmul.f32 %v3247, %v3316
    %v3802 = vmul.f32 %v3247, %v3320
    %v3803 = vmul.f32 %v3247, %v3324
    %v3804 = vmul.f32 %v3247, %v3328
    %v3805 = vmul.f32 %v3247, %v3332
    %v3806 = vmul.f32 %v3247, %v3336
    %v3807 = vmul.f32 %v3247, %v3340
    %v3808 = vmul.f32 %v3247, %v3344
    %v3809 = vmul.f32 %v3251, %v3316
    %v3810 = vmul.f32 %v3251, %v3320
    %v3811 = vmul.f32 %v3251, %v3324
    %v3812 = vmul.f32 %v3251, %v3328
    %v3813 = vmul.f32 %v3251, %v3332
    %v3814 = vmul.f32 %v3251, %v3336
    %v3815 = vmul.f32 %v3251, %v3340
    %v3816 = vmul.f32 %v3251, %v3344
    %v3817 = vmul.f32 %v3255, %v3316
    %v3818 = vmul.f32 %v3255, %v3320
    %v3819 = vmul.f32 %v3255, %v3324
    %v3820 = vmul.f32 %v3255, %v3328
    %v3821 = vmul.f32 %v3255, %v3332
    %v3822 = vmul.f32 %v3255, %v3336
    %v3823 = vmul.f32 %v3255, %v3340
    %v3824 = vmul.f32 %v3255, %v3344
    %v3825 = vmul.f32 %v3259, %v3316
    %v3826 = vmul.f32 %v3259, %v3320
    %v3827 = vmul.f32 %v3259, %v3324
    %v3828 = vmul.f32 %v3259, %v3328
    %v3829 = vmul.f32 %v3259, %v3332
    %v3830 = vmul.f32 %v3259, %v3336
    %v3831 = vmul.f32 %v3259, %v3340
    %v3832 = vmul.f32 %v3259, %v3344
    %v3833 = vmul.f32 %v3263, %v3316
    %v3834 = vmul.f32 %v3263, %v3320
    %v3835 = vmul.f32 %v3263, %v3324
    %v3836 = vmul.f32 %v3263, %v3328
    %v3837 = vmul.f32 %v3263, %v3332
    %v3838 = vmul.f32 %v3263, %v3336
    %v3839 = vmul.f32 %v3263, %v3340
    %v3840 = vmul.f32 %v3263, %v3344
    %v3841 = vmul.f32 %v3267, %v3316
    %v3842 = vmul.f32 %v3267, %v3320
    %v3843 = vmul.f32 %v3267, %v3324
    %v3844 = vmul.f32 %v3267, %v3328
    %v3845 = vmul.f32 %v3267, %v3332
    %v3846 = vmul.f32 %v3267, %v3336
    %v3847 = vmul.f32 %v3267, %v3340
    %v3848 = vmul.f32 %v3267, %v3344
    %v3849 = vmul.f32 %v3271, %v3316
    %v3850 = vmul.f32 %v3271, %v3320
    %v3851 = vmul.f32 %v3271, %v3324
    %v3852 = vmul.f32 %v3271, %v3328
    %v3853 = vmul.f32 %v3271, %v3332
    %v3854 = vmul.f32 %v3271, %v3336
    %v3855 = vmul.f32 %v3271, %v3340
    %v3856 = vmul.f32 %v3271, %v3344
    %v3857 = vadd.f32 %v2505, %v3345
    %v3858 = vadd.f32 %v2506, %v3346
    %v3859 = vadd.f32 %v2507, %v3347
    %v3860 = vadd.f32 %v2508, %v3348
    %v3861 = vadd.f32 %v2509, %v3349
    %v3862 = vadd.f32 %v2510, %v3350
    %v3863 = vadd.f32 %v2511, %v3351
    %v3864 = vadd.f32 %v2512, %v3352
    %v3865 = vadd.f32 %v2513, %v3353
    %v3866 = vadd.f32 %v2514, %v3354
    %v3867 = vadd.f32 %v2515, %v3355
    %v3868 = vadd.f32 %v2516, %v3356
    %v3869 = vadd.f32 %v2517, %v3357
    %v3870 = vadd.f32 %v2518, %v3358
    %v3871 = vadd.f32 %v2519, %v3359
    %v3872 = vadd.f32 %v2520, %v3360
    %v3873 = vadd.f32 %v2521, %v3361
    %v3874 = vadd.f32 %v2522, %v3362
    %v3875 = vadd.f32 %v2523, %v3363
    %v3876 = vadd.f32 %v2524, %v3364
    %v3877 = vadd.f32 %v2525, %v3365
    %v3878 = vadd.f32 %v2526, %v3366
    %v3879 = vadd.f32 %v2527, %v3367
    %v3880 = vadd.f32 %v2528, %v3368
    %v3881 = vadd.f32 %v2529, %v3369
    %v3882 = vadd.f32 %v2530, %v3370
    %v3883 = vadd.f32 %v2531, %v3371
    %v3884 = vadd.f32 %v2532, %v3372
    %v3885 = vadd.f32 %v2533, %v3373
    %v3886 = vadd.f32 %v2534, %v3374
    %v3887 = vadd.f32 %v2535, %v3375
    %v3888 = vadd.f32 %v2536, %v3376
    %v3889 = vadd.f32 %v2537, %v3377
    %v3890 = vadd.f32 %v2538, %v3378
    %v3891 = vadd.f32 %v2539, %v3379
    %v3892 = vadd.f32 %v2540, %v3380
    %v3893 = vadd.f32 %v2541, %v3381
    %v3894 = vadd.f32 %v2542, %v3382
    %v3895 = vadd.f32 %v2543, %v3383
    %v3896 = vadd.f32 %v2544, %v3384
    %v3897 = vadd.f32 %v2545, %v3385
    %v3898 = vadd.f32 %v2546, %v3386
    %v3899 = vadd.f32 %v2547, %v3387
    %v3900 = vadd.f32 %v2548, %v3388
    %v3901 = vadd.f32 %v2549, %v3389
    %v3902 = vadd.f32 %v2550, %v3390
    %v3903 = vadd.f32 %v2551, %v3391
    %v3904 = vadd.f32 %v2552, %v3392
    %v3905 = vadd.f32 %v2553, %v3393
    %v3906 = vadd.f32 %v2554, %v3394
    %v3907 = vadd.f32 %v2555, %v3395
    %v3908 = vadd.f32 %v2556, %v3396
    %v3909 = vadd.f32 %v2557, %v3397
    %v3910 = vadd.f32 %v2558, %v3398
    %v3911 = vadd.f32 %v2559, %v3399
    %v3912 = vadd.f32 %v2560, %v3400
    %v3913 = vadd.f32 %v2561, %v3401
    %v3914 = vadd.f32 %v2562, %v3402
    %v3915 = vadd.f32 %v2563, %v3403
    %v3916 = vadd.f32 %v2564, %v3404
    %v3917 = vadd.f32 %v2565, %v3405
    %v3918 = vadd.f32 %v2566, %v3406
    %v3919 = vadd.f32 %v2567, %v3407
    %v3920 = vadd.f32 %v2568, %v3408
    %v3921 = vadd.f32 %v2569, %v3409
    %v3922 = vadd.f32 %v2570, %v3410
    %v3923 = vadd.f32 %v2571, %v3411
    %v3924 = vadd.f32 %v2572, %v3412
    %v3925 = vadd.f32 %v2573, %v3413
    %v3926 = vadd.f32 %v2574, %v3414
    %v3927 = vadd.f32 %v2575, %v3415
    %v3928 = vadd.f32 %v2576, %v3416
    %v3929 = vadd.f32 %v2577, %v3417
    %v3930 = vadd.f32 %v2578, %v3418
    %v3931 = vadd.f32 %v2579, %v3419
    %v3932 = vadd.f32 %v2580, %v3420
    %v3933 = vadd.f32 %v2581, %v3421
    %v3934 = vadd.f32 %v2582, %v3422
    %v3935 = vadd.f32 %v2583, %v3423
    %v3936 = vadd.f32 %v2584, %v3424
    %v3937 = vadd.f32 %v2585, %v3425
    %v3938 = vadd.f32 %v2586, %v3426
    %v3939 = vadd.f32 %v2587, %v3427
    %v3940 = vadd.f32 %v2588, %v3428
    %v3941 = vadd.f32 %v2589, %v3429
    %v3942 = vadd.f32 %v2590, %v3430
    %v3943 = vadd.f32 %v2591, %v3431
    %v3944 = vadd.f32 %v2592, %v3432
    %v3945 = vadd.f32 %v2593, %v3433
    %v3946 = vadd.f32 %v2594, %v3434
    %v3947 = vadd.f32 %v2595, %v3435
    %v3948 = vadd.f32 %v2596, %v3436
    %v3949 = vadd.f32 %v2597, %v3437
    %v3950 = vadd.f32 %v2598, %v3438
    %v3951 = vadd.f32 %v2599, %v3439
    %v3952 = vadd.f32 %v2600, %v3440
    %v3953 = vadd.f32 %v2601, %v3441
    %v3954 = vadd.f32 %v2602, %v3442
    %v3955 = vadd.f32 %v2603, %v3443
    %v3956 = vadd.f32 %v2604, %v3444
    %v3957 = vadd.f32 %v2605, %v3445
    %v3958 = vadd.f32 %v2606, %v3446
    %v3959 = vadd.f32 %v2607, %v3447
    %v3960 = vadd.f32 %v2608, %v3448
    %v3961 = vadd.f32 %v2609, %v3449
    %v3962 = vadd.f32 %v2610, %v3450
    %v3963 = vadd.f32 %v2611, %v3451
    %v3964 = vadd.f32 %v2612, %v3452
    %v3965 = vadd.f32 %v2613, %v3453
    %v3966 = vadd.f32 %v2614, %v3454
    %v3967 = vadd.f32 %v2615, %v3455
    %v3968 = vadd.f32 %v2616, %v3456
    %v3969 = vadd.f32 %v2617, %v3457
    %v3970 = vadd.f32 %v2618, %v3458
    %v3971 = vadd.f32 %v2619, %v3459
    %v3972 = vadd.f32 %v2620, %v3460
    %v3973 = vadd.f32 %v2621, %v3461
    %v3974 = vadd.f32 %v2622, %v3462
    %v3975 = vadd.f32 %v2623, %v3463
    %v3976 = vadd.f32 %v2624, %v3464
    %v3977 = vadd.f32 %v2625, %v3465
    %v3978 = vadd.f32 %v2626, %v3466
    %v3979 = vadd.f32 %v2627, %v3467
    %v3980 = vadd.f32 %v2628, %v3468
    %v3981 = vadd.f32 %v2629, %v3469
    %v3982 = vadd.f32 %v2630, %v3470
    %v3983 = vadd.f32 %v2631, %v3471
    %v3984 = vadd.f32 %v2632, %v3472
    %v3985 = vadd.f32 %v2633, %v3473
    %v3986 = vadd.f32 %v2634, %v3474
    %v3987 = vadd.f32 %v2635, %v3475
    %v3988 = vadd.f32 %v2636, %v3476
    %v3989 = vadd.f32 %v2637, %v3477
    %v3990 = vadd.f32 %v2638, %v3478
    %v3991 = vadd.f32 %v2639, %v3479
    %v3992 = vadd.f32 %v2640, %v3480
    %v3993 = vadd.f32 %v2641, %v3481
    %v3994 = vadd.f32 %v2642, %v3482
    %v3995 = vadd.f32 %v2643, %v3483
    %v3996 = vadd.f32 %v2644, %v3484
    %v3997 = vadd.f32 %v2645, %v3485
    %v3998 = vadd.f32 %v2646, %v3486
    %v3999 = vadd.f32 %v2647, %v3487
    %v4000 = vadd.f32 %v2648, %v3488
    %v4001 = vadd.f32 %v2649, %v3489
    %v4002 = vadd.f32 %v2650, %v3490
    %v4003 = vadd.f32 %v2651, %v3491
    %v4004 = vadd.f32 %v2652, %v3492
    %v4005 = vadd.f32 %v2653, %v3493
    %v4006 = vadd.f32 %v2654, %v3494
    %v4007 = vadd.f32 %v2655, %v3495
    %v4008 = vadd.f32 %v2656, %v3496
    %v4009 = vadd.f32 %v2657, %v3497
    %v4010 = vadd.f32 %v2658, %v3498
    %v4011 = vadd.f32 %v2659, %v3499
    %v4012 = vadd.f32 %v2660, %v3500
    %v4013 = vadd.f32 %v2661, %v3501
    %v4014 = vadd.f32 %v2662, %v3502
    %v4015 = vadd.f32 %v2663, %v3503
    %v4016 = vadd.f32 %v2664, %v3504
    %v4017 = vadd.f32 %v2665, %v3505
    %v4018 = vadd.f32 %v2666, %v3506
    %v4019 = vadd.f32 %v2667, %v3507
    %v4020 = vadd.f32 %v2668, %v3508
    %v4021 = vadd.f32 %v2669, %v3509
    %v4022 = vadd.f32 %v2670, %v3510
    %v4023 = vadd.f32 %v2671, %v3511
    %v4024 = vadd.f32 %v2672, %v3512
    %v4025 = vadd.f32 %v2673, %v3513
    %v4026 = vadd.f32 %v2674, %v3514
    %v4027 = vadd.f32 %v2675, %v3515
    %v4028 = vadd.f32 %v2676, %v3516
    %v4029 = vadd.f32 %v2677, %v3517
    %v4030 = vadd.f32 %v2678, %v3518
    %v4031 = vadd.f32 %v2679, %v3519
    %v4032 = vadd.f32 %v2680, %v3520
    %v4033 = vadd.f32 %v2681, %v3521
    %v4034 = vadd.f32 %v2682, %v3522
    %v4035 = vadd.f32 %v2683, %v3523
    %v4036 = vadd.f32 %v2684, %v3524
    %v4037 = vadd.f32 %v2685, %v3525
    %v4038 = vadd.f32 %v2686, %v3526
    %v4039 = vadd.f32 %v2687, %v3527
    %v4040 = vadd.f32 %v2688, %v3528
    %v4041 = vadd.f32 %v2689, %v3529
    %v4042 = vadd.f32 %v2690, %v3530
    %v4043 = vadd.f32 %v2691, %v3531
    %v4044 = vadd.f32 %v2692, %v3532
    %v4045 = vadd.f32 %v2693, %v3533
    %v4046 = vadd.f32 %v2694, %v3534
    %v4047 = vadd.f32 %v2695, %v3535
    %v4048 = vadd.f32 %v2696, %v3536
    %v4049 = vadd.f32 %v2697, %v3537
    %v4050 = vadd.f32 %v2698, %v3538
    %v4051 = vadd.f32 %v2699, %v3539
    %v4052 = vadd.f32 %v2700, %v3540
    %v4053 = vadd.f32 %v2701, %v3541
    %v4054 = vadd.f32 %v2702, %v3542
    %v4055 = vadd.f32 %v2703, %v3543
    %v4056 = vadd.f32 %v2704, %v3544
    %v4057 = vadd.f32 %v2705, %v3545
    %v4058 = vadd.f32 %v2706, %v3546
    %v4059 = vadd.f32 %v2707, %v3547
    %v4060 = vadd.f32 %v2708, %v3548
    %v4061 = vadd.f32 %v2709, %v3549
    %v4062 = vadd.f32 %v2710, %v3550
    %v4063 = vadd.f32 %v2711, %v3551
    %v4064 = vadd.f32 %v2712, %v3552
    %v4065 = vadd.f32 %v2713, %v3553
    %v4066 = vadd.f32 %v2714, %v3554
    %v4067 = vadd.f32 %v2715, %v3555
    %v4068 = vadd.f32 %v2716, %v3556
    %v4069 = vadd.f32 %v2717, %v3557
    %v4070 = vadd.f32 %v2718, %v3558
    %v4071 = vadd.f32 %v2719, %v3559
    %v4072 = vadd.f32 %v2720, %v3560
    %v4073 = vadd.f32 %v2721, %v3561
    %v4074 = vadd.f32 %v2722, %v3562
    %v4075 = vadd.f32 %v2723, %v3563
    %v4076 = vadd.f32 %v2724, %v3564
    %v4077 = vadd.f32 %v2725, %v3565
    %v4078 = vadd.f32 %v2726, %v3566
    %v4079 = vadd.f32 %v2727, %v3567
    %v4080 = vadd.f32 %v2728, %v3568
    %v4081 = vadd.f32 %v2729, %v3569
    %v4082 = vadd.f32 %v2730, %v3570
    %v4083 = vadd.f32 %v2731, %v3571
    %v4084 = vadd.f32 %v2732, %v3572
    %v4085 = vadd.f32 %v2733, %v3573
    %v4086 = vadd.f32 %v2734, %v3574
    %v4087 = vadd.f32 %v2735, %v3575
    %v4088 = vadd.f32 %v2736, %v3576
    %v4089 = vadd.f32 %v2737, %v3577
    %v4090 = vadd.f32 %v2738, %v3578
    %v4091 = vadd.f32 %v2739, %v3579
    %v4092 = vadd.f32 %v2740, %v3580
    %v4093 = vadd.f32 %v2741, %v3581
    %v4094 = vadd.f32 %v2742, %v3582
    %v4095 = vadd.f32 %v2743, %v3583
    %v4096 = vadd.f32 %v2744, %v3584
    %v4097 = vadd.f32 %v2745, %v3585
    %v4098 = vadd.f32 %v2746, %v3586
    %v4099 = vadd.f32 %v2747, %v3587
    %v4100 = vadd.f32 %v2748, %v3588
    %v4101 = vadd.f32 %v2749, %v3589
    %v4102 = vadd.f32 %v2750, %v3590
    %v4103 = vadd.f32 %v2751, %v3591
    %v4104 = vadd.f32 %v2752, %v3592
    %v4105 = vadd.f32 %v2753, %v3593
    %v4106 = vadd.f32 %v2754, %v3594
    %v4107 = vadd.f32 %v2755, %v3595
    %v4108 = vadd.f32 %v2756, %v3596
    %v4109 = vadd.f32 %v2757, %v3597
    %v4110 = vadd.f32 %v2758, %v3598
    %v4111 = vadd.f32 %v2759, %v3599
    %v4112 = vadd.f32 %v2760, %v3600
    %v4113 = vadd.f32 %v2761, %v3601
    %v4114 = vadd.f32 %v2762, %v3602
    %v4115 = vadd.f32 %v2763, %v3603
    %v4116 = vadd.f32 %v2764, %v3604
    %v4117 = vadd.f32 %v2765, %v3605
    %v4118 = vadd.f32 %v2766, %v3606
    %v4119 = vadd.f32 %v2767, %v3607
    %v4120 = vadd.f32 %v2768, %v3608
    %v4121 = vadd.f32 %v2769, %v3609
    %v4122 = vadd.f32 %v2770, %v3610
    %v4123 = vadd.f32 %v2771, %v3611
    %v4124 = vadd.f32 %v2772, %v3612
    %v4125 = vadd.f32 %v2773, %v3613
    %v4126 = vadd.f32 %v2774, %v3614
    %v4127 = vadd.f32 %v2775, %v3615
    %v4128 = vadd.f32 %v2776, %v3616
    %v4129 = vadd.f32 %v2777, %v3617
    %v4130 = vadd.f32 %v2778, %v3618
    %v4131 = vadd.f32 %v2779, %v3619
    %v4132 = vadd.f32 %v2780, %v3620
    %v4133 = vadd.f32 %v2781, %v3621
    %v4134 = vadd.f32 %v2782, %v3622
    %v4135 = vadd.f32 %v2783, %v3623
    %v4136 = vadd.f32 %v2784, %v3624
    %v4137 = vadd.f32 %v2785, %v3625
    %v4138 = vadd.f32 %v2786, %v3626
    %v4139 = vadd.f32 %v2787, %v3627
    %v4140 = vadd.f32 %v2788, %v3628
    %v4141 = vadd.f32 %v2789, %v3629
    %v4142 = vadd.f32 %v2790, %v3630
    %v4143 = vadd.f32 %v2791, %v3631
    %v4144 = vadd.f32 %v2792, %v3632
    %v4145 = vadd.f32 %v2793, %v3633
    %v4146 = vadd.f32 %v2794, %v3634
    %v4147 = vadd.f32 %v2795, %v3635
    %v4148 = vadd.f32 %v2796, %v3636
    %v4149 = vadd.f32 %v2797, %v3637
    %v4150 = vadd.f32 %v2798, %v3638
    %v4151 = vadd.f32 %v2799, %v3639
    %v4152 = vadd.f32 %v2800, %v3640
    %v4153 = vadd.f32 %v2801, %v3641
    %v4154 = vadd.f32 %v2802, %v3642
    %v4155 = vadd.f32 %v2803, %v3643
    %v4156 = vadd.f32 %v2804, %v3644
    %v4157 = vadd.f32 %v2805, %v3645
    %v4158 = vadd.f32 %v2806, %v3646
    %v4159 = vadd.f32 %v2807, %v3647
    %v4160 = vadd.f32 %v2808, %v3648
    %v4161 = vadd.f32 %v2809, %v3649
    %v4162 = vadd.f32 %v2810, %v3650
    %v4163 = vadd.f32 %v2811, %v3651
    %v4164 = vadd.f32 %v2812, %v3652
    %v4165 = vadd.f32 %v2813, %v3653
    %v4166 = vadd.f32 %v2814, %v3654
    %v4167 = vadd.f32 %v2815, %v3655
    %v4168 = vadd.f32 %v2816, %v3656
    %v4169 = vadd.f32 %v2817, %v3657
    %v4170 = vadd.f32 %v2818, %v3658
    %v4171 = vadd.f32 %v2819, %v3659
    %v4172 = vadd.f32 %v2820, %v3660
    %v4173 = vadd.f32 %v2821, %v3661
    %v4174 = vadd.f32 %v2822, %v3662
    %v4175 = vadd.f32 %v2823, %v3663
    %v4176 = vadd.f32 %v2824, %v3664
    %v4177 = vadd.f32 %v2825, %v3665
    %v4178 = vadd.f32 %v2826, %v3666
    %v4179 = vadd.f32 %v2827, %v3667
    %v4180 = vadd.f32 %v2828, %v3668
    %v4181 = vadd.f32 %v2829, %v3669
    %v4182 = vadd.f32 %v2830, %v3670
    %v4183 = vadd.f32 %v2831, %v3671
    %v4184 = vadd.f32 %v2832, %v3672
    %v4185 = vadd.f32 %v2833, %v3673
    %v4186 = vadd.f32 %v2834, %v3674
    %v4187 = vadd.f32 %v2835, %v3675
    %v4188 = vadd.f32 %v2836, %v3676
    %v4189 = vadd.f32 %v2837, %v3677
    %v4190 = vadd.f32 %v2838, %v3678
    %v4191 = vadd.f32 %v2839, %v3679
    %v4192 = vadd.f32 %v2840, %v3680
    %v4193 = vadd.f32 %v2841, %v3681
    %v4194 = vadd.f32 %v2842, %v3682
    %v4195 = vadd.f32 %v2843, %v3683
    %v4196 = vadd.f32 %v2844, %v3684
    %v4197 = vadd.f32 %v2845, %v3685
    %v4198 = vadd.f32 %v2846, %v3686
    %v4199 = vadd.f32 %v2847, %v3687
    %v4200 = vadd.f32 %v2848, %v3688
    %v4201 = vadd.f32 %v2849, %v3689
    %v4202 = vadd.f32 %v2850, %v3690
    %v4203 = vadd.f32 %v2851, %v3691
    %v4204 = vadd.f32 %v2852, %v3692
    %v4205 = vadd.f32 %v2853, %v3693
    %v4206 = vadd.f32 %v2854, %v3694
    %v4207 = vadd.f32 %v2855, %v3695
    %v4208 = vadd.f32 %v2856, %v3696
    %v4209 = vadd.f32 %v2857, %v3697
    %v4210 = vadd.f32 %v2858, %v3698
    %v4211 = vadd.f32 %v2859, %v3699
    %v4212 = vadd.f32 %v2860, %v3700
    %v4213 = vadd.f32 %v2861, %v3701
    %v4214 = vadd.f32 %v2862, %v3702
    %v4215 = vadd.f32 %v2863, %v3703
    %v4216 = vadd.f32 %v2864, %v3704
    %v4217 = vadd.f32 %v2865, %v3705
    %v4218 = vadd.f32 %v2866, %v3706
    %v4219 = vadd.f32 %v2867, %v3707
    %v4220 = vadd.f32 %v2868, %v3708
    %v4221 = vadd.f32 %v2869, %v3709
    %v4222 = vadd.f32 %v2870, %v3710
    %v4223 = vadd.f32 %v2871, %v3711
    %v4224 = vadd.f32 %v2872, %v3712
    %v4225 = vadd.f32 %v2873, %v3713
    %v4226 = vadd.f32 %v2874, %v3714
    %v4227 = vadd.f32 %v2875, %v3715
    %v4228 = vadd.f32 %v2876, %v3716
    %v4229 = vadd.f32 %v2877, %v3717
    %v4230 = vadd.f32 %v2878, %v3718
    %v4231 = vadd.f32 %v2879, %v3719
    %v4232 = vadd.f32 %v2880, %v3720
    %v4233 = vadd.f32 %v2881, %v3721
    %v4234 = vadd.f32 %v2882, %v3722
    %v4235 = vadd.f32 %v2883, %v3723
    %v4236 = vadd.f32 %v2884, %v3724
    %v4237 = vadd.f32 %v2885, %v3725
    %v4238 = vadd.f32 %v2886, %v3726
    %v4239 = vadd.f32 %v2887, %v3727
    %v4240 = vadd.f32 %v2888, %v3728
    %v4241 = vadd.f32 %v2889, %v3729
    %v4242 = vadd.f32 %v2890, %v3730
    %v4243 = vadd.f32 %v2891, %v3731
    %v4244 = vadd.f32 %v2892, %v3732
    %v4245 = vadd.f32 %v2893, %v3733
    %v4246 = vadd.f32 %v2894, %v3734
    %v4247 = vadd.f32 %v2895, %v3735
    %v4248 = vadd.f32 %v2896, %v3736
    %v4249 = vadd.f32 %v2897, %v3737
    %v4250 = vadd.f32 %v2898, %v3738
    %v4251 = vadd.f32 %v2899, %v3739
    %v4252 = vadd.f32 %v2900, %v3740
    %v4253 = vadd.f32 %v2901, %v3741
    %v4254 = vadd.f32 %v2902, %v3742
    %v4255 = vadd.f32 %v2903, %v3743
    %v4256 = vadd.f32 %v2904, %v3744
    %v4257 = vadd.f32 %v2905, %v3745
    %v4258 = vadd.f32 %v2906, %v3746
    %v4259 = vadd.f32 %v2907, %v3747
    %v4260 = vadd.f32 %v2908, %v3748
    %v4261 = vadd.f32 %v2909, %v3749
    %v4262 = vadd.f32 %v2910, %v3750
    %v4263 = vadd.f32 %v2911, %v3751
    %v4264 = vadd.f32 %v2912, %v3752
    %v4265 = vadd.f32 %v2913, %v3753
    %v4266 = vadd.f32 %v2914, %v3754
    %v4267 = vadd.f32 %v2915, %v3755
    %v4268 = vadd.f32 %v2916, %v3756
    %v4269 = vadd.f32 %v2917, %v3757
    %v4270 = vadd.f32 %v2918, %v3758
    %v4271 = vadd.f32 %v2919, %v3759
    %v4272 = vadd.f32 %v2920, %v3760
    %v4273 = vadd.f32 %v2921, %v3761
    %v4274 = vadd.f32 %v2922, %v3762
    %v4275 = vadd.f32 %v2923, %v3763
    %v4276 = vadd.f32 %v2924, %v3764
    %v4277 = vadd.f32 %v2925, %v3765
    %v4278 = vadd.f32 %v2926, %v3766
    %v4279 = vadd.f32 %v2927, %v3767
    %v4280 = vadd.f32 %v2928, %v3768
    %v4281 = vadd.f32 %v2929, %v3769
    %v4282 = vadd.f32 %v2930, %v3770
    %v4283 = vadd.f32 %v2931, %v3771
    %v4284 = vadd.f32 %v2932, %v3772
    %v4285 = vadd.f32 %v2933, %v3773
    %v4286 = vadd.f32 %v2934, %v3774
    %v4287 = vadd.f32 %v2935, %v3775
    %v4288 = vadd.f32 %v2936, %v3776
    %v4289 = vadd.f32 %v2937, %v3777
    %v4290 = vadd.f32 %v2938, %v3778
    %v4291 = vadd.f32 %v2939, %v3779
    %v4292 = vadd.f32 %v2940, %v3780
    %v4293 = vadd.f32 %v2941, %v3781
    %v4294 = vadd.f32 %v2942, %v3782
    %v4295 = vadd.f32 %v2943, %v3783
    %v4296 = vadd.f32 %v2944, %v3784
    %v4297 = vadd.f32 %v2945, %v3785
    %v4298 = vadd.f32 %v2946, %v3786
    %v4299 = vadd.f32 %v2947, %v3787
    %v4300 = vadd.f32 %v2948, %v3788
    %v4301 = vadd.f32 %v2949, %v3789
    %v4302 = vadd.f32 %v2950, %v3790
    %v4303 = vadd.f32 %v2951, %v3791
    %v4304 = vadd.f32 %v2952, %v3792
    %v4305 = vadd.f32 %v2953, %v3793
    %v4306 = vadd.f32 %v2954, %v3794
    %v4307 = vadd.f32 %v2955, %v3795
    %v4308 = vadd.f32 %v2956, %v3796
    %v4309 = vadd.f32 %v2957, %v3797
    %v4310 = vadd.f32 %v2958, %v3798
    %v4311 = vadd.f32 %v2959, %v3799
    %v4312 = vadd.f32 %v2960, %v3800
    %v4313 = vadd.f32 %v2961, %v3801
    %v4314 = vadd.f32 %v2962, %v3802
    %v4315 = vadd.f32 %v2963, %v3803
    %v4316 = vadd.f32 %v2964, %v3804
    %v4317 = vadd.f32 %v2965, %v3805
    %v4318 = vadd.f32 %v2966, %v3806
    %v4319 = vadd.f32 %v2967, %v3807
    %v4320 = vadd.f32 %v2968, %v3808
    %v4321 = vadd.f32 %v2969, %v3809
    %v4322 = vadd.f32 %v2970, %v3810
    %v4323 = vadd.f32 %v2971, %v3811
    %v4324 = vadd.f32 %v2972, %v3812
    %v4325 = vadd.f32 %v2973, %v3813
    %v4326 = vadd.f32 %v2974, %v3814
    %v4327 = vadd.f32 %v2975, %v3815
    %v4328 = vadd.f32 %v2976, %v3816
    %v4329 = vadd.f32 %v2977, %v3817
    %v4330 = vadd.f32 %v2978, %v3818
    %v4331 = vadd.f32 %v2979, %v3819
    %v4332 = vadd.f32 %v2980, %v3820
    %v4333 = vadd.f32 %v2981, %v3821
    %v4334 = vadd.f32 %v2982, %v3822
    %v4335 = vadd.f32 %v2983, %v3823
    %v4336 = vadd.f32 %v2984, %v3824
    %v4337 = vadd.f32 %v2985, %v3825
    %v4338 = vadd.f32 %v2986, %v3826
    %v4339 = vadd.f32 %v2987, %v3827
    %v4340 = vadd.f32 %v2988, %v3828
    %v4341 = vadd.f32 %v2989, %v3829
    %v4342 = vadd.f32 %v2990, %v3830
    %v4343 = vadd.f32 %v2991, %v3831
    %v4344 = vadd.f32 %v2992, %v3832
    %v4345 = vadd.f32 %v2993, %v3833
    %v4346 = vadd.f32 %v2994, %v3834
    %v4347 = vadd.f32 %v2995, %v3835
    %v4348 = vadd.f32 %v2996, %v3836
    %v4349 = vadd.f32 %v2997, %v3837
    %v4350 = vadd.f32 %v2998, %v3838
    %v4351 = vadd.f32 %v2999, %v3839
    %v4352 = vadd.f32 %v3000, %v3840
    %v4353 = vadd.f32 %v3001, %v3841
    %v4354 = vadd.f32 %v3002, %v3842
    %v4355 = vadd.f32 %v3003, %v3843
    %v4356 = vadd.f32 %v3004, %v3844
    %v4357 = vadd.f32 %v3005, %v3845
    %v4358 = vadd.f32 %v3006, %v3846
    %v4359 = vadd.f32 %v3007, %v3847
    %v4360 = vadd.f32 %v3008, %v3848
    %v4361 = vadd.f32 %v3009, %v3849
    %v4362 = vadd.f32 %v3010, %v3850
    %v4363 = vadd.f32 %v3011, %v3851
    %v4364 = vadd.f32 %v3012, %v3852
    %v4365 = vadd.f32 %v3013, %v3853
    %v4366 = vadd.f32 %v3014, %v3854
    %v4367 = vadd.f32 %v3015, %v3855
    %v4368 = vadd.f32 %v3016, %v3856
    %4369 = vset.pattern.permute.xlu0 3
    %4370 = vperm.xlu0 %4369, %v135
    %v4371 = vpop.permute.xlu0 %4370
    %4373 = vset.pattern.permute.xlu0 3
    %4374 = vperm.xlu0 %4373, %v136
    %v4375 = vpop.permute.xlu0 %4374
    %4377 = vset.pattern.permute.xlu0 3
    %4378 = vperm.xlu0 %4377, %v137
    %v4379 = vpop.permute.xlu0 %4378
    %4381 = vset.pattern.permute.xlu0 3
    %4382 = vperm.xlu0 %4381, %v138
    %v4383 = vpop.permute.xlu0 %4382
    %4385 = vset.pattern.permute.xlu0 3
    %4386 = vperm.xlu0 %4385, %v139
    %v4387 = vpop.permute.xlu0 %4386
    %4389 = vset.pattern.permute.xlu0 3
    %4390 = vperm.xlu0 %4389, %v140
    %v4391 = vpop.permute.xlu0 %4390
    %4393 = vset.pattern.permute.xlu0 3
    %4394 = vperm.xlu0 %4393, %v141
    %v4395 = vpop.permute.xlu0 %4394
    %4397 = vset.pattern.permute.xlu0 3
    %4398 = vperm.xlu0 %4397, %v142
    %v4399 = vpop.permute.xlu0 %4398
    %4401 = vset.pattern.permute.xlu0 3
    %4402 = vperm.xlu0 %4401, %v143
    %v4403 = vpop.permute.xlu0 %4402
    %4405 = vset.pattern.permute.xlu0 3
    %4406 = vperm.xlu0 %4405, %v144
    %v4407 = vpop.permute.xlu0 %4406
    %4409 = vset.pattern.permute.xlu0 3
    %4410 = vperm.xlu0 %4409, %v145
    %v4411 = vpop.permute.xlu0 %4410
    %4413 = vset.pattern.permute.xlu0 3
    %4414 = vperm.xlu0 %4413, %v146
    %v4415 = vpop.permute.xlu0 %4414
    %4417 = vset.pattern.permute.xlu0 3
    %4418 = vperm.xlu0 %4417, %v147
    %v4419 = vpop.permute.xlu0 %4418
    %4421 = vset.pattern.permute.xlu0 3
    %4422 = vperm.xlu0 %4421, %v148
    %v4423 = vpop.permute.xlu0 %4422
    %4425 = vset.pattern.permute.xlu0 3
    %4426 = vperm.xlu0 %4425, %v149
    %v4427 = vpop.permute.xlu0 %4426
    %4429 = vset.pattern.permute.xlu0 3
    %4430 = vperm.xlu0 %4429, %v150
    %v4431 = vpop.permute.xlu0 %4430
    %4433 = vset.pattern.permute.xlu0 3
    %4434 = vperm.xlu0 %4433, %v151
    %v4435 = vpop.permute.xlu0 %4434
    %4437 = vset.pattern.permute.xlu0 3
    %4438 = vperm.xlu0 %4437, %v152
    %v4439 = vpop.permute.xlu0 %4438
    %4441 = vset.pattern.permute.xlu0 3
    %4442 = vperm.xlu0 %4441, %v153
    %v4443 = vpop.permute.xlu0 %4442
    %4445 = vset.pattern.permute.xlu0 3
    %4446 = vperm.xlu0 %4445, %v154
    %v4447 = vpop.permute.xlu0 %4446
    %4449 = vset.pattern.permute.xlu0 3
    %4450 = vperm.xlu0 %4449, %v155
    %v4451 = vpop.permute.xlu0 %4450
    %4453 = vset.pattern.permute.xlu0 3
    %4454 = vperm.xlu0 %4453, %v156
    %v4455 = vpop.permute.xlu0 %4454
    %4457 = vset.pattern.permute.xlu0 3
    %4458 = vperm.xlu0 %4457, %v157
    %v4459 = vpop.permute.xlu0 %4458
    %4461 = vset.pattern.permute.xlu0 3
    %4462 = vperm.xlu0 %4461, %v158
    %v4463 = vpop.permute.xlu0 %4462
    %4465 = vset.pattern.permute.xlu0 3
    %4466 = vperm.xlu0 %4465, %v159
    %v4467 = vpop.permute.xlu0 %4466
    %4469 = vset.pattern.permute.xlu0 3
    %4470 = vperm.xlu0 %4469, %v160
    %v4471 = vpop.permute.xlu0 %4470
    %4473 = vset.pattern.permute.xlu0 3
    %4474 = vperm.xlu0 %4473, %v161
    %v4475 = vpop.permute.xlu0 %4474
    %4477 = vset.pattern.permute.xlu0 3
    %4478 = vperm.xlu0 %4477, %v162
    %v4479 = vpop.permute.xlu0 %4478
    %4481 = vset.pattern.permute.xlu0 3
    %4482 = vperm.xlu0 %4481, %v163
    %v4483 = vpop.permute.xlu0 %4482
    %4485 = vset.pattern.permute.xlu0 3
    %4486 = vperm.xlu0 %4485, %v164
    %v4487 = vpop.permute.xlu0 %4486
    %4489 = vset.pattern.permute.xlu0 3
    %4490 = vperm.xlu0 %4489, %v165
    %v4491 = vpop.permute.xlu0 %4490
    %4493 = vset.pattern.permute.xlu0 3
    %4494 = vperm.xlu0 %4493, %v166
    %v4495 = vpop.permute.xlu0 %4494
    %4497 = vset.pattern.permute.xlu0 3
    %4498 = vperm.xlu0 %4497, %v167
    %v4499 = vpop.permute.xlu0 %4498
    %4501 = vset.pattern.permute.xlu0 3
    %4502 = vperm.xlu0 %4501, %v168
    %v4503 = vpop.permute.xlu0 %4502
    %4505 = vset.pattern.permute.xlu0 3
    %4506 = vperm.xlu0 %4505, %v169
    %v4507 = vpop.permute.xlu0 %4506
    %4509 = vset.pattern.permute.xlu0 3
    %4510 = vperm.xlu0 %4509, %v170
    %v4511 = vpop.permute.xlu0 %4510
    %4513 = vset.pattern.permute.xlu0 3
    %4514 = vperm.xlu0 %4513, %v171
    %v4515 = vpop.permute.xlu0 %4514
    %4517 = vset.pattern.permute.xlu0 3
    %4518 = vperm.xlu0 %4517, %v172
    %v4519 = vpop.permute.xlu0 %4518
    %4521 = vset.pattern.permute.xlu0 3
    %4522 = vperm.xlu0 %4521, %v173
    %v4523 = vpop.permute.xlu0 %4522
    %4525 = vset.pattern.permute.xlu0 3
    %4526 = vperm.xlu0 %4525, %v174
    %v4527 = vpop.permute.xlu0 %4526
    %4529 = vset.pattern.permute.xlu0 3
    %4530 = vperm.xlu0 %4529, %v175
    %v4531 = vpop.permute.xlu0 %4530
    %4533 = vset.pattern.permute.xlu0 3
    %4534 = vperm.xlu0 %4533, %v176
    %v4535 = vpop.permute.xlu0 %4534
    %4537 = vset.pattern.permute.xlu0 3
    %4538 = vperm.xlu0 %4537, %v177
    %v4539 = vpop.permute.xlu0 %4538
    %4541 = vset.pattern.permute.xlu0 3
    %4542 = vperm.xlu0 %4541, %v178
    %v4543 = vpop.permute.xlu0 %4542
    %4545 = vset.pattern.permute.xlu0 3
    %4546 = vperm.xlu0 %4545, %v179
    %v4547 = vpop.permute.xlu0 %4546
    %4549 = vset.pattern.permute.xlu0 3
    %4550 = vperm.xlu0 %4549, %v180
    %v4551 = vpop.permute.xlu0 %4550
    %4553 = vset.pattern.permute.xlu0 3
    %4554 = vperm.xlu0 %4553, %v181
    %v4555 = vpop.permute.xlu0 %4554
    %4557 = vset.pattern.permute.xlu0 3
    %4558 = vperm.xlu0 %4557, %v182
    %v4559 = vpop.permute.xlu0 %4558
    %4561 = vset.pattern.permute.xlu0 3
    %4562 = vperm.xlu0 %4561, %v183
    %v4563 = vpop.permute.xlu0 %4562
    %4565 = vset.pattern.permute.xlu0 3
    %4566 = vperm.xlu0 %4565, %v184
    %v4567 = vpop.permute.xlu0 %4566
    %4569 = vset.pattern.permute.xlu0 3
    %4570 = vperm.xlu0 %4569, %v185
    %v4571 = vpop.permute.xlu0 %4570
    %4573 = vset.pattern.permute.xlu0 3
    %4574 = vperm.xlu0 %4573, %v186
    %v4575 = vpop.permute.xlu0 %4574
    %4577 = vset.pattern.permute.xlu0 3
    %4578 = vperm.xlu0 %4577, %v187
    %v4579 = vpop.permute.xlu0 %4578
    %4581 = vset.pattern.permute.xlu0 3
    %4582 = vperm.xlu0 %4581, %v188
    %v4583 = vpop.permute.xlu0 %4582
    %4585 = vset.pattern.permute.xlu0 3
    %4586 = vperm.xlu0 %4585, %v189
    %v4587 = vpop.permute.xlu0 %4586
    %4589 = vset.pattern.permute.xlu0 3
    %4590 = vperm.xlu0 %4589, %v190
    %v4591 = vpop.permute.xlu0 %4590
    %4593 = vset.pattern.permute.xlu0 3
    %4594 = vperm.xlu0 %4593, %v191
    %v4595 = vpop.permute.xlu0 %4594
    %4597 = vset.pattern.permute.xlu0 3
    %4598 = vperm.xlu0 %4597, %v192
    %v4599 = vpop.permute.xlu0 %4598
    %4601 = vset.pattern.permute.xlu0 3
    %4602 = vperm.xlu0 %4601, %v193
    %v4603 = vpop.permute.xlu0 %4602
    %4605 = vset.pattern.permute.xlu0 3
    %4606 = vperm.xlu0 %4605, %v194
    %v4607 = vpop.permute.xlu0 %4606
    %4609 = vset.pattern.permute.xlu0 3
    %4610 = vperm.xlu0 %4609, %v195
    %v4611 = vpop.permute.xlu0 %4610
    %4613 = vset.pattern.permute.xlu0 3
    %4614 = vperm.xlu0 %4613, %v196
    %v4615 = vpop.permute.xlu0 %4614
    %4617 = vset.pattern.permute.xlu0 3
    %4618 = vperm.xlu0 %4617, %v197
    %v4619 = vpop.permute.xlu0 %4618
    %4621 = vset.pattern.permute.xlu0 3
    %4622 = vperm.xlu0 %4621, %v198
    %v4623 = vpop.permute.xlu0 %4622
    %v4625 = vlaneseq
    %v4626 = vshrl.u32 %v4625, 7
    %v4627 = vsub.s32 3, %v4626
    %v4628 = vrot.slane %v199, %v4627
    %v4629 = vlaneseq
    %v4630 = vshrl.u32 %v4629, 7
    %v4631 = vsub.s32 7, %v4630
    %v4632 = vrot.slane %v199, %v4631
    %v4633 = vlaneseq
    %v4634 = vshrl.u32 %v4633, 7
    %v4635 = vsub.s32 3, %v4634
    %v4636 = vrot.slane %v200, %v4635
    %v4637 = vlaneseq
    %v4638 = vshrl.u32 %v4637, 7
    %v4639 = vsub.s32 7, %v4638
    %v4640 = vrot.slane %v200, %v4639
    %v4641 = vlaneseq
    %v4642 = vshrl.u32 %v4641, 7
    %v4643 = vsub.s32 3, %v4642
    %v4644 = vrot.slane %v201, %v4643
    %v4645 = vlaneseq
    %v4646 = vshrl.u32 %v4645, 7
    %v4647 = vsub.s32 7, %v4646
    %v4648 = vrot.slane %v201, %v4647
    %v4649 = vlaneseq
    %v4650 = vshrl.u32 %v4649, 7
    %v4651 = vsub.s32 3, %v4650
    %v4652 = vrot.slane %v202, %v4651
    %v4653 = vlaneseq
    %v4654 = vshrl.u32 %v4653, 7
    %v4655 = vsub.s32 7, %v4654
    %v4656 = vrot.slane %v202, %v4655
    %v4665 = vlaneseq
    %v4666 = vshrl.u32 %v4665, 7
    %v4667 = vsub.s32 3, %v4666
    %v4668 = vrot.slane %v4628, %v4667
    %v4669 = vlaneseq
    %v4670 = vshrl.u32 %v4669, 7
    %v4671 = vsub.s32 3, %v4670
    %v4672 = vrot.slane %v4632, %v4671
    %v4673 = vlaneseq
    %v4674 = vshrl.u32 %v4673, 7
    %v4675 = vsub.s32 3, %v4674
    %v4676 = vrot.slane %v4636, %v4675
    %v4677 = vlaneseq
    %v4678 = vshrl.u32 %v4677, 7
    %v4679 = vsub.s32 3, %v4678
    %v4680 = vrot.slane %v4640, %v4679
    %v4681 = vlaneseq
    %v4682 = vshrl.u32 %v4681, 7
    %v4683 = vsub.s32 3, %v4682
    %v4684 = vrot.slane %v4644, %v4683
    %v4685 = vlaneseq
    %v4686 = vshrl.u32 %v4685, 7
    %v4687 = vsub.s32 3, %v4686
    %v4688 = vrot.slane %v4648, %v4687
    %v4689 = vlaneseq
    %v4690 = vshrl.u32 %v4689, 7
    %v4691 = vsub.s32 3, %v4690
    %v4692 = vrot.slane %v4652, %v4691
    %v4693 = vlaneseq
    %v4694 = vshrl.u32 %v4693, 7
    %v4695 = vsub.s32 3, %v4694
    %v4696 = vrot.slane %v4656, %v4695
    %v4697 = vmul.f32 %v4371, %v4668
    %v4698 = vmul.f32 %v4371, %v4672
    %v4699 = vmul.f32 %v4371, %v4676
    %v4700 = vmul.f32 %v4371, %v4680
    %v4701 = vmul.f32 %v4371, %v4684
    %v4702 = vmul.f32 %v4371, %v4688
    %v4703 = vmul.f32 %v4371, %v4692
    %v4704 = vmul.f32 %v4371, %v4696
    %v4705 = vmul.f32 %v4375, %v4668
    %v4706 = vmul.f32 %v4375, %v4672
    %v4707 = vmul.f32 %v4375, %v4676
    %v4708 = vmul.f32 %v4375, %v4680
    %v4709 = vmul.f32 %v4375, %v4684
    %v4710 = vmul.f32 %v4375, %v4688
    %v4711 = vmul.f32 %v4375, %v4692
    %v4712 = vmul.f32 %v4375, %v4696
    %v4713 = vmul.f32 %v4379, %v4668
    %v4714 = vmul.f32 %v4379, %v4672
    %v4715 = vmul.f32 %v4379, %v4676
    %v4716 = vmul.f32 %v4379, %v4680
    %v4717 = vmul.f32 %v4379, %v4684
    %v4718 = vmul.f32 %v4379, %v4688
    %v4719 = vmul.f32 %v4379, %v4692
    %v4720 = vmul.f32 %v4379, %v4696
    %v4721 = vmul.f32 %v4383, %v4668
    %v4722 = vmul.f32 %v4383, %v4672
    %v4723 = vmul.f32 %v4383, %v4676
    %v4724 = vmul.f32 %v4383, %v4680
    %v4725 = vmul.f32 %v4383, %v4684
    %v4726 = vmul.f32 %v4383, %v4688
    %v4727 = vmul.f32 %v4383, %v4692
    %v4728 = vmul.f32 %v4383, %v4696
    %v4729 = vmul.f32 %v4387, %v4668
    %v4730 = vmul.f32 %v4387, %v4672
    %v4731 = vmul.f32 %v4387, %v4676
    %v4732 = vmul.f32 %v4387, %v4680
    %v4733 = vmul.f32 %v4387, %v4684
    %v4734 = vmul.f32 %v4387, %v4688
    %v4735 = vmul.f32 %v4387, %v4692
    %v4736 = vmul.f32 %v4387, %v4696
    %v4737 = vmul.f32 %v4391, %v4668
    %v4738 = vmul.f32 %v4391, %v4672
    %v4739 = vmul.f32 %v4391, %v4676
    %v4740 = vmul.f32 %v4391, %v4680
    %v4741 = vmul.f32 %v4391, %v4684
    %v4742 = vmul.f32 %v4391, %v4688
    %v4743 = vmul.f32 %v4391, %v4692
    %v4744 = vmul.f32 %v4391, %v4696
    %v4745 = vmul.f32 %v4395, %v4668
    %v4746 = vmul.f32 %v4395, %v4672
    %v4747 = vmul.f32 %v4395, %v4676
    %v4748 = vmul.f32 %v4395, %v4680
    %v4749 = vmul.f32 %v4395, %v4684
    %v4750 = vmul.f32 %v4395, %v4688
    %v4751 = vmul.f32 %v4395, %v4692
    %v4752 = vmul.f32 %v4395, %v4696
    %v4753 = vmul.f32 %v4399, %v4668
    %v4754 = vmul.f32 %v4399, %v4672
    %v4755 = vmul.f32 %v4399, %v4676
    %v4756 = vmul.f32 %v4399, %v4680
    %v4757 = vmul.f32 %v4399, %v4684
    %v4758 = vmul.f32 %v4399, %v4688
    %v4759 = vmul.f32 %v4399, %v4692
    %v4760 = vmul.f32 %v4399, %v4696
    %v4761 = vmul.f32 %v4403, %v4668
    %v4762 = vmul.f32 %v4403, %v4672
    %v4763 = vmul.f32 %v4403, %v4676
    %v4764 = vmul.f32 %v4403, %v4680
    %v4765 = vmul.f32 %v4403, %v4684
    %v4766 = vmul.f32 %v4403, %v4688
    %v4767 = vmul.f32 %v4403, %v4692
    %v4768 = vmul.f32 %v4403, %v4696
    %v4769 = vmul.f32 %v4407, %v4668
    %v4770 = vmul.f32 %v4407, %v4672
    %v4771 = vmul.f32 %v4407, %v4676
    %v4772 = vmul.f32 %v4407, %v4680
    %v4773 = vmul.f32 %v4407, %v4684
    %v4774 = vmul.f32 %v4407, %v4688
    %v4775 = vmul.f32 %v4407, %v4692
    %v4776 = vmul.f32 %v4407, %v4696
    %v4777 = vmul.f32 %v4411, %v4668
    %v4778 = vmul.f32 %v4411, %v4672
    %v4779 = vmul.f32 %v4411, %v4676
    %v4780 = vmul.f32 %v4411, %v4680
    %v4781 = vmul.f32 %v4411, %v4684
    %v4782 = vmul.f32 %v4411, %v4688
    %v4783 = vmul.f32 %v4411, %v4692
    %v4784 = vmul.f32 %v4411, %v4696
    %v4785 = vmul.f32 %v4415, %v4668
    %v4786 = vmul.f32 %v4415, %v4672
    %v4787 = vmul.f32 %v4415, %v4676
    %v4788 = vmul.f32 %v4415, %v4680
    %v4789 = vmul.f32 %v4415, %v4684
    %v4790 = vmul.f32 %v4415, %v4688
    %v4791 = vmul.f32 %v4415, %v4692
    %v4792 = vmul.f32 %v4415, %v4696
    %v4793 = vmul.f32 %v4419, %v4668
    %v4794 = vmul.f32 %v4419, %v4672
    %v4795 = vmul.f32 %v4419, %v4676
    %v4796 = vmul.f32 %v4419, %v4680
    %v4797 = vmul.f32 %v4419, %v4684
    %v4798 = vmul.f32 %v4419, %v4688
    %v4799 = vmul.f32 %v4419, %v4692
    %v4800 = vmul.f32 %v4419, %v4696
    %v4801 = vmul.f32 %v4423, %v4668
    %v4802 = vmul.f32 %v4423, %v4672
    %v4803 = vmul.f32 %v4423, %v4676
    %v4804 = vmul.f32 %v4423, %v4680
    %v4805 = vmul.f32 %v4423, %v4684
    %v4806 = vmul.f32 %v4423, %v4688
    %v4807 = vmul.f32 %v4423, %v4692
    %v4808 = vmul.f32 %v4423, %v4696
    %v4809 = vmul.f32 %v4427, %v4668
    %v4810 = vmul.f32 %v4427, %v4672
    %v4811 = vmul.f32 %v4427, %v4676
    %v4812 = vmul.f32 %v4427, %v4680
    %v4813 = vmul.f32 %v4427, %v4684
    %v4814 = vmul.f32 %v4427, %v4688
    %v4815 = vmul.f32 %v4427, %v4692
    %v4816 = vmul.f32 %v4427, %v4696
    %v4817 = vmul.f32 %v4431, %v4668
    %v4818 = vmul.f32 %v4431, %v4672
    %v4819 = vmul.f32 %v4431, %v4676
    %v4820 = vmul.f32 %v4431, %v4680
    %v4821 = vmul.f32 %v4431, %v4684
    %v4822 = vmul.f32 %v4431, %v4688
    %v4823 = vmul.f32 %v4431, %v4692
    %v4824 = vmul.f32 %v4431, %v4696
    %v4825 = vmul.f32 %v4435, %v4668
    %v4826 = vmul.f32 %v4435, %v4672
    %v4827 = vmul.f32 %v4435, %v4676
    %v4828 = vmul.f32 %v4435, %v4680
    %v4829 = vmul.f32 %v4435, %v4684
    %v4830 = vmul.f32 %v4435, %v4688
    %v4831 = vmul.f32 %v4435, %v4692
    %v4832 = vmul.f32 %v4435, %v4696
    %v4833 = vmul.f32 %v4439, %v4668
    %v4834 = vmul.f32 %v4439, %v4672
    %v4835 = vmul.f32 %v4439, %v4676
    %v4836 = vmul.f32 %v4439, %v4680
    %v4837 = vmul.f32 %v4439, %v4684
    %v4838 = vmul.f32 %v4439, %v4688
    %v4839 = vmul.f32 %v4439, %v4692
    %v4840 = vmul.f32 %v4439, %v4696
    %v4841 = vmul.f32 %v4443, %v4668
    %v4842 = vmul.f32 %v4443, %v4672
    %v4843 = vmul.f32 %v4443, %v4676
    %v4844 = vmul.f32 %v4443, %v4680
    %v4845 = vmul.f32 %v4443, %v4684
    %v4846 = vmul.f32 %v4443, %v4688
    %v4847 = vmul.f32 %v4443, %v4692
    %v4848 = vmul.f32 %v4443, %v4696
    %v4849 = vmul.f32 %v4447, %v4668
    %v4850 = vmul.f32 %v4447, %v4672
    %v4851 = vmul.f32 %v4447, %v4676
    %v4852 = vmul.f32 %v4447, %v4680
    %v4853 = vmul.f32 %v4447, %v4684
    %v4854 = vmul.f32 %v4447, %v4688
    %v4855 = vmul.f32 %v4447, %v4692
    %v4856 = vmul.f32 %v4447, %v4696
    %v4857 = vmul.f32 %v4451, %v4668
    %v4858 = vmul.f32 %v4451, %v4672
    %v4859 = vmul.f32 %v4451, %v4676
    %v4860 = vmul.f32 %v4451, %v4680
    %v4861 = vmul.f32 %v4451, %v4684
    %v4862 = vmul.f32 %v4451, %v4688
    %v4863 = vmul.f32 %v4451, %v4692
    %v4864 = vmul.f32 %v4451, %v4696
    %v4865 = vmul.f32 %v4455, %v4668
    %v4866 = vmul.f32 %v4455, %v4672
    %v4867 = vmul.f32 %v4455, %v4676
    %v4868 = vmul.f32 %v4455, %v4680
    %v4869 = vmul.f32 %v4455, %v4684
    %v4870 = vmul.f32 %v4455, %v4688
    %v4871 = vmul.f32 %v4455, %v4692
    %v4872 = vmul.f32 %v4455, %v4696
    %v4873 = vmul.f32 %v4459, %v4668
    %v4874 = vmul.f32 %v4459, %v4672
    %v4875 = vmul.f32 %v4459, %v4676
    %v4876 = vmul.f32 %v4459, %v4680
    %v4877 = vmul.f32 %v4459, %v4684
    %v4878 = vmul.f32 %v4459, %v4688
    %v4879 = vmul.f32 %v4459, %v4692
    %v4880 = vmul.f32 %v4459, %v4696
    %v4881 = vmul.f32 %v4463, %v4668
    %v4882 = vmul.f32 %v4463, %v4672
    %v4883 = vmul.f32 %v4463, %v4676
    %v4884 = vmul.f32 %v4463, %v4680
    %v4885 = vmul.f32 %v4463, %v4684
    %v4886 = vmul.f32 %v4463, %v4688
    %v4887 = vmul.f32 %v4463, %v4692
    %v4888 = vmul.f32 %v4463, %v4696
    %v4889 = vmul.f32 %v4467, %v4668
    %v4890 = vmul.f32 %v4467, %v4672
    %v4891 = vmul.f32 %v4467, %v4676
    %v4892 = vmul.f32 %v4467, %v4680
    %v4893 = vmul.f32 %v4467, %v4684
    %v4894 = vmul.f32 %v4467, %v4688
    %v4895 = vmul.f32 %v4467, %v4692
    %v4896 = vmul.f32 %v4467, %v4696
    %v4897 = vmul.f32 %v4471, %v4668
    %v4898 = vmul.f32 %v4471, %v4672
    %v4899 = vmul.f32 %v4471, %v4676
    %v4900 = vmul.f32 %v4471, %v4680
    %v4901 = vmul.f32 %v4471, %v4684
    %v4902 = vmul.f32 %v4471, %v4688
    %v4903 = vmul.f32 %v4471, %v4692
    %v4904 = vmul.f32 %v4471, %v4696
    %v4905 = vmul.f32 %v4475, %v4668
    %v4906 = vmul.f32 %v4475, %v4672
    %v4907 = vmul.f32 %v4475, %v4676
    %v4908 = vmul.f32 %v4475, %v4680
    %v4909 = vmul.f32 %v4475, %v4684
    %v4910 = vmul.f32 %v4475, %v4688
    %v4911 = vmul.f32 %v4475, %v4692
    %v4912 = vmul.f32 %v4475, %v4696
    %v4913 = vmul.f32 %v4479, %v4668
    %v4914 = vmul.f32 %v4479, %v4672
    %v4915 = vmul.f32 %v4479, %v4676
    %v4916 = vmul.f32 %v4479, %v4680
    %v4917 = vmul.f32 %v4479, %v4684
    %v4918 = vmul.f32 %v4479, %v4688
    %v4919 = vmul.f32 %v4479, %v4692
    %v4920 = vmul.f32 %v4479, %v4696
    %v4921 = vmul.f32 %v4483, %v4668
    %v4922 = vmul.f32 %v4483, %v4672
    %v4923 = vmul.f32 %v4483, %v4676
    %v4924 = vmul.f32 %v4483, %v4680
    %v4925 = vmul.f32 %v4483, %v4684
    %v4926 = vmul.f32 %v4483, %v4688
    %v4927 = vmul.f32 %v4483, %v4692
    %v4928 = vmul.f32 %v4483, %v4696
    %v4929 = vmul.f32 %v4487, %v4668
    %v4930 = vmul.f32 %v4487, %v4672
    %v4931 = vmul.f32 %v4487, %v4676
    %v4932 = vmul.f32 %v4487, %v4680
    %v4933 = vmul.f32 %v4487, %v4684
    %v4934 = vmul.f32 %v4487, %v4688
    %v4935 = vmul.f32 %v4487, %v4692
    %v4936 = vmul.f32 %v4487, %v4696
    %v4937 = vmul.f32 %v4491, %v4668
    %v4938 = vmul.f32 %v4491, %v4672
    %v4939 = vmul.f32 %v4491, %v4676
    %v4940 = vmul.f32 %v4491, %v4680
    %v4941 = vmul.f32 %v4491, %v4684
    %v4942 = vmul.f32 %v4491, %v4688
    %v4943 = vmul.f32 %v4491, %v4692
    %v4944 = vmul.f32 %v4491, %v4696
    %v4945 = vmul.f32 %v4495, %v4668
    %v4946 = vmul.f32 %v4495, %v4672
    %v4947 = vmul.f32 %v4495, %v4676
    %v4948 = vmul.f32 %v4495, %v4680
    %v4949 = vmul.f32 %v4495, %v4684
    %v4950 = vmul.f32 %v4495, %v4688
    %v4951 = vmul.f32 %v4495, %v4692
    %v4952 = vmul.f32 %v4495, %v4696
    %v4953 = vmul.f32 %v4499, %v4668
    %v4954 = vmul.f32 %v4499, %v4672
    %v4955 = vmul.f32 %v4499, %v4676
    %v4956 = vmul.f32 %v4499, %v4680
    %v4957 = vmul.f32 %v4499, %v4684
    %v4958 = vmul.f32 %v4499, %v4688
    %v4959 = vmul.f32 %v4499, %v4692
    %v4960 = vmul.f32 %v4499, %v4696
    %v4961 = vmul.f32 %v4503, %v4668
    %v4962 = vmul.f32 %v4503, %v4672
    %v4963 = vmul.f32 %v4503, %v4676
    %v4964 = vmul.f32 %v4503, %v4680
    %v4965 = vmul.f32 %v4503, %v4684
    %v4966 = vmul.f32 %v4503, %v4688
    %v4967 = vmul.f32 %v4503, %v4692
    %v4968 = vmul.f32 %v4503, %v4696
    %v4969 = vmul.f32 %v4507, %v4668
    %v4970 = vmul.f32 %v4507, %v4672
    %v4971 = vmul.f32 %v4507, %v4676
    %v4972 = vmul.f32 %v4507, %v4680
    %v4973 = vmul.f32 %v4507, %v4684
    %v4974 = vmul.f32 %v4507, %v4688
    %v4975 = vmul.f32 %v4507, %v4692
    %v4976 = vmul.f32 %v4507, %v4696
    %v4977 = vmul.f32 %v4511, %v4668
    %v4978 = vmul.f32 %v4511, %v4672
    %v4979 = vmul.f32 %v4511, %v4676
    %v4980 = vmul.f32 %v4511, %v4680
    %v4981 = vmul.f32 %v4511, %v4684
    %v4982 = vmul.f32 %v4511, %v4688
    %v4983 = vmul.f32 %v4511, %v4692
    %v4984 = vmul.f32 %v4511, %v4696
    %v4985 = vmul.f32 %v4515, %v4668
    %v4986 = vmul.f32 %v4515, %v4672
    %v4987 = vmul.f32 %v4515, %v4676
    %v4988 = vmul.f32 %v4515, %v4680
    %v4989 = vmul.f32 %v4515, %v4684
    %v4990 = vmul.f32 %v4515, %v4688
    %v4991 = vmul.f32 %v4515, %v4692
    %v4992 = vmul.f32 %v4515, %v4696
    %v4993 = vmul.f32 %v4519, %v4668
    %v4994 = vmul.f32 %v4519, %v4672
    %v4995 = vmul.f32 %v4519, %v4676
    %v4996 = vmul.f32 %v4519, %v4680
    %v4997 = vmul.f32 %v4519, %v4684
    %v4998 = vmul.f32 %v4519, %v4688
    %v4999 = vmul.f32 %v4519, %v4692
    %v5000 = vmul.f32 %v4519, %v4696
    %v5001 = vmul.f32 %v4523, %v4668
    %v5002 = vmul.f32 %v4523, %v4672
    %v5003 = vmul.f32 %v4523, %v4676
    %v5004 = vmul.f32 %v4523, %v4680
    %v5005 = vmul.f32 %v4523, %v4684
    %v5006 = vmul.f32 %v4523, %v4688
    %v5007 = vmul.f32 %v4523, %v4692
    %v5008 = vmul.f32 %v4523, %v4696
    %v5009 = vmul.f32 %v4527, %v4668
    %v5010 = vmul.f32 %v4527, %v4672
    %v5011 = vmul.f32 %v4527, %v4676
    %v5012 = vmul.f32 %v4527, %v4680
    %v5013 = vmul.f32 %v4527, %v4684
    %v5014 = vmul.f32 %v4527, %v4688
    %v5015 = vmul.f32 %v4527, %v4692
    %v5016 = vmul.f32 %v4527, %v4696
    %v5017 = vmul.f32 %v4531, %v4668
    %v5018 = vmul.f32 %v4531, %v4672
    %v5019 = vmul.f32 %v4531, %v4676
    %v5020 = vmul.f32 %v4531, %v4680
    %v5021 = vmul.f32 %v4531, %v4684
    %v5022 = vmul.f32 %v4531, %v4688
    %v5023 = vmul.f32 %v4531, %v4692
    %v5024 = vmul.f32 %v4531, %v4696
    %v5025 = vmul.f32 %v4535, %v4668
    %v5026 = vmul.f32 %v4535, %v4672
    %v5027 = vmul.f32 %v4535, %v4676
    %v5028 = vmul.f32 %v4535, %v4680
    %v5029 = vmul.f32 %v4535, %v4684
    %v5030 = vmul.f32 %v4535, %v4688
    %v5031 = vmul.f32 %v4535, %v4692
    %v5032 = vmul.f32 %v4535, %v4696
    %v5033 = vmul.f32 %v4539, %v4668
    %v5034 = vmul.f32 %v4539, %v4672
    %v5035 = vmul.f32 %v4539, %v4676
    %v5036 = vmul.f32 %v4539, %v4680
    %v5037 = vmul.f32 %v4539, %v4684
    %v5038 = vmul.f32 %v4539, %v4688
    %v5039 = vmul.f32 %v4539, %v4692
    %v5040 = vmul.f32 %v4539, %v4696
    %v5041 = vmul.f32 %v4543, %v4668
    %v5042 = vmul.f32 %v4543, %v4672
    %v5043 = vmul.f32 %v4543, %v4676
    %v5044 = vmul.f32 %v4543, %v4680
    %v5045 = vmul.f32 %v4543, %v4684
    %v5046 = vmul.f32 %v4543, %v4688
    %v5047 = vmul.f32 %v4543, %v4692
    %v5048 = vmul.f32 %v4543, %v4696
    %v5049 = vmul.f32 %v4547, %v4668
    %v5050 = vmul.f32 %v4547, %v4672
    %v5051 = vmul.f32 %v4547, %v4676
    %v5052 = vmul.f32 %v4547, %v4680
    %v5053 = vmul.f32 %v4547, %v4684
    %v5054 = vmul.f32 %v4547, %v4688
    %v5055 = vmul.f32 %v4547, %v4692
    %v5056 = vmul.f32 %v4547, %v4696
    %v5057 = vmul.f32 %v4551, %v4668
    %v5058 = vmul.f32 %v4551, %v4672
    %v5059 = vmul.f32 %v4551, %v4676
    %v5060 = vmul.f32 %v4551, %v4680
    %v5061 = vmul.f32 %v4551, %v4684
    %v5062 = vmul.f32 %v4551, %v4688
    %v5063 = vmul.f32 %v4551, %v4692
    %v5064 = vmul.f32 %v4551, %v4696
    %v5065 = vmul.f32 %v4555, %v4668
    %v5066 = vmul.f32 %v4555, %v4672
    %v5067 = vmul.f32 %v4555, %v4676
    %v5068 = vmul.f32 %v4555, %v4680
    %v5069 = vmul.f32 %v4555, %v4684
    %v5070 = vmul.f32 %v4555, %v4688
    %v5071 = vmul.f32 %v4555, %v4692
    %v5072 = vmul.f32 %v4555, %v4696
    %v5073 = vmul.f32 %v4559, %v4668
    %v5074 = vmul.f32 %v4559, %v4672
    %v5075 = vmul.f32 %v4559, %v4676
    %v5076 = vmul.f32 %v4559, %v4680
    %v5077 = vmul.f32 %v4559, %v4684
    %v5078 = vmul.f32 %v4559, %v4688
    %v5079 = vmul.f32 %v4559, %v4692
    %v5080 = vmul.f32 %v4559, %v4696
    %v5081 = vmul.f32 %v4563, %v4668
    %v5082 = vmul.f32 %v4563, %v4672
    %v5083 = vmul.f32 %v4563, %v4676
    %v5084 = vmul.f32 %v4563, %v4680
    %v5085 = vmul.f32 %v4563, %v4684
    %v5086 = vmul.f32 %v4563, %v4688
    %v5087 = vmul.f32 %v4563, %v4692
    %v5088 = vmul.f32 %v4563, %v4696
    %v5089 = vmul.f32 %v4567, %v4668
    %v5090 = vmul.f32 %v4567, %v4672
    %v5091 = vmul.f32 %v4567, %v4676
    %v5092 = vmul.f32 %v4567, %v4680
    %v5093 = vmul.f32 %v4567, %v4684
    %v5094 = vmul.f32 %v4567, %v4688
    %v5095 = vmul.f32 %v4567, %v4692
    %v5096 = vmul.f32 %v4567, %v4696
    %v5097 = vmul.f32 %v4571, %v4668
    %v5098 = vmul.f32 %v4571, %v4672
    %v5099 = vmul.f32 %v4571, %v4676
    %v5100 = vmul.f32 %v4571, %v4680
    %v5101 = vmul.f32 %v4571, %v4684
    %v5102 = vmul.f32 %v4571, %v4688
    %v5103 = vmul.f32 %v4571, %v4692
    %v5104 = vmul.f32 %v4571, %v4696
    %v5105 = vmul.f32 %v4575, %v4668
    %v5106 = vmul.f32 %v4575, %v4672
    %v5107 = vmul.f32 %v4575, %v4676
    %v5108 = vmul.f32 %v4575, %v4680
    %v5109 = vmul.f32 %v4575, %v4684
    %v5110 = vmul.f32 %v4575, %v4688
    %v5111 = vmul.f32 %v4575, %v4692
    %v5112 = vmul.f32 %v4575, %v4696
    %v5113 = vmul.f32 %v4579, %v4668
    %v5114 = vmul.f32 %v4579, %v4672
    %v5115 = vmul.f32 %v4579, %v4676
    %v5116 = vmul.f32 %v4579, %v4680
    %v5117 = vmul.f32 %v4579, %v4684
    %v5118 = vmul.f32 %v4579, %v4688
    %v5119 = vmul.f32 %v4579, %v4692
    %v5120 = vmul.f32 %v4579, %v4696
    %v5121 = vmul.f32 %v4583, %v4668
    %v5122 = vmul.f32 %v4583, %v4672
    %v5123 = vmul.f32 %v4583, %v4676
    %v5124 = vmul.f32 %v4583, %v4680
    %v5125 = vmul.f32 %v4583, %v4684
    %v5126 = vmul.f32 %v4583, %v4688
    %v5127 = vmul.f32 %v4583, %v4692
    %v5128 = vmul.f32 %v4583, %v4696
    %v5129 = vmul.f32 %v4587, %v4668
    %v5130 = vmul.f32 %v4587, %v4672
    %v5131 = vmul.f32 %v4587, %v4676
    %v5132 = vmul.f32 %v4587, %v4680
    %v5133 = vmul.f32 %v4587, %v4684
    %v5134 = vmul.f32 %v4587, %v4688
    %v5135 = vmul.f32 %v4587, %v4692
    %v5136 = vmul.f32 %v4587, %v4696
    %v5137 = vmul.f32 %v4591, %v4668
    %v5138 = vmul.f32 %v4591, %v4672
    %v5139 = vmul.f32 %v4591, %v4676
    %v5140 = vmul.f32 %v4591, %v4680
    %v5141 = vmul.f32 %v4591, %v4684
    %v5142 = vmul.f32 %v4591, %v4688
    %v5143 = vmul.f32 %v4591, %v4692
    %v5144 = vmul.f32 %v4591, %v4696
    %v5145 = vmul.f32 %v4595, %v4668
    %v5146 = vmul.f32 %v4595, %v4672
    %v5147 = vmul.f32 %v4595, %v4676
    %v5148 = vmul.f32 %v4595, %v4680
    %v5149 = vmul.f32 %v4595, %v4684
    %v5150 = vmul.f32 %v4595, %v4688
    %v5151 = vmul.f32 %v4595, %v4692
    %v5152 = vmul.f32 %v4595, %v4696
    %v5153 = vmul.f32 %v4599, %v4668
    %v5154 = vmul.f32 %v4599, %v4672
    %v5155 = vmul.f32 %v4599, %v4676
    %v5156 = vmul.f32 %v4599, %v4680
    %v5157 = vmul.f32 %v4599, %v4684
    %v5158 = vmul.f32 %v4599, %v4688
    %v5159 = vmul.f32 %v4599, %v4692
    %v5160 = vmul.f32 %v4599, %v4696
    %v5161 = vmul.f32 %v4603, %v4668
    %v5162 = vmul.f32 %v4603, %v4672
    %v5163 = vmul.f32 %v4603, %v4676
    %v5164 = vmul.f32 %v4603, %v4680
    %v5165 = vmul.f32 %v4603, %v4684
    %v5166 = vmul.f32 %v4603, %v4688
    %v5167 = vmul.f32 %v4603, %v4692
    %v5168 = vmul.f32 %v4603, %v4696
    %v5169 = vmul.f32 %v4607, %v4668
    %v5170 = vmul.f32 %v4607, %v4672
    %v5171 = vmul.f32 %v4607, %v4676
    %v5172 = vmul.f32 %v4607, %v4680
    %v5173 = vmul.f32 %v4607, %v4684
    %v5174 = vmul.f32 %v4607, %v4688
    %v5175 = vmul.f32 %v4607, %v4692
    %v5176 = vmul.f32 %v4607, %v4696
    %v5177 = vmul.f32 %v4611, %v4668
    %v5178 = vmul.f32 %v4611, %v4672
    %v5179 = vmul.f32 %v4611, %v4676
    %v5180 = vmul.f32 %v4611, %v4680
    %v5181 = vmul.f32 %v4611, %v4684
    %v5182 = vmul.f32 %v4611, %v4688
    %v5183 = vmul.f32 %v4611, %v4692
    %v5184 = vmul.f32 %v4611, %v4696
    %v5185 = vmul.f32 %v4615, %v4668
    %v5186 = vmul.f32 %v4615, %v4672
    %v5187 = vmul.f32 %v4615, %v4676
    %v5188 = vmul.f32 %v4615, %v4680
    %v5189 = vmul.f32 %v4615, %v4684
    %v5190 = vmul.f32 %v4615, %v4688
    %v5191 = vmul.f32 %v4615, %v4692
    %v5192 = vmul.f32 %v4615, %v4696
    %v5193 = vmul.f32 %v4619, %v4668
    %v5194 = vmul.f32 %v4619, %v4672
    %v5195 = vmul.f32 %v4619, %v4676
    %v5196 = vmul.f32 %v4619, %v4680
    %v5197 = vmul.f32 %v4619, %v4684
    %v5198 = vmul.f32 %v4619, %v4688
    %v5199 = vmul.f32 %v4619, %v4692
    %v5200 = vmul.f32 %v4619, %v4696
    %v5201 = vmul.f32 %v4623, %v4668
    %v5202 = vmul.f32 %v4623, %v4672
    %v5203 = vmul.f32 %v4623, %v4676
    %v5204 = vmul.f32 %v4623, %v4680
    %v5205 = vmul.f32 %v4623, %v4684
    %v5206 = vmul.f32 %v4623, %v4688
    %v5207 = vmul.f32 %v4623, %v4692
    %v5208 = vmul.f32 %v4623, %v4696
    %v5209 = vadd.f32 %v3857, %v4697
    %v5210 = vadd.f32 %v3858, %v4698
    %v5211 = vadd.f32 %v3859, %v4699
    %v5212 = vadd.f32 %v3860, %v4700
    %v5213 = vadd.f32 %v3861, %v4701
    %v5214 = vadd.f32 %v3862, %v4702
    %v5215 = vadd.f32 %v3863, %v4703
    %v5216 = vadd.f32 %v3864, %v4704
    %v5217 = vadd.f32 %v3865, %v4705
    %v5218 = vadd.f32 %v3866, %v4706
    %v5219 = vadd.f32 %v3867, %v4707
    %v5220 = vadd.f32 %v3868, %v4708
    %v5221 = vadd.f32 %v3869, %v4709
    %v5222 = vadd.f32 %v3870, %v4710
    %v5223 = vadd.f32 %v3871, %v4711
    %v5224 = vadd.f32 %v3872, %v4712
    %v5225 = vadd.f32 %v3873, %v4713
    %v5226 = vadd.f32 %v3874, %v4714
    %v5227 = vadd.f32 %v3875, %v4715
    %v5228 = vadd.f32 %v3876, %v4716
    %v5229 = vadd.f32 %v3877, %v4717
    %v5230 = vadd.f32 %v3878, %v4718
    %v5231 = vadd.f32 %v3879, %v4719
    %v5232 = vadd.f32 %v3880, %v4720
    %v5233 = vadd.f32 %v3881, %v4721
    %v5234 = vadd.f32 %v3882, %v4722
    %v5235 = vadd.f32 %v3883, %v4723
    %v5236 = vadd.f32 %v3884, %v4724
    %v5237 = vadd.f32 %v3885, %v4725
    %v5238 = vadd.f32 %v3886, %v4726
    %v5239 = vadd.f32 %v3887, %v4727
    %v5240 = vadd.f32 %v3888, %v4728
    %v5241 = vadd.f32 %v3889, %v4729
    %v5242 = vadd.f32 %v3890, %v4730
    %v5243 = vadd.f32 %v3891, %v4731
    %v5244 = vadd.f32 %v3892, %v4732
    %v5245 = vadd.f32 %v3893, %v4733
    %v5246 = vadd.f32 %v3894, %v4734
    %v5247 = vadd.f32 %v3895, %v4735
    %v5248 = vadd.f32 %v3896, %v4736
    %v5249 = vadd.f32 %v3897, %v4737
    %v5250 = vadd.f32 %v3898, %v4738
    %v5251 = vadd.f32 %v3899, %v4739
    %v5252 = vadd.f32 %v3900, %v4740
    %v5253 = vadd.f32 %v3901, %v4741
    %v5254 = vadd.f32 %v3902, %v4742
    %v5255 = vadd.f32 %v3903, %v4743
    %v5256 = vadd.f32 %v3904, %v4744
    %v5257 = vadd.f32 %v3905, %v4745
    %v5258 = vadd.f32 %v3906, %v4746
    %v5259 = vadd.f32 %v3907, %v4747
    %v5260 = vadd.f32 %v3908, %v4748
    %v5261 = vadd.f32 %v3909, %v4749
    %v5262 = vadd.f32 %v3910, %v4750
    %v5263 = vadd.f32 %v3911, %v4751
    %v5264 = vadd.f32 %v3912, %v4752
    %v5265 = vadd.f32 %v3913, %v4753
    %v5266 = vadd.f32 %v3914, %v4754
    %v5267 = vadd.f32 %v3915, %v4755
    %v5268 = vadd.f32 %v3916, %v4756
    %v5269 = vadd.f32 %v3917, %v4757
    %v5270 = vadd.f32 %v3918, %v4758
    %v5271 = vadd.f32 %v3919, %v4759
    %v5272 = vadd.f32 %v3920, %v4760
    %v5273 = vadd.f32 %v3921, %v4761
    %v5274 = vadd.f32 %v3922, %v4762
    %v5275 = vadd.f32 %v3923, %v4763
    %v5276 = vadd.f32 %v3924, %v4764
    %v5277 = vadd.f32 %v3925, %v4765
    %v5278 = vadd.f32 %v3926, %v4766
    %v5279 = vadd.f32 %v3927, %v4767
    %v5280 = vadd.f32 %v3928, %v4768
    %v5281 = vadd.f32 %v3929, %v4769
    %v5282 = vadd.f32 %v3930, %v4770
    %v5283 = vadd.f32 %v3931, %v4771
    %v5284 = vadd.f32 %v3932, %v4772
    %v5285 = vadd.f32 %v3933, %v4773
    %v5286 = vadd.f32 %v3934, %v4774
    %v5287 = vadd.f32 %v3935, %v4775
    %v5288 = vadd.f32 %v3936, %v4776
    %v5289 = vadd.f32 %v3937, %v4777
    %v5290 = vadd.f32 %v3938, %v4778
    %v5291 = vadd.f32 %v3939, %v4779
    %v5292 = vadd.f32 %v3940, %v4780
    %v5293 = vadd.f32 %v3941, %v4781
    %v5294 = vadd.f32 %v3942, %v4782
    %v5295 = vadd.f32 %v3943, %v4783
    %v5296 = vadd.f32 %v3944, %v4784
    %v5297 = vadd.f32 %v3945, %v4785
    %v5298 = vadd.f32 %v3946, %v4786
    %v5299 = vadd.f32 %v3947, %v4787
    %v5300 = vadd.f32 %v3948, %v4788
    %v5301 = vadd.f32 %v3949, %v4789
    %v5302 = vadd.f32 %v3950, %v4790
    %v5303 = vadd.f32 %v3951, %v4791
    %v5304 = vadd.f32 %v3952, %v4792
    %v5305 = vadd.f32 %v3953, %v4793
    %v5306 = vadd.f32 %v3954, %v4794
    %v5307 = vadd.f32 %v3955, %v4795
    %v5308 = vadd.f32 %v3956, %v4796
    %v5309 = vadd.f32 %v3957, %v4797
    %v5310 = vadd.f32 %v3958, %v4798
    %v5311 = vadd.f32 %v3959, %v4799
    %v5312 = vadd.f32 %v3960, %v4800
    %v5313 = vadd.f32 %v3961, %v4801
    %v5314 = vadd.f32 %v3962, %v4802
    %v5315 = vadd.f32 %v3963, %v4803
    %v5316 = vadd.f32 %v3964, %v4804
    %v5317 = vadd.f32 %v3965, %v4805
    %v5318 = vadd.f32 %v3966, %v4806
    %v5319 = vadd.f32 %v3967, %v4807
    %v5320 = vadd.f32 %v3968, %v4808
    %v5321 = vadd.f32 %v3969, %v4809
    %v5322 = vadd.f32 %v3970, %v4810
    %v5323 = vadd.f32 %v3971, %v4811
    %v5324 = vadd.f32 %v3972, %v4812
    %v5325 = vadd.f32 %v3973, %v4813
    %v5326 = vadd.f32 %v3974, %v4814
    %v5327 = vadd.f32 %v3975, %v4815
    %v5328 = vadd.f32 %v3976, %v4816
    %v5329 = vadd.f32 %v3977, %v4817
    %v5330 = vadd.f32 %v3978, %v4818
    %v5331 = vadd.f32 %v3979, %v4819
    %v5332 = vadd.f32 %v3980, %v4820
    %v5333 = vadd.f32 %v3981, %v4821
    %v5334 = vadd.f32 %v3982, %v4822
    %v5335 = vadd.f32 %v3983, %v4823
    %v5336 = vadd.f32 %v3984, %v4824
    %v5337 = vadd.f32 %v3985, %v4825
    %v5338 = vadd.f32 %v3986, %v4826
    %v5339 = vadd.f32 %v3987, %v4827
    %v5340 = vadd.f32 %v3988, %v4828
    %v5341 = vadd.f32 %v3989, %v4829
    %v5342 = vadd.f32 %v3990, %v4830
    %v5343 = vadd.f32 %v3991, %v4831
    %v5344 = vadd.f32 %v3992, %v4832
    %v5345 = vadd.f32 %v3993, %v4833
    %v5346 = vadd.f32 %v3994, %v4834
    %v5347 = vadd.f32 %v3995, %v4835
    %v5348 = vadd.f32 %v3996, %v4836
    %v5349 = vadd.f32 %v3997, %v4837
    %v5350 = vadd.f32 %v3998, %v4838
    %v5351 = vadd.f32 %v3999, %v4839
    %v5352 = vadd.f32 %v4000, %v4840
    %v5353 = vadd.f32 %v4001, %v4841
    %v5354 = vadd.f32 %v4002, %v4842
    %v5355 = vadd.f32 %v4003, %v4843
    %v5356 = vadd.f32 %v4004, %v4844
    %v5357 = vadd.f32 %v4005, %v4845
    %v5358 = vadd.f32 %v4006, %v4846
    %v5359 = vadd.f32 %v4007, %v4847
    %v5360 = vadd.f32 %v4008, %v4848
    %v5361 = vadd.f32 %v4009, %v4849
    %v5362 = vadd.f32 %v4010, %v4850
    %v5363 = vadd.f32 %v4011, %v4851
    %v5364 = vadd.f32 %v4012, %v4852
    %v5365 = vadd.f32 %v4013, %v4853
    %v5366 = vadd.f32 %v4014, %v4854
    %v5367 = vadd.f32 %v4015, %v4855
    %v5368 = vadd.f32 %v4016, %v4856
    %v5369 = vadd.f32 %v4017, %v4857
    %v5370 = vadd.f32 %v4018, %v4858
    %v5371 = vadd.f32 %v4019, %v4859
    %v5372 = vadd.f32 %v4020, %v4860
    %v5373 = vadd.f32 %v4021, %v4861
    %v5374 = vadd.f32 %v4022, %v4862
    %v5375 = vadd.f32 %v4023, %v4863
    %v5376 = vadd.f32 %v4024, %v4864
    %v5377 = vadd.f32 %v4025, %v4865
    %v5378 = vadd.f32 %v4026, %v4866
    %v5379 = vadd.f32 %v4027, %v4867
    %v5380 = vadd.f32 %v4028, %v4868
    %v5381 = vadd.f32 %v4029, %v4869
    %v5382 = vadd.f32 %v4030, %v4870
    %v5383 = vadd.f32 %v4031, %v4871
    %v5384 = vadd.f32 %v4032, %v4872
    %v5385 = vadd.f32 %v4033, %v4873
    %v5386 = vadd.f32 %v4034, %v4874
    %v5387 = vadd.f32 %v4035, %v4875
    %v5388 = vadd.f32 %v4036, %v4876
    %v5389 = vadd.f32 %v4037, %v4877
    %v5390 = vadd.f32 %v4038, %v4878
    %v5391 = vadd.f32 %v4039, %v4879
    %v5392 = vadd.f32 %v4040, %v4880
    %v5393 = vadd.f32 %v4041, %v4881
    %v5394 = vadd.f32 %v4042, %v4882
    %v5395 = vadd.f32 %v4043, %v4883
    %v5396 = vadd.f32 %v4044, %v4884
    %v5397 = vadd.f32 %v4045, %v4885
    %v5398 = vadd.f32 %v4046, %v4886
    %v5399 = vadd.f32 %v4047, %v4887
    %v5400 = vadd.f32 %v4048, %v4888
    %v5401 = vadd.f32 %v4049, %v4889
    %v5402 = vadd.f32 %v4050, %v4890
    %v5403 = vadd.f32 %v4051, %v4891
    %v5404 = vadd.f32 %v4052, %v4892
    %v5405 = vadd.f32 %v4053, %v4893
    %v5406 = vadd.f32 %v4054, %v4894
    %v5407 = vadd.f32 %v4055, %v4895
    %v5408 = vadd.f32 %v4056, %v4896
    %v5409 = vadd.f32 %v4057, %v4897
    %v5410 = vadd.f32 %v4058, %v4898
    %v5411 = vadd.f32 %v4059, %v4899
    %v5412 = vadd.f32 %v4060, %v4900
    %v5413 = vadd.f32 %v4061, %v4901
    %v5414 = vadd.f32 %v4062, %v4902
    %v5415 = vadd.f32 %v4063, %v4903
    %v5416 = vadd.f32 %v4064, %v4904
    %v5417 = vadd.f32 %v4065, %v4905
    %v5418 = vadd.f32 %v4066, %v4906
    %v5419 = vadd.f32 %v4067, %v4907
    %v5420 = vadd.f32 %v4068, %v4908
    %v5421 = vadd.f32 %v4069, %v4909
    %v5422 = vadd.f32 %v4070, %v4910
    %v5423 = vadd.f32 %v4071, %v4911
    %v5424 = vadd.f32 %v4072, %v4912
    %v5425 = vadd.f32 %v4073, %v4913
    %v5426 = vadd.f32 %v4074, %v4914
    %v5427 = vadd.f32 %v4075, %v4915
    %v5428 = vadd.f32 %v4076, %v4916
    %v5429 = vadd.f32 %v4077, %v4917
    %v5430 = vadd.f32 %v4078, %v4918
    %v5431 = vadd.f32 %v4079, %v4919
    %v5432 = vadd.f32 %v4080, %v4920
    %v5433 = vadd.f32 %v4081, %v4921
    %v5434 = vadd.f32 %v4082, %v4922
    %v5435 = vadd.f32 %v4083, %v4923
    %v5436 = vadd.f32 %v4084, %v4924
    %v5437 = vadd.f32 %v4085, %v4925
    %v5438 = vadd.f32 %v4086, %v4926
    %v5439 = vadd.f32 %v4087, %v4927
    %v5440 = vadd.f32 %v4088, %v4928
    %v5441 = vadd.f32 %v4089, %v4929
    %v5442 = vadd.f32 %v4090, %v4930
    %v5443 = vadd.f32 %v4091, %v4931
    %v5444 = vadd.f32 %v4092, %v4932
    %v5445 = vadd.f32 %v4093, %v4933
    %v5446 = vadd.f32 %v4094, %v4934
    %v5447 = vadd.f32 %v4095, %v4935
    %v5448 = vadd.f32 %v4096, %v4936
    %v5449 = vadd.f32 %v4097, %v4937
    %v5450 = vadd.f32 %v4098, %v4938
    %v5451 = vadd.f32 %v4099, %v4939
    %v5452 = vadd.f32 %v4100, %v4940
    %v5453 = vadd.f32 %v4101, %v4941
    %v5454 = vadd.f32 %v4102, %v4942
    %v5455 = vadd.f32 %v4103, %v4943
    %v5456 = vadd.f32 %v4104, %v4944
    %v5457 = vadd.f32 %v4105, %v4945
    %v5458 = vadd.f32 %v4106, %v4946
    %v5459 = vadd.f32 %v4107, %v4947
    %v5460 = vadd.f32 %v4108, %v4948
    %v5461 = vadd.f32 %v4109, %v4949
    %v5462 = vadd.f32 %v4110, %v4950
    %v5463 = vadd.f32 %v4111, %v4951
    %v5464 = vadd.f32 %v4112, %v4952
    %v5465 = vadd.f32 %v4113, %v4953
    %v5466 = vadd.f32 %v4114, %v4954
    %v5467 = vadd.f32 %v4115, %v4955
    %v5468 = vadd.f32 %v4116, %v4956
    %v5469 = vadd.f32 %v4117, %v4957
    %v5470 = vadd.f32 %v4118, %v4958
    %v5471 = vadd.f32 %v4119, %v4959
    %v5472 = vadd.f32 %v4120, %v4960
    %v5473 = vadd.f32 %v4121, %v4961
    %v5474 = vadd.f32 %v4122, %v4962
    %v5475 = vadd.f32 %v4123, %v4963
    %v5476 = vadd.f32 %v4124, %v4964
    %v5477 = vadd.f32 %v4125, %v4965
    %v5478 = vadd.f32 %v4126, %v4966
    %v5479 = vadd.f32 %v4127, %v4967
    %v5480 = vadd.f32 %v4128, %v4968
    %v5481 = vadd.f32 %v4129, %v4969
    %v5482 = vadd.f32 %v4130, %v4970
    %v5483 = vadd.f32 %v4131, %v4971
    %v5484 = vadd.f32 %v4132, %v4972
    %v5485 = vadd.f32 %v4133, %v4973
    %v5486 = vadd.f32 %v4134, %v4974
    %v5487 = vadd.f32 %v4135, %v4975
    %v5488 = vadd.f32 %v4136, %v4976
    %v5489 = vadd.f32 %v4137, %v4977
    %v5490 = vadd.f32 %v4138, %v4978
    %v5491 = vadd.f32 %v4139, %v4979
    %v5492 = vadd.f32 %v4140, %v4980
    %v5493 = vadd.f32 %v4141, %v4981
    %v5494 = vadd.f32 %v4142, %v4982
    %v5495 = vadd.f32 %v4143, %v4983
    %v5496 = vadd.f32 %v4144, %v4984
    %v5497 = vadd.f32 %v4145, %v4985
    %v5498 = vadd.f32 %v4146, %v4986
    %v5499 = vadd.f32 %v4147, %v4987
    %v5500 = vadd.f32 %v4148, %v4988
    %v5501 = vadd.f32 %v4149, %v4989
    %v5502 = vadd.f32 %v4150, %v4990
    %v5503 = vadd.f32 %v4151, %v4991
    %v5504 = vadd.f32 %v4152, %v4992
    %v5505 = vadd.f32 %v4153, %v4993
    %v5506 = vadd.f32 %v4154, %v4994
    %v5507 = vadd.f32 %v4155, %v4995
    %v5508 = vadd.f32 %v4156, %v4996
    %v5509 = vadd.f32 %v4157, %v4997
    %v5510 = vadd.f32 %v4158, %v4998
    %v5511 = vadd.f32 %v4159, %v4999
    %v5512 = vadd.f32 %v4160, %v5000
    %v5513 = vadd.f32 %v4161, %v5001
    %v5514 = vadd.f32 %v4162, %v5002
    %v5515 = vadd.f32 %v4163, %v5003
    %v5516 = vadd.f32 %v4164, %v5004
    %v5517 = vadd.f32 %v4165, %v5005
    %v5518 = vadd.f32 %v4166, %v5006
    %v5519 = vadd.f32 %v4167, %v5007
    %v5520 = vadd.f32 %v4168, %v5008
    %v5521 = vadd.f32 %v4169, %v5009
    %v5522 = vadd.f32 %v4170, %v5010
    %v5523 = vadd.f32 %v4171, %v5011
    %v5524 = vadd.f32 %v4172, %v5012
    %v5525 = vadd.f32 %v4173, %v5013
    %v5526 = vadd.f32 %v4174, %v5014
    %v5527 = vadd.f32 %v4175, %v5015
    %v5528 = vadd.f32 %v4176, %v5016
    %v5529 = vadd.f32 %v4177, %v5017
    %v5530 = vadd.f32 %v4178, %v5018
    %v5531 = vadd.f32 %v4179, %v5019
    %v5532 = vadd.f32 %v4180, %v5020
    %v5533 = vadd.f32 %v4181, %v5021
    %v5534 = vadd.f32 %v4182, %v5022
    %v5535 = vadd.f32 %v4183, %v5023
    %v5536 = vadd.f32 %v4184, %v5024
    %v5537 = vadd.f32 %v4185, %v5025
    %v5538 = vadd.f32 %v4186, %v5026
    %v5539 = vadd.f32 %v4187, %v5027
    %v5540 = vadd.f32 %v4188, %v5028
    %v5541 = vadd.f32 %v4189, %v5029
    %v5542 = vadd.f32 %v4190, %v5030
    %v5543 = vadd.f32 %v4191, %v5031
    %v5544 = vadd.f32 %v4192, %v5032
    %v5545 = vadd.f32 %v4193, %v5033
    %v5546 = vadd.f32 %v4194, %v5034
    %v5547 = vadd.f32 %v4195, %v5035
    %v5548 = vadd.f32 %v4196, %v5036
    %v5549 = vadd.f32 %v4197, %v5037
    %v5550 = vadd.f32 %v4198, %v5038
    %v5551 = vadd.f32 %v4199, %v5039
    %v5552 = vadd.f32 %v4200, %v5040
    %v5553 = vadd.f32 %v4201, %v5041
    %v5554 = vadd.f32 %v4202, %v5042
    %v5555 = vadd.f32 %v4203, %v5043
    %v5556 = vadd.f32 %v4204, %v5044
    %v5557 = vadd.f32 %v4205, %v5045
    %v5558 = vadd.f32 %v4206, %v5046
    %v5559 = vadd.f32 %v4207, %v5047
    %v5560 = vadd.f32 %v4208, %v5048
    %v5561 = vadd.f32 %v4209, %v5049
    %v5562 = vadd.f32 %v4210, %v5050
    %v5563 = vadd.f32 %v4211, %v5051
    %v5564 = vadd.f32 %v4212, %v5052
    %v5565 = vadd.f32 %v4213, %v5053
    %v5566 = vadd.f32 %v4214, %v5054
    %v5567 = vadd.f32 %v4215, %v5055
    %v5568 = vadd.f32 %v4216, %v5056
    %v5569 = vadd.f32 %v4217, %v5057
    %v5570 = vadd.f32 %v4218, %v5058
    %v5571 = vadd.f32 %v4219, %v5059
    %v5572 = vadd.f32 %v4220, %v5060
    %v5573 = vadd.f32 %v4221, %v5061
    %v5574 = vadd.f32 %v4222, %v5062
    %v5575 = vadd.f32 %v4223, %v5063
    %v5576 = vadd.f32 %v4224, %v5064
    %v5577 = vadd.f32 %v4225, %v5065
    %v5578 = vadd.f32 %v4226, %v5066
    %v5579 = vadd.f32 %v4227, %v5067
    %v5580 = vadd.f32 %v4228, %v5068
    %v5581 = vadd.f32 %v4229, %v5069
    %v5582 = vadd.f32 %v4230, %v5070
    %v5583 = vadd.f32 %v4231, %v5071
    %v5584 = vadd.f32 %v4232, %v5072
    %v5585 = vadd.f32 %v4233, %v5073
    %v5586 = vadd.f32 %v4234, %v5074
    %v5587 = vadd.f32 %v4235, %v5075
    %v5588 = vadd.f32 %v4236, %v5076
    %v5589 = vadd.f32 %v4237, %v5077
    %v5590 = vadd.f32 %v4238, %v5078
    %v5591 = vadd.f32 %v4239, %v5079
    %v5592 = vadd.f32 %v4240, %v5080
    %v5593 = vadd.f32 %v4241, %v5081
    %v5594 = vadd.f32 %v4242, %v5082
    %v5595 = vadd.f32 %v4243, %v5083
    %v5596 = vadd.f32 %v4244, %v5084
    %v5597 = vadd.f32 %v4245, %v5085
    %v5598 = vadd.f32 %v4246, %v5086
    %v5599 = vadd.f32 %v4247, %v5087
    %v5600 = vadd.f32 %v4248, %v5088
    %v5601 = vadd.f32 %v4249, %v5089
    %v5602 = vadd.f32 %v4250, %v5090
    %v5603 = vadd.f32 %v4251, %v5091
    %v5604 = vadd.f32 %v4252, %v5092
    %v5605 = vadd.f32 %v4253, %v5093
    %v5606 = vadd.f32 %v4254, %v5094
    %v5607 = vadd.f32 %v4255, %v5095
    %v5608 = vadd.f32 %v4256, %v5096
    %v5609 = vadd.f32 %v4257, %v5097
    %v5610 = vadd.f32 %v4258, %v5098
    %v5611 = vadd.f32 %v4259, %v5099
    %v5612 = vadd.f32 %v4260, %v5100
    %v5613 = vadd.f32 %v4261, %v5101
    %v5614 = vadd.f32 %v4262, %v5102
    %v5615 = vadd.f32 %v4263, %v5103
    %v5616 = vadd.f32 %v4264, %v5104
    %v5617 = vadd.f32 %v4265, %v5105
    %v5618 = vadd.f32 %v4266, %v5106
    %v5619 = vadd.f32 %v4267, %v5107
    %v5620 = vadd.f32 %v4268, %v5108
    %v5621 = vadd.f32 %v4269, %v5109
    %v5622 = vadd.f32 %v4270, %v5110
    %v5623 = vadd.f32 %v4271, %v5111
    %v5624 = vadd.f32 %v4272, %v5112
    %v5625 = vadd.f32 %v4273, %v5113
    %v5626 = vadd.f32 %v4274, %v5114
    %v5627 = vadd.f32 %v4275, %v5115
    %v5628 = vadd.f32 %v4276, %v5116
    %v5629 = vadd.f32 %v4277, %v5117
    %v5630 = vadd.f32 %v4278, %v5118
    %v5631 = vadd.f32 %v4279, %v5119
    %v5632 = vadd.f32 %v4280, %v5120
    %v5633 = vadd.f32 %v4281, %v5121
    %v5634 = vadd.f32 %v4282, %v5122
    %v5635 = vadd.f32 %v4283, %v5123
    %v5636 = vadd.f32 %v4284, %v5124
    %v5637 = vadd.f32 %v4285, %v5125
    %v5638 = vadd.f32 %v4286, %v5126
    %v5639 = vadd.f32 %v4287, %v5127
    %v5640 = vadd.f32 %v4288, %v5128
    %v5641 = vadd.f32 %v4289, %v5129
    %v5642 = vadd.f32 %v4290, %v5130
    %v5643 = vadd.f32 %v4291, %v5131
    %v5644 = vadd.f32 %v4292, %v5132
    %v5645 = vadd.f32 %v4293, %v5133
    %v5646 = vadd.f32 %v4294, %v5134
    %v5647 = vadd.f32 %v4295, %v5135
    %v5648 = vadd.f32 %v4296, %v5136
    %v5649 = vadd.f32 %v4297, %v5137
    %v5650 = vadd.f32 %v4298, %v5138
    %v5651 = vadd.f32 %v4299, %v5139
    %v5652 = vadd.f32 %v4300, %v5140
    %v5653 = vadd.f32 %v4301, %v5141
    %v5654 = vadd.f32 %v4302, %v5142
    %v5655 = vadd.f32 %v4303, %v5143
    %v5656 = vadd.f32 %v4304, %v5144
    %v5657 = vadd.f32 %v4305, %v5145
    %v5658 = vadd.f32 %v4306, %v5146
    %v5659 = vadd.f32 %v4307, %v5147
    %v5660 = vadd.f32 %v4308, %v5148
    %v5661 = vadd.f32 %v4309, %v5149
    %v5662 = vadd.f32 %v4310, %v5150
    %v5663 = vadd.f32 %v4311, %v5151
    %v5664 = vadd.f32 %v4312, %v5152
    %v5665 = vadd.f32 %v4313, %v5153
    %v5666 = vadd.f32 %v4314, %v5154
    %v5667 = vadd.f32 %v4315, %v5155
    %v5668 = vadd.f32 %v4316, %v5156
    %v5669 = vadd.f32 %v4317, %v5157
    %v5670 = vadd.f32 %v4318, %v5158
    %v5671 = vadd.f32 %v4319, %v5159
    %v5672 = vadd.f32 %v4320, %v5160
    %v5673 = vadd.f32 %v4321, %v5161
    %v5674 = vadd.f32 %v4322, %v5162
    %v5675 = vadd.f32 %v4323, %v5163
    %v5676 = vadd.f32 %v4324, %v5164
    %v5677 = vadd.f32 %v4325, %v5165
    %v5678 = vadd.f32 %v4326, %v5166
    %v5679 = vadd.f32 %v4327, %v5167
    %v5680 = vadd.f32 %v4328, %v5168
    %v5681 = vadd.f32 %v4329, %v5169
    %v5682 = vadd.f32 %v4330, %v5170
    %v5683 = vadd.f32 %v4331, %v5171
    %v5684 = vadd.f32 %v4332, %v5172
    %v5685 = vadd.f32 %v4333, %v5173
    %v5686 = vadd.f32 %v4334, %v5174
    %v5687 = vadd.f32 %v4335, %v5175
    %v5688 = vadd.f32 %v4336, %v5176
    %v5689 = vadd.f32 %v4337, %v5177
    %v5690 = vadd.f32 %v4338, %v5178
    %v5691 = vadd.f32 %v4339, %v5179
    %v5692 = vadd.f32 %v4340, %v5180
    %v5693 = vadd.f32 %v4341, %v5181
    %v5694 = vadd.f32 %v4342, %v5182
    %v5695 = vadd.f32 %v4343, %v5183
    %v5696 = vadd.f32 %v4344, %v5184
    %v5697 = vadd.f32 %v4345, %v5185
    %v5698 = vadd.f32 %v4346, %v5186
    %v5699 = vadd.f32 %v4347, %v5187
    %v5700 = vadd.f32 %v4348, %v5188
    %v5701 = vadd.f32 %v4349, %v5189
    %v5702 = vadd.f32 %v4350, %v5190
    %v5703 = vadd.f32 %v4351, %v5191
    %v5704 = vadd.f32 %v4352, %v5192
    %v5705 = vadd.f32 %v4353, %v5193
    %v5706 = vadd.f32 %v4354, %v5194
    %v5707 = vadd.f32 %v4355, %v5195
    %v5708 = vadd.f32 %v4356, %v5196
    %v5709 = vadd.f32 %v4357, %v5197
    %v5710 = vadd.f32 %v4358, %v5198
    %v5711 = vadd.f32 %v4359, %v5199
    %v5712 = vadd.f32 %v4360, %v5200
    %v5713 = vadd.f32 %v4361, %v5201
    %v5714 = vadd.f32 %v4362, %v5202
    %v5715 = vadd.f32 %v4363, %v5203
    %v5716 = vadd.f32 %v4364, %v5204
    %v5717 = vadd.f32 %v4365, %v5205
    %v5718 = vadd.f32 %v4366, %v5206
    %v5719 = vadd.f32 %v4367, %v5207
    %v5720 = vadd.f32 %v4368, %v5208
    %v5721 = vmax.f32 %v5209, 0.0
    %v5722 = vmax.f32 %v5210, 0.0
    %v5723 = vmax.f32 %v5211, 0.0
    %v5724 = vmax.f32 %v5212, 0.0
    %v5725 = vmax.f32 %v5213, 0.0
    %v5726 = vmax.f32 %v5214, 0.0
    %v5727 = vmax.f32 %v5215, 0.0
    %v5728 = vmax.f32 %v5216, 0.0
    %v5729 = vmax.f32 %v5217, 0.0
    %v5730 = vmax.f32 %v5218, 0.0
    %v5731 = vmax.f32 %v5219, 0.0
    %v5732 = vmax.f32 %v5220, 0.0
    %v5733 = vmax.f32 %v5221, 0.0
    %v5734 = vmax.f32 %v5222, 0.0
    %v5735 = vmax.f32 %v5223, 0.0
    %v5736 = vmax.f32 %v5224, 0.0
    %v5737 = vmax.f32 %v5225, 0.0
    %v5738 = vmax.f32 %v5226, 0.0
    %v5739 = vmax.f32 %v5227, 0.0
    %v5740 = vmax.f32 %v5228, 0.0
    %v5741 = vmax.f32 %v5229, 0.0
    %v5742 = vmax.f32 %v5230, 0.0
    %v5743 = vmax.f32 %v5231, 0.0
    %v5744 = vmax.f32 %v5232, 0.0
    %v5745 = vmax.f32 %v5233, 0.0
    %v5746 = vmax.f32 %v5234, 0.0
    %v5747 = vmax.f32 %v5235, 0.0
    %v5748 = vmax.f32 %v5236, 0.0
    %v5749 = vmax.f32 %v5237, 0.0
    %v5750 = vmax.f32 %v5238, 0.0
    %v5751 = vmax.f32 %v5239, 0.0
    %v5752 = vmax.f32 %v5240, 0.0
    %v5753 = vmax.f32 %v5241, 0.0
    %v5754 = vmax.f32 %v5242, 0.0
    %v5755 = vmax.f32 %v5243, 0.0
    %v5756 = vmax.f32 %v5244, 0.0
    %v5757 = vmax.f32 %v5245, 0.0
    %v5758 = vmax.f32 %v5246, 0.0
    %v5759 = vmax.f32 %v5247, 0.0
    %v5760 = vmax.f32 %v5248, 0.0
    %v5761 = vmax.f32 %v5249, 0.0
    %v5762 = vmax.f32 %v5250, 0.0
    %v5763 = vmax.f32 %v5251, 0.0
    %v5764 = vmax.f32 %v5252, 0.0
    %v5765 = vmax.f32 %v5253, 0.0
    %v5766 = vmax.f32 %v5254, 0.0
    %v5767 = vmax.f32 %v5255, 0.0
    %v5768 = vmax.f32 %v5256, 0.0
    %v5769 = vmax.f32 %v5257, 0.0
    %v5770 = vmax.f32 %v5258, 0.0
    %v5771 = vmax.f32 %v5259, 0.0
    %v5772 = vmax.f32 %v5260, 0.0
    %v5773 = vmax.f32 %v5261, 0.0
    %v5774 = vmax.f32 %v5262, 0.0
    %v5775 = vmax.f32 %v5263, 0.0
    %v5776 = vmax.f32 %v5264, 0.0
    %v5777 = vmax.f32 %v5265, 0.0
    %v5778 = vmax.f32 %v5266, 0.0
    %v5779 = vmax.f32 %v5267, 0.0
    %v5780 = vmax.f32 %v5268, 0.0
    %v5781 = vmax.f32 %v5269, 0.0
    %v5782 = vmax.f32 %v5270, 0.0
    %v5783 = vmax.f32 %v5271, 0.0
    %v5784 = vmax.f32 %v5272, 0.0
    %v5785 = vmax.f32 %v5273, 0.0
    %v5786 = vmax.f32 %v5274, 0.0
    %v5787 = vmax.f32 %v5275, 0.0
    %v5788 = vmax.f32 %v5276, 0.0
    %v5789 = vmax.f32 %v5277, 0.0
    %v5790 = vmax.f32 %v5278, 0.0
    %v5791 = vmax.f32 %v5279, 0.0
    %v5792 = vmax.f32 %v5280, 0.0
    %v5793 = vmax.f32 %v5281, 0.0
    %v5794 = vmax.f32 %v5282, 0.0
    %v5795 = vmax.f32 %v5283, 0.0
    %v5796 = vmax.f32 %v5284, 0.0
    %v5797 = vmax.f32 %v5285, 0.0
    %v5798 = vmax.f32 %v5286, 0.0
    %v5799 = vmax.f32 %v5287, 0.0
    %v5800 = vmax.f32 %v5288, 0.0
    %v5801 = vmax.f32 %v5289, 0.0
    %v5802 = vmax.f32 %v5290, 0.0
    %v5803 = vmax.f32 %v5291, 0.0
    %v5804 = vmax.f32 %v5292, 0.0
    %v5805 = vmax.f32 %v5293, 0.0
    %v5806 = vmax.f32 %v5294, 0.0
    %v5807 = vmax.f32 %v5295, 0.0
    %v5808 = vmax.f32 %v5296, 0.0
    %v5809 = vmax.f32 %v5297, 0.0
    %v5810 = vmax.f32 %v5298, 0.0
    %v5811 = vmax.f32 %v5299, 0.0
    %v5812 = vmax.f32 %v5300, 0.0
    %v5813 = vmax.f32 %v5301, 0.0
    %v5814 = vmax.f32 %v5302, 0.0
    %v5815 = vmax.f32 %v5303, 0.0
    %v5816 = vmax.f32 %v5304, 0.0
    %v5817 = vmax.f32 %v5305, 0.0
    %v5818 = vmax.f32 %v5306, 0.0
    %v5819 = vmax.f32 %v5307, 0.0
    %v5820 = vmax.f32 %v5308, 0.0
    %v5821 = vmax.f32 %v5309, 0.0
    %v5822 = vmax.f32 %v5310, 0.0
    %v5823 = vmax.f32 %v5311, 0.0
    %v5824 = vmax.f32 %v5312, 0.0
    %v5825 = vmax.f32 %v5313, 0.0
    %v5826 = vmax.f32 %v5314, 0.0
    %v5827 = vmax.f32 %v5315, 0.0
    %v5828 = vmax.f32 %v5316, 0.0
    %v5829 = vmax.f32 %v5317, 0.0
    %v5830 = vmax.f32 %v5318, 0.0
    %v5831 = vmax.f32 %v5319, 0.0
    %v5832 = vmax.f32 %v5320, 0.0
    %v5833 = vmax.f32 %v5321, 0.0
    %v5834 = vmax.f32 %v5322, 0.0
    %v5835 = vmax.f32 %v5323, 0.0
    %v5836 = vmax.f32 %v5324, 0.0
    %v5837 = vmax.f32 %v5325, 0.0
    %v5838 = vmax.f32 %v5326, 0.0
    %v5839 = vmax.f32 %v5327, 0.0
    %v5840 = vmax.f32 %v5328, 0.0
    %v5841 = vmax.f32 %v5329, 0.0
    %v5842 = vmax.f32 %v5330, 0.0
    %v5843 = vmax.f32 %v5331, 0.0
    %v5844 = vmax.f32 %v5332, 0.0
    %v5845 = vmax.f32 %v5333, 0.0
    %v5846 = vmax.f32 %v5334, 0.0
    %v5847 = vmax.f32 %v5335, 0.0
    %v5848 = vmax.f32 %v5336, 0.0
    %v5849 = vmax.f32 %v5337, 0.0
    %v5850 = vmax.f32 %v5338, 0.0
    %v5851 = vmax.f32 %v5339, 0.0
    %v5852 = vmax.f32 %v5340, 0.0
    %v5853 = vmax.f32 %v5341, 0.0
    %v5854 = vmax.f32 %v5342, 0.0
    %v5855 = vmax.f32 %v5343, 0.0
    %v5856 = vmax.f32 %v5344, 0.0
    %v5857 = vmax.f32 %v5345, 0.0
    %v5858 = vmax.f32 %v5346, 0.0
    %v5859 = vmax.f32 %v5347, 0.0
    %v5860 = vmax.f32 %v5348, 0.0
    %v5861 = vmax.f32 %v5349, 0.0
    %v5862 = vmax.f32 %v5350, 0.0
    %v5863 = vmax.f32 %v5351, 0.0
    %v5864 = vmax.f32 %v5352, 0.0
    %v5865 = vmax.f32 %v5353, 0.0
    %v5866 = vmax.f32 %v5354, 0.0
    %v5867 = vmax.f32 %v5355, 0.0
    %v5868 = vmax.f32 %v5356, 0.0
    %v5869 = vmax.f32 %v5357, 0.0
    %v5870 = vmax.f32 %v5358, 0.0
    %v5871 = vmax.f32 %v5359, 0.0
    %v5872 = vmax.f32 %v5360, 0.0
    %v5873 = vmax.f32 %v5361, 0.0
    %v5874 = vmax.f32 %v5362, 0.0
    %v5875 = vmax.f32 %v5363, 0.0
    %v5876 = vmax.f32 %v5364, 0.0
    %v5877 = vmax.f32 %v5365, 0.0
    %v5878 = vmax.f32 %v5366, 0.0
    %v5879 = vmax.f32 %v5367, 0.0
    %v5880 = vmax.f32 %v5368, 0.0
    %v5881 = vmax.f32 %v5369, 0.0
    %v5882 = vmax.f32 %v5370, 0.0
    %v5883 = vmax.f32 %v5371, 0.0
    %v5884 = vmax.f32 %v5372, 0.0
    %v5885 = vmax.f32 %v5373, 0.0
    %v5886 = vmax.f32 %v5374, 0.0
    %v5887 = vmax.f32 %v5375, 0.0
    %v5888 = vmax.f32 %v5376, 0.0
    %v5889 = vmax.f32 %v5377, 0.0
    %v5890 = vmax.f32 %v5378, 0.0
    %v5891 = vmax.f32 %v5379, 0.0
    %v5892 = vmax.f32 %v5380, 0.0
    %v5893 = vmax.f32 %v5381, 0.0
    %v5894 = vmax.f32 %v5382, 0.0
    %v5895 = vmax.f32 %v5383, 0.0
    %v5896 = vmax.f32 %v5384, 0.0
    %v5897 = vmax.f32 %v5385, 0.0
    %v5898 = vmax.f32 %v5386, 0.0
    %v5899 = vmax.f32 %v5387, 0.0
    %v5900 = vmax.f32 %v5388, 0.0
    %v5901 = vmax.f32 %v5389, 0.0
    %v5902 = vmax.f32 %v5390, 0.0
    %v5903 = vmax.f32 %v5391, 0.0
    %v5904 = vmax.f32 %v5392, 0.0
    %v5905 = vmax.f32 %v5393, 0.0
    %v5906 = vmax.f32 %v5394, 0.0
    %v5907 = vmax.f32 %v5395, 0.0
    %v5908 = vmax.f32 %v5396, 0.0
    %v5909 = vmax.f32 %v5397, 0.0
    %v5910 = vmax.f32 %v5398, 0.0
    %v5911 = vmax.f32 %v5399, 0.0
    %v5912 = vmax.f32 %v5400, 0.0
    %v5913 = vmax.f32 %v5401, 0.0
    %v5914 = vmax.f32 %v5402, 0.0
    %v5915 = vmax.f32 %v5403, 0.0
    %v5916 = vmax.f32 %v5404, 0.0
    %v5917 = vmax.f32 %v5405, 0.0
    %v5918 = vmax.f32 %v5406, 0.0
    %v5919 = vmax.f32 %v5407, 0.0
    %v5920 = vmax.f32 %v5408, 0.0
    %v5921 = vmax.f32 %v5409, 0.0
    %v5922 = vmax.f32 %v5410, 0.0
    %v5923 = vmax.f32 %v5411, 0.0
    %v5924 = vmax.f32 %v5412, 0.0
    %v5925 = vmax.f32 %v5413, 0.0
    %v5926 = vmax.f32 %v5414, 0.0
    %v5927 = vmax.f32 %v5415, 0.0
    %v5928 = vmax.f32 %v5416, 0.0
    %v5929 = vmax.f32 %v5417, 0.0
    %v5930 = vmax.f32 %v5418, 0.0
    %v5931 = vmax.f32 %v5419, 0.0
    %v5932 = vmax.f32 %v5420, 0.0
    %v5933 = vmax.f32 %v5421, 0.0
    %v5934 = vmax.f32 %v5422, 0.0
    %v5935 = vmax.f32 %v5423, 0.0
    %v5936 = vmax.f32 %v5424, 0.0
    %v5937 = vmax.f32 %v5425, 0.0
    %v5938 = vmax.f32 %v5426, 0.0
    %v5939 = vmax.f32 %v5427, 0.0
    %v5940 = vmax.f32 %v5428, 0.0
    %v5941 = vmax.f32 %v5429, 0.0
    %v5942 = vmax.f32 %v5430, 0.0
    %v5943 = vmax.f32 %v5431, 0.0
    %v5944 = vmax.f32 %v5432, 0.0
    %v5945 = vmax.f32 %v5433, 0.0
    %v5946 = vmax.f32 %v5434, 0.0
    %v5947 = vmax.f32 %v5435, 0.0
    %v5948 = vmax.f32 %v5436, 0.0
    %v5949 = vmax.f32 %v5437, 0.0
    %v5950 = vmax.f32 %v5438, 0.0
    %v5951 = vmax.f32 %v5439, 0.0
    %v5952 = vmax.f32 %v5440, 0.0
    %v5953 = vmax.f32 %v5441, 0.0
    %v5954 = vmax.f32 %v5442, 0.0
    %v5955 = vmax.f32 %v5443, 0.0
    %v5956 = vmax.f32 %v5444, 0.0
    %v5957 = vmax.f32 %v5445, 0.0
    %v5958 = vmax.f32 %v5446, 0.0
    %v5959 = vmax.f32 %v5447, 0.0
    %v5960 = vmax.f32 %v5448, 0.0
    %v5961 = vmax.f32 %v5449, 0.0
    %v5962 = vmax.f32 %v5450, 0.0
    %v5963 = vmax.f32 %v5451, 0.0
    %v5964 = vmax.f32 %v5452, 0.0
    %v5965 = vmax.f32 %v5453, 0.0
    %v5966 = vmax.f32 %v5454, 0.0
    %v5967 = vmax.f32 %v5455, 0.0
    %v5968 = vmax.f32 %v5456, 0.0
    %v5969 = vmax.f32 %v5457, 0.0
    %v5970 = vmax.f32 %v5458, 0.0
    %v5971 = vmax.f32 %v5459, 0.0
    %v5972 = vmax.f32 %v5460, 0.0
    %v5973 = vmax.f32 %v5461, 0.0
    %v5974 = vmax.f32 %v5462, 0.0
    %v5975 = vmax.f32 %v5463, 0.0
    %v5976 = vmax.f32 %v5464, 0.0
    %v5977 = vmax.f32 %v5465, 0.0
    %v5978 = vmax.f32 %v5466, 0.0
    %v5979 = vmax.f32 %v5467, 0.0
    %v5980 = vmax.f32 %v5468, 0.0
    %v5981 = vmax.f32 %v5469, 0.0
    %v5982 = vmax.f32 %v5470, 0.0
    %v5983 = vmax.f32 %v5471, 0.0
    %v5984 = vmax.f32 %v5472, 0.0
    %v5985 = vmax.f32 %v5473, 0.0
    %v5986 = vmax.f32 %v5474, 0.0
    %v5987 = vmax.f32 %v5475, 0.0
    %v5988 = vmax.f32 %v5476, 0.0
    %v5989 = vmax.f32 %v5477, 0.0
    %v5990 = vmax.f32 %v5478, 0.0
    %v5991 = vmax.f32 %v5479, 0.0
    %v5992 = vmax.f32 %v5480, 0.0
    %v5993 = vmax.f32 %v5481, 0.0
    %v5994 = vmax.f32 %v5482, 0.0
    %v5995 = vmax.f32 %v5483, 0.0
    %v5996 = vmax.f32 %v5484, 0.0
    %v5997 = vmax.f32 %v5485, 0.0
    %v5998 = vmax.f32 %v5486, 0.0
    %v5999 = vmax.f32 %v5487, 0.0
    %v6000 = vmax.f32 %v5488, 0.0
    %v6001 = vmax.f32 %v5489, 0.0
    %v6002 = vmax.f32 %v5490, 0.0
    %v6003 = vmax.f32 %v5491, 0.0
    %v6004 = vmax.f32 %v5492, 0.0
    %v6005 = vmax.f32 %v5493, 0.0
    %v6006 = vmax.f32 %v5494, 0.0
    %v6007 = vmax.f32 %v5495, 0.0
    %v6008 = vmax.f32 %v5496, 0.0
    %v6009 = vmax.f32 %v5497, 0.0
    %v6010 = vmax.f32 %v5498, 0.0
    %v6011 = vmax.f32 %v5499, 0.0
    %v6012 = vmax.f32 %v5500, 0.0
    %v6013 = vmax.f32 %v5501, 0.0
    %v6014 = vmax.f32 %v5502, 0.0
    %v6015 = vmax.f32 %v5503, 0.0
    %v6016 = vmax.f32 %v5504, 0.0
    %v6017 = vmax.f32 %v5505, 0.0
    %v6018 = vmax.f32 %v5506, 0.0
    %v6019 = vmax.f32 %v5507, 0.0
    %v6020 = vmax.f32 %v5508, 0.0
    %v6021 = vmax.f32 %v5509, 0.0
    %v6022 = vmax.f32 %v5510, 0.0
    %v6023 = vmax.f32 %v5511, 0.0
    %v6024 = vmax.f32 %v5512, 0.0
    %v6025 = vmax.f32 %v5513, 0.0
    %v6026 = vmax.f32 %v5514, 0.0
    %v6027 = vmax.f32 %v5515, 0.0
    %v6028 = vmax.f32 %v5516, 0.0
    %v6029 = vmax.f32 %v5517, 0.0
    %v6030 = vmax.f32 %v5518, 0.0
    %v6031 = vmax.f32 %v5519, 0.0
    %v6032 = vmax.f32 %v5520, 0.0
    %v6033 = vmax.f32 %v5521, 0.0
    %v6034 = vmax.f32 %v5522, 0.0
    %v6035 = vmax.f32 %v5523, 0.0
    %v6036 = vmax.f32 %v5524, 0.0
    %v6037 = vmax.f32 %v5525, 0.0
    %v6038 = vmax.f32 %v5526, 0.0
    %v6039 = vmax.f32 %v5527, 0.0
    %v6040 = vmax.f32 %v5528, 0.0
    %v6041 = vmax.f32 %v5529, 0.0
    %v6042 = vmax.f32 %v5530, 0.0
    %v6043 = vmax.f32 %v5531, 0.0
    %v6044 = vmax.f32 %v5532, 0.0
    %v6045 = vmax.f32 %v5533, 0.0
    %v6046 = vmax.f32 %v5534, 0.0
    %v6047 = vmax.f32 %v5535, 0.0
    %v6048 = vmax.f32 %v5536, 0.0
    %v6049 = vmax.f32 %v5537, 0.0
    %v6050 = vmax.f32 %v5538, 0.0
    %v6051 = vmax.f32 %v5539, 0.0
    %v6052 = vmax.f32 %v5540, 0.0
    %v6053 = vmax.f32 %v5541, 0.0
    %v6054 = vmax.f32 %v5542, 0.0
    %v6055 = vmax.f32 %v5543, 0.0
    %v6056 = vmax.f32 %v5544, 0.0
    %v6057 = vmax.f32 %v5545, 0.0
    %v6058 = vmax.f32 %v5546, 0.0
    %v6059 = vmax.f32 %v5547, 0.0
    %v6060 = vmax.f32 %v5548, 0.0
    %v6061 = vmax.f32 %v5549, 0.0
    %v6062 = vmax.f32 %v5550, 0.0
    %v6063 = vmax.f32 %v5551, 0.0
    %v6064 = vmax.f32 %v5552, 0.0
    %v6065 = vmax.f32 %v5553, 0.0
    %v6066 = vmax.f32 %v5554, 0.0
    %v6067 = vmax.f32 %v5555, 0.0
    %v6068 = vmax.f32 %v5556, 0.0
    %v6069 = vmax.f32 %v5557, 0.0
    %v6070 = vmax.f32 %v5558, 0.0
    %v6071 = vmax.f32 %v5559, 0.0
    %v6072 = vmax.f32 %v5560, 0.0
    %v6073 = vmax.f32 %v5561, 0.0
    %v6074 = vmax.f32 %v5562, 0.0
    %v6075 = vmax.f32 %v5563, 0.0
    %v6076 = vmax.f32 %v5564, 0.0
    %v6077 = vmax.f32 %v5565, 0.0
    %v6078 = vmax.f32 %v5566, 0.0
    %v6079 = vmax.f32 %v5567, 0.0
    %v6080 = vmax.f32 %v5568, 0.0
    %v6081 = vmax.f32 %v5569, 0.0
    %v6082 = vmax.f32 %v5570, 0.0
    %v6083 = vmax.f32 %v5571, 0.0
    %v6084 = vmax.f32 %v5572, 0.0
    %v6085 = vmax.f32 %v5573, 0.0
    %v6086 = vmax.f32 %v5574, 0.0
    %v6087 = vmax.f32 %v5575, 0.0
    %v6088 = vmax.f32 %v5576, 0.0
    %v6089 = vmax.f32 %v5577, 0.0
    %v6090 = vmax.f32 %v5578, 0.0
    %v6091 = vmax.f32 %v5579, 0.0
    %v6092 = vmax.f32 %v5580, 0.0
    %v6093 = vmax.f32 %v5581, 0.0
    %v6094 = vmax.f32 %v5582, 0.0
    %v6095 = vmax.f32 %v5583, 0.0
    %v6096 = vmax.f32 %v5584, 0.0
    %v6097 = vmax.f32 %v5585, 0.0
    %v6098 = vmax.f32 %v5586, 0.0
    %v6099 = vmax.f32 %v5587, 0.0
    %v6100 = vmax.f32 %v5588, 0.0
    %v6101 = vmax.f32 %v5589, 0.0
    %v6102 = vmax.f32 %v5590, 0.0
    %v6103 = vmax.f32 %v5591, 0.0
    %v6104 = vmax.f32 %v5592, 0.0
    %v6105 = vmax.f32 %v5593, 0.0
    %v6106 = vmax.f32 %v5594, 0.0
    %v6107 = vmax.f32 %v5595, 0.0
    %v6108 = vmax.f32 %v5596, 0.0
    %v6109 = vmax.f32 %v5597, 0.0
    %v6110 = vmax.f32 %v5598, 0.0
    %v6111 = vmax.f32 %v5599, 0.0
    %v6112 = vmax.f32 %v5600, 0.0
    %v6113 = vmax.f32 %v5601, 0.0
    %v6114 = vmax.f32 %v5602, 0.0
    %v6115 = vmax.f32 %v5603, 0.0
    %v6116 = vmax.f32 %v5604, 0.0
    %v6117 = vmax.f32 %v5605, 0.0
    %v6118 = vmax.f32 %v5606, 0.0
    %v6119 = vmax.f32 %v5607, 0.0
    %v6120 = vmax.f32 %v5608, 0.0
    %v6121 = vmax.f32 %v5609, 0.0
    %v6122 = vmax.f32 %v5610, 0.0
    %v6123 = vmax.f32 %v5611, 0.0
    %v6124 = vmax.f32 %v5612, 0.0
    %v6125 = vmax.f32 %v5613, 0.0
    %v6126 = vmax.f32 %v5614, 0.0
    %v6127 = vmax.f32 %v5615, 0.0
    %v6128 = vmax.f32 %v5616, 0.0
    %v6129 = vmax.f32 %v5617, 0.0
    %v6130 = vmax.f32 %v5618, 0.0
    %v6131 = vmax.f32 %v5619, 0.0
    %v6132 = vmax.f32 %v5620, 0.0
    %v6133 = vmax.f32 %v5621, 0.0
    %v6134 = vmax.f32 %v5622, 0.0
    %v6135 = vmax.f32 %v5623, 0.0
    %v6136 = vmax.f32 %v5624, 0.0
    %v6137 = vmax.f32 %v5625, 0.0
    %v6138 = vmax.f32 %v5626, 0.0
    %v6139 = vmax.f32 %v5627, 0.0
    %v6140 = vmax.f32 %v5628, 0.0
    %v6141 = vmax.f32 %v5629, 0.0
    %v6142 = vmax.f32 %v5630, 0.0
    %v6143 = vmax.f32 %v5631, 0.0
    %v6144 = vmax.f32 %v5632, 0.0
    %v6145 = vmax.f32 %v5633, 0.0
    %v6146 = vmax.f32 %v5634, 0.0
    %v6147 = vmax.f32 %v5635, 0.0
    %v6148 = vmax.f32 %v5636, 0.0
    %v6149 = vmax.f32 %v5637, 0.0
    %v6150 = vmax.f32 %v5638, 0.0
    %v6151 = vmax.f32 %v5639, 0.0
    %v6152 = vmax.f32 %v5640, 0.0
    %v6153 = vmax.f32 %v5641, 0.0
    %v6154 = vmax.f32 %v5642, 0.0
    %v6155 = vmax.f32 %v5643, 0.0
    %v6156 = vmax.f32 %v5644, 0.0
    %v6157 = vmax.f32 %v5645, 0.0
    %v6158 = vmax.f32 %v5646, 0.0
    %v6159 = vmax.f32 %v5647, 0.0
    %v6160 = vmax.f32 %v5648, 0.0
    %v6161 = vmax.f32 %v5649, 0.0
    %v6162 = vmax.f32 %v5650, 0.0
    %v6163 = vmax.f32 %v5651, 0.0
    %v6164 = vmax.f32 %v5652, 0.0
    %v6165 = vmax.f32 %v5653, 0.0
    %v6166 = vmax.f32 %v5654, 0.0
    %v6167 = vmax.f32 %v5655, 0.0
    %v6168 = vmax.f32 %v5656, 0.0
    %v6169 = vmax.f32 %v5657, 0.0
    %v6170 = vmax.f32 %v5658, 0.0
    %v6171 = vmax.f32 %v5659, 0.0
    %v6172 = vmax.f32 %v5660, 0.0
    %v6173 = vmax.f32 %v5661, 0.0
    %v6174 = vmax.f32 %v5662, 0.0
    %v6175 = vmax.f32 %v5663, 0.0
    %v6176 = vmax.f32 %v5664, 0.0
    %v6177 = vmax.f32 %v5665, 0.0
    %v6178 = vmax.f32 %v5666, 0.0
    %v6179 = vmax.f32 %v5667, 0.0
    %v6180 = vmax.f32 %v5668, 0.0
    %v6181 = vmax.f32 %v5669, 0.0
    %v6182 = vmax.f32 %v5670, 0.0
    %v6183 = vmax.f32 %v5671, 0.0
    %v6184 = vmax.f32 %v5672, 0.0
    %v6185 = vmax.f32 %v5673, 0.0
    %v6186 = vmax.f32 %v5674, 0.0
    %v6187 = vmax.f32 %v5675, 0.0
    %v6188 = vmax.f32 %v5676, 0.0
    %v6189 = vmax.f32 %v5677, 0.0
    %v6190 = vmax.f32 %v5678, 0.0
    %v6191 = vmax.f32 %v5679, 0.0
    %v6192 = vmax.f32 %v5680, 0.0
    %v6193 = vmax.f32 %v5681, 0.0
    %v6194 = vmax.f32 %v5682, 0.0
    %v6195 = vmax.f32 %v5683, 0.0
    %v6196 = vmax.f32 %v5684, 0.0
    %v6197 = vmax.f32 %v5685, 0.0
    %v6198 = vmax.f32 %v5686, 0.0
    %v6199 = vmax.f32 %v5687, 0.0
    %v6200 = vmax.f32 %v5688, 0.0
    %v6201 = vmax.f32 %v5689, 0.0
    %v6202 = vmax.f32 %v5690, 0.0
    %v6203 = vmax.f32 %v5691, 0.0
    %v6204 = vmax.f32 %v5692, 0.0
    %v6205 = vmax.f32 %v5693, 0.0
    %v6206 = vmax.f32 %v5694, 0.0
    %v6207 = vmax.f32 %v5695, 0.0
    %v6208 = vmax.f32 %v5696, 0.0
    %v6209 = vmax.f32 %v5697, 0.0
    %v6210 = vmax.f32 %v5698, 0.0
    %v6211 = vmax.f32 %v5699, 0.0
    %v6212 = vmax.f32 %v5700, 0.0
    %v6213 = vmax.f32 %v5701, 0.0
    %v6214 = vmax.f32 %v5702, 0.0
    %v6215 = vmax.f32 %v5703, 0.0
    %v6216 = vmax.f32 %v5704, 0.0
    %v6217 = vmax.f32 %v5705, 0.0
    %v6218 = vmax.f32 %v5706, 0.0
    %v6219 = vmax.f32 %v5707, 0.0
    %v6220 = vmax.f32 %v5708, 0.0
    %v6221 = vmax.f32 %v5709, 0.0
    %v6222 = vmax.f32 %v5710, 0.0
    %v6223 = vmax.f32 %v5711, 0.0
    %v6224 = vmax.f32 %v5712, 0.0
    %v6225 = vmax.f32 %v5713, 0.0
    %v6226 = vmax.f32 %v5714, 0.0
    %v6227 = vmax.f32 %v5715, 0.0
    %v6228 = vmax.f32 %v5716, 0.0
    %v6229 = vmax.f32 %v5717, 0.0
    %v6230 = vmax.f32 %v5718, 0.0
    %v6231 = vmax.f32 %v5719, 0.0
    %v6232 = vmax.f32 %v5720, 0.0
    %v6233 = vpack.c.bf16 %v5729, %v5721
    %v6234 = vpack.c.bf16 %v5730, %v5722
    %v6235 = vpack.c.bf16 %v5731, %v5723
    %v6236 = vpack.c.bf16 %v5732, %v5724
    %v6237 = vpack.c.bf16 %v5733, %v5725
    %v6238 = vpack.c.bf16 %v5734, %v5726
    %v6239 = vpack.c.bf16 %v5735, %v5727
    %v6240 = vpack.c.bf16 %v5736, %v5728
    %v6241 = vpack.c.bf16 %v5745, %v5737
    %v6242 = vpack.c.bf16 %v5746, %v5738
    %v6243 = vpack.c.bf16 %v5747, %v5739
    %v6244 = vpack.c.bf16 %v5748, %v5740
    %v6245 = vpack.c.bf16 %v5749, %v5741
    %v6246 = vpack.c.bf16 %v5750, %v5742
    %v6247 = vpack.c.bf16 %v5751, %v5743
    %v6248 = vpack.c.bf16 %v5752, %v5744
    %v6249 = vpack.c.bf16 %v5761, %v5753
    %v6250 = vpack.c.bf16 %v5762, %v5754
    %v6251 = vpack.c.bf16 %v5763, %v5755
    %v6252 = vpack.c.bf16 %v5764, %v5756
    %v6253 = vpack.c.bf16 %v5765, %v5757
    %v6254 = vpack.c.bf16 %v5766, %v5758
    %v6255 = vpack.c.bf16 %v5767, %v5759
    %v6256 = vpack.c.bf16 %v5768, %v5760
    %v6257 = vpack.c.bf16 %v5777, %v5769
    %v6258 = vpack.c.bf16 %v5778, %v5770
    %v6259 = vpack.c.bf16 %v5779, %v5771
    %v6260 = vpack.c.bf16 %v5780, %v5772
    %v6261 = vpack.c.bf16 %v5781, %v5773
    %v6262 = vpack.c.bf16 %v5782, %v5774
    %v6263 = vpack.c.bf16 %v5783, %v5775
    %v6264 = vpack.c.bf16 %v5784, %v5776
    %v6265 = vpack.c.bf16 %v5793, %v5785
    %v6266 = vpack.c.bf16 %v5794, %v5786
    %v6267 = vpack.c.bf16 %v5795, %v5787
    %v6268 = vpack.c.bf16 %v5796, %v5788
    %v6269 = vpack.c.bf16 %v5797, %v5789
    %v6270 = vpack.c.bf16 %v5798, %v5790
    %v6271 = vpack.c.bf16 %v5799, %v5791
    %v6272 = vpack.c.bf16 %v5800, %v5792
    %v6273 = vpack.c.bf16 %v5809, %v5801
    %v6274 = vpack.c.bf16 %v5810, %v5802
    %v6275 = vpack.c.bf16 %v5811, %v5803
    %v6276 = vpack.c.bf16 %v5812, %v5804
    %v6277 = vpack.c.bf16 %v5813, %v5805
    %v6278 = vpack.c.bf16 %v5814, %v5806
    %v6279 = vpack.c.bf16 %v5815, %v5807
    %v6280 = vpack.c.bf16 %v5816, %v5808
    %v6281 = vpack.c.bf16 %v5825, %v5817
    %v6282 = vpack.c.bf16 %v5826, %v5818
    %v6283 = vpack.c.bf16 %v5827, %v5819
    %v6284 = vpack.c.bf16 %v5828, %v5820
    %v6285 = vpack.c.bf16 %v5829, %v5821
    %v6286 = vpack.c.bf16 %v5830, %v5822
    %v6287 = vpack.c.bf16 %v5831, %v5823
    %v6288 = vpack.c.bf16 %v5832, %v5824
    %v6289 = vpack.c.bf16 %v5841, %v5833
    %v6290 = vpack.c.bf16 %v5842, %v5834
    %v6291 = vpack.c.bf16 %v5843, %v5835
    %v6292 = vpack.c.bf16 %v5844, %v5836
    %v6293 = vpack.c.bf16 %v5845, %v5837
    %v6294 = vpack.c.bf16 %v5846, %v5838
    %v6295 = vpack.c.bf16 %v5847, %v5839
    %v6296 = vpack.c.bf16 %v5848, %v5840
    %v6297 = vpack.c.bf16 %v5857, %v5849
    %v6298 = vpack.c.bf16 %v5858, %v5850
    %v6299 = vpack.c.bf16 %v5859, %v5851
    %v6300 = vpack.c.bf16 %v5860, %v5852
    %v6301 = vpack.c.bf16 %v5861, %v5853
    %v6302 = vpack.c.bf16 %v5862, %v5854
    %v6303 = vpack.c.bf16 %v5863, %v5855
    %v6304 = vpack.c.bf16 %v5864, %v5856
    %v6305 = vpack.c.bf16 %v5873, %v5865
    %v6306 = vpack.c.bf16 %v5874, %v5866
    %v6307 = vpack.c.bf16 %v5875, %v5867
    %v6308 = vpack.c.bf16 %v5876, %v5868
    %v6309 = vpack.c.bf16 %v5877, %v5869
    %v6310 = vpack.c.bf16 %v5878, %v5870
    %v6311 = vpack.c.bf16 %v5879, %v5871
    %v6312 = vpack.c.bf16 %v5880, %v5872
    %v6313 = vpack.c.bf16 %v5889, %v5881
    %v6314 = vpack.c.bf16 %v5890, %v5882
    %v6315 = vpack.c.bf16 %v5891, %v5883
    %v6316 = vpack.c.bf16 %v5892, %v5884
    %v6317 = vpack.c.bf16 %v5893, %v5885
    %v6318 = vpack.c.bf16 %v5894, %v5886
    %v6319 = vpack.c.bf16 %v5895, %v5887
    %v6320 = vpack.c.bf16 %v5896, %v5888
    %v6321 = vpack.c.bf16 %v5905, %v5897
    %v6322 = vpack.c.bf16 %v5906, %v5898
    %v6323 = vpack.c.bf16 %v5907, %v5899
    %v6324 = vpack.c.bf16 %v5908, %v5900
    %v6325 = vpack.c.bf16 %v5909, %v5901
    %v6326 = vpack.c.bf16 %v5910, %v5902
    %v6327 = vpack.c.bf16 %v5911, %v5903
    %v6328 = vpack.c.bf16 %v5912, %v5904
    %v6329 = vpack.c.bf16 %v5921, %v5913
    %v6330 = vpack.c.bf16 %v5922, %v5914
    %v6331 = vpack.c.bf16 %v5923, %v5915
    %v6332 = vpack.c.bf16 %v5924, %v5916
    %v6333 = vpack.c.bf16 %v5925, %v5917
    %v6334 = vpack.c.bf16 %v5926, %v5918
    %v6335 = vpack.c.bf16 %v5927, %v5919
    %v6336 = vpack.c.bf16 %v5928, %v5920
    %v6337 = vpack.c.bf16 %v5937, %v5929
    %v6338 = vpack.c.bf16 %v5938, %v5930
    %v6339 = vpack.c.bf16 %v5939, %v5931
    %v6340 = vpack.c.bf16 %v5940, %v5932
    %v6341 = vpack.c.bf16 %v5941, %v5933
    %v6342 = vpack.c.bf16 %v5942, %v5934
    %v6343 = vpack.c.bf16 %v5943, %v5935
    %v6344 = vpack.c.bf16 %v5944, %v5936
    %v6345 = vpack.c.bf16 %v5953, %v5945
    %v6346 = vpack.c.bf16 %v5954, %v5946
    %v6347 = vpack.c.bf16 %v5955, %v5947
    %v6348 = vpack.c.bf16 %v5956, %v5948
    %v6349 = vpack.c.bf16 %v5957, %v5949
    %v6350 = vpack.c.bf16 %v5958, %v5950
    %v6351 = vpack.c.bf16 %v5959, %v5951
    %v6352 = vpack.c.bf16 %v5960, %v5952
    %v6353 = vpack.c.bf16 %v5969, %v5961
    %v6354 = vpack.c.bf16 %v5970, %v5962
    %v6355 = vpack.c.bf16 %v5971, %v5963
    %v6356 = vpack.c.bf16 %v5972, %v5964
    %v6357 = vpack.c.bf16 %v5973, %v5965
    %v6358 = vpack.c.bf16 %v5974, %v5966
    %v6359 = vpack.c.bf16 %v5975, %v5967
    %v6360 = vpack.c.bf16 %v5976, %v5968
    %v6361 = vpack.c.bf16 %v5985, %v5977
    %v6362 = vpack.c.bf16 %v5986, %v5978
    %v6363 = vpack.c.bf16 %v5987, %v5979
    %v6364 = vpack.c.bf16 %v5988, %v5980
    %v6365 = vpack.c.bf16 %v5989, %v5981
    %v6366 = vpack.c.bf16 %v5990, %v5982
    %v6367 = vpack.c.bf16 %v5991, %v5983
    %v6368 = vpack.c.bf16 %v5992, %v5984
    %v6369 = vpack.c.bf16 %v6001, %v5993
    %v6370 = vpack.c.bf16 %v6002, %v5994
    %v6371 = vpack.c.bf16 %v6003, %v5995
    %v6372 = vpack.c.bf16 %v6004, %v5996
    %v6373 = vpack.c.bf16 %v6005, %v5997
    %v6374 = vpack.c.bf16 %v6006, %v5998
    %v6375 = vpack.c.bf16 %v6007, %v5999
    %v6376 = vpack.c.bf16 %v6008, %v6000
    %v6377 = vpack.c.bf16 %v6017, %v6009
    %v6378 = vpack.c.bf16 %v6018, %v6010
    %v6379 = vpack.c.bf16 %v6019, %v6011
    %v6380 = vpack.c.bf16 %v6020, %v6012
    %v6381 = vpack.c.bf16 %v6021, %v6013
    %v6382 = vpack.c.bf16 %v6022, %v6014
    %v6383 = vpack.c.bf16 %v6023, %v6015
    %v6384 = vpack.c.bf16 %v6024, %v6016
    %v6385 = vpack.c.bf16 %v6033, %v6025
    %v6386 = vpack.c.bf16 %v6034, %v6026
    %v6387 = vpack.c.bf16 %v6035, %v6027
    %v6388 = vpack.c.bf16 %v6036, %v6028
    %v6389 = vpack.c.bf16 %v6037, %v6029
    %v6390 = vpack.c.bf16 %v6038, %v6030
    %v6391 = vpack.c.bf16 %v6039, %v6031
    %v6392 = vpack.c.bf16 %v6040, %v6032
    %v6393 = vpack.c.bf16 %v6049, %v6041
    %v6394 = vpack.c.bf16 %v6050, %v6042
    %v6395 = vpack.c.bf16 %v6051, %v6043
    %v6396 = vpack.c.bf16 %v6052, %v6044
    %v6397 = vpack.c.bf16 %v6053, %v6045
    %v6398 = vpack.c.bf16 %v6054, %v6046
    %v6399 = vpack.c.bf16 %v6055, %v6047
    %v6400 = vpack.c.bf16 %v6056, %v6048
    %v6401 = vpack.c.bf16 %v6065, %v6057
    %v6402 = vpack.c.bf16 %v6066, %v6058
    %v6403 = vpack.c.bf16 %v6067, %v6059
    %v6404 = vpack.c.bf16 %v6068, %v6060
    %v6405 = vpack.c.bf16 %v6069, %v6061
    %v6406 = vpack.c.bf16 %v6070, %v6062
    %v6407 = vpack.c.bf16 %v6071, %v6063
    %v6408 = vpack.c.bf16 %v6072, %v6064
    %v6409 = vpack.c.bf16 %v6081, %v6073
    %v6410 = vpack.c.bf16 %v6082, %v6074
    %v6411 = vpack.c.bf16 %v6083, %v6075
    %v6412 = vpack.c.bf16 %v6084, %v6076
    %v6413 = vpack.c.bf16 %v6085, %v6077
    %v6414 = vpack.c.bf16 %v6086, %v6078
    %v6415 = vpack.c.bf16 %v6087, %v6079
    %v6416 = vpack.c.bf16 %v6088, %v6080
    %v6417 = vpack.c.bf16 %v6097, %v6089
    %v6418 = vpack.c.bf16 %v6098, %v6090
    %v6419 = vpack.c.bf16 %v6099, %v6091
    %v6420 = vpack.c.bf16 %v6100, %v6092
    %v6421 = vpack.c.bf16 %v6101, %v6093
    %v6422 = vpack.c.bf16 %v6102, %v6094
    %v6423 = vpack.c.bf16 %v6103, %v6095
    %v6424 = vpack.c.bf16 %v6104, %v6096
    %v6425 = vpack.c.bf16 %v6113, %v6105
    %v6426 = vpack.c.bf16 %v6114, %v6106
    %v6427 = vpack.c.bf16 %v6115, %v6107
    %v6428 = vpack.c.bf16 %v6116, %v6108
    %v6429 = vpack.c.bf16 %v6117, %v6109
    %v6430 = vpack.c.bf16 %v6118, %v6110
    %v6431 = vpack.c.bf16 %v6119, %v6111
    %v6432 = vpack.c.bf16 %v6120, %v6112
    %v6433 = vpack.c.bf16 %v6129, %v6121
    %v6434 = vpack.c.bf16 %v6130, %v6122
    %v6435 = vpack.c.bf16 %v6131, %v6123
    %v6436 = vpack.c.bf16 %v6132, %v6124
    %v6437 = vpack.c.bf16 %v6133, %v6125
    %v6438 = vpack.c.bf16 %v6134, %v6126
    %v6439 = vpack.c.bf16 %v6135, %v6127
    %v6440 = vpack.c.bf16 %v6136, %v6128
    %v6441 = vpack.c.bf16 %v6145, %v6137
    %v6442 = vpack.c.bf16 %v6146, %v6138
    %v6443 = vpack.c.bf16 %v6147, %v6139
    %v6444 = vpack.c.bf16 %v6148, %v6140
    %v6445 = vpack.c.bf16 %v6149, %v6141
    %v6446 = vpack.c.bf16 %v6150, %v6142
    %v6447 = vpack.c.bf16 %v6151, %v6143
    %v6448 = vpack.c.bf16 %v6152, %v6144
    %v6449 = vpack.c.bf16 %v6161, %v6153
    %v6450 = vpack.c.bf16 %v6162, %v6154
    %v6451 = vpack.c.bf16 %v6163, %v6155
    %v6452 = vpack.c.bf16 %v6164, %v6156
    %v6453 = vpack.c.bf16 %v6165, %v6157
    %v6454 = vpack.c.bf16 %v6166, %v6158
    %v6455 = vpack.c.bf16 %v6167, %v6159
    %v6456 = vpack.c.bf16 %v6168, %v6160
    %v6457 = vpack.c.bf16 %v6177, %v6169
    %v6458 = vpack.c.bf16 %v6178, %v6170
    %v6459 = vpack.c.bf16 %v6179, %v6171
    %v6460 = vpack.c.bf16 %v6180, %v6172
    %v6461 = vpack.c.bf16 %v6181, %v6173
    %v6462 = vpack.c.bf16 %v6182, %v6174
    %v6463 = vpack.c.bf16 %v6183, %v6175
    %v6464 = vpack.c.bf16 %v6184, %v6176
    %v6465 = vpack.c.bf16 %v6193, %v6185
    %v6466 = vpack.c.bf16 %v6194, %v6186
    %v6467 = vpack.c.bf16 %v6195, %v6187
    %v6468 = vpack.c.bf16 %v6196, %v6188
    %v6469 = vpack.c.bf16 %v6197, %v6189
    %v6470 = vpack.c.bf16 %v6198, %v6190
    %v6471 = vpack.c.bf16 %v6199, %v6191
    %v6472 = vpack.c.bf16 %v6200, %v6192
    %v6473 = vpack.c.bf16 %v6209, %v6201
    %v6474 = vpack.c.bf16 %v6210, %v6202
    %v6475 = vpack.c.bf16 %v6211, %v6203
    %v6476 = vpack.c.bf16 %v6212, %v6204
    %v6477 = vpack.c.bf16 %v6213, %v6205
    %v6478 = vpack.c.bf16 %v6214, %v6206
    %v6479 = vpack.c.bf16 %v6215, %v6207
    %v6480 = vpack.c.bf16 %v6216, %v6208
    %v6481 = vpack.c.bf16 %v6225, %v6217
    %v6482 = vpack.c.bf16 %v6226, %v6218
    %v6483 = vpack.c.bf16 %v6227, %v6219
    %v6484 = vpack.c.bf16 %v6228, %v6220
    %v6485 = vpack.c.bf16 %v6229, %v6221
    %v6486 = vpack.c.bf16 %v6230, %v6222
    %v6487 = vpack.c.bf16 %v6231, %v6223
    %v6488 = vpack.c.bf16 %v6232, %v6224
    %v6489 = vld [vmem:[#allocation9] sm:$0xff]
    %v6490 = vld [vmem:[#allocation9 + $0x8] sm:$0xff]
    %v6491 = vld [vmem:[#allocation9 + $0x10] sm:$0xff]
    %v6492 = vld [vmem:[#allocation9 + $0x18] sm:$0xff]
    %v6493 = vld [vmem:[#allocation9 + $0x20] sm:$0xff]
    %v6494 = vld [vmem:[#allocation9 + $0x28] sm:$0xff]
    %v6495 = vld [vmem:[#allocation9 + $0x30] sm:$0xff]
    %v6496 = vld [vmem:[#allocation9 + $0x38] sm:$0xff]
    %v6497 = vld [vmem:[#allocation9 + $0x40] sm:$0xff]
    %v6498 = vld [vmem:[#allocation9 + $0x48] sm:$0xff]
    %v6499 = vld [vmem:[#allocation9 + $0x50] sm:$0xff]
    %v6500 = vld [vmem:[#allocation9 + $0x58] sm:$0xff]
    %v6501 = vld [vmem:[#allocation9 + $0x60] sm:$0xff]
    %v6502 = vld [vmem:[#allocation9 + $0x68] sm:$0xff]
    %v6503 = vld [vmem:[#allocation9 + $0x70] sm:$0xff]
    %v6504 = vld [vmem:[#allocation9 + $0x78] sm:$0xff]
    %v6505 = vld [vmem:[#allocation9 + $0x80] sm:$0xff]
    %v6506 = vld [vmem:[#allocation9 + $0x88] sm:$0xff]
    %v6507 = vld [vmem:[#allocation9 + $0x90] sm:$0xff]
    %v6508 = vld [vmem:[#allocation9 + $0x98] sm:$0xff]
    %v6509 = vld [vmem:[#allocation9 + $0xa0] sm:$0xff]
    %v6510 = vld [vmem:[#allocation9 + $0xa8] sm:$0xff]
    %v6511 = vld [vmem:[#allocation9 + $0xb0] sm:$0xff]
    %v6512 = vld [vmem:[#allocation9 + $0xb8] sm:$0xff]
    %v6513 = vld [vmem:[#allocation9 + $0xc0] sm:$0xff]
    %v6514 = vld [vmem:[#allocation9 + $0xc8] sm:$0xff]
    %v6515 = vld [vmem:[#allocation9 + $0xd0] sm:$0xff]
    %v6516 = vld [vmem:[#allocation9 + $0xd8] sm:$0xff]
    %v6517 = vld [vmem:[#allocation9 + $0xe0] sm:$0xff]
    %v6518 = vld [vmem:[#allocation9 + $0xe8] sm:$0xff]
    %v6519 = vld [vmem:[#allocation9 + $0xf0] sm:$0xff]
    %v6520 = vld [vmem:[#allocation9 + $0xf8] sm:$0xff]
    %v6521 = vld [vmem:[#allocation9 + $0x100] sm:$0xff]
    %v6522 = vld [vmem:[#allocation9 + $0x108] sm:$0xff]
    %v6523 = vld [vmem:[#allocation9 + $0x110] sm:$0xff]
    %v6524 = vld [vmem:[#allocation9 + $0x118] sm:$0xff]
    %v6525 = vld [vmem:[#allocation9 + $0x120] sm:$0xff]
    %v6526 = vld [vmem:[#allocation9 + $0x128] sm:$0xff]
    %v6527 = vld [vmem:[#allocation9 + $0x130] sm:$0xff]
    %v6528 = vld [vmem:[#allocation9 + $0x138] sm:$0xff]
    %v6529 = vld [vmem:[#allocation9 + $0x140] sm:$0xff]
    %v6530 = vld [vmem:[#allocation9 + $0x148] sm:$0xff]
    %v6531 = vld [vmem:[#allocation9 + $0x150] sm:$0xff]
    %v6532 = vld [vmem:[#allocation9 + $0x158] sm:$0xff]
    %v6533 = vld [vmem:[#allocation9 + $0x160] sm:$0xff]
    %v6534 = vld [vmem:[#allocation9 + $0x168] sm:$0xff]
    %v6535 = vld [vmem:[#allocation9 + $0x170] sm:$0xff]
    %v6536 = vld [vmem:[#allocation9 + $0x178] sm:$0xff]
    %v6537 = vld [vmem:[#allocation9 + $0x180] sm:$0xff]
    %v6538 = vld [vmem:[#allocation9 + $0x188] sm:$0xff]
    %v6539 = vld [vmem:[#allocation9 + $0x190] sm:$0xff]
    %v6540 = vld [vmem:[#allocation9 + $0x198] sm:$0xff]
    %v6541 = vld [vmem:[#allocation9 + $0x1a0] sm:$0xff]
    %v6542 = vld [vmem:[#allocation9 + $0x1a8] sm:$0xff]
    %v6543 = vld [vmem:[#allocation9 + $0x1b0] sm:$0xff]
    %v6544 = vld [vmem:[#allocation9 + $0x1b8] sm:$0xff]
    %v6545 = vld [vmem:[#allocation9 + $0x1c0] sm:$0xff]
    %v6546 = vld [vmem:[#allocation9 + $0x1c8] sm:$0xff]
    %v6547 = vld [vmem:[#allocation9 + $0x1d0] sm:$0xff]
    %v6548 = vld [vmem:[#allocation9 + $0x1d8] sm:$0xff]
    %v6549 = vld [vmem:[#allocation9 + $0x1e0] sm:$0xff]
    %v6550 = vld [vmem:[#allocation9 + $0x1e8] sm:$0xff]
    %v6551 = vld [vmem:[#allocation9 + $0x1f0] sm:$0xff]
    %v6552 = vld [vmem:[#allocation9 + $0x1f8] sm:$0xff]
    %v6553 = vld [vmem:[#allocation9 + $0x200] sm:$0xff]
    %v6554 = vld [vmem:[#allocation9 + $0x208] sm:$0xff]
    %v6555 = vld [vmem:[#allocation9 + $0x210] sm:$0xff]
    %v6556 = vld [vmem:[#allocation9 + $0x218] sm:$0xff]
    %v6557 = vld [vmem:[#allocation9 + $0x220] sm:$0xff]
    %v6558 = vld [vmem:[#allocation9 + $0x228] sm:$0xff]
    %v6559 = vld [vmem:[#allocation9 + $0x230] sm:$0xff]
    %v6560 = vld [vmem:[#allocation9 + $0x238] sm:$0xff]
    %v6561 = vld [vmem:[#allocation9 + $0x240] sm:$0xff]
    %v6562 = vld [vmem:[#allocation9 + $0x248] sm:$0xff]
    %v6563 = vld [vmem:[#allocation9 + $0x250] sm:$0xff]
    %v6564 = vld [vmem:[#allocation9 + $0x258] sm:$0xff]
    %v6565 = vld [vmem:[#allocation9 + $0x260] sm:$0xff]
    %v6566 = vld [vmem:[#allocation9 + $0x268] sm:$0xff]
    %v6567 = vld [vmem:[#allocation9 + $0x270] sm:$0xff]
    %v6568 = vld [vmem:[#allocation9 + $0x278] sm:$0xff]
    %v6569 = vld [vmem:[#allocation9 + $0x280] sm:$0xff]
    %v6570 = vld [vmem:[#allocation9 + $0x288] sm:$0xff]
    %v6571 = vld [vmem:[#allocation9 + $0x290] sm:$0xff]
    %v6572 = vld [vmem:[#allocation9 + $0x298] sm:$0xff]
    %v6573 = vld [vmem:[#allocation9 + $0x2a0] sm:$0xff]
    %v6574 = vld [vmem:[#allocation9 + $0x2a8] sm:$0xff]
    %v6575 = vld [vmem:[#allocation9 + $0x2b0] sm:$0xff]
    %v6576 = vld [vmem:[#allocation9 + $0x2b8] sm:$0xff]
    %v6577 = vld [vmem:[#allocation9 + $0x2c0] sm:$0xff]
    %v6578 = vld [vmem:[#allocation9 + $0x2c8] sm:$0xff]
    %v6579 = vld [vmem:[#allocation9 + $0x2d0] sm:$0xff]
    %v6580 = vld [vmem:[#allocation9 + $0x2d8] sm:$0xff]
    %v6581 = vld [vmem:[#allocation9 + $0x2e0] sm:$0xff]
    %v6582 = vld [vmem:[#allocation9 + $0x2e8] sm:$0xff]
    %v6583 = vld [vmem:[#allocation9 + $0x2f0] sm:$0xff]
    %v6584 = vld [vmem:[#allocation9 + $0x2f8] sm:$0xff]
    %v6585 = vld [vmem:[#allocation9 + $0x300] sm:$0xff]
    %v6586 = vld [vmem:[#allocation9 + $0x308] sm:$0xff]
    %v6587 = vld [vmem:[#allocation9 + $0x310] sm:$0xff]
    %v6588 = vld [vmem:[#allocation9 + $0x318] sm:$0xff]
    %v6589 = vld [vmem:[#allocation9 + $0x320] sm:$0xff]
    %v6590 = vld [vmem:[#allocation9 + $0x328] sm:$0xff]
    %v6591 = vld [vmem:[#allocation9 + $0x330] sm:$0xff]
    %v6592 = vld [vmem:[#allocation9 + $0x338] sm:$0xff]
    %v6593 = vld [vmem:[#allocation9 + $0x340] sm:$0xff]
    %v6594 = vld [vmem:[#allocation9 + $0x348] sm:$0xff]
    %v6595 = vld [vmem:[#allocation9 + $0x350] sm:$0xff]
    %v6596 = vld [vmem:[#allocation9 + $0x358] sm:$0xff]
    %v6597 = vld [vmem:[#allocation9 + $0x360] sm:$0xff]
    %v6598 = vld [vmem:[#allocation9 + $0x368] sm:$0xff]
    %v6599 = vld [vmem:[#allocation9 + $0x370] sm:$0xff]
    %v6600 = vld [vmem:[#allocation9 + $0x378] sm:$0xff]
    %v6601 = vld [vmem:[#allocation9 + $0x380] sm:$0xff]
    %v6602 = vld [vmem:[#allocation9 + $0x388] sm:$0xff]
    %v6603 = vld [vmem:[#allocation9 + $0x390] sm:$0xff]
    %v6604 = vld [vmem:[#allocation9 + $0x398] sm:$0xff]
    %v6605 = vld [vmem:[#allocation9 + $0x3a0] sm:$0xff]
    %v6606 = vld [vmem:[#allocation9 + $0x3a8] sm:$0xff]
    %v6607 = vld [vmem:[#allocation9 + $0x3b0] sm:$0xff]
    %v6608 = vld [vmem:[#allocation9 + $0x3b8] sm:$0xff]
    %v6609 = vld [vmem:[#allocation9 + $0x3c0] sm:$0xff]
    %v6610 = vld [vmem:[#allocation9 + $0x3c8] sm:$0xff]
    %v6611 = vld [vmem:[#allocation9 + $0x3d0] sm:$0xff]
    %v6612 = vld [vmem:[#allocation9 + $0x3d8] sm:$0xff]
    %v6613 = vld [vmem:[#allocation9 + $0x3e0] sm:$0xff]
    %v6614 = vld [vmem:[#allocation9 + $0x3e8] sm:$0xff]
    %v6615 = vld [vmem:[#allocation9 + $0x3f0] sm:$0xff]
    %v6616 = vld [vmem:[#allocation9 + $0x3f8] sm:$0xff]
    %v6617 = vld [vmem:[#allocation11] sm:$0x3]
    %v6619 = vlaneseq
    %v6620 = vshrl.u32 %v6619, 7
    %v6621 = vsub.s32 0, %v6620
    %v6622 = vrot.slane %v6617, %v6621
    %v6623 = vlaneseq
    %v6624 = vshrl.u32 %v6623, 7
    %v6625 = vsub.s32 1, %v6624
    %v6626 = vrot.slane %v6617, %v6625
    %v6757 = vunpack.c.l.b16 %v6489
    %v6758 = vunpack.c.h.b16 %v6489
    %v6759 = vunpack.c.l.b16 %v6490
    %v6760 = vunpack.c.h.b16 %v6490
    %v6761 = vunpack.c.l.b16 %v6491
    %v6762 = vunpack.c.h.b16 %v6491
    %v6763 = vunpack.c.l.b16 %v6492
    %v6764 = vunpack.c.h.b16 %v6492
    %v6765 = vunpack.c.l.b16 %v6493
    %v6766 = vunpack.c.h.b16 %v6493
    %v6767 = vunpack.c.l.b16 %v6494
    %v6768 = vunpack.c.h.b16 %v6494
    %v6769 = vunpack.c.l.b16 %v6495
    %v6770 = vunpack.c.h.b16 %v6495
    %v6771 = vunpack.c.l.b16 %v6496
    %v6772 = vunpack.c.h.b16 %v6496
    %v6773 = vunpack.c.l.b16 %v6497
    %v6774 = vunpack.c.h.b16 %v6497
    %v6775 = vunpack.c.l.b16 %v6498
    %v6776 = vunpack.c.h.b16 %v6498
    %v6777 = vunpack.c.l.b16 %v6499
    %v6778 = vunpack.c.h.b16 %v6499
    %v6779 = vunpack.c.l.b16 %v6500
    %v6780 = vunpack.c.h.b16 %v6500
    %v6781 = vunpack.c.l.b16 %v6501
    %v6782 = vunpack.c.h.b16 %v6501
    %v6783 = vunpack.c.l.b16 %v6502
    %v6784 = vunpack.c.h.b16 %v6502
    %v6785 = vunpack.c.l.b16 %v6503
    %v6786 = vunpack.c.h.b16 %v6503
    %v6787 = vunpack.c.l.b16 %v6504
    %v6788 = vunpack.c.h.b16 %v6504
    %v6789 = vunpack.c.l.b16 %v6505
    %v6790 = vunpack.c.h.b16 %v6505
    %v6791 = vunpack.c.l.b16 %v6506
    %v6792 = vunpack.c.h.b16 %v6506
    %v6793 = vunpack.c.l.b16 %v6507
    %v6794 = vunpack.c.h.b16 %v6507
    %v6795 = vunpack.c.l.b16 %v6508
    %v6796 = vunpack.c.h.b16 %v6508
    %v6797 = vunpack.c.l.b16 %v6509
    %v6798 = vunpack.c.h.b16 %v6509
    %v6799 = vunpack.c.l.b16 %v6510
    %v6800 = vunpack.c.h.b16 %v6510
    %v6801 = vunpack.c.l.b16 %v6511
    %v6802 = vunpack.c.h.b16 %v6511
    %v6803 = vunpack.c.l.b16 %v6512
    %v6804 = vunpack.c.h.b16 %v6512
    %v6805 = vunpack.c.l.b16 %v6513
    %v6806 = vunpack.c.h.b16 %v6513
    %v6807 = vunpack.c.l.b16 %v6514
    %v6808 = vunpack.c.h.b16 %v6514
    %v6809 = vunpack.c.l.b16 %v6515
    %v6810 = vunpack.c.h.b16 %v6515
    %v6811 = vunpack.c.l.b16 %v6516
    %v6812 = vunpack.c.h.b16 %v6516
    %v6813 = vunpack.c.l.b16 %v6517
    %v6814 = vunpack.c.h.b16 %v6517
    %v6815 = vunpack.c.l.b16 %v6518
    %v6816 = vunpack.c.h.b16 %v6518
    %v6817 = vunpack.c.l.b16 %v6519
    %v6818 = vunpack.c.h.b16 %v6519
    %v6819 = vunpack.c.l.b16 %v6520
    %v6820 = vunpack.c.h.b16 %v6520
    %v6821 = vunpack.c.l.b16 %v6521
    %v6822 = vunpack.c.h.b16 %v6521
    %v6823 = vunpack.c.l.b16 %v6522
    %v6824 = vunpack.c.h.b16 %v6522
    %v6825 = vunpack.c.l.b16 %v6523
    %v6826 = vunpack.c.h.b16 %v6523
    %v6827 = vunpack.c.l.b16 %v6524
    %v6828 = vunpack.c.h.b16 %v6524
    %v6829 = vunpack.c.l.b16 %v6525
    %v6830 = vunpack.c.h.b16 %v6525
    %v6831 = vunpack.c.l.b16 %v6526
    %v6832 = vunpack.c.h.b16 %v6526
    %v6833 = vunpack.c.l.b16 %v6527
    %v6834 = vunpack.c.h.b16 %v6527
    %v6835 = vunpack.c.l.b16 %v6528
    %v6836 = vunpack.c.h.b16 %v6528
    %v6837 = vunpack.c.l.b16 %v6529
    %v6838 = vunpack.c.h.b16 %v6529
    %v6839 = vunpack.c.l.b16 %v6530
    %v6840 = vunpack.c.h.b16 %v6530
    %v6841 = vunpack.c.l.b16 %v6531
    %v6842 = vunpack.c.h.b16 %v6531
    %v6843 = vunpack.c.l.b16 %v6532
    %v6844 = vunpack.c.h.b16 %v6532
    %v6845 = vunpack.c.l.b16 %v6533
    %v6846 = vunpack.c.h.b16 %v6533
    %v6847 = vunpack.c.l.b16 %v6534
    %v6848 = vunpack.c.h.b16 %v6534
    %v6849 = vunpack.c.l.b16 %v6535
    %v6850 = vunpack.c.h.b16 %v6535
    %v6851 = vunpack.c.l.b16 %v6536
    %v6852 = vunpack.c.h.b16 %v6536
    %v6853 = vunpack.c.l.b16 %v6537
    %v6854 = vunpack.c.h.b16 %v6537
    %v6855 = vunpack.c.l.b16 %v6538
    %v6856 = vunpack.c.h.b16 %v6538
    %v6857 = vunpack.c.l.b16 %v6539
    %v6858 = vunpack.c.h.b16 %v6539
    %v6859 = vunpack.c.l.b16 %v6540
    %v6860 = vunpack.c.h.b16 %v6540
    %v6861 = vunpack.c.l.b16 %v6541
    %v6862 = vunpack.c.h.b16 %v6541
    %v6863 = vunpack.c.l.b16 %v6542
    %v6864 = vunpack.c.h.b16 %v6542
    %v6865 = vunpack.c.l.b16 %v6543
    %v6866 = vunpack.c.h.b16 %v6543
    %v6867 = vunpack.c.l.b16 %v6544
    %v6868 = vunpack.c.h.b16 %v6544
    %v6869 = vunpack.c.l.b16 %v6545
    %v6870 = vunpack.c.h.b16 %v6545
    %v6871 = vunpack.c.l.b16 %v6546
    %v6872 = vunpack.c.h.b16 %v6546
    %v6873 = vunpack.c.l.b16 %v6547
    %v6874 = vunpack.c.h.b16 %v6547
    %v6875 = vunpack.c.l.b16 %v6548
    %v6876 = vunpack.c.h.b16 %v6548
    %v6877 = vunpack.c.l.b16 %v6549
    %v6878 = vunpack.c.h.b16 %v6549
    %v6879 = vunpack.c.l.b16 %v6550
    %v6880 = vunpack.c.h.b16 %v6550
    %v6881 = vunpack.c.l.b16 %v6551
    %v6882 = vunpack.c.h.b16 %v6551
    %v6883 = vunpack.c.l.b16 %v6552
    %v6884 = vunpack.c.h.b16 %v6552
    %v6885 = vunpack.c.l.b16 %v6553
    %v6886 = vunpack.c.h.b16 %v6553
    %v6887 = vunpack.c.l.b16 %v6554
    %v6888 = vunpack.c.h.b16 %v6554
    %v6889 = vunpack.c.l.b16 %v6555
    %v6890 = vunpack.c.h.b16 %v6555
    %v6891 = vunpack.c.l.b16 %v6556
    %v6892 = vunpack.c.h.b16 %v6556
    %v6893 = vunpack.c.l.b16 %v6557
    %v6894 = vunpack.c.h.b16 %v6557
    %v6895 = vunpack.c.l.b16 %v6558
    %v6896 = vunpack.c.h.b16 %v6558
    %v6897 = vunpack.c.l.b16 %v6559
    %v6898 = vunpack.c.h.b16 %v6559
    %v6899 = vunpack.c.l.b16 %v6560
    %v6900 = vunpack.c.h.b16 %v6560
    %v6901 = vunpack.c.l.b16 %v6561
    %v6902 = vunpack.c.h.b16 %v6561
    %v6903 = vunpack.c.l.b16 %v6562
    %v6904 = vunpack.c.h.b16 %v6562
    %v6905 = vunpack.c.l.b16 %v6563
    %v6906 = vunpack.c.h.b16 %v6563
    %v6907 = vunpack.c.l.b16 %v6564
    %v6908 = vunpack.c.h.b16 %v6564
    %v6909 = vunpack.c.l.b16 %v6565
    %v6910 = vunpack.c.h.b16 %v6565
    %v6911 = vunpack.c.l.b16 %v6566
    %v6912 = vunpack.c.h.b16 %v6566
    %v6913 = vunpack.c.l.b16 %v6567
    %v6914 = vunpack.c.h.b16 %v6567
    %v6915 = vunpack.c.l.b16 %v6568
    %v6916 = vunpack.c.h.b16 %v6568
    %v6917 = vunpack.c.l.b16 %v6569
    %v6918 = vunpack.c.h.b16 %v6569
    %v6919 = vunpack.c.l.b16 %v6570
    %v6920 = vunpack.c.h.b16 %v6570
    %v6921 = vunpack.c.l.b16 %v6571
    %v6922 = vunpack.c.h.b16 %v6571
    %v6923 = vunpack.c.l.b16 %v6572
    %v6924 = vunpack.c.h.b16 %v6572
    %v6925 = vunpack.c.l.b16 %v6573
    %v6926 = vunpack.c.h.b16 %v6573
    %v6927 = vunpack.c.l.b16 %v6574
    %v6928 = vunpack.c.h.b16 %v6574
    %v6929 = vunpack.c.l.b16 %v6575
    %v6930 = vunpack.c.h.b16 %v6575
    %v6931 = vunpack.c.l.b16 %v6576
    %v6932 = vunpack.c.h.b16 %v6576
    %v6933 = vunpack.c.l.b16 %v6577
    %v6934 = vunpack.c.h.b16 %v6577
    %v6935 = vunpack.c.l.b16 %v6578
    %v6936 = vunpack.c.h.b16 %v6578
    %v6937 = vunpack.c.l.b16 %v6579
    %v6938 = vunpack.c.h.b16 %v6579
    %v6939 = vunpack.c.l.b16 %v6580
    %v6940 = vunpack.c.h.b16 %v6580
    %v6941 = vunpack.c.l.b16 %v6581
    %v6942 = vunpack.c.h.b16 %v6581
    %v6943 = vunpack.c.l.b16 %v6582
    %v6944 = vunpack.c.h.b16 %v6582
    %v6945 = vunpack.c.l.b16 %v6583
    %v6946 = vunpack.c.h.b16 %v6583
    %v6947 = vunpack.c.l.b16 %v6584
    %v6948 = vunpack.c.h.b16 %v6584
    %v6949 = vunpack.c.l.b16 %v6585
    %v6950 = vunpack.c.h.b16 %v6585
    %v6951 = vunpack.c.l.b16 %v6586
    %v6952 = vunpack.c.h.b16 %v6586
    %v6953 = vunpack.c.l.b16 %v6587
    %v6954 = vunpack.c.h.b16 %v6587
    %v6955 = vunpack.c.l.b16 %v6588
    %v6956 = vunpack.c.h.b16 %v6588
    %v6957 = vunpack.c.l.b16 %v6589
    %v6958 = vunpack.c.h.b16 %v6589
    %v6959 = vunpack.c.l.b16 %v6590
    %v6960 = vunpack.c.h.b16 %v6590
    %v6961 = vunpack.c.l.b16 %v6591
    %v6962 = vunpack.c.h.b16 %v6591
    %v6963 = vunpack.c.l.b16 %v6592
    %v6964 = vunpack.c.h.b16 %v6592
    %v6965 = vunpack.c.l.b16 %v6593
    %v6966 = vunpack.c.h.b16 %v6593
    %v6967 = vunpack.c.l.b16 %v6594
    %v6968 = vunpack.c.h.b16 %v6594
    %v6969 = vunpack.c.l.b16 %v6595
    %v6970 = vunpack.c.h.b16 %v6595
    %v6971 = vunpack.c.l.b16 %v6596
    %v6972 = vunpack.c.h.b16 %v6596
    %v6973 = vunpack.c.l.b16 %v6597
    %v6974 = vunpack.c.h.b16 %v6597
    %v6975 = vunpack.c.l.b16 %v6598
    %v6976 = vunpack.c.h.b16 %v6598
    %v6977 = vunpack.c.l.b16 %v6599
    %v6978 = vunpack.c.h.b16 %v6599
    %v6979 = vunpack.c.l.b16 %v6600
    %v6980 = vunpack.c.h.b16 %v6600
    %v6981 = vunpack.c.l.b16 %v6601
    %v6982 = vunpack.c.h.b16 %v6601
    %v6983 = vunpack.c.l.b16 %v6602
    %v6984 = vunpack.c.h.b16 %v6602
    %v6985 = vunpack.c.l.b16 %v6603
    %v6986 = vunpack.c.h.b16 %v6603
    %v6987 = vunpack.c.l.b16 %v6604
    %v6988 = vunpack.c.h.b16 %v6604
    %v6989 = vunpack.c.l.b16 %v6605
    %v6990 = vunpack.c.h.b16 %v6605
    %v6991 = vunpack.c.l.b16 %v6606
    %v6992 = vunpack.c.h.b16 %v6606
    %v6993 = vunpack.c.l.b16 %v6607
    %v6994 = vunpack.c.h.b16 %v6607
    %v6995 = vunpack.c.l.b16 %v6608
    %v6996 = vunpack.c.h.b16 %v6608
    %v6997 = vunpack.c.l.b16 %v6609
    %v6998 = vunpack.c.h.b16 %v6609
    %v6999 = vunpack.c.l.b16 %v6610
    %v7000 = vunpack.c.h.b16 %v6610
    %v7001 = vunpack.c.l.b16 %v6611
    %v7002 = vunpack.c.h.b16 %v6611
    %v7003 = vunpack.c.l.b16 %v6612
    %v7004 = vunpack.c.h.b16 %v6612
    %v7005 = vunpack.c.l.b16 %v6613
    %v7006 = vunpack.c.h.b16 %v6613
    %v7007 = vunpack.c.l.b16 %v6614
    %v7008 = vunpack.c.h.b16 %v6614
    %v7009 = vunpack.c.l.b16 %v6615
    %v7010 = vunpack.c.h.b16 %v6615
    %v7011 = vunpack.c.l.b16 %v6616
    %v7012 = vunpack.c.h.b16 %v6616
    %v7013 = vpack.c.b16 %v6759, %v6757
    %v7014 = vpack.c.b16 %v6760, %v6758
    %v7015 = vpack.c.b16 %v6763, %v6761
    %v7016 = vpack.c.b16 %v6764, %v6762
    %v7017 = vpack.c.b16 %v6767, %v6765
    %v7018 = vpack.c.b16 %v6768, %v6766
    %v7019 = vpack.c.b16 %v6771, %v6769
    %v7020 = vpack.c.b16 %v6772, %v6770
    %v7021 = vpack.c.b16 %v6775, %v6773
    %v7022 = vpack.c.b16 %v6776, %v6774
    %v7023 = vpack.c.b16 %v6779, %v6777
    %v7024 = vpack.c.b16 %v6780, %v6778
    %v7025 = vpack.c.b16 %v6783, %v6781
    %v7026 = vpack.c.b16 %v6784, %v6782
    %v7027 = vpack.c.b16 %v6787, %v6785
    %v7028 = vpack.c.b16 %v6788, %v6786
    %v7029 = vpack.c.b16 %v6791, %v6789
    %v7030 = vpack.c.b16 %v6792, %v6790
    %v7031 = vpack.c.b16 %v6795, %v6793
    %v7032 = vpack.c.b16 %v6796, %v6794
    %v7033 = vpack.c.b16 %v6799, %v6797
    %v7034 = vpack.c.b16 %v6800, %v6798
    %v7035 = vpack.c.b16 %v6803, %v6801
    %v7036 = vpack.c.b16 %v6804, %v6802
    %v7037 = vpack.c.b16 %v6807, %v6805
    %v7038 = vpack.c.b16 %v6808, %v6806
    %v7039 = vpack.c.b16 %v6811, %v6809
    %v7040 = vpack.c.b16 %v6812, %v6810
    %v7041 = vpack.c.b16 %v6815, %v6813
    %v7042 = vpack.c.b16 %v6816, %v6814
    %v7043 = vpack.c.b16 %v6819, %v6817
    %v7044 = vpack.c.b16 %v6820, %v6818
    %v7045 = vpack.c.b16 %v6823, %v6821
    %v7046 = vpack.c.b16 %v6824, %v6822
    %v7047 = vpack.c.b16 %v6827, %v6825
    %v7048 = vpack.c.b16 %v6828, %v6826
    %v7049 = vpack.c.b16 %v6831, %v6829
    %v7050 = vpack.c.b16 %v6832, %v6830
    %v7051 = vpack.c.b16 %v6835, %v6833
    %v7052 = vpack.c.b16 %v6836, %v6834
    %v7053 = vpack.c.b16 %v6839, %v6837
    %v7054 = vpack.c.b16 %v6840, %v6838
    %v7055 = vpack.c.b16 %v6843, %v6841
    %v7056 = vpack.c.b16 %v6844, %v6842
    %v7057 = vpack.c.b16 %v6847, %v6845
    %v7058 = vpack.c.b16 %v6848, %v6846
    %v7059 = vpack.c.b16 %v6851, %v6849
    %v7060 = vpack.c.b16 %v6852, %v6850
    %v7061 = vpack.c.b16 %v6855, %v6853
    %v7062 = vpack.c.b16 %v6856, %v6854
    %v7063 = vpack.c.b16 %v6859, %v6857
    %v7064 = vpack.c.b16 %v6860, %v6858
    %v7065 = vpack.c.b16 %v6863, %v6861
    %v7066 = vpack.c.b16 %v6864, %v6862
    %v7067 = vpack.c.b16 %v6867, %v6865
    %v7068 = vpack.c.b16 %v6868, %v6866
    %v7069 = vpack.c.b16 %v6871, %v6869
    %v7070 = vpack.c.b16 %v6872, %v6870
    %v7071 = vpack.c.b16 %v6875, %v6873
    %v7072 = vpack.c.b16 %v6876, %v6874
    %v7073 = vpack.c.b16 %v6879, %v6877
    %v7074 = vpack.c.b16 %v6880, %v6878
    %v7075 = vpack.c.b16 %v6883, %v6881
    %v7076 = vpack.c.b16 %v6884, %v6882
    %v7077 = vpack.c.b16 %v6887, %v6885
    %v7078 = vpack.c.b16 %v6888, %v6886
    %v7079 = vpack.c.b16 %v6891, %v6889
    %v7080 = vpack.c.b16 %v6892, %v6890
    %v7081 = vpack.c.b16 %v6895, %v6893
    %v7082 = vpack.c.b16 %v6896, %v6894
    %v7083 = vpack.c.b16 %v6899, %v6897
    %v7084 = vpack.c.b16 %v6900, %v6898
    %v7085 = vpack.c.b16 %v6903, %v6901
    %v7086 = vpack.c.b16 %v6904, %v6902
    %v7087 = vpack.c.b16 %v6907, %v6905
    %v7088 = vpack.c.b16 %v6908, %v6906
    %v7089 = vpack.c.b16 %v6911, %v6909
    %v7090 = vpack.c.b16 %v6912, %v6910
    %v7091 = vpack.c.b16 %v6915, %v6913
    %v7092 = vpack.c.b16 %v6916, %v6914
    %v7093 = vpack.c.b16 %v6919, %v6917
    %v7094 = vpack.c.b16 %v6920, %v6918
    %v7095 = vpack.c.b16 %v6923, %v6921
    %v7096 = vpack.c.b16 %v6924, %v6922
    %v7097 = vpack.c.b16 %v6927, %v6925
    %v7098 = vpack.c.b16 %v6928, %v6926
    %v7099 = vpack.c.b16 %v6931, %v6929
    %v7100 = vpack.c.b16 %v6932, %v6930
    %v7101 = vpack.c.b16 %v6935, %v6933
    %v7102 = vpack.c.b16 %v6936, %v6934
    %v7103 = vpack.c.b16 %v6939, %v6937
    %v7104 = vpack.c.b16 %v6940, %v6938
    %v7105 = vpack.c.b16 %v6943, %v6941
    %v7106 = vpack.c.b16 %v6944, %v6942
    %v7107 = vpack.c.b16 %v6947, %v6945
    %v7108 = vpack.c.b16 %v6948, %v6946
    %v7109 = vpack.c.b16 %v6951, %v6949
    %v7110 = vpack.c.b16 %v6952, %v6950
    %v7111 = vpack.c.b16 %v6955, %v6953
    %v7112 = vpack.c.b16 %v6956, %v6954
    %v7113 = vpack.c.b16 %v6959, %v6957
    %v7114 = vpack.c.b16 %v6960, %v6958
    %v7115 = vpack.c.b16 %v6963, %v6961
    %v7116 = vpack.c.b16 %v6964, %v6962
    %v7117 = vpack.c.b16 %v6967, %v6965
    %v7118 = vpack.c.b16 %v6968, %v6966
    %v7119 = vpack.c.b16 %v6971, %v6969
    %v7120 = vpack.c.b16 %v6972, %v6970
    %v7121 = vpack.c.b16 %v6975, %v6973
    %v7122 = vpack.c.b16 %v6976, %v6974
    %v7123 = vpack.c.b16 %v6979, %v6977
    %v7124 = vpack.c.b16 %v6980, %v6978
    %v7125 = vpack.c.b16 %v6983, %v6981
    %v7126 = vpack.c.b16 %v6984, %v6982
    %v7127 = vpack.c.b16 %v6987, %v6985
    %v7128 = vpack.c.b16 %v6988, %v6986
    %v7129 = vpack.c.b16 %v6991, %v6989
    %v7130 = vpack.c.b16 %v6992, %v6990
    %v7131 = vpack.c.b16 %v6995, %v6993
    %v7132 = vpack.c.b16 %v6996, %v6994
    %v7133 = vpack.c.b16 %v6999, %v6997
    %v7134 = vpack.c.b16 %v7000, %v6998
    %v7135 = vpack.c.b16 %v7003, %v7001
    %v7136 = vpack.c.b16 %v7004, %v7002
    %v7137 = vpack.c.b16 %v7007, %v7005
    %v7138 = vpack.c.b16 %v7008, %v7006
    %v7139 = vpack.c.b16 %v7011, %v7009
    %v7140 = vpack.c.b16 %v7012, %v7010
    %7269 = vmatprep.subr.bf16.mxu0 %v7014
    %7270 = vmatpush1.bf16.msra.mxu0 %v7013
    %7271 = vmatprep.subr.bf16.mxu0 %v7016
    %7272 = vmatpush1.bf16.msra.mxu0 %v7015
    %7273 = vmatprep.subr.bf16.mxu0 %v7018
    %7274 = vmatpush1.bf16.msra.mxu0 %v7017
    %7275 = vmatprep.subr.bf16.mxu0 %v7020
    %7276 = vmatpush1.bf16.msra.mxu0 %v7019
    %7277 = vmatprep.subr.bf16.mxu0 %v7022
    %7278 = vmatpush1.bf16.msra.mxu0 %v7021
    %7279 = vmatprep.subr.bf16.mxu0 %v7024
    %7280 = vmatpush1.bf16.msra.mxu0 %v7023
    %7281 = vmatprep.subr.bf16.mxu0 %v7026
    %7282 = vmatpush1.bf16.msra.mxu0 %v7025
    %7283 = vmatprep.subr.bf16.mxu0 %v7028
    %7284 = vmatpush1.bf16.msra.mxu0 %v7027
    %7285 = vmatprep.subr.bf16.mxu0 %v7030
    %7286 = vmatpush1.bf16.msra.mxu0 %v7029
    %7287 = vmatprep.subr.bf16.mxu0 %v7032
    %7288 = vmatpush1.bf16.msra.mxu0 %v7031
    %7289 = vmatprep.subr.bf16.mxu0 %v7034
    %7290 = vmatpush1.bf16.msra.mxu0 %v7033
    %7291 = vmatprep.subr.bf16.mxu0 %v7036
    %7292 = vmatpush1.bf16.msra.mxu0 %v7035
    %7293 = vmatprep.subr.bf16.mxu0 %v7038
    %7294 = vmatpush1.bf16.msra.mxu0 %v7037
    %7295 = vmatprep.subr.bf16.mxu0 %v7040
    %7296 = vmatpush1.bf16.msra.mxu0 %v7039
    %7297 = vmatprep.subr.bf16.mxu0 %v7042
    %7298 = vmatpush1.bf16.msra.mxu0 %v7041
    %7299 = vmatprep.subr.bf16.mxu0 %v7044
    %7300 = vmatpush1.bf16.msra.mxu0 %v7043
    %7301 = vmatprep.mubr.bf16.mxu0 %v6234
    %7302 = vmatmul.mubr.bf16.gmra.mrb[0].mxu0 %v6233
    %v7303 = vpop.f32.mrb[0].mxu0
    %v7304 = vadd.f32 %v6622, %v7303
    %v7305 = vpop.f32.mrb[0].mxu0
    %v7306 = vadd.f32 %v6626, %v7305
    %v7307 = vpop.f32.mrb[0].mxu0
    %v7308 = vadd.f32 %v6622, %v7307
    %v7309 = vpop.f32.mrb[0].mxu0
    %v7310 = vadd.f32 %v6626, %v7309
    %7311 = vmatprep.mubr.bf16.mxu0 %v6242
    %7312 = vmatmul.mubr.bf16.gmra.mrb[0].mxu0 %v6241
    %v7313 = vpop.f32.mrb[0].mxu0
    %v7314 = vadd.f32 %v6622, %v7313
    %v7315 = vpop.f32.mrb[0].mxu0
    %v7316 = vadd.f32 %v6626, %v7315
    %v7317 = vpop.f32.mrb[0].mxu0
    %v7318 = vadd.f32 %v6622, %v7317
    %v7319 = vpop.f32.mrb[0].mxu0
    %v7320 = vadd.f32 %v6626, %v7319
    %7321 = vmatprep.mubr.bf16.mxu0 %v6250
    %7322 = vmatmul.mubr.bf16.gmra.mrb[0].mxu0 %v6249
    %v7323 = vpop.f32.mrb[0].mxu0
    %v7324 = vadd.f32 %v6622, %v7323
    %v7325 = vpop.f32.mrb[0].mxu0
    %v7326 = vadd.f32 %v6626, %v7325
    %v7327 = vpop.f32.mrb[0].mxu0
    %v7328 = vadd.f32 %v6622, %v7327
    %v7329 = vpop.f32.mrb[0].mxu0
    %v7330 = vadd.f32 %v6626, %v7329
    %7331 = vmatprep.mubr.bf16.mxu0 %v6258
    %7332 = vmatmul.mubr.bf16.gmra.mrb[0].mxu0 %v6257
    %v7333 = vpop.f32.mrb[0].mxu0
    %v7334 = vadd.f32 %v6622, %v7333
    %v7335 = vpop.f32.mrb[0].mxu0
    %v7336 = vadd.f32 %v6626, %v7335
    %v7337 = vpop.f32.mrb[0].mxu0
    %v7338 = vadd.f32 %v6622, %v7337
    %v7339 = vpop.f32.mrb[0].mxu0
    %v7340 = vadd.f32 %v6626, %v7339
    %7341 = vmatprep.mubr.bf16.mxu0 %v6266
    %7342 = vmatmul.mubr.bf16.gmra.mrb[0].mxu0 %v6265
    %v7343 = vpop.f32.mrb[0].mxu0
    %v7344 = vadd.f32 %v6622, %v7343
    %v7345 = vpop.f32.mrb[0].mxu0
    %v7346 = vadd.f32 %v6626, %v7345
    %v7347 = vpop.f32.mrb[0].mxu0
    %v7348 = vadd.f32 %v6622, %v7347
    %v7349 = vpop.f32.mrb[0].mxu0
    %v7350 = vadd.f32 %v6626, %v7349
    %7351 = vmatprep.mubr.bf16.mxu0 %v6274
    %7352 = vmatmul.mubr.bf16.gmra.mrb[0].mxu0 %v6273
    %v7353 = vpop.f32.mrb[0].mxu0
    %v7354 = vadd.f32 %v6622, %v7353
    %v7355 = vpop.f32.mrb[0].mxu0
    %v7356 = vadd.f32 %v6626, %v7355
    %v7357 = vpop.f32.mrb[0].mxu0
    %v7358 = vadd.f32 %v6622, %v7357
    %v7359 = vpop.f32.mrb[0].mxu0
    %v7360 = vadd.f32 %v6626, %v7359
    %7361 = vmatprep.mubr.bf16.mxu0 %v6282
    %7362 = vmatmul.mubr.bf16.gmra.mrb[0].mxu0 %v6281
    %v7363 = vpop.f32.mrb[0].mxu0
    %v7364 = vadd.f32 %v6622, %v7363
    %v7365 = vpop.f32.mrb[0].mxu0
    %v7366 = vadd.f32 %v6626, %v7365
    %v7367 = vpop.f32.mrb[0].mxu0
    %v7368 = vadd.f32 %v6622, %v7367
    %v7369 = vpop.f32.mrb[0].mxu0
    %v7370 = vadd.f32 %v6626, %v7369
    %7371 = vmatprep.mubr.bf16.mxu0 %v6290
    %7372 = vmatmul.mubr.bf16.gmra.mrb[0].mxu0 %v6289
    %v7373 = vpop.f32.mrb[0].mxu0
    %v7374 = vadd.f32 %v6622, %v7373
    %v7375 = vpop.f32.mrb[0].mxu0
    %v7376 = vadd.f32 %v6626, %v7375
    %v7377 = vpop.f32.mrb[0].mxu0
    %v7378 = vadd.f32 %v6622, %v7377
    %v7379 = vpop.f32.mrb[0].mxu0
    %v7380 = vadd.f32 %v6626, %v7379
    %7381 = vmatprep.mubr.bf16.mxu0 %v6298
    %7382 = vmatmul.mubr.bf16.gmra.mrb[0].mxu0 %v6297
    %v7383 = vpop.f32.mrb[0].mxu0
    %v7384 = vadd.f32 %v6622, %v7383
    %v7385 = vpop.f32.mrb[0].mxu0
    %v7386 = vadd.f32 %v6626, %v7385
    %v7387 = vpop.f32.mrb[0].mxu0
    %v7388 = vadd.f32 %v6622, %v7387
    %v7389 = vpop.f32.mrb[0].mxu0
    %v7390 = vadd.f32 %v6626, %v7389
    %7391 = vmatprep.mubr.bf16.mxu0 %v6306
    %7392 = vmatmul.mubr.bf16.gmra.mrb[0].mxu0 %v6305
    %v7393 = vpop.f32.mrb[0].mxu0
    %v7394 = vadd.f32 %v6622, %v7393
    %v7395 = vpop.f32.mrb[0].mxu0
    %v7396 = vadd.f32 %v6626, %v7395
    %v7397 = vpop.f32.mrb[0].mxu0
    %v7398 = vadd.f32 %v6622, %v7397
    %v7399 = vpop.f32.mrb[0].mxu0
    %v7400 = vadd.f32 %v6626, %v7399
    %7401 = vmatprep.mubr.bf16.mxu0 %v6314
    %7402 = vmatmul.mubr.bf16.gmra.mrb[0].mxu0 %v6313
    %v7403 = vpop.f32.mrb[0].mxu0
    %v7404 = vadd.f32 %v6622, %v7403
    %v7405 = vpop.f32.mrb[0].mxu0
    %v7406 = vadd.f32 %v6626, %v7405
    %v7407 = vpop.f32.mrb[0].mxu0
    %v7408 = vadd.f32 %v6622, %v7407
    %v7409 = vpop.f32.mrb[0].mxu0
    %v7410 = vadd.f32 %v6626, %v7409
    %7411 = vmatprep.mubr.bf16.mxu0 %v6322
    %7412 = vmatmul.mubr.bf16.gmra.mrb[0].mxu0 %v6321
    %v7413 = vpop.f32.mrb[0].mxu0
    %v7414 = vadd.f32 %v6622, %v7413
    %v7415 = vpop.f32.mrb[0].mxu0
    %v7416 = vadd.f32 %v6626, %v7415
    %v7417 = vpop.f32.mrb[0].mxu0
    %v7418 = vadd.f32 %v6622, %v7417
    %v7419 = vpop.f32.mrb[0].mxu0
    %v7420 = vadd.f32 %v6626, %v7419
    %7421 = vmatprep.mubr.bf16.mxu0 %v6330
    %7422 = vmatmul.mubr.bf16.gmra.mrb[0].mxu0 %v6329
    %v7423 = vpop.f32.mrb[0].mxu0
    %v7424 = vadd.f32 %v6622, %v7423
    %v7425 = vpop.f32.mrb[0].mxu0
    %v7426 = vadd.f32 %v6626, %v7425
    %v7427 = vpop.f32.mrb[0].mxu0
    %v7428 = vadd.f32 %v6622, %v7427
    %v7429 = vpop.f32.mrb[0].mxu0
    %v7430 = vadd.f32 %v6626, %v7429
    %7431 = vmatprep.mubr.bf16.mxu0 %v6338
    %7432 = vmatmul.mubr.bf16.gmra.mrb[0].mxu0 %v6337
    %v7433 = vpop.f32.mrb[0].mxu0
    %v7434 = vadd.f32 %v6622, %v7433
    %v7435 = vpop.f32.mrb[0].mxu0
    %v7436 = vadd.f32 %v6626, %v7435
    %v7437 = vpop.f32.mrb[0].mxu0
    %v7438 = vadd.f32 %v6622, %v7437
    %v7439 = vpop.f32.mrb[0].mxu0
    %v7440 = vadd.f32 %v6626, %v7439
    %7441 = vmatprep.mubr.bf16.mxu0 %v6346
    %7442 = vmatmul.mubr.bf16.gmra.mrb[0].mxu0 %v6345
    %v7443 = vpop.f32.mrb[0].mxu0
    %v7444 = vadd.f32 %v6622, %v7443
    %v7445 = vpop.f32.mrb[0].mxu0
    %v7446 = vadd.f32 %v6626, %v7445
    %v7447 = vpop.f32.mrb[0].mxu0
    %v7448 = vadd.f32 %v6622, %v7447
    %v7449 = vpop.f32.mrb[0].mxu0
    %v7450 = vadd.f32 %v6626, %v7449
    %7451 = vmatprep.mubr.bf16.mxu0 %v6354
    %7452 = vmatmul.mubr.bf16.gmra.mrb[0].mxu0 %v6353
    %v7453 = vpop.f32.mrb[0].mxu0
    %v7454 = vadd.f32 %v6622, %v7453
    %v7455 = vpop.f32.mrb[0].mxu0
    %v7456 = vadd.f32 %v6626, %v7455
    %v7457 = vpop.f32.mrb[0].mxu0
    %v7458 = vadd.f32 %v6622, %v7457
    %v7459 = vpop.f32.mrb[0].mxu0
    %v7460 = vadd.f32 %v6626, %v7459
    %7461 = vmatprep.mubr.bf16.mxu0 %v6362
    %7462 = vmatmul.mubr.bf16.gmra.mrb[0].mxu0 %v6361
    %v7463 = vpop.f32.mrb[0].mxu0
    %v7464 = vadd.f32 %v6622, %v7463
    %v7465 = vpop.f32.mrb[0].mxu0
    %v7466 = vadd.f32 %v6626, %v7465
    %v7467 = vpop.f32.mrb[0].mxu0
    %v7468 = vadd.f32 %v6622, %v7467
    %v7469 = vpop.f32.mrb[0].mxu0
    %v7470 = vadd.f32 %v6626, %v7469
    %7471 = vmatprep.mubr.bf16.mxu0 %v6370
    %7472 = vmatmul.mubr.bf16.gmra.mrb[0].mxu0 %v6369
    %v7473 = vpop.f32.mrb[0].mxu0
    %v7474 = vadd.f32 %v6622, %v7473
    %v7475 = vpop.f32.mrb[0].mxu0
    %v7476 = vadd.f32 %v6626, %v7475
    %v7477 = vpop.f32.mrb[0].mxu0
    %v7478 = vadd.f32 %v6622, %v7477
    %v7479 = vpop.f32.mrb[0].mxu0
    %v7480 = vadd.f32 %v6626, %v7479
    %7481 = vmatprep.mubr.bf16.mxu0 %v6378
    %7482 = vmatmul.mubr.bf16.gmra.mrb[0].mxu0 %v6377
    %v7483 = vpop.f32.mrb[0].mxu0
    %v7484 = vadd.f32 %v6622, %v7483
    %v7485 = vpop.f32.mrb[0].mxu0
    %v7486 = vadd.f32 %v6626, %v7485
    %v7487 = vpop.f32.mrb[0].mxu0
    %v7488 = vadd.f32 %v6622, %v7487
    %v7489 = vpop.f32.mrb[0].mxu0
    %v7490 = vadd.f32 %v6626, %v7489
    %7491 = vmatprep.mubr.bf16.mxu0 %v6386
    %7492 = vmatmul.mubr.bf16.gmra.mrb[0].mxu0 %v6385
    %v7493 = vpop.f32.mrb[0].mxu0
    %v7494 = vadd.f32 %v6622, %v7493
    %v7495 = vpop.f32.mrb[0].mxu0
    %v7496 = vadd.f32 %v6626, %v7495
    %v7497 = vpop.f32.mrb[0].mxu0
    %v7498 = vadd.f32 %v6622, %v7497
    %v7499 = vpop.f32.mrb[0].mxu0
    %v7500 = vadd.f32 %v6626, %v7499
    %7501 = vmatprep.mubr.bf16.mxu0 %v6394
    %7502 = vmatmul.mubr.bf16.gmra.mrb[0].mxu0 %v6393
    %v7503 = vpop.f32.mrb[0].mxu0
    %v7504 = vadd.f32 %v6622, %v7503
    %v7505 = vpop.f32.mrb[0].mxu0
    %v7506 = vadd.f32 %v6626, %v7505
    %v7507 = vpop.f32.mrb[0].mxu0
    %v7508 = vadd.f32 %v6622, %v7507
    %v7509 = vpop.f32.mrb[0].mxu0
    %v7510 = vadd.f32 %v6626, %v7509
    %7511 = vmatprep.mubr.bf16.mxu0 %v6402
    %7512 = vmatmul.mubr.bf16.gmra.mrb[0].mxu0 %v6401
    %v7513 = vpop.f32.mrb[0].mxu0
    %v7514 = vadd.f32 %v6622, %v7513
    %v7515 = vpop.f32.mrb[0].mxu0
    %v7516 = vadd.f32 %v6626, %v7515
    %v7517 = vpop.f32.mrb[0].mxu0
    %v7518 = vadd.f32 %v6622, %v7517
    %v7519 = vpop.f32.mrb[0].mxu0
    %v7520 = vadd.f32 %v6626, %v7519
    %7521 = vmatprep.mubr.bf16.mxu0 %v6410
    %7522 = vmatmul.mubr.bf16.gmra.mrb[0].mxu0 %v6409
    %v7523 = vpop.f32.mrb[0].mxu0
    %v7524 = vadd.f32 %v6622, %v7523
    %v7525 = vpop.f32.mrb[0].mxu0
    %v7526 = vadd.f32 %v6626, %v7525
    %v7527 = vpop.f32.mrb[0].mxu0
    %v7528 = vadd.f32 %v6622, %v7527
    %v7529 = vpop.f32.mrb[0].mxu0
    %v7530 = vadd.f32 %v6626, %v7529
    %7531 = vmatprep.mubr.bf16.mxu0 %v6418
    %7532 = vmatmul.mubr.bf16.gmra.mrb[0].mxu0 %v6417
    %v7533 = vpop.f32.mrb[0].mxu0
    %v7534 = vadd.f32 %v6622, %v7533
    %v7535 = vpop.f32.mrb[0].mxu0
    %v7536 = vadd.f32 %v6626, %v7535
    %v7537 = vpop.f32.mrb[0].mxu0
    %v7538 = vadd.f32 %v6622, %v7537
    %v7539 = vpop.f32.mrb[0].mxu0
    %v7540 = vadd.f32 %v6626, %v7539
    %7541 = vmatprep.mubr.bf16.mxu0 %v6426
    %7542 = vmatmul.mubr.bf16.gmra.mrb[0].mxu0 %v6425
    %v7543 = vpop.f32.mrb[0].mxu0
    %v7544 = vadd.f32 %v6622, %v7543
    %v7545 = vpop.f32.mrb[0].mxu0
    %v7546 = vadd.f32 %v6626, %v7545
    %v7547 = vpop.f32.mrb[0].mxu0
    %v7548 = vadd.f32 %v6622, %v7547
    %v7549 = vpop.f32.mrb[0].mxu0
    %v7550 = vadd.f32 %v6626, %v7549
    %7551 = vmatprep.mubr.bf16.mxu0 %v6434
    %7552 = vmatmul.mubr.bf16.gmra.mrb[0].mxu0 %v6433
    %v7553 = vpop.f32.mrb[0].mxu0
    %v7554 = vadd.f32 %v6622, %v7553
    %v7555 = vpop.f32.mrb[0].mxu0
    %v7556 = vadd.f32 %v6626, %v7555
    %v7557 = vpop.f32.mrb[0].mxu0
    %v7558 = vadd.f32 %v6622, %v7557
    %v7559 = vpop.f32.mrb[0].mxu0
    %v7560 = vadd.f32 %v6626, %v7559
    %7561 = vmatprep.mubr.bf16.mxu0 %v6442
    %7562 = vmatmul.mubr.bf16.gmra.mrb[0].mxu0 %v6441
    %v7563 = vpop.f32.mrb[0].mxu0
    %v7564 = vadd.f32 %v6622, %v7563
    %v7565 = vpop.f32.mrb[0].mxu0
    %v7566 = vadd.f32 %v6626, %v7565
    %v7567 = vpop.f32.mrb[0].mxu0
    %v7568 = vadd.f32 %v6622, %v7567
    %v7569 = vpop.f32.mrb[0].mxu0
    %v7570 = vadd.f32 %v6626, %v7569
    %7571 = vmatprep.mubr.bf16.mxu0 %v6450
    %7572 = vmatmul.mubr.bf16.gmra.mrb[0].mxu0 %v6449
    %v7573 = vpop.f32.mrb[0].mxu0
    %v7574 = vadd.f32 %v6622, %v7573
    %v7575 = vpop.f32.mrb[0].mxu0
    %v7576 = vadd.f32 %v6626, %v7575
    %v7577 = vpop.f32.mrb[0].mxu0
    %v7578 = vadd.f32 %v6622, %v7577
    %v7579 = vpop.f32.mrb[0].mxu0
    %v7580 = vadd.f32 %v6626, %v7579
    %7581 = vmatprep.mubr.bf16.mxu0 %v6458
    %7582 = vmatmul.mubr.bf16.gmra.mrb[0].mxu0 %v6457
    %v7583 = vpop.f32.mrb[0].mxu0
    %v7584 = vadd.f32 %v6622, %v7583
    %v7585 = vpop.f32.mrb[0].mxu0
    %v7586 = vadd.f32 %v6626, %v7585
    %v7587 = vpop.f32.mrb[0].mxu0
    %v7588 = vadd.f32 %v6622, %v7587
    %v7589 = vpop.f32.mrb[0].mxu0
    %v7590 = vadd.f32 %v6626, %v7589
    %7591 = vmatprep.mubr.bf16.mxu0 %v6466
    %7592 = vmatmul.mubr.bf16.gmra.mrb[0].mxu0 %v6465
    %v7593 = vpop.f32.mrb[0].mxu0
    %v7594 = vadd.f32 %v6622, %v7593
    %v7595 = vpop.f32.mrb[0].mxu0
    %v7596 = vadd.f32 %v6626, %v7595
    %v7597 = vpop.f32.mrb[0].mxu0
    %v7598 = vadd.f32 %v6622, %v7597
    %v7599 = vpop.f32.mrb[0].mxu0
    %v7600 = vadd.f32 %v6626, %v7599
    %7601 = vmatprep.mubr.bf16.mxu0 %v6474
    %7602 = vmatmul.mubr.bf16.gmra.mrb[0].mxu0 %v6473
    %v7603 = vpop.f32.mrb[0].mxu0
    %v7604 = vadd.f32 %v6622, %v7603
    %v7605 = vpop.f32.mrb[0].mxu0
    %v7606 = vadd.f32 %v6626, %v7605
    %v7607 = vpop.f32.mrb[0].mxu0
    %v7608 = vadd.f32 %v6622, %v7607
    %v7609 = vpop.f32.mrb[0].mxu0
    %v7610 = vadd.f32 %v6626, %v7609
    %7611 = vmatprep.mubr.bf16.mxu0 %v6482
    %7612 = vmatmul.mubr.bf16.gmra.mrb[0].mxu0 %v6481
    %v7613 = vpop.f32.mrb[0].mxu0
    %v7614 = vadd.f32 %v6622, %v7613
    %v7615 = vpop.f32.mrb[0].mxu0
    %v7616 = vadd.f32 %v6626, %v7615
    %v7617 = vpop.f32.mrb[0].mxu0
    %v7618 = vadd.f32 %v6622, %v7617
    %v7619 = vpop.f32.mrb[0].mxu0
    %v7620 = vadd.f32 %v6626, %v7619
    %7621 = vdwg.mxu0
    %7622 = vmatprep.subr.bf16.mxu0 %v7046
    %7623 = vmatpush1.bf16.msra.mxu0 %v7045
    %7624 = vmatprep.subr.bf16.mxu0 %v7048
    %7625 = vmatpush1.bf16.msra.mxu0 %v7047
    %7626 = vmatprep.subr.bf16.mxu0 %v7050
    %7627 = vmatpush1.bf16.msra.mxu0 %v7049
    %7628 = vmatprep.subr.bf16.mxu0 %v7052
    %7629 = vmatpush1.bf16.msra.mxu0 %v7051
    %7630 = vmatprep.subr.bf16.mxu0 %v7054
    %7631 = vmatpush1.bf16.msra.mxu0 %v7053
    %7632 = vmatprep.subr.bf16.mxu0 %v7056
    %7633 = vmatpush1.bf16.msra.mxu0 %v7055
    %7634 = vmatprep.subr.bf16.mxu0 %v7058
    %7635 = vmatpush1.bf16.msra.mxu0 %v7057
    %7636 = vmatprep.subr.bf16.mxu0 %v7060
    %7637 = vmatpush1.bf16.msra.mxu0 %v7059
    %7638 = vmatprep.subr.bf16.mxu0 %v7062
    %7639 = vmatpush1.bf16.msra.mxu0 %v7061
    %7640 = vmatprep.subr.bf16.mxu0 %v7064
    %7641 = vmatpush1.bf16.msra.mxu0 %v7063
    %7642 = vmatprep.subr.bf16.mxu0 %v7066
    %7643 = vmatpush1.bf16.msra.mxu0 %v7065
    %7644 = vmatprep.subr.bf16.mxu0 %v7068
    %7645 = vmatpush1.bf16.msra.mxu0 %v7067
    %7646 = vmatprep.subr.bf16.mxu0 %v7070
    %7647 = vmatpush1.bf16.msra.mxu0 %v7069
    %7648 = vmatprep.subr.bf16.mxu0 %v7072
    %7649 = vmatpush1.bf16.msra.mxu0 %v7071
    %7650 = vmatprep.subr.bf16.mxu0 %v7074
    %7651 = vmatpush1.bf16.msra.mxu0 %v7073
    %7652 = vmatprep.subr.bf16.mxu0 %v7076
    %7653 = vmatpush1.bf16.msra.mxu0 %v7075
    %7654 = vmatprep.mubr.bf16.mxu0 %v6236
    %7655 = vmatmul.mubr.bf16.gmra.mrb[0].mxu0 %v6235
    %v7656 = vpop.f32.mrb[0].mxu0
    %v7657 = vadd.f32 %v7304, %v7656
    %v7658 = vpop.f32.mrb[0].mxu0
    %v7659 = vadd.f32 %v7306, %v7658
    %v7660 = vpop.f32.mrb[0].mxu0
    %v7661 = vadd.f32 %v7308, %v7660
    %v7662 = vpop.f32.mrb[0].mxu0
    %v7663 = vadd.f32 %v7310, %v7662
    %7664 = vmatprep.mubr.bf16.mxu0 %v6244
    %7665 = vmatmul.mubr.bf16.gmra.mrb[0].mxu0 %v6243
    %v7666 = vpop.f32.mrb[0].mxu0
    %v7667 = vadd.f32 %v7314, %v7666
    %v7668 = vpop.f32.mrb[0].mxu0
    %v7669 = vadd.f32 %v7316, %v7668
    %v7670 = vpop.f32.mrb[0].mxu0
    %v7671 = vadd.f32 %v7318, %v7670
    %v7672 = vpop.f32.mrb[0].mxu0
    %v7673 = vadd.f32 %v7320, %v7672
    %7674 = vmatprep.mubr.bf16.mxu0 %v6252
    %7675 = vmatmul.mubr.bf16.gmra.mrb[0].mxu0 %v6251
    %v7676 = vpop.f32.mrb[0].mxu0
    %v7677 = vadd.f32 %v7324, %v7676
    %v7678 = vpop.f32.mrb[0].mxu0
    %v7679 = vadd.f32 %v7326, %v7678
    %v7680 = vpop.f32.mrb[0].mxu0
    %v7681 = vadd.f32 %v7328, %v7680
    %v7682 = vpop.f32.mrb[0].mxu0
    %v7683 = vadd.f32 %v7330, %v7682
    %7684 = vmatprep.mubr.bf16.mxu0 %v6260
    %7685 = vmatmul.mubr.bf16.gmra.mrb[0].mxu0 %v6259
    %v7686 = vpop.f32.mrb[0].mxu0
    %v7687 = vadd.f32 %v7334, %v7686
    %v7688 = vpop.f32.mrb[0].mxu0
    %v7689 = vadd.f32 %v7336, %v7688
    %v7690 = vpop.f32.mrb[0].mxu0
    %v7691 = vadd.f32 %v7338, %v7690
    %v7692 = vpop.f32.mrb[0].mxu0
    %v7693 = vadd.f32 %v7340, %v7692
    %7694 = vmatprep.mubr.bf16.mxu0 %v6268
    %7695 = vmatmul.mubr.bf16.gmra.mrb[0].mxu0 %v6267
    %v7696 = vpop.f32.mrb[0].mxu0
    %v7697 = vadd.f32 %v7344, %v7696
    %v7698 = vpop.f32.mrb[0].mxu0
    %v7699 = vadd.f32 %v7346, %v7698
    %v7700 = vpop.f32.mrb[0].mxu0
    %v7701 = vadd.f32 %v7348, %v7700
    %v7702 = vpop.f32.mrb[0].mxu0
    %v7703 = vadd.f32 %v7350, %v7702
    %7704 = vmatprep.mubr.bf16.mxu0 %v6276
    %7705 = vmatmul.mubr.bf16.gmra.mrb[0].mxu0 %v6275
    %v7706 = vpop.f32.mrb[0].mxu0
    %v7707 = vadd.f32 %v7354, %v7706
    %v7708 = vpop.f32.mrb[0].mxu0
    %v7709 = vadd.f32 %v7356, %v7708
    %v7710 = vpop.f32.mrb[0].mxu0
    %v7711 = vadd.f32 %v7358, %v7710
    %v7712 = vpop.f32.mrb[0].mxu0
    %v7713 = vadd.f32 %v7360, %v7712
    %7714 = vmatprep.mubr.bf16.mxu0 %v6284
    %7715 = vmatmul.mubr.bf16.gmra.mrb[0].mxu0 %v6283
    %v7716 = vpop.f32.mrb[0].mxu0
    %v7717 = vadd.f32 %v7364, %v7716
    %v7718 = vpop.f32.mrb[0].mxu0
    %v7719 = vadd.f32 %v7366, %v7718
    %v7720 = vpop.f32.mrb[0].mxu0
    %v7721 = vadd.f32 %v7368, %v7720
    %v7722 = vpop.f32.mrb[0].mxu0
    %v7723 = vadd.f32 %v7370, %v7722
    %7724 = vmatprep.mubr.bf16.mxu0 %v6292
    %7725 = vmatmul.mubr.bf16.gmra.mrb[0].mxu0 %v6291
    %v7726 = vpop.f32.mrb[0].mxu0
    %v7727 = vadd.f32 %v7374, %v7726
    %v7728 = vpop.f32.mrb[0].mxu0
    %v7729 = vadd.f32 %v7376, %v7728
    %v7730 = vpop.f32.mrb[0].mxu0
    %v7731 = vadd.f32 %v7378, %v7730
    %v7732 = vpop.f32.mrb[0].mxu0
    %v7733 = vadd.f32 %v7380, %v7732
    %7734 = vmatprep.mubr.bf16.mxu0 %v6300
    %7735 = vmatmul.mubr.bf16.gmra.mrb[0].mxu0 %v6299
    %v7736 = vpop.f32.mrb[0].mxu0
    %v7737 = vadd.f32 %v7384, %v7736
    %v7738 = vpop.f32.mrb[0].mxu0
    %v7739 = vadd.f32 %v7386, %v7738
    %v7740 = vpop.f32.mrb[0].mxu0
    %v7741 = vadd.f32 %v7388, %v7740
    %v7742 = vpop.f32.mrb[0].mxu0
    %v7743 = vadd.f32 %v7390, %v7742
    %7744 = vmatprep.mubr.bf16.mxu0 %v6308
    %7745 = vmatmul.mubr.bf16.gmra.mrb[0].mxu0 %v6307
    %v7746 = vpop.f32.mrb[0].mxu0
    %v7747 = vadd.f32 %v7394, %v7746
    %v7748 = vpop.f32.mrb[0].mxu0
    %v7749 = vadd.f32 %v7396, %v7748
    %v7750 = vpop.f32.mrb[0].mxu0
    %v7751 = vadd.f32 %v7398, %v7750
    %v7752 = vpop.f32.mrb[0].mxu0
    %v7753 = vadd.f32 %v7400, %v7752
    %7754 = vmatprep.mubr.bf16.mxu0 %v6316
    %7755 = vmatmul.mubr.bf16.gmra.mrb[0].mxu0 %v6315
    %v7756 = vpop.f32.mrb[0].mxu0
    %v7757 = vadd.f32 %v7404, %v7756
    %v7758 = vpop.f32.mrb[0].mxu0
    %v7759 = vadd.f32 %v7406, %v7758
    %v7760 = vpop.f32.mrb[0].mxu0
    %v7761 = vadd.f32 %v7408, %v7760
    %v7762 = vpop.f32.mrb[0].mxu0
    %v7763 = vadd.f32 %v7410, %v7762
    %7764 = vmatprep.mubr.bf16.mxu0 %v6324
    %7765 = vmatmul.mubr.bf16.gmra.mrb[0].mxu0 %v6323
    %v7766 = vpop.f32.mrb[0].mxu0
    %v7767 = vadd.f32 %v7414, %v7766
    %v7768 = vpop.f32.mrb[0].mxu0
    %v7769 = vadd.f32 %v7416, %v7768
    %v7770 = vpop.f32.mrb[0].mxu0
    %v7771 = vadd.f32 %v7418, %v7770
    %v7772 = vpop.f32.mrb[0].mxu0
    %v7773 = vadd.f32 %v7420, %v7772
    %7774 = vmatprep.mubr.bf16.mxu0 %v6332
    %7775 = vmatmul.mubr.bf16.gmra.mrb[0].mxu0 %v6331
    %v7776 = vpop.f32.mrb[0].mxu0
    %v7777 = vadd.f32 %v7424, %v7776
    %v7778 = vpop.f32.mrb[0].mxu0
    %v7779 = vadd.f32 %v7426, %v7778
    %v7780 = vpop.f32.mrb[0].mxu0
    %v7781 = vadd.f32 %v7428, %v7780
    %v7782 = vpop.f32.mrb[0].mxu0
    %v7783 = vadd.f32 %v7430, %v7782
    %7784 = vmatprep.mubr.bf16.mxu0 %v6340
    %7785 = vmatmul.mubr.bf16.gmra.mrb[0].mxu0 %v6339
    %v7786 = vpop.f32.mrb[0].mxu0
    %v7787 = vadd.f32 %v7434, %v7786
    %v7788 = vpop.f32.mrb[0].mxu0
    %v7789 = vadd.f32 %v7436, %v7788
    %v7790 = vpop.f32.mrb[0].mxu0
    %v7791 = vadd.f32 %v7438, %v7790
    %v7792 = vpop.f32.mrb[0].mxu0
    %v7793 = vadd.f32 %v7440, %v7792
    %7794 = vmatprep.mubr.bf16.mxu0 %v6348
    %7795 = vmatmul.mubr.bf16.gmra.mrb[0].mxu0 %v6347
    %v7796 = vpop.f32.mrb[0].mxu0
    %v7797 = vadd.f32 %v7444, %v7796
    %v7798 = vpop.f32.mrb[0].mxu0
    %v7799 = vadd.f32 %v7446, %v7798
    %v7800 = vpop.f32.mrb[0].mxu0
    %v7801 = vadd.f32 %v7448, %v7800
    %v7802 = vpop.f32.mrb[0].mxu0
    %v7803 = vadd.f32 %v7450, %v7802
    %7804 = vmatprep.mubr.bf16.mxu0 %v6356
    %7805 = vmatmul.mubr.bf16.gmra.mrb[0].mxu0 %v6355
    %v7806 = vpop.f32.mrb[0].mxu0
    %v7807 = vadd.f32 %v7454, %v7806
    %v7808 = vpop.f32.mrb[0].mxu0
    %v7809 = vadd.f32 %v7456, %v7808
    %v7810 = vpop.f32.mrb[0].mxu0
    %v7811 = vadd.f32 %v7458, %v7810
    %v7812 = vpop.f32.mrb[0].mxu0
    %v7813 = vadd.f32 %v7460, %v7812
    %7814 = vmatprep.mubr.bf16.mxu0 %v6364
    %7815 = vmatmul.mubr.bf16.gmra.mrb[0].mxu0 %v6363
    %v7816 = vpop.f32.mrb[0].mxu0
    %v7817 = vadd.f32 %v7464, %v7816
    %v7818 = vpop.f32.mrb[0].mxu0
    %v7819 = vadd.f32 %v7466, %v7818
    %v7820 = vpop.f32.mrb[0].mxu0
    %v7821 = vadd.f32 %v7468, %v7820
    %v7822 = vpop.f32.mrb[0].mxu0
    %v7823 = vadd.f32 %v7470, %v7822
    %7824 = vmatprep.mubr.bf16.mxu0 %v6372
    %7825 = vmatmul.mubr.bf16.gmra.mrb[0].mxu0 %v6371
    %v7826 = vpop.f32.mrb[0].mxu0
    %v7827 = vadd.f32 %v7474, %v7826
    %v7828 = vpop.f32.mrb[0].mxu0
    %v7829 = vadd.f32 %v7476, %v7828
    %v7830 = vpop.f32.mrb[0].mxu0
    %v7831 = vadd.f32 %v7478, %v7830
    %v7832 = vpop.f32.mrb[0].mxu0
    %v7833 = vadd.f32 %v7480, %v7832
    %7834 = vmatprep.mubr.bf16.mxu0 %v6380
    %7835 = vmatmul.mubr.bf16.gmra.mrb[0].mxu0 %v6379
    %v7836 = vpop.f32.mrb[0].mxu0
    %v7837 = vadd.f32 %v7484, %v7836
    %v7838 = vpop.f32.mrb[0].mxu0
    %v7839 = vadd.f32 %v7486, %v7838
    %v7840 = vpop.f32.mrb[0].mxu0
    %v7841 = vadd.f32 %v7488, %v7840
    %v7842 = vpop.f32.mrb[0].mxu0
    %v7843 = vadd.f32 %v7490, %v7842
    %7844 = vmatprep.mubr.bf16.mxu0 %v6388
    %7845 = vmatmul.mubr.bf16.gmra.mrb[0].mxu0 %v6387
    %v7846 = vpop.f32.mrb[0].mxu0
    %v7847 = vadd.f32 %v7494, %v7846
    %v7848 = vpop.f32.mrb[0].mxu0
    %v7849 = vadd.f32 %v7496, %v7848
    %v7850 = vpop.f32.mrb[0].mxu0
    %v7851 = vadd.f32 %v7498, %v7850
    %v7852 = vpop.f32.mrb[0].mxu0
    %v7853 = vadd.f32 %v7500, %v7852
    %7854 = vmatprep.mubr.bf16.mxu0 %v6396
    %7855 = vmatmul.mubr.bf16.gmra.mrb[0].mxu0 %v6395
    %v7856 = vpop.f32.mrb[0].mxu0
    %v7857 = vadd.f32 %v7504, %v7856
    %v7858 = vpop.f32.mrb[0].mxu0
    %v7859 = vadd.f32 %v7506, %v7858
    %v7860 = vpop.f32.mrb[0].mxu0
    %v7861 = vadd.f32 %v7508, %v7860
    %v7862 = vpop.f32.mrb[0].mxu0
    %v7863 = vadd.f32 %v7510, %v7862
    %7864 = vmatprep.mubr.bf16.mxu0 %v6404
    %7865 = vmatmul.mubr.bf16.gmra.mrb[0].mxu0 %v6403
    %v7866 = vpop.f32.mrb[0].mxu0
    %v7867 = vadd.f32 %v7514, %v7866
    %v7868 = vpop.f32.mrb[0].mxu0
    %v7869 = vadd.f32 %v7516, %v7868
    %v7870 = vpop.f32.mrb[0].mxu0
    %v7871 = vadd.f32 %v7518, %v7870
    %v7872 = vpop.f32.mrb[0].mxu0
    %v7873 = vadd.f32 %v7520, %v7872
    %7874 = vmatprep.mubr.bf16.mxu0 %v6412
    %7875 = vmatmul.mubr.bf16.gmra.mrb[0].mxu0 %v6411
    %v7876 = vpop.f32.mrb[0].mxu0
    %v7877 = vadd.f32 %v7524, %v7876
    %v7878 = vpop.f32.mrb[0].mxu0
    %v7879 = vadd.f32 %v7526, %v7878
    %v7880 = vpop.f32.mrb[0].mxu0
    %v7881 = vadd.f32 %v7528, %v7880
    %v7882 = vpop.f32.mrb[0].mxu0
    %v7883 = vadd.f32 %v7530, %v7882
    %7884 = vmatprep.mubr.bf16.mxu0 %v6420
    %7885 = vmatmul.mubr.bf16.gmra.mrb[0].mxu0 %v6419
    %v7886 = vpop.f32.mrb[0].mxu0
    %v7887 = vadd.f32 %v7534, %v7886
    %v7888 = vpop.f32.mrb[0].mxu0
    %v7889 = vadd.f32 %v7536, %v7888
    %v7890 = vpop.f32.mrb[0].mxu0
    %v7891 = vadd.f32 %v7538, %v7890
    %v7892 = vpop.f32.mrb[0].mxu0
    %v7893 = vadd.f32 %v7540, %v7892
    %7894 = vmatprep.mubr.bf16.mxu0 %v6428
    %7895 = vmatmul.mubr.bf16.gmra.mrb[0].mxu0 %v6427
    %v7896 = vpop.f32.mrb[0].mxu0
    %v7897 = vadd.f32 %v7544, %v7896
    %v7898 = vpop.f32.mrb[0].mxu0
    %v7899 = vadd.f32 %v7546, %v7898
    %v7900 = vpop.f32.mrb[0].mxu0
    %v7901 = vadd.f32 %v7548, %v7900
    %v7902 = vpop.f32.mrb[0].mxu0
    %v7903 = vadd.f32 %v7550, %v7902
    %7904 = vmatprep.mubr.bf16.mxu0 %v6436
    %7905 = vmatmul.mubr.bf16.gmra.mrb[0].mxu0 %v6435
    %v7906 = vpop.f32.mrb[0].mxu0
    %v7907 = vadd.f32 %v7554, %v7906
    %v7908 = vpop.f32.mrb[0].mxu0
    %v7909 = vadd.f32 %v7556, %v7908
    %v7910 = vpop.f32.mrb[0].mxu0
    %v7911 = vadd.f32 %v7558, %v7910
    %v7912 = vpop.f32.mrb[0].mxu0
    %v7913 = vadd.f32 %v7560, %v7912
    %7914 = vmatprep.mubr.bf16.mxu0 %v6444
    %7915 = vmatmul.mubr.bf16.gmra.mrb[0].mxu0 %v6443
    %v7916 = vpop.f32.mrb[0].mxu0
    %v7917 = vadd.f32 %v7564, %v7916
    %v7918 = vpop.f32.mrb[0].mxu0
    %v7919 = vadd.f32 %v7566, %v7918
    %v7920 = vpop.f32.mrb[0].mxu0
    %v7921 = vadd.f32 %v7568, %v7920
    %v7922 = vpop.f32.mrb[0].mxu0
    %v7923 = vadd.f32 %v7570, %v7922
    %7924 = vmatprep.mubr.bf16.mxu0 %v6452
    %7925 = vmatmul.mubr.bf16.gmra.mrb[0].mxu0 %v6451
    %v7926 = vpop.f32.mrb[0].mxu0
    %v7927 = vadd.f32 %v7574, %v7926
    %v7928 = vpop.f32.mrb[0].mxu0
    %v7929 = vadd.f32 %v7576, %v7928
    %v7930 = vpop.f32.mrb[0].mxu0
    %v7931 = vadd.f32 %v7578, %v7930
    %v7932 = vpop.f32.mrb[0].mxu0
    %v7933 = vadd.f32 %v7580, %v7932
    %7934 = vmatprep.mubr.bf16.mxu0 %v6460
    %7935 = vmatmul.mubr.bf16.gmra.mrb[0].mxu0 %v6459
    %v7936 = vpop.f32.mrb[0].mxu0
    %v7937 = vadd.f32 %v7584, %v7936
    %v7938 = vpop.f32.mrb[0].mxu0
    %v7939 = vadd.f32 %v7586, %v7938
    %v7940 = vpop.f32.mrb[0].mxu0
    %v7941 = vadd.f32 %v7588, %v7940
    %v7942 = vpop.f32.mrb[0].mxu0
    %v7943 = vadd.f32 %v7590, %v7942
    %7944 = vmatprep.mubr.bf16.mxu0 %v6468
    %7945 = vmatmul.mubr.bf16.gmra.mrb[0].mxu0 %v6467
    %v7946 = vpop.f32.mrb[0].mxu0
    %v7947 = vadd.f32 %v7594, %v7946
    %v7948 = vpop.f32.mrb[0].mxu0
    %v7949 = vadd.f32 %v7596, %v7948
    %v7950 = vpop.f32.mrb[0].mxu0
    %v7951 = vadd.f32 %v7598, %v7950
    %v7952 = vpop.f32.mrb[0].mxu0
    %v7953 = vadd.f32 %v7600, %v7952
    %7954 = vmatprep.mubr.bf16.mxu0 %v6476
    %7955 = vmatmul.mubr.bf16.gmra.mrb[0].mxu0 %v6475
    %v7956 = vpop.f32.mrb[0].mxu0
    %v7957 = vadd.f32 %v7604, %v7956
    %v7958 = vpop.f32.mrb[0].mxu0
    %v7959 = vadd.f32 %v7606, %v7958
    %v7960 = vpop.f32.mrb[0].mxu0
    %v7961 = vadd.f32 %v7608, %v7960
    %v7962 = vpop.f32.mrb[0].mxu0
    %v7963 = vadd.f32 %v7610, %v7962
    %7964 = vmatprep.mubr.bf16.mxu0 %v6484
    %7965 = vmatmul.mubr.bf16.gmra.mrb[0].mxu0 %v6483
    %v7966 = vpop.f32.mrb[0].mxu0
    %v7967 = vadd.f32 %v7614, %v7966
    %v7968 = vpop.f32.mrb[0].mxu0
    %v7969 = vadd.f32 %v7616, %v7968
    %v7970 = vpop.f32.mrb[0].mxu0
    %v7971 = vadd.f32 %v7618, %v7970
    %v7972 = vpop.f32.mrb[0].mxu0
    %v7973 = vadd.f32 %v7620, %v7972
    %7974 = vdwg.mxu0
    %7975 = vmatprep.subr.bf16.mxu0 %v7078
    %7976 = vmatpush1.bf16.msra.mxu0 %v7077
    %7977 = vmatprep.subr.bf16.mxu0 %v7080
    %7978 = vmatpush1.bf16.msra.mxu0 %v7079
    %7979 = vmatprep.subr.bf16.mxu0 %v7082
    %7980 = vmatpush1.bf16.msra.mxu0 %v7081
    %7981 = vmatprep.subr.bf16.mxu0 %v7084
    %7982 = vmatpush1.bf16.msra.mxu0 %v7083
    %7983 = vmatprep.subr.bf16.mxu0 %v7086
    %7984 = vmatpush1.bf16.msra.mxu0 %v7085
    %7985 = vmatprep.subr.bf16.mxu0 %v7088
    %7986 = vmatpush1.bf16.msra.mxu0 %v7087
    %7987 = vmatprep.subr.bf16.mxu0 %v7090
    %7988 = vmatpush1.bf16.msra.mxu0 %v7089
    %7989 = vmatprep.subr.bf16.mxu0 %v7092
    %7990 = vmatpush1.bf16.msra.mxu0 %v7091
    %7991 = vmatprep.subr.bf16.mxu0 %v7094
    %7992 = vmatpush1.bf16.msra.mxu0 %v7093
    %7993 = vmatprep.subr.bf16.mxu0 %v7096
    %7994 = vmatpush1.bf16.msra.mxu0 %v7095
    %7995 = vmatprep.subr.bf16.mxu0 %v7098
    %7996 = vmatpush1.bf16.msra.mxu0 %v7097
    %7997 = vmatprep.subr.bf16.mxu0 %v7100
    %7998 = vmatpush1.bf16.msra.mxu0 %v7099
    %7999 = vmatprep.subr.bf16.mxu0 %v7102
    %8000 = vmatpush1.bf16.msra.mxu0 %v7101
    %8001 = vmatprep.subr.bf16.mxu0 %v7104
    %8002 = vmatpush1.bf16.msra.mxu0 %v7103
    %8003 = vmatprep.subr.bf16.mxu0 %v7106
    %8004 = vmatpush1.bf16.msra.mxu0 %v7105
    %8005 = vmatprep.subr.bf16.mxu0 %v7108
    %8006 = vmatpush1.bf16.msra.mxu0 %v7107
    %8007 = vmatprep.mubr.bf16.mxu0 %v6238
    %8008 = vmatmul.mubr.bf16.gmra.mrb[0].mxu0 %v6237
    %v8009 = vpop.f32.mrb[0].mxu0
    %v8010 = vadd.f32 %v7657, %v8009
    %v8011 = vpop.f32.mrb[0].mxu0
    %v8012 = vadd.f32 %v7659, %v8011
    %v8013 = vpop.f32.mrb[0].mxu0
    %v8014 = vadd.f32 %v7661, %v8013
    %v8015 = vpop.f32.mrb[0].mxu0
    %v8016 = vadd.f32 %v7663, %v8015
    %8017 = vmatprep.mubr.bf16.mxu0 %v6246
    %8018 = vmatmul.mubr.bf16.gmra.mrb[0].mxu0 %v6245
    %v8019 = vpop.f32.mrb[0].mxu0
    %v8020 = vadd.f32 %v7667, %v8019
    %v8021 = vpop.f32.mrb[0].mxu0
    %v8022 = vadd.f32 %v7669, %v8021
    %v8023 = vpop.f32.mrb[0].mxu0
    %v8024 = vadd.f32 %v7671, %v8023
    %v8025 = vpop.f32.mrb[0].mxu0
    %v8026 = vadd.f32 %v7673, %v8025
    %8027 = vmatprep.mubr.bf16.mxu0 %v6254
    %8028 = vmatmul.mubr.bf16.gmra.mrb[0].mxu0 %v6253
    %v8029 = vpop.f32.mrb[0].mxu0
    %v8030 = vadd.f32 %v7677, %v8029
    %v8031 = vpop.f32.mrb[0].mxu0
    %v8032 = vadd.f32 %v7679, %v8031
    %v8033 = vpop.f32.mrb[0].mxu0
    %v8034 = vadd.f32 %v7681, %v8033
    %v8035 = vpop.f32.mrb[0].mxu0
    %v8036 = vadd.f32 %v7683, %v8035
    %8037 = vmatprep.mubr.bf16.mxu0 %v6262
    %8038 = vmatmul.mubr.bf16.gmra.mrb[0].mxu0 %v6261
    %v8039 = vpop.f32.mrb[0].mxu0
    %v8040 = vadd.f32 %v7687, %v8039
    %v8041 = vpop.f32.mrb[0].mxu0
    %v8042 = vadd.f32 %v7689, %v8041
    %v8043 = vpop.f32.mrb[0].mxu0
    %v8044 = vadd.f32 %v7691, %v8043
    %v8045 = vpop.f32.mrb[0].mxu0
    %v8046 = vadd.f32 %v7693, %v8045
    %8047 = vmatprep.mubr.bf16.mxu0 %v6270
    %8048 = vmatmul.mubr.bf16.gmra.mrb[0].mxu0 %v6269
    %v8049 = vpop.f32.mrb[0].mxu0
    %v8050 = vadd.f32 %v7697, %v8049
    %v8051 = vpop.f32.mrb[0].mxu0
    %v8052 = vadd.f32 %v7699, %v8051
    %v8053 = vpop.f32.mrb[0].mxu0
    %v8054 = vadd.f32 %v7701, %v8053
    %v8055 = vpop.f32.mrb[0].mxu0
    %v8056 = vadd.f32 %v7703, %v8055
    %8057 = vmatprep.mubr.bf16.mxu0 %v6278
    %8058 = vmatmul.mubr.bf16.gmra.mrb[0].mxu0 %v6277
    %v8059 = vpop.f32.mrb[0].mxu0
    %v8060 = vadd.f32 %v7707, %v8059
    %v8061 = vpop.f32.mrb[0].mxu0
    %v8062 = vadd.f32 %v7709, %v8061
    %v8063 = vpop.f32.mrb[0].mxu0
    %v8064 = vadd.f32 %v7711, %v8063
    %v8065 = vpop.f32.mrb[0].mxu0
    %v8066 = vadd.f32 %v7713, %v8065
    %8067 = vmatprep.mubr.bf16.mxu0 %v6286
    %8068 = vmatmul.mubr.bf16.gmra.mrb[0].mxu0 %v6285
    %v8069 = vpop.f32.mrb[0].mxu0
    %v8070 = vadd.f32 %v7717, %v8069
    %v8071 = vpop.f32.mrb[0].mxu0
    %v8072 = vadd.f32 %v7719, %v8071
    %v8073 = vpop.f32.mrb[0].mxu0
    %v8074 = vadd.f32 %v7721, %v8073
    %v8075 = vpop.f32.mrb[0].mxu0
    %v8076 = vadd.f32 %v7723, %v8075
    %8077 = vmatprep.mubr.bf16.mxu0 %v6294
    %8078 = vmatmul.mubr.bf16.gmra.mrb[0].mxu0 %v6293
    %v8079 = vpop.f32.mrb[0].mxu0
    %v8080 = vadd.f32 %v7727, %v8079
    %v8081 = vpop.f32.mrb[0].mxu0
    %v8082 = vadd.f32 %v7729, %v8081
    %v8083 = vpop.f32.mrb[0].mxu0
    %v8084 = vadd.f32 %v7731, %v8083
    %v8085 = vpop.f32.mrb[0].mxu0
    %v8086 = vadd.f32 %v7733, %v8085
    %8087 = vmatprep.mubr.bf16.mxu0 %v6302
    %8088 = vmatmul.mubr.bf16.gmra.mrb[0].mxu0 %v6301
    %v8089 = vpop.f32.mrb[0].mxu0
    %v8090 = vadd.f32 %v7737, %v8089
    %v8091 = vpop.f32.mrb[0].mxu0
    %v8092 = vadd.f32 %v7739, %v8091
    %v8093 = vpop.f32.mrb[0].mxu0
    %v8094 = vadd.f32 %v7741, %v8093
    %v8095 = vpop.f32.mrb[0].mxu0
    %v8096 = vadd.f32 %v7743, %v8095
    %8097 = vmatprep.mubr.bf16.mxu0 %v6310
    %8098 = vmatmul.mubr.bf16.gmra.mrb[0].mxu0 %v6309
    %v8099 = vpop.f32.mrb[0].mxu0
    %v8100 = vadd.f32 %v7747, %v8099
    %v8101 = vpop.f32.mrb[0].mxu0
    %v8102 = vadd.f32 %v7749, %v8101
    %v8103 = vpop.f32.mrb[0].mxu0
    %v8104 = vadd.f32 %v7751, %v8103
    %v8105 = vpop.f32.mrb[0].mxu0
    %v8106 = vadd.f32 %v7753, %v8105
    %8107 = vmatprep.mubr.bf16.mxu0 %v6318
    %8108 = vmatmul.mubr.bf16.gmra.mrb[0].mxu0 %v6317
    %v8109 = vpop.f32.mrb[0].mxu0
    %v8110 = vadd.f32 %v7757, %v8109
    %v8111 = vpop.f32.mrb[0].mxu0
    %v8112 = vadd.f32 %v7759, %v8111
    %v8113 = vpop.f32.mrb[0].mxu0
    %v8114 = vadd.f32 %v7761, %v8113
    %v8115 = vpop.f32.mrb[0].mxu0
    %v8116 = vadd.f32 %v7763, %v8115
    %8117 = vmatprep.mubr.bf16.mxu0 %v6326
    %8118 = vmatmul.mubr.bf16.gmra.mrb[0].mxu0 %v6325
    %v8119 = vpop.f32.mrb[0].mxu0
    %v8120 = vadd.f32 %v7767, %v8119
    %v8121 = vpop.f32.mrb[0].mxu0
    %v8122 = vadd.f32 %v7769, %v8121
    %v8123 = vpop.f32.mrb[0].mxu0
    %v8124 = vadd.f32 %v7771, %v8123
    %v8125 = vpop.f32.mrb[0].mxu0
    %v8126 = vadd.f32 %v7773, %v8125
    %8127 = vmatprep.mubr.bf16.mxu0 %v6334
    %8128 = vmatmul.mubr.bf16.gmra.mrb[0].mxu0 %v6333
    %v8129 = vpop.f32.mrb[0].mxu0
    %v8130 = vadd.f32 %v7777, %v8129
    %v8131 = vpop.f32.mrb[0].mxu0
    %v8132 = vadd.f32 %v7779, %v8131
    %v8133 = vpop.f32.mrb[0].mxu0
    %v8134 = vadd.f32 %v7781, %v8133
    %v8135 = vpop.f32.mrb[0].mxu0
    %v8136 = vadd.f32 %v7783, %v8135
    %8137 = vmatprep.mubr.bf16.mxu0 %v6342
    %8138 = vmatmul.mubr.bf16.gmra.mrb[0].mxu0 %v6341
    %v8139 = vpop.f32.mrb[0].mxu0
    %v8140 = vadd.f32 %v7787, %v8139
    %v8141 = vpop.f32.mrb[0].mxu0
    %v8142 = vadd.f32 %v7789, %v8141
    %v8143 = vpop.f32.mrb[0].mxu0
    %v8144 = vadd.f32 %v7791, %v8143
    %v8145 = vpop.f32.mrb[0].mxu0
    %v8146 = vadd.f32 %v7793, %v8145
    %8147 = vmatprep.mubr.bf16.mxu0 %v6350
    %8148 = vmatmul.mubr.bf16.gmra.mrb[0].mxu0 %v6349
    %v8149 = vpop.f32.mrb[0].mxu0
    %v8150 = vadd.f32 %v7797, %v8149
    %v8151 = vpop.f32.mrb[0].mxu0
    %v8152 = vadd.f32 %v7799, %v8151
    %v8153 = vpop.f32.mrb[0].mxu0
    %v8154 = vadd.f32 %v7801, %v8153
    %v8155 = vpop.f32.mrb[0].mxu0
    %v8156 = vadd.f32 %v7803, %v8155
    %8157 = vmatprep.mubr.bf16.mxu0 %v6358
    %8158 = vmatmul.mubr.bf16.gmra.mrb[0].mxu0 %v6357
    %v8159 = vpop.f32.mrb[0].mxu0
    %v8160 = vadd.f32 %v7807, %v8159
    %v8161 = vpop.f32.mrb[0].mxu0
    %v8162 = vadd.f32 %v7809, %v8161
    %v8163 = vpop.f32.mrb[0].mxu0
    %v8164 = vadd.f32 %v7811, %v8163
    %v8165 = vpop.f32.mrb[0].mxu0
    %v8166 = vadd.f32 %v7813, %v8165
    %8167 = vmatprep.mubr.bf16.mxu0 %v6366
    %8168 = vmatmul.mubr.bf16.gmra.mrb[0].mxu0 %v6365
    %v8169 = vpop.f32.mrb[0].mxu0
    %v8170 = vadd.f32 %v7817, %v8169
    %v8171 = vpop.f32.mrb[0].mxu0
    %v8172 = vadd.f32 %v7819, %v8171
    %v8173 = vpop.f32.mrb[0].mxu0
    %v8174 = vadd.f32 %v7821, %v8173
    %v8175 = vpop.f32.mrb[0].mxu0
    %v8176 = vadd.f32 %v7823, %v8175
    %8177 = vmatprep.mubr.bf16.mxu0 %v6374
    %8178 = vmatmul.mubr.bf16.gmra.mrb[0].mxu0 %v6373
    %v8179 = vpop.f32.mrb[0].mxu0
    %v8180 = vadd.f32 %v7827, %v8179
    %v8181 = vpop.f32.mrb[0].mxu0
    %v8182 = vadd.f32 %v7829, %v8181
    %v8183 = vpop.f32.mrb[0].mxu0
    %v8184 = vadd.f32 %v7831, %v8183
    %v8185 = vpop.f32.mrb[0].mxu0
    %v8186 = vadd.f32 %v7833, %v8185
    %8187 = vmatprep.mubr.bf16.mxu0 %v6382
    %8188 = vmatmul.mubr.bf16.gmra.mrb[0].mxu0 %v6381
    %v8189 = vpop.f32.mrb[0].mxu0
    %v8190 = vadd.f32 %v7837, %v8189
    %v8191 = vpop.f32.mrb[0].mxu0
    %v8192 = vadd.f32 %v7839, %v8191
    %v8193 = vpop.f32.mrb[0].mxu0
    %v8194 = vadd.f32 %v7841, %v8193
    %v8195 = vpop.f32.mrb[0].mxu0
    %v8196 = vadd.f32 %v7843, %v8195
    %8197 = vmatprep.mubr.bf16.mxu0 %v6390
    %8198 = vmatmul.mubr.bf16.gmra.mrb[0].mxu0 %v6389
    %v8199 = vpop.f32.mrb[0].mxu0
    %v8200 = vadd.f32 %v7847, %v8199
    %v8201 = vpop.f32.mrb[0].mxu0
    %v8202 = vadd.f32 %v7849, %v8201
    %v8203 = vpop.f32.mrb[0].mxu0
    %v8204 = vadd.f32 %v7851, %v8203
    %v8205 = vpop.f32.mrb[0].mxu0
    %v8206 = vadd.f32 %v7853, %v8205
    %8207 = vmatprep.mubr.bf16.mxu0 %v6398
    %8208 = vmatmul.mubr.bf16.gmra.mrb[0].mxu0 %v6397
    %v8209 = vpop.f32.mrb[0].mxu0
    %v8210 = vadd.f32 %v7857, %v8209
    %v8211 = vpop.f32.mrb[0].mxu0
    %v8212 = vadd.f32 %v7859, %v8211
    %v8213 = vpop.f32.mrb[0].mxu0
    %v8214 = vadd.f32 %v7861, %v8213
    %v8215 = vpop.f32.mrb[0].mxu0
    %v8216 = vadd.f32 %v7863, %v8215
    %8217 = vmatprep.mubr.bf16.mxu0 %v6406
    %8218 = vmatmul.mubr.bf16.gmra.mrb[0].mxu0 %v6405
    %v8219 = vpop.f32.mrb[0].mxu0
    %v8220 = vadd.f32 %v7867, %v8219
    %v8221 = vpop.f32.mrb[0].mxu0
    %v8222 = vadd.f32 %v7869, %v8221
    %v8223 = vpop.f32.mrb[0].mxu0
    %v8224 = vadd.f32 %v7871, %v8223
    %v8225 = vpop.f32.mrb[0].mxu0
    %v8226 = vadd.f32 %v7873, %v8225
    %8227 = vmatprep.mubr.bf16.mxu0 %v6414
    %8228 = vmatmul.mubr.bf16.gmra.mrb[0].mxu0 %v6413
    %v8229 = vpop.f32.mrb[0].mxu0
    %v8230 = vadd.f32 %v7877, %v8229
    %v8231 = vpop.f32.mrb[0].mxu0
    %v8232 = vadd.f32 %v7879, %v8231
    %v8233 = vpop.f32.mrb[0].mxu0
    %v8234 = vadd.f32 %v7881, %v8233
    %v8235 = vpop.f32.mrb[0].mxu0
    %v8236 = vadd.f32 %v7883, %v8235
    %8237 = vmatprep.mubr.bf16.mxu0 %v6422
    %8238 = vmatmul.mubr.bf16.gmra.mrb[0].mxu0 %v6421
    %v8239 = vpop.f32.mrb[0].mxu0
    %v8240 = vadd.f32 %v7887, %v8239
    %v8241 = vpop.f32.mrb[0].mxu0
    %v8242 = vadd.f32 %v7889, %v8241
    %v8243 = vpop.f32.mrb[0].mxu0
    %v8244 = vadd.f32 %v7891, %v8243
    %v8245 = vpop.f32.mrb[0].mxu0
    %v8246 = vadd.f32 %v7893, %v8245
    %8247 = vmatprep.mubr.bf16.mxu0 %v6430
    %8248 = vmatmul.mubr.bf16.gmra.mrb[0].mxu0 %v6429
    %v8249 = vpop.f32.mrb[0].mxu0
    %v8250 = vadd.f32 %v7897, %v8249
    %v8251 = vpop.f32.mrb[0].mxu0
    %v8252 = vadd.f32 %v7899, %v8251
    %v8253 = vpop.f32.mrb[0].mxu0
    %v8254 = vadd.f32 %v7901, %v8253
    %v8255 = vpop.f32.mrb[0].mxu0
    %v8256 = vadd.f32 %v7903, %v8255
    %8257 = vmatprep.mubr.bf16.mxu0 %v6438
    %8258 = vmatmul.mubr.bf16.gmra.mrb[0].mxu0 %v6437
    %v8259 = vpop.f32.mrb[0].mxu0
    %v8260 = vadd.f32 %v7907, %v8259
    %v8261 = vpop.f32.mrb[0].mxu0
    %v8262 = vadd.f32 %v7909, %v8261
    %v8263 = vpop.f32.mrb[0].mxu0
    %v8264 = vadd.f32 %v7911, %v8263
    %v8265 = vpop.f32.mrb[0].mxu0
    %v8266 = vadd.f32 %v7913, %v8265
    %8267 = vmatprep.mubr.bf16.mxu0 %v6446
    %8268 = vmatmul.mubr.bf16.gmra.mrb[0].mxu0 %v6445
    %v8269 = vpop.f32.mrb[0].mxu0
    %v8270 = vadd.f32 %v7917, %v8269
    %v8271 = vpop.f32.mrb[0].mxu0
    %v8272 = vadd.f32 %v7919, %v8271
    %v8273 = vpop.f32.mrb[0].mxu0
    %v8274 = vadd.f32 %v7921, %v8273
    %v8275 = vpop.f32.mrb[0].mxu0
    %v8276 = vadd.f32 %v7923, %v8275
    %8277 = vmatprep.mubr.bf16.mxu0 %v6454
    %8278 = vmatmul.mubr.bf16.gmra.mrb[0].mxu0 %v6453
    %v8279 = vpop.f32.mrb[0].mxu0
    %v8280 = vadd.f32 %v7927, %v8279
    %v8281 = vpop.f32.mrb[0].mxu0
    %v8282 = vadd.f32 %v7929, %v8281
    %v8283 = vpop.f32.mrb[0].mxu0
    %v8284 = vadd.f32 %v7931, %v8283
    %v8285 = vpop.f32.mrb[0].mxu0
    %v8286 = vadd.f32 %v7933, %v8285
    %8287 = vmatprep.mubr.bf16.mxu0 %v6462
    %8288 = vmatmul.mubr.bf16.gmra.mrb[0].mxu0 %v6461
    %v8289 = vpop.f32.mrb[0].mxu0
    %v8290 = vadd.f32 %v7937, %v8289
    %v8291 = vpop.f32.mrb[0].mxu0
    %v8292 = vadd.f32 %v7939, %v8291
    %v8293 = vpop.f32.mrb[0].mxu0
    %v8294 = vadd.f32 %v7941, %v8293
    %v8295 = vpop.f32.mrb[0].mxu0
    %v8296 = vadd.f32 %v7943, %v8295
    %8297 = vmatprep.mubr.bf16.mxu0 %v6470
    %8298 = vmatmul.mubr.bf16.gmra.mrb[0].mxu0 %v6469
    %v8299 = vpop.f32.mrb[0].mxu0
    %v8300 = vadd.f32 %v7947, %v8299
    %v8301 = vpop.f32.mrb[0].mxu0
    %v8302 = vadd.f32 %v7949, %v8301
    %v8303 = vpop.f32.mrb[0].mxu0
    %v8304 = vadd.f32 %v7951, %v8303
    %v8305 = vpop.f32.mrb[0].mxu0
    %v8306 = vadd.f32 %v7953, %v8305
    %8307 = vmatprep.mubr.bf16.mxu0 %v6478
    %8308 = vmatmul.mubr.bf16.gmra.mrb[0].mxu0 %v6477
    %v8309 = vpop.f32.mrb[0].mxu0
    %v8310 = vadd.f32 %v7957, %v8309
    %v8311 = vpop.f32.mrb[0].mxu0
    %v8312 = vadd.f32 %v7959, %v8311
    %v8313 = vpop.f32.mrb[0].mxu0
    %v8314 = vadd.f32 %v7961, %v8313
    %v8315 = vpop.f32.mrb[0].mxu0
    %v8316 = vadd.f32 %v7963, %v8315
    %8317 = vmatprep.mubr.bf16.mxu0 %v6486
    %8318 = vmatmul.mubr.bf16.gmra.mrb[0].mxu0 %v6485
    %v8319 = vpop.f32.mrb[0].mxu0
    %v8320 = vadd.f32 %v7967, %v8319
    %v8321 = vpop.f32.mrb[0].mxu0
    %v8322 = vadd.f32 %v7969, %v8321
    %v8323 = vpop.f32.mrb[0].mxu0
    %v8324 = vadd.f32 %v7971, %v8323
    %v8325 = vpop.f32.mrb[0].mxu0
    %v8326 = vadd.f32 %v7973, %v8325
    %8327 = vdwg.mxu0
    %8328 = vmatprep.subr.bf16.mxu0 %v7110
    %8329 = vmatpush1.bf16.msra.mxu0 %v7109
    %8330 = vmatprep.subr.bf16.mxu0 %v7112
    %8331 = vmatpush1.bf16.msra.mxu0 %v7111
    %8332 = vmatprep.subr.bf16.mxu0 %v7114
    %8333 = vmatpush1.bf16.msra.mxu0 %v7113
    %8334 = vmatprep.subr.bf16.mxu0 %v7116
    %8335 = vmatpush1.bf16.msra.mxu0 %v7115
    %8336 = vmatprep.subr.bf16.mxu0 %v7118
    %8337 = vmatpush1.bf16.msra.mxu0 %v7117
    %8338 = vmatprep.subr.bf16.mxu0 %v7120
    %8339 = vmatpush1.bf16.msra.mxu0 %v7119
    %8340 = vmatprep.subr.bf16.mxu0 %v7122
    %8341 = vmatpush1.bf16.msra.mxu0 %v7121
    %8342 = vmatprep.subr.bf16.mxu0 %v7124
    %8343 = vmatpush1.bf16.msra.mxu0 %v7123
    %8344 = vmatprep.subr.bf16.mxu0 %v7126
    %8345 = vmatpush1.bf16.msra.mxu0 %v7125
    %8346 = vmatprep.subr.bf16.mxu0 %v7128
    %8347 = vmatpush1.bf16.msra.mxu0 %v7127
    %8348 = vmatprep.subr.bf16.mxu0 %v7130
    %8349 = vmatpush1.bf16.msra.mxu0 %v7129
    %8350 = vmatprep.subr.bf16.mxu0 %v7132
    %8351 = vmatpush1.bf16.msra.mxu0 %v7131
    %8352 = vmatprep.subr.bf16.mxu0 %v7134
    %8353 = vmatpush1.bf16.msra.mxu0 %v7133
    %8354 = vmatprep.subr.bf16.mxu0 %v7136
    %8355 = vmatpush1.bf16.msra.mxu0 %v7135
    %8356 = vmatprep.subr.bf16.mxu0 %v7138
    %8357 = vmatpush1.bf16.msra.mxu0 %v7137
    %8358 = vmatprep.subr.bf16.mxu0 %v7140
    %8359 = vmatpush1.bf16.msra.mxu0 %v7139
    %8360 = vmatprep.mubr.bf16.mxu0 %v6240
    %8361 = vmatmul.mubr.bf16.gmra.mrb[0].mxu0 %v6239
    %v8362 = vpop.f32.mrb[0].mxu0
    %v8363 = vadd.f32 %v8010, %v8362
    %v8364 = vpop.f32.mrb[0].mxu0
    %v8365 = vadd.f32 %v8012, %v8364
    %v8366 = vpop.f32.mrb[0].mxu0
    %v8367 = vadd.f32 %v8014, %v8366
    %v8368 = vpop.f32.mrb[0].mxu0
    %v8369 = vadd.f32 %v8016, %v8368
    %8370 = vmatprep.mubr.bf16.mxu0 %v6248
    %8371 = vmatmul.mubr.bf16.gmra.mrb[0].mxu0 %v6247
    %v8372 = vpop.f32.mrb[0].mxu0
    %v8373 = vadd.f32 %v8020, %v8372
    %v8374 = vpop.f32.mrb[0].mxu0
    %v8375 = vadd.f32 %v8022, %v8374
    %v8376 = vpop.f32.mrb[0].mxu0
    %v8377 = vadd.f32 %v8024, %v8376
    %v8378 = vpop.f32.mrb[0].mxu0
    %v8379 = vadd.f32 %v8026, %v8378
    %8380 = vmatprep.mubr.bf16.mxu0 %v6256
    %8381 = vmatmul.mubr.bf16.gmra.mrb[0].mxu0 %v6255
    %v8382 = vpop.f32.mrb[0].mxu0
    %v8383 = vadd.f32 %v8030, %v8382
    %v8384 = vpop.f32.mrb[0].mxu0
    %v8385 = vadd.f32 %v8032, %v8384
    %v8386 = vpop.f32.mrb[0].mxu0
    %v8387 = vadd.f32 %v8034, %v8386
    %v8388 = vpop.f32.mrb[0].mxu0
    %v8389 = vadd.f32 %v8036, %v8388
    %8390 = vmatprep.mubr.bf16.mxu0 %v6264
    %8391 = vmatmul.mubr.bf16.gmra.mrb[0].mxu0 %v6263
    %v8392 = vpop.f32.mrb[0].mxu0
    %v8393 = vadd.f32 %v8040, %v8392
    %v8394 = vpop.f32.mrb[0].mxu0
    %v8395 = vadd.f32 %v8042, %v8394
    %v8396 = vpop.f32.mrb[0].mxu0
    %v8397 = vadd.f32 %v8044, %v8396
    %v8398 = vpop.f32.mrb[0].mxu0
    %v8399 = vadd.f32 %v8046, %v8398
    %8400 = vmatprep.mubr.bf16.mxu0 %v6272
    %8401 = vmatmul.mubr.bf16.gmra.mrb[0].mxu0 %v6271
    %v8402 = vpop.f32.mrb[0].mxu0
    %v8403 = vadd.f32 %v8050, %v8402
    %v8404 = vpop.f32.mrb[0].mxu0
    %v8405 = vadd.f32 %v8052, %v8404
    %v8406 = vpop.f32.mrb[0].mxu0
    %v8407 = vadd.f32 %v8054, %v8406
    %v8408 = vpop.f32.mrb[0].mxu0
    %v8409 = vadd.f32 %v8056, %v8408
    %8410 = vmatprep.mubr.bf16.mxu0 %v6280
    %8411 = vmatmul.mubr.bf16.gmra.mrb[0].mxu0 %v6279
    %v8412 = vpop.f32.mrb[0].mxu0
    %v8413 = vadd.f32 %v8060, %v8412
    %v8414 = vpop.f32.mrb[0].mxu0
    %v8415 = vadd.f32 %v8062, %v8414
    %v8416 = vpop.f32.mrb[0].mxu0
    %v8417 = vadd.f32 %v8064, %v8416
    %v8418 = vpop.f32.mrb[0].mxu0
    %v8419 = vadd.f32 %v8066, %v8418
    %8420 = vmatprep.mubr.bf16.mxu0 %v6288
    %8421 = vmatmul.mubr.bf16.gmra.mrb[0].mxu0 %v6287
    %v8422 = vpop.f32.mrb[0].mxu0
    %v8423 = vadd.f32 %v8070, %v8422
    %v8424 = vpop.f32.mrb[0].mxu0
    %v8425 = vadd.f32 %v8072, %v8424
    %v8426 = vpop.f32.mrb[0].mxu0
    %v8427 = vadd.f32 %v8074, %v8426
    %v8428 = vpop.f32.mrb[0].mxu0
    %v8429 = vadd.f32 %v8076, %v8428
    %8430 = vmatprep.mubr.bf16.mxu0 %v6296
    %8431 = vmatmul.mubr.bf16.gmra.mrb[0].mxu0 %v6295
    %v8432 = vpop.f32.mrb[0].mxu0
    %v8433 = vadd.f32 %v8080, %v8432
    %v8434 = vpop.f32.mrb[0].mxu0
    %v8435 = vadd.f32 %v8082, %v8434
    %v8436 = vpop.f32.mrb[0].mxu0
    %v8437 = vadd.f32 %v8084, %v8436
    %v8438 = vpop.f32.mrb[0].mxu0
    %v8439 = vadd.f32 %v8086, %v8438
    %8440 = vmatprep.mubr.bf16.mxu0 %v6304
    %8441 = vmatmul.mubr.bf16.gmra.mrb[0].mxu0 %v6303
    %v8442 = vpop.f32.mrb[0].mxu0
    %v8443 = vadd.f32 %v8090, %v8442
    %v8444 = vpop.f32.mrb[0].mxu0
    %v8445 = vadd.f32 %v8092, %v8444
    %v8446 = vpop.f32.mrb[0].mxu0
    %v8447 = vadd.f32 %v8094, %v8446
    %v8448 = vpop.f32.mrb[0].mxu0
    %v8449 = vadd.f32 %v8096, %v8448
    %8450 = vmatprep.mubr.bf16.mxu0 %v6312
    %8451 = vmatmul.mubr.bf16.gmra.mrb[0].mxu0 %v6311
    %v8452 = vpop.f32.mrb[0].mxu0
    %v8453 = vadd.f32 %v8100, %v8452
    %v8454 = vpop.f32.mrb[0].mxu0
    %v8455 = vadd.f32 %v8102, %v8454
    %v8456 = vpop.f32.mrb[0].mxu0
    %v8457 = vadd.f32 %v8104, %v8456
    %v8458 = vpop.f32.mrb[0].mxu0
    %v8459 = vadd.f32 %v8106, %v8458
    %8460 = vmatprep.mubr.bf16.mxu0 %v6320
    %8461 = vmatmul.mubr.bf16.gmra.mrb[0].mxu0 %v6319
    %v8462 = vpop.f32.mrb[0].mxu0
    %v8463 = vadd.f32 %v8110, %v8462
    %v8464 = vpop.f32.mrb[0].mxu0
    %v8465 = vadd.f32 %v8112, %v8464
    %v8466 = vpop.f32.mrb[0].mxu0
    %v8467 = vadd.f32 %v8114, %v8466
    %v8468 = vpop.f32.mrb[0].mxu0
    %v8469 = vadd.f32 %v8116, %v8468
    %8470 = vmatprep.mubr.bf16.mxu0 %v6328
    %8471 = vmatmul.mubr.bf16.gmra.mrb[0].mxu0 %v6327
    %v8472 = vpop.f32.mrb[0].mxu0
    %v8473 = vadd.f32 %v8120, %v8472
    %v8474 = vpop.f32.mrb[0].mxu0
    %v8475 = vadd.f32 %v8122, %v8474
    %v8476 = vpop.f32.mrb[0].mxu0
    %v8477 = vadd.f32 %v8124, %v8476
    %v8478 = vpop.f32.mrb[0].mxu0
    %v8479 = vadd.f32 %v8126, %v8478
    %8480 = vmatprep.mubr.bf16.mxu0 %v6336
    %8481 = vmatmul.mubr.bf16.gmra.mrb[0].mxu0 %v6335
    %v8482 = vpop.f32.mrb[0].mxu0
    %v8483 = vadd.f32 %v8130, %v8482
    %v8484 = vpop.f32.mrb[0].mxu0
    %v8485 = vadd.f32 %v8132, %v8484
    %v8486 = vpop.f32.mrb[0].mxu0
    %v8487 = vadd.f32 %v8134, %v8486
    %v8488 = vpop.f32.mrb[0].mxu0
    %v8489 = vadd.f32 %v8136, %v8488
    %8490 = vmatprep.mubr.bf16.mxu0 %v6344
    %8491 = vmatmul.mubr.bf16.gmra.mrb[0].mxu0 %v6343
    %v8492 = vpop.f32.mrb[0].mxu0
    %v8493 = vadd.f32 %v8140, %v8492
    %v8494 = vpop.f32.mrb[0].mxu0
    %v8495 = vadd.f32 %v8142, %v8494
    %v8496 = vpop.f32.mrb[0].mxu0
    %v8497 = vadd.f32 %v8144, %v8496
    %v8498 = vpop.f32.mrb[0].mxu0
    %v8499 = vadd.f32 %v8146, %v8498
    %8500 = vmatprep.mubr.bf16.mxu0 %v6352
    %8501 = vmatmul.mubr.bf16.gmra.mrb[0].mxu0 %v6351
    %v8502 = vpop.f32.mrb[0].mxu0
    %v8503 = vadd.f32 %v8150, %v8502
    %v8504 = vpop.f32.mrb[0].mxu0
    %v8505 = vadd.f32 %v8152, %v8504
    %v8506 = vpop.f32.mrb[0].mxu0
    %v8507 = vadd.f32 %v8154, %v8506
    %v8508 = vpop.f32.mrb[0].mxu0
    %v8509 = vadd.f32 %v8156, %v8508
    %8510 = vmatprep.mubr.bf16.mxu0 %v6360
    %8511 = vmatmul.mubr.bf16.gmra.mrb[0].mxu0 %v6359
    %v8512 = vpop.f32.mrb[0].mxu0
    %v8513 = vadd.f32 %v8160, %v8512
    %v8514 = vpop.f32.mrb[0].mxu0
    %v8515 = vadd.f32 %v8162, %v8514
    %v8516 = vpop.f32.mrb[0].mxu0
    %v8517 = vadd.f32 %v8164, %v8516
    %v8518 = vpop.f32.mrb[0].mxu0
    %v8519 = vadd.f32 %v8166, %v8518
    %8520 = vmatprep.mubr.bf16.mxu0 %v6368
    %8521 = vmatmul.mubr.bf16.gmra.mrb[0].mxu0 %v6367
    %v8522 = vpop.f32.mrb[0].mxu0
    %v8523 = vadd.f32 %v8170, %v8522
    %v8524 = vpop.f32.mrb[0].mxu0
    %v8525 = vadd.f32 %v8172, %v8524
    %v8526 = vpop.f32.mrb[0].mxu0
    %v8527 = vadd.f32 %v8174, %v8526
    %v8528 = vpop.f32.mrb[0].mxu0
    %v8529 = vadd.f32 %v8176, %v8528
    %8530 = vmatprep.mubr.bf16.mxu0 %v6376
    %8531 = vmatmul.mubr.bf16.gmra.mrb[0].mxu0 %v6375
    %v8532 = vpop.f32.mrb[0].mxu0
    %v8533 = vadd.f32 %v8180, %v8532
    %v8534 = vpop.f32.mrb[0].mxu0
    %v8535 = vadd.f32 %v8182, %v8534
    %v8536 = vpop.f32.mrb[0].mxu0
    %v8537 = vadd.f32 %v8184, %v8536
    %v8538 = vpop.f32.mrb[0].mxu0
    %v8539 = vadd.f32 %v8186, %v8538
    %8540 = vmatprep.mubr.bf16.mxu0 %v6384
    %8541 = vmatmul.mubr.bf16.gmra.mrb[0].mxu0 %v6383
    %v8542 = vpop.f32.mrb[0].mxu0
    %v8543 = vadd.f32 %v8190, %v8542
    %v8544 = vpop.f32.mrb[0].mxu0
    %v8545 = vadd.f32 %v8192, %v8544
    %v8546 = vpop.f32.mrb[0].mxu0
    %v8547 = vadd.f32 %v8194, %v8546
    %v8548 = vpop.f32.mrb[0].mxu0
    %v8549 = vadd.f32 %v8196, %v8548
    %8550 = vmatprep.mubr.bf16.mxu0 %v6392
    %8551 = vmatmul.mubr.bf16.gmra.mrb[0].mxu0 %v6391
    %v8552 = vpop.f32.mrb[0].mxu0
    %v8553 = vadd.f32 %v8200, %v8552
    %v8554 = vpop.f32.mrb[0].mxu0
    %v8555 = vadd.f32 %v8202, %v8554
    %v8556 = vpop.f32.mrb[0].mxu0
    %v8557 = vadd.f32 %v8204, %v8556
    %v8558 = vpop.f32.mrb[0].mxu0
    %v8559 = vadd.f32 %v8206, %v8558
    %8560 = vmatprep.mubr.bf16.mxu0 %v6400
    %8561 = vmatmul.mubr.bf16.gmra.mrb[0].mxu0 %v6399
    %v8562 = vpop.f32.mrb[0].mxu0
    %v8563 = vadd.f32 %v8210, %v8562
    %v8564 = vpop.f32.mrb[0].mxu0
    %v8565 = vadd.f32 %v8212, %v8564
    %v8566 = vpop.f32.mrb[0].mxu0
    %v8567 = vadd.f32 %v8214, %v8566
    %v8568 = vpop.f32.mrb[0].mxu0
    %v8569 = vadd.f32 %v8216, %v8568
    %8570 = vmatprep.mubr.bf16.mxu0 %v6408
    %8571 = vmatmul.mubr.bf16.gmra.mrb[0].mxu0 %v6407
    %v8572 = vpop.f32.mrb[0].mxu0
    %v8573 = vadd.f32 %v8220, %v8572
    %v8574 = vpop.f32.mrb[0].mxu0
    %v8575 = vadd.f32 %v8222, %v8574
    %v8576 = vpop.f32.mrb[0].mxu0
    %v8577 = vadd.f32 %v8224, %v8576
    %v8578 = vpop.f32.mrb[0].mxu0
    %v8579 = vadd.f32 %v8226, %v8578
    %8580 = vmatprep.mubr.bf16.mxu0 %v6416
    %8581 = vmatmul.mubr.bf16.gmra.mrb[0].mxu0 %v6415
    %v8582 = vpop.f32.mrb[0].mxu0
    %v8583 = vadd.f32 %v8230, %v8582
    %v8584 = vpop.f32.mrb[0].mxu0
    %v8585 = vadd.f32 %v8232, %v8584
    %v8586 = vpop.f32.mrb[0].mxu0
    %v8587 = vadd.f32 %v8234, %v8586
    %v8588 = vpop.f32.mrb[0].mxu0
    %v8589 = vadd.f32 %v8236, %v8588
    %8590 = vmatprep.mubr.bf16.mxu0 %v6424
    %8591 = vmatmul.mubr.bf16.gmra.mrb[0].mxu0 %v6423
    %v8592 = vpop.f32.mrb[0].mxu0
    %v8593 = vadd.f32 %v8240, %v8592
    %v8594 = vpop.f32.mrb[0].mxu0
    %v8595 = vadd.f32 %v8242, %v8594
    %v8596 = vpop.f32.mrb[0].mxu0
    %v8597 = vadd.f32 %v8244, %v8596
    %v8598 = vpop.f32.mrb[0].mxu0
    %v8599 = vadd.f32 %v8246, %v8598
    %8600 = vmatprep.mubr.bf16.mxu0 %v6432
    %8601 = vmatmul.mubr.bf16.gmra.mrb[0].mxu0 %v6431
    %v8602 = vpop.f32.mrb[0].mxu0
    %v8603 = vadd.f32 %v8250, %v8602
    %v8604 = vpop.f32.mrb[0].mxu0
    %v8605 = vadd.f32 %v8252, %v8604
    %v8606 = vpop.f32.mrb[0].mxu0
    %v8607 = vadd.f32 %v8254, %v8606
    %v8608 = vpop.f32.mrb[0].mxu0
    %v8609 = vadd.f32 %v8256, %v8608
    %8610 = vmatprep.mubr.bf16.mxu0 %v6440
    %8611 = vmatmul.mubr.bf16.gmra.mrb[0].mxu0 %v6439
    %v8612 = vpop.f32.mrb[0].mxu0
    %v8613 = vadd.f32 %v8260, %v8612
    %v8614 = vpop.f32.mrb[0].mxu0
    %v8615 = vadd.f32 %v8262, %v8614
    %v8616 = vpop.f32.mrb[0].mxu0
    %v8617 = vadd.f32 %v8264, %v8616
    %v8618 = vpop.f32.mrb[0].mxu0
    %v8619 = vadd.f32 %v8266, %v8618
    %8620 = vmatprep.mubr.bf16.mxu0 %v6448
    %8621 = vmatmul.mubr.bf16.gmra.mrb[0].mxu0 %v6447
    %v8622 = vpop.f32.mrb[0].mxu0
    %v8623 = vadd.f32 %v8270, %v8622
    %v8624 = vpop.f32.mrb[0].mxu0
    %v8625 = vadd.f32 %v8272, %v8624
    %v8626 = vpop.f32.mrb[0].mxu0
    %v8627 = vadd.f32 %v8274, %v8626
    %v8628 = vpop.f32.mrb[0].mxu0
    %v8629 = vadd.f32 %v8276, %v8628
    %8630 = vmatprep.mubr.bf16.mxu0 %v6456
    %8631 = vmatmul.mubr.bf16.gmra.mrb[0].mxu0 %v6455
    %v8632 = vpop.f32.mrb[0].mxu0
    %v8633 = vadd.f32 %v8280, %v8632
    %v8634 = vpop.f32.mrb[0].mxu0
    %v8635 = vadd.f32 %v8282, %v8634
    %v8636 = vpop.f32.mrb[0].mxu0
    %v8637 = vadd.f32 %v8284, %v8636
    %v8638 = vpop.f32.mrb[0].mxu0
    %v8639 = vadd.f32 %v8286, %v8638
    %8640 = vmatprep.mubr.bf16.mxu0 %v6464
    %8641 = vmatmul.mubr.bf16.gmra.mrb[0].mxu0 %v6463
    %v8642 = vpop.f32.mrb[0].mxu0
    %v8643 = vadd.f32 %v8290, %v8642
    %v8644 = vpop.f32.mrb[0].mxu0
    %v8645 = vadd.f32 %v8292, %v8644
    %v8646 = vpop.f32.mrb[0].mxu0
    %v8647 = vadd.f32 %v8294, %v8646
    %v8648 = vpop.f32.mrb[0].mxu0
    %v8649 = vadd.f32 %v8296, %v8648
    %8650 = vmatprep.mubr.bf16.mxu0 %v6472
    %8651 = vmatmul.mubr.bf16.gmra.mrb[0].mxu0 %v6471
    %v8652 = vpop.f32.mrb[0].mxu0
    %v8653 = vadd.f32 %v8300, %v8652
    %v8654 = vpop.f32.mrb[0].mxu0
    %v8655 = vadd.f32 %v8302, %v8654
    %v8656 = vpop.f32.mrb[0].mxu0
    %v8657 = vadd.f32 %v8304, %v8656
    %v8658 = vpop.f32.mrb[0].mxu0
    %v8659 = vadd.f32 %v8306, %v8658
    %8660 = vmatprep.mubr.bf16.mxu0 %v6480
    %8661 = vmatmul.mubr.bf16.gmra.mrb[0].mxu0 %v6479
    %v8662 = vpop.f32.mrb[0].mxu0
    %v8663 = vadd.f32 %v8310, %v8662
    %v8664 = vpop.f32.mrb[0].mxu0
    %v8665 = vadd.f32 %v8312, %v8664
    %v8666 = vpop.f32.mrb[0].mxu0
    %v8667 = vadd.f32 %v8314, %v8666
    %v8668 = vpop.f32.mrb[0].mxu0
    %v8669 = vadd.f32 %v8316, %v8668
    %8670 = vmatprep.mubr.bf16.mxu0 %v6488
    %8671 = vmatmul.mubr.bf16.gmra.mrb[0].mxu0 %v6487
    %v8672 = vpop.f32.mrb[0].mxu0
    %v8673 = vadd.f32 %v8320, %v8672
    %v8674 = vpop.f32.mrb[0].mxu0
    %v8675 = vadd.f32 %v8322, %v8674
    %v8676 = vpop.f32.mrb[0].mxu0
    %v8677 = vadd.f32 %v8324, %v8676
    %v8678 = vpop.f32.mrb[0].mxu0
    %v8679 = vadd.f32 %v8326, %v8678
    %8680 = vdwg.mxu0
    %v8681 = vmax.f32 %v8363, 0.0
    %v8682 = vmax.f32 %v8365, 0.0
    %v8683 = vmax.f32 %v8367, 0.0
    %v8684 = vmax.f32 %v8369, 0.0
    %v8685 = vmax.f32 %v8373, 0.0
    %v8686 = vmax.f32 %v8375, 0.0
    %v8687 = vmax.f32 %v8377, 0.0
    %v8688 = vmax.f32 %v8379, 0.0
    %v8689 = vmax.f32 %v8383, 0.0
    %v8690 = vmax.f32 %v8385, 0.0
    %v8691 = vmax.f32 %v8387, 0.0
    %v8692 = vmax.f32 %v8389, 0.0
    %v8693 = vmax.f32 %v8393, 0.0
    %v8694 = vmax.f32 %v8395, 0.0
    %v8695 = vmax.f32 %v8397, 0.0
    %v8696 = vmax.f32 %v8399, 0.0
    %v8697 = vmax.f32 %v8403, 0.0
    %v8698 = vmax.f32 %v8405, 0.0
    %v8699 = vmax.f32 %v8407, 0.0
    %v8700 = vmax.f32 %v8409, 0.0
    %v8701 = vmax.f32 %v8413, 0.0
    %v8702 = vmax.f32 %v8415, 0.0
    %v8703 = vmax.f32 %v8417, 0.0
    %v8704 = vmax.f32 %v8419, 0.0
    %v8705 = vmax.f32 %v8423, 0.0
    %v8706 = vmax.f32 %v8425, 0.0
    %v8707 = vmax.f32 %v8427, 0.0
    %v8708 = vmax.f32 %v8429, 0.0
    %v8709 = vmax.f32 %v8433, 0.0
    %v8710 = vmax.f32 %v8435, 0.0
    %v8711 = vmax.f32 %v8437, 0.0
    %v8712 = vmax.f32 %v8439, 0.0
    %v8713 = vmax.f32 %v8443, 0.0
    %v8714 = vmax.f32 %v8445, 0.0
    %v8715 = vmax.f32 %v8447, 0.0
    %v8716 = vmax.f32 %v8449, 0.0
    %v8717 = vmax.f32 %v8453, 0.0
    %v8718 = vmax.f32 %v8455, 0.0
    %v8719 = vmax.f32 %v8457, 0.0
    %v8720 = vmax.f32 %v8459, 0.0
    %v8721 = vmax.f32 %v8463, 0.0
    %v8722 = vmax.f32 %v8465, 0.0
    %v8723 = vmax.f32 %v8467, 0.0
    %v8724 = vmax.f32 %v8469, 0.0
    %v8725 = vmax.f32 %v8473, 0.0
    %v8726 = vmax.f32 %v8475, 0.0
    %v8727 = vmax.f32 %v8477, 0.0
    %v8728 = vmax.f32 %v8479, 0.0
    %v8729 = vmax.f32 %v8483, 0.0
    %v8730 = vmax.f32 %v8485, 0.0
    %v8731 = vmax.f32 %v8487, 0.0
    %v8732 = vmax.f32 %v8489, 0.0
    %v8733 = vmax.f32 %v8493, 0.0
    %v8734 = vmax.f32 %v8495, 0.0
    %v8735 = vmax.f32 %v8497, 0.0
    %v8736 = vmax.f32 %v8499, 0.0
    %v8737 = vmax.f32 %v8503, 0.0
    %v8738 = vmax.f32 %v8505, 0.0
    %v8739 = vmax.f32 %v8507, 0.0
    %v8740 = vmax.f32 %v8509, 0.0
    %v8741 = vmax.f32 %v8513, 0.0
    %v8742 = vmax.f32 %v8515, 0.0
    %v8743 = vmax.f32 %v8517, 0.0
    %v8744 = vmax.f32 %v8519, 0.0
    %v8745 = vmax.f32 %v8523, 0.0
    %v8746 = vmax.f32 %v8525, 0.0
    %v8747 = vmax.f32 %v8527, 0.0
    %v8748 = vmax.f32 %v8529, 0.0
    %v8749 = vmax.f32 %v8533, 0.0
    %v8750 = vmax.f32 %v8535, 0.0
    %v8751 = vmax.f32 %v8537, 0.0
    %v8752 = vmax.f32 %v8539, 0.0
    %v8753 = vmax.f32 %v8543, 0.0
    %v8754 = vmax.f32 %v8545, 0.0
    %v8755 = vmax.f32 %v8547, 0.0
    %v8756 = vmax.f32 %v8549, 0.0
    %v8757 = vmax.f32 %v8553, 0.0
    %v8758 = vmax.f32 %v8555, 0.0
    %v8759 = vmax.f32 %v8557, 0.0
    %v8760 = vmax.f32 %v8559, 0.0
    %v8761 = vmax.f32 %v8563, 0.0
    %v8762 = vmax.f32 %v8565, 0.0
    %v8763 = vmax.f32 %v8567, 0.0
    %v8764 = vmax.f32 %v8569, 0.0
    %v8765 = vmax.f32 %v8573, 0.0
    %v8766 = vmax.f32 %v8575, 0.0
    %v8767 = vmax.f32 %v8577, 0.0
    %v8768 = vmax.f32 %v8579, 0.0
    %v8769 = vmax.f32 %v8583, 0.0
    %v8770 = vmax.f32 %v8585, 0.0
    %v8771 = vmax.f32 %v8587, 0.0
    %v8772 = vmax.f32 %v8589, 0.0
    %v8773 = vmax.f32 %v8593, 0.0
    %v8774 = vmax.f32 %v8595, 0.0
    %v8775 = vmax.f32 %v8597, 0.0
    %v8776 = vmax.f32 %v8599, 0.0
    %v8777 = vmax.f32 %v8603, 0.0
    %v8778 = vmax.f32 %v8605, 0.0
    %v8779 = vmax.f32 %v8607, 0.0
    %v8780 = vmax.f32 %v8609, 0.0
    %v8781 = vmax.f32 %v8613, 0.0
    %v8782 = vmax.f32 %v8615, 0.0
    %v8783 = vmax.f32 %v8617, 0.0
    %v8784 = vmax.f32 %v8619, 0.0
    %v8785 = vmax.f32 %v8623, 0.0
    %v8786 = vmax.f32 %v8625, 0.0
    %v8787 = vmax.f32 %v8627, 0.0
    %v8788 = vmax.f32 %v8629, 0.0
    %v8789 = vmax.f32 %v8633, 0.0
    %v8790 = vmax.f32 %v8635, 0.0
    %v8791 = vmax.f32 %v8637, 0.0
    %v8792 = vmax.f32 %v8639, 0.0
    %v8793 = vmax.f32 %v8643, 0.0
    %v8794 = vmax.f32 %v8645, 0.0
    %v8795 = vmax.f32 %v8647, 0.0
    %v8796 = vmax.f32 %v8649, 0.0
    %v8797 = vmax.f32 %v8653, 0.0
    %v8798 = vmax.f32 %v8655, 0.0
    %v8799 = vmax.f32 %v8657, 0.0
    %v8800 = vmax.f32 %v8659, 0.0
    %v8801 = vmax.f32 %v8663, 0.0
    %v8802 = vmax.f32 %v8665, 0.0
    %v8803 = vmax.f32 %v8667, 0.0
    %v8804 = vmax.f32 %v8669, 0.0
    %v8805 = vmax.f32 %v8673, 0.0
    %v8806 = vmax.f32 %v8675, 0.0
    %v8807 = vmax.f32 %v8677, 0.0
    %v8808 = vmax.f32 %v8679, 0.0
    %v8809 = vpack.c.bf16 %v8683, %v8681
    %v8810 = vpack.c.bf16 %v8684, %v8682
    %v8811 = vpack.c.bf16 %v8687, %v8685
    %v8812 = vpack.c.bf16 %v8688, %v8686
    %v8813 = vpack.c.bf16 %v8691, %v8689
    %v8814 = vpack.c.bf16 %v8692, %v8690
    %v8815 = vpack.c.bf16 %v8695, %v8693
    %v8816 = vpack.c.bf16 %v8696, %v8694
    %v8817 = vpack.c.bf16 %v8699, %v8697
    %v8818 = vpack.c.bf16 %v8700, %v8698
    %v8819 = vpack.c.bf16 %v8703, %v8701
    %v8820 = vpack.c.bf16 %v8704, %v8702
    %v8821 = vpack.c.bf16 %v8707, %v8705
    %v8822 = vpack.c.bf16 %v8708, %v8706
    %v8823 = vpack.c.bf16 %v8711, %v8709
    %v8824 = vpack.c.bf16 %v8712, %v8710
    %v8825 = vpack.c.bf16 %v8715, %v8713
    %v8826 = vpack.c.bf16 %v8716, %v8714
    %v8827 = vpack.c.bf16 %v8719, %v8717
    %v8828 = vpack.c.bf16 %v8720, %v8718
    %v8829 = vpack.c.bf16 %v8723, %v8721
    %v8830 = vpack.c.bf16 %v8724, %v8722
    %v8831 = vpack.c.bf16 %v8727, %v8725
    %v8832 = vpack.c.bf16 %v8728, %v8726
    %v8833 = vpack.c.bf16 %v8731, %v8729
    %v8834 = vpack.c.bf16 %v8732, %v8730
    %v8835 = vpack.c.bf16 %v8735, %v8733
    %v8836 = vpack.c.bf16 %v8736, %v8734
    %v8837 = vpack.c.bf16 %v8739, %v8737
    %v8838 = vpack.c.bf16 %v8740, %v8738
    %v8839 = vpack.c.bf16 %v8743, %v8741
    %v8840 = vpack.c.bf16 %v8744, %v8742
    %v8841 = vpack.c.bf16 %v8747, %v8745
    %v8842 = vpack.c.bf16 %v8748, %v8746
    %v8843 = vpack.c.bf16 %v8751, %v8749
    %v8844 = vpack.c.bf16 %v8752, %v8750
    %v8845 = vpack.c.bf16 %v8755, %v8753
    %v8846 = vpack.c.bf16 %v8756, %v8754
    %v8847 = vpack.c.bf16 %v8759, %v8757
    %v8848 = vpack.c.bf16 %v8760, %v8758
    %v8849 = vpack.c.bf16 %v8763, %v8761
    %v8850 = vpack.c.bf16 %v8764, %v8762
    %v8851 = vpack.c.bf16 %v8767, %v8765
    %v8852 = vpack.c.bf16 %v8768, %v8766
    %v8853 = vpack.c.bf16 %v8771, %v8769
    %v8854 = vpack.c.bf16 %v8772, %v8770
    %v8855 = vpack.c.bf16 %v8775, %v8773
    %v8856 = vpack.c.bf16 %v8776, %v8774
    %v8857 = vpack.c.bf16 %v8779, %v8777
    %v8858 = vpack.c.bf16 %v8780, %v8778
    %v8859 = vpack.c.bf16 %v8783, %v8781
    %v8860 = vpack.c.bf16 %v8784, %v8782
    %v8861 = vpack.c.bf16 %v8787, %v8785
    %v8862 = vpack.c.bf16 %v8788, %v8786
    %v8863 = vpack.c.bf16 %v8791, %v8789
    %v8864 = vpack.c.bf16 %v8792, %v8790
    %v8865 = vpack.c.bf16 %v8795, %v8793
    %v8866 = vpack.c.bf16 %v8796, %v8794
    %v8867 = vpack.c.bf16 %v8799, %v8797
    %v8868 = vpack.c.bf16 %v8800, %v8798
    %v8869 = vpack.c.bf16 %v8803, %v8801
    %v8870 = vpack.c.bf16 %v8804, %v8802
    %v8871 = vpack.c.bf16 %v8807, %v8805
    %v8872 = vpack.c.bf16 %v8808, %v8806
    %v8873 = vld [vmem:[#allocation12] sm:$0xf]
    %v8874 = vld [vmem:[#allocation12 + $0x4] sm:$0xf]
    %v8875 = vld [vmem:[#allocation12 + $0x8] sm:$0xf]
    %v8876 = vld [vmem:[#allocation12 + $0xc] sm:$0xf]
    %v8877 = vld [vmem:[#allocation12 + $0x10] sm:$0xf]
    %v8878 = vld [vmem:[#allocation12 + $0x14] sm:$0xf]
    %v8879 = vld [vmem:[#allocation12 + $0x18] sm:$0xf]
    %v8880 = vld [vmem:[#allocation12 + $0x1c] sm:$0xf]
    %v8881 = vld [vmem:[#allocation12 + $0x20] sm:$0xf]
    %v8882 = vld [vmem:[#allocation12 + $0x24] sm:$0xf]
    %v8883 = vld [vmem:[#allocation12 + $0x28] sm:$0xf]
    %v8884 = vld [vmem:[#allocation12 + $0x2c] sm:$0xf]
    %v8885 = vld [vmem:[#allocation12 + $0x30] sm:$0xf]
    %v8886 = vld [vmem:[#allocation12 + $0x34] sm:$0xf]
    %v8887 = vld [vmem:[#allocation12 + $0x38] sm:$0xf]
    %v8888 = vld [vmem:[#allocation12 + $0x3c] sm:$0xf]
    %v8889 = vld [vmem:[#allocation12 + $0x40] sm:$0xf]
    %v8890 = vld [vmem:[#allocation12 + $0x44] sm:$0xf]
    %v8891 = vld [vmem:[#allocation12 + $0x48] sm:$0xf]
    %v8892 = vld [vmem:[#allocation12 + $0x4c] sm:$0xf]
    %v8893 = vld [vmem:[#allocation12 + $0x50] sm:$0xf]
    %v8894 = vld [vmem:[#allocation12 + $0x54] sm:$0xf]
    %v8895 = vld [vmem:[#allocation12 + $0x58] sm:$0xf]
    %v8896 = vld [vmem:[#allocation12 + $0x5c] sm:$0xf]
    %v8897 = vld [vmem:[#allocation12 + $0x60] sm:$0xf]
    %v8898 = vld [vmem:[#allocation12 + $0x64] sm:$0xf]
    %v8899 = vld [vmem:[#allocation12 + $0x68] sm:$0xf]
    %v8900 = vld [vmem:[#allocation12 + $0x6c] sm:$0xf]
    %v8901 = vld [vmem:[#allocation12 + $0x70] sm:$0xf]
    %v8902 = vld [vmem:[#allocation12 + $0x74] sm:$0xf]
    %v8903 = vld [vmem:[#allocation12 + $0x78] sm:$0xf]
    %v8904 = vld [vmem:[#allocation12 + $0x7c] sm:$0xf]
    %v8905 = vld [vmem:[#allocation14] sm:$0x1]
    %v8907 = vlaneseq
    %v8908 = vshrl.u32 %v8907, 7
    %v8909 = vsub.s32 0, %v8908
    %v8910 = vrot.slane %v8905, %v8909
    %v8944 = vunpack.c.l.b16 %v8873
    %v8945 = vunpack.c.l.b16 %v8874
    %v8946 = vunpack.c.l.b16 %v8875
    %v8947 = vunpack.c.l.b16 %v8876
    %v8948 = vunpack.c.l.b16 %v8877
    %v8949 = vunpack.c.l.b16 %v8878
    %v8950 = vunpack.c.l.b16 %v8879
    %v8951 = vunpack.c.l.b16 %v8880
    %v8952 = vunpack.c.l.b16 %v8881
    %v8953 = vunpack.c.l.b16 %v8882
    %v8954 = vunpack.c.l.b16 %v8883
    %v8955 = vunpack.c.l.b16 %v8884
    %v8956 = vunpack.c.l.b16 %v8885
    %v8957 = vunpack.c.l.b16 %v8886
    %v8958 = vunpack.c.l.b16 %v8887
    %v8959 = vunpack.c.l.b16 %v8888
    %v8960 = vunpack.c.l.b16 %v8889
    %v8961 = vunpack.c.l.b16 %v8890
    %v8962 = vunpack.c.l.b16 %v8891
    %v8963 = vunpack.c.l.b16 %v8892
    %v8964 = vunpack.c.l.b16 %v8893
    %v8965 = vunpack.c.l.b16 %v8894
    %v8966 = vunpack.c.l.b16 %v8895
    %v8967 = vunpack.c.l.b16 %v8896
    %v8968 = vunpack.c.l.b16 %v8897
    %v8969 = vunpack.c.l.b16 %v8898
    %v8970 = vunpack.c.l.b16 %v8899
    %v8971 = vunpack.c.l.b16 %v8900
    %v8972 = vunpack.c.l.b16 %v8901
    %v8973 = vunpack.c.l.b16 %v8902
    %v8974 = vunpack.c.l.b16 %v8903
    %v8975 = vunpack.c.l.b16 %v8904
    %v8976 = vpack.c.b16 %v8945, %v8944
    %v8977 = vpack.c.b16 %v8947, %v8946
    %v8978 = vpack.c.b16 %v8949, %v8948
    %v8979 = vpack.c.b16 %v8951, %v8950
    %v8980 = vpack.c.b16 %v8953, %v8952
    %v8981 = vpack.c.b16 %v8955, %v8954
    %v8982 = vpack.c.b16 %v8957, %v8956
    %v8983 = vpack.c.b16 %v8959, %v8958
    %v8984 = vpack.c.b16 %v8961, %v8960
    %v8985 = vpack.c.b16 %v8963, %v8962
    %v8986 = vpack.c.b16 %v8965, %v8964
    %v8987 = vpack.c.b16 %v8967, %v8966
    %v8988 = vpack.c.b16 %v8969, %v8968
    %v8989 = vpack.c.b16 %v8971, %v8970
    %v8990 = vpack.c.b16 %v8973, %v8972
    %v8991 = vpack.c.b16 %v8975, %v8974
    %9008 = vmatprep.subr.bf16.mxu0 0
    %9009 = vmatpush1.bf16.msra.mxu0 %v8976
    %9010 = vmatprep.subr.bf16.mxu0 0
    %9011 = vmatpush1.bf16.msra.mxu0 %v8977
    %9012 = vmatprep.subr.bf16.mxu0 0
    %9013 = vmatpush1.bf16.msra.mxu0 %v8978
    %9014 = vmatprep.subr.bf16.mxu0 0
    %9015 = vmatpush1.bf16.msra.mxu0 %v8979
    %9016 = vmatprep.subr.bf16.mxu0 0
    %9017 = vmatpush1.bf16.msra.mxu0 %v8980
    %9018 = vmatprep.subr.bf16.mxu0 0
    %9019 = vmatpush1.bf16.msra.mxu0 %v8981
    %9020 = vmatprep.subr.bf16.mxu0 0
    %9021 = vmatpush1.bf16.msra.mxu0 %v8982
    %9022 = vmatprep.subr.bf16.mxu0 0
    %9023 = vmatpush1.bf16.msra.mxu0 %v8983
    %9024 = vmatprep.subr.bf16.mxu0 0
    %9025 = vmatpush1.bf16.msra.mxu0 %v8984
    %9026 = vmatprep.subr.bf16.mxu0 0
    %9027 = vmatpush1.bf16.msra.mxu0 %v8985
    %9028 = vmatprep.subr.bf16.mxu0 0
    %9029 = vmatpush1.bf16.msra.mxu0 %v8986
    %9030 = vmatprep.subr.bf16.mxu0 0
    %9031 = vmatpush1.bf16.msra.mxu0 %v8987
    %9032 = vmatprep.subr.bf16.mxu0 0
    %9033 = vmatpush1.bf16.msra.mxu0 %v8988
    %9034 = vmatprep.subr.bf16.mxu0 0
    %9035 = vmatpush1.bf16.msra.mxu0 %v8989
    %9036 = vmatprep.subr.bf16.mxu0 0
    %9037 = vmatpush1.bf16.msra.mxu0 %v8990
    %9038 = vmatprep.subr.bf16.mxu0 0
    %9039 = vmatpush1.bf16.msra.mxu0 %v8991
    %9040 = vmatprep.mubr.bf16.mxu0 %v8810
    %9041 = vmatmul.mubr.bf16.gmra.mrb[0].mxu0 %v8809
    %v9042 = vpop.f32.mrb[0].mxu0
    %v9043 = vadd.f32 %v8910, %v9042
    %v9044 = vpop.f32.mrb[0].mxu0
    %v9045 = vpop.f32.mrb[0].mxu0
    %v9046 = vadd.f32 %v8910, %v9045
    %v9047 = vpop.f32.mrb[0].mxu0
    %9048 = vmatprep.mubr.bf16.mxu0 %v8812
    %9049 = vmatmul.mubr.bf16.gmra.mrb[0].mxu0 %v8811
    %v9050 = vpop.f32.mrb[0].mxu0
    %v9051 = vadd.f32 %v8910, %v9050
    %v9052 = vpop.f32.mrb[0].mxu0
    %v9053 = vpop.f32.mrb[0].mxu0
    %v9054 = vadd.f32 %v8910, %v9053
    %v9055 = vpop.f32.mrb[0].mxu0
    %9056 = vmatprep.mubr.bf16.mxu0 %v8814
    %9057 = vmatmul.mubr.bf16.gmra.mrb[0].mxu0 %v8813
    %v9058 = vpop.f32.mrb[0].mxu0
    %v9059 = vadd.f32 %v8910, %v9058
    %v9060 = vpop.f32.mrb[0].mxu0
    %v9061 = vpop.f32.mrb[0].mxu0
    %v9062 = vadd.f32 %v8910, %v9061
    %v9063 = vpop.f32.mrb[0].mxu0
    %9064 = vmatprep.mubr.bf16.mxu0 %v8816
    %9065 = vmatmul.mubr.bf16.gmra.mrb[0].mxu0 %v8815
    %v9066 = vpop.f32.mrb[0].mxu0
    %v9067 = vadd.f32 %v8910, %v9066
    %v9068 = vpop.f32.mrb[0].mxu0
    %v9069 = vpop.f32.mrb[0].mxu0
    %v9070 = vadd.f32 %v8910, %v9069
    %v9071 = vpop.f32.mrb[0].mxu0
    %9072 = vmatprep.mubr.bf16.mxu0 %v8818
    %9073 = vmatmul.mubr.bf16.gmra.mrb[0].mxu0 %v8817
    %v9074 = vpop.f32.mrb[0].mxu0
    %v9075 = vadd.f32 %v8910, %v9074
    %v9076 = vpop.f32.mrb[0].mxu0
    %v9077 = vpop.f32.mrb[0].mxu0
    %v9078 = vadd.f32 %v8910, %v9077
    %v9079 = vpop.f32.mrb[0].mxu0
    %9080 = vmatprep.mubr.bf16.mxu0 %v8820
    %9081 = vmatmul.mubr.bf16.gmra.mrb[0].mxu0 %v8819
    %v9082 = vpop.f32.mrb[0].mxu0
    %v9083 = vadd.f32 %v8910, %v9082
    %v9084 = vpop.f32.mrb[0].mxu0
    %v9085 = vpop.f32.mrb[0].mxu0
    %v9086 = vadd.f32 %v8910, %v9085
    %v9087 = vpop.f32.mrb[0].mxu0
    %9088 = vmatprep.mubr.bf16.mxu0 %v8822
    %9089 = vmatmul.mubr.bf16.gmra.mrb[0].mxu0 %v8821
    %v9090 = vpop.f32.mrb[0].mxu0
    %v9091 = vadd.f32 %v8910, %v9090
    %v9092 = vpop.f32.mrb[0].mxu0
    %v9093 = vpop.f32.mrb[0].mxu0
    %v9094 = vadd.f32 %v8910, %v9093
    %v9095 = vpop.f32.mrb[0].mxu0
    %9096 = vmatprep.mubr.bf16.mxu0 %v8824
    %9097 = vmatmul.mubr.bf16.gmra.mrb[0].mxu0 %v8823
    %v9098 = vpop.f32.mrb[0].mxu0
    %v9099 = vadd.f32 %v8910, %v9098
    %v9100 = vpop.f32.mrb[0].mxu0
    %v9101 = vpop.f32.mrb[0].mxu0
    %v9102 = vadd.f32 %v8910, %v9101
    %v9103 = vpop.f32.mrb[0].mxu0
    %9104 = vmatprep.mubr.bf16.mxu0 %v8826
    %9105 = vmatmul.mubr.bf16.gmra.mrb[0].mxu0 %v8825
    %v9106 = vpop.f32.mrb[0].mxu0
    %v9107 = vadd.f32 %v8910, %v9106
    %v9108 = vpop.f32.mrb[0].mxu0
    %v9109 = vpop.f32.mrb[0].mxu0
    %v9110 = vadd.f32 %v8910, %v9109
    %v9111 = vpop.f32.mrb[0].mxu0
    %9112 = vmatprep.mubr.bf16.mxu0 %v8828
    %9113 = vmatmul.mubr.bf16.gmra.mrb[0].mxu0 %v8827
    %v9114 = vpop.f32.mrb[0].mxu0
    %v9115 = vadd.f32 %v8910, %v9114
    %v9116 = vpop.f32.mrb[0].mxu0
    %v9117 = vpop.f32.mrb[0].mxu0
    %v9118 = vadd.f32 %v8910, %v9117
    %v9119 = vpop.f32.mrb[0].mxu0
    %9120 = vmatprep.mubr.bf16.mxu0 %v8830
    %9121 = vmatmul.mubr.bf16.gmra.mrb[0].mxu0 %v8829
    %v9122 = vpop.f32.mrb[0].mxu0
    %v9123 = vadd.f32 %v8910, %v9122
    %v9124 = vpop.f32.mrb[0].mxu0
    %v9125 = vpop.f32.mrb[0].mxu0
    %v9126 = vadd.f32 %v8910, %v9125
    %v9127 = vpop.f32.mrb[0].mxu0
    %9128 = vmatprep.mubr.bf16.mxu0 %v8832
    %9129 = vmatmul.mubr.bf16.gmra.mrb[0].mxu0 %v8831
    %v9130 = vpop.f32.mrb[0].mxu0
    %v9131 = vadd.f32 %v8910, %v9130
    %v9132 = vpop.f32.mrb[0].mxu0
    %v9133 = vpop.f32.mrb[0].mxu0
    %v9134 = vadd.f32 %v8910, %v9133
    %v9135 = vpop.f32.mrb[0].mxu0
    %9136 = vmatprep.mubr.bf16.mxu0 %v8834
    %9137 = vmatmul.mubr.bf16.gmra.mrb[0].mxu0 %v8833
    %v9138 = vpop.f32.mrb[0].mxu0
    %v9139 = vadd.f32 %v8910, %v9138
    %v9140 = vpop.f32.mrb[0].mxu0
    %v9141 = vpop.f32.mrb[0].mxu0
    %v9142 = vadd.f32 %v8910, %v9141
    %v9143 = vpop.f32.mrb[0].mxu0
    %9144 = vmatprep.mubr.bf16.mxu0 %v8836
    %9145 = vmatmul.mubr.bf16.gmra.mrb[0].mxu0 %v8835
    %v9146 = vpop.f32.mrb[0].mxu0
    %v9147 = vadd.f32 %v8910, %v9146
    %v9148 = vpop.f32.mrb[0].mxu0
    %v9149 = vpop.f32.mrb[0].mxu0
    %v9150 = vadd.f32 %v8910, %v9149
    %v9151 = vpop.f32.mrb[0].mxu0
    %9152 = vmatprep.mubr.bf16.mxu0 %v8838
    %9153 = vmatmul.mubr.bf16.gmra.mrb[0].mxu0 %v8837
    %v9154 = vpop.f32.mrb[0].mxu0
    %v9155 = vadd.f32 %v8910, %v9154
    %v9156 = vpop.f32.mrb[0].mxu0
    %v9157 = vpop.f32.mrb[0].mxu0
    %v9158 = vadd.f32 %v8910, %v9157
    %v9159 = vpop.f32.mrb[0].mxu0
    %9160 = vmatprep.mubr.bf16.mxu0 %v8840
    %9161 = vmatmul.mubr.bf16.gmra.mrb[0].mxu0 %v8839
    %v9162 = vpop.f32.mrb[0].mxu0
    %v9163 = vadd.f32 %v8910, %v9162
    %v9164 = vpop.f32.mrb[0].mxu0
    %v9165 = vpop.f32.mrb[0].mxu0
    %v9166 = vadd.f32 %v8910, %v9165
    %v9167 = vpop.f32.mrb[0].mxu0
    %9168 = vmatprep.mubr.bf16.mxu0 %v8842
    %9169 = vmatmul.mubr.bf16.gmra.mrb[0].mxu0 %v8841
    %v9170 = vpop.f32.mrb[0].mxu0
    %v9171 = vadd.f32 %v8910, %v9170
    %v9172 = vpop.f32.mrb[0].mxu0
    %v9173 = vpop.f32.mrb[0].mxu0
    %v9174 = vadd.f32 %v8910, %v9173
    %v9175 = vpop.f32.mrb[0].mxu0
    %9176 = vmatprep.mubr.bf16.mxu0 %v8844
    %9177 = vmatmul.mubr.bf16.gmra.mrb[0].mxu0 %v8843
    %v9178 = vpop.f32.mrb[0].mxu0
    %v9179 = vadd.f32 %v8910, %v9178
    %v9180 = vpop.f32.mrb[0].mxu0
    %v9181 = vpop.f32.mrb[0].mxu0
    %v9182 = vadd.f32 %v8910, %v9181
    %v9183 = vpop.f32.mrb[0].mxu0
    %9184 = vmatprep.mubr.bf16.mxu0 %v8846
    %9185 = vmatmul.mubr.bf16.gmra.mrb[0].mxu0 %v8845
    %v9186 = vpop.f32.mrb[0].mxu0
    %v9187 = vadd.f32 %v8910, %v9186
    %v9188 = vpop.f32.mrb[0].mxu0
    %v9189 = vpop.f32.mrb[0].mxu0
    %v9190 = vadd.f32 %v8910, %v9189
    %v9191 = vpop.f32.mrb[0].mxu0
    %9192 = vmatprep.mubr.bf16.mxu0 %v8848
    %9193 = vmatmul.mubr.bf16.gmra.mrb[0].mxu0 %v8847
    %v9194 = vpop.f32.mrb[0].mxu0
    %v9195 = vadd.f32 %v8910, %v9194
    %v9196 = vpop.f32.mrb[0].mxu0
    %v9197 = vpop.f32.mrb[0].mxu0
    %v9198 = vadd.f32 %v8910, %v9197
    %v9199 = vpop.f32.mrb[0].mxu0
    %9200 = vmatprep.mubr.bf16.mxu0 %v8850
    %9201 = vmatmul.mubr.bf16.gmra.mrb[0].mxu0 %v8849
    %v9202 = vpop.f32.mrb[0].mxu0
    %v9203 = vadd.f32 %v8910, %v9202
    %v9204 = vpop.f32.mrb[0].mxu0
    %v9205 = vpop.f32.mrb[0].mxu0
    %v9206 = vadd.f32 %v8910, %v9205
    %v9207 = vpop.f32.mrb[0].mxu0
    %9208 = vmatprep.mubr.bf16.mxu0 %v8852
    %9209 = vmatmul.mubr.bf16.gmra.mrb[0].mxu0 %v8851
    %v9210 = vpop.f32.mrb[0].mxu0
    %v9211 = vadd.f32 %v8910, %v9210
    %v9212 = vpop.f32.mrb[0].mxu0
    %v9213 = vpop.f32.mrb[0].mxu0
    %v9214 = vadd.f32 %v8910, %v9213
    %v9215 = vpop.f32.mrb[0].mxu0
    %9216 = vmatprep.mubr.bf16.mxu0 %v8854
    %9217 = vmatmul.mubr.bf16.gmra.mrb[0].mxu0 %v8853
    %v9218 = vpop.f32.mrb[0].mxu0
    %v9219 = vadd.f32 %v8910, %v9218
    %v9220 = vpop.f32.mrb[0].mxu0
    %v9221 = vpop.f32.mrb[0].mxu0
    %v9222 = vadd.f32 %v8910, %v9221
    %v9223 = vpop.f32.mrb[0].mxu0
    %9224 = vmatprep.mubr.bf16.mxu0 %v8856
    %9225 = vmatmul.mubr.bf16.gmra.mrb[0].mxu0 %v8855
    %v9226 = vpop.f32.mrb[0].mxu0
    %v9227 = vadd.f32 %v8910, %v9226
    %v9228 = vpop.f32.mrb[0].mxu0
    %v9229 = vpop.f32.mrb[0].mxu0
    %v9230 = vadd.f32 %v8910, %v9229
    %v9231 = vpop.f32.mrb[0].mxu0
    %9232 = vmatprep.mubr.bf16.mxu0 %v8858
    %9233 = vmatmul.mubr.bf16.gmra.mrb[0].mxu0 %v8857
    %v9234 = vpop.f32.mrb[0].mxu0
    %v9235 = vadd.f32 %v8910, %v9234
    %v9236 = vpop.f32.mrb[0].mxu0
    %v9237 = vpop.f32.mrb[0].mxu0
    %v9238 = vadd.f32 %v8910, %v9237
    %v9239 = vpop.f32.mrb[0].mxu0
    %9240 = vmatprep.mubr.bf16.mxu0 %v8860
    %9241 = vmatmul.mubr.bf16.gmra.mrb[0].mxu0 %v8859
    %v9242 = vpop.f32.mrb[0].mxu0
    %v9243 = vadd.f32 %v8910, %v9242
    %v9244 = vpop.f32.mrb[0].mxu0
    %v9245 = vpop.f32.mrb[0].mxu0
    %v9246 = vadd.f32 %v8910, %v9245
    %v9247 = vpop.f32.mrb[0].mxu0
    %9248 = vmatprep.mubr.bf16.mxu0 %v8862
    %9249 = vmatmul.mubr.bf16.gmra.mrb[0].mxu0 %v8861
    %v9250 = vpop.f32.mrb[0].mxu0
    %v9251 = vadd.f32 %v8910, %v9250
    %v9252 = vpop.f32.mrb[0].mxu0
    %v9253 = vpop.f32.mrb[0].mxu0
    %v9254 = vadd.f32 %v8910, %v9253
    %v9255 = vpop.f32.mrb[0].mxu0
    %9256 = vmatprep.mubr.bf16.mxu0 %v8864
    %9257 = vmatmul.mubr.bf16.gmra.mrb[0].mxu0 %v8863
    %v9258 = vpop.f32.mrb[0].mxu0
    %v9259 = vadd.f32 %v8910, %v9258
    %v9260 = vpop.f32.mrb[0].mxu0
    %v9261 = vpop.f32.mrb[0].mxu0
    %v9262 = vadd.f32 %v8910, %v9261
    %v9263 = vpop.f32.mrb[0].mxu0
    %9264 = vmatprep.mubr.bf16.mxu0 %v8866
    %9265 = vmatmul.mubr.bf16.gmra.mrb[0].mxu0 %v8865
    %v9266 = vpop.f32.mrb[0].mxu0
    %v9267 = vadd.f32 %v8910, %v9266
    %v9268 = vpop.f32.mrb[0].mxu0
    %v9269 = vpop.f32.mrb[0].mxu0
    %v9270 = vadd.f32 %v8910, %v9269
    %v9271 = vpop.f32.mrb[0].mxu0
    %9272 = vmatprep.mubr.bf16.mxu0 %v8868
    %9273 = vmatmul.mubr.bf16.gmra.mrb[0].mxu0 %v8867
    %v9274 = vpop.f32.mrb[0].mxu0
    %v9275 = vadd.f32 %v8910, %v9274
    %v9276 = vpop.f32.mrb[0].mxu0
    %v9277 = vpop.f32.mrb[0].mxu0
    %v9278 = vadd.f32 %v8910, %v9277
    %v9279 = vpop.f32.mrb[0].mxu0
    %9280 = vmatprep.mubr.bf16.mxu0 %v8870
    %9281 = vmatmul.mubr.bf16.gmra.mrb[0].mxu0 %v8869
    %v9282 = vpop.f32.mrb[0].mxu0
    %v9283 = vadd.f32 %v8910, %v9282
    %v9284 = vpop.f32.mrb[0].mxu0
    %v9285 = vpop.f32.mrb[0].mxu0
    %v9286 = vadd.f32 %v8910, %v9285
    %v9287 = vpop.f32.mrb[0].mxu0
    %9288 = vmatprep.mubr.bf16.mxu0 %v8872
    %9289 = vmatmul.mubr.bf16.gmra.mrb[0].mxu0 %v8871
    %v9290 = vpop.f32.mrb[0].mxu0
    %v9291 = vadd.f32 %v8910, %v9290
    %v9292 = vpop.f32.mrb[0].mxu0
    %v9293 = vpop.f32.mrb[0].mxu0
    %v9294 = vadd.f32 %v8910, %v9293
    %v9295 = vpop.f32.mrb[0].mxu0
    %9296 = vdwg.mxu0
    %v9297 = vmax.f32 %v9043, 0.0
    %v9298 = vmax.f32 %v9046, 0.0
    %v9299 = vmax.f32 %v9051, 0.0
    %v9300 = vmax.f32 %v9054, 0.0
    %v9301 = vmax.f32 %v9059, 0.0
    %v9302 = vmax.f32 %v9062, 0.0
    %v9303 = vmax.f32 %v9067, 0.0
    %v9304 = vmax.f32 %v9070, 0.0
    %v9305 = vmax.f32 %v9075, 0.0
    %v9306 = vmax.f32 %v9078, 0.0
    %v9307 = vmax.f32 %v9083, 0.0
    %v9308 = vmax.f32 %v9086, 0.0
    %v9309 = vmax.f32 %v9091, 0.0
    %v9310 = vmax.f32 %v9094, 0.0
    %v9311 = vmax.f32 %v9099, 0.0
    %v9312 = vmax.f32 %v9102, 0.0
    %v9313 = vmax.f32 %v9107, 0.0
    %v9314 = vmax.f32 %v9110, 0.0
    %v9315 = vmax.f32 %v9115, 0.0
    %v9316 = vmax.f32 %v9118, 0.0
    %v9317 = vmax.f32 %v9123, 0.0
    %v9318 = vmax.f32 %v9126, 0.0
    %v9319 = vmax.f32 %v9131, 0.0
    %v9320 = vmax.f32 %v9134, 0.0
    %v9321 = vmax.f32 %v9139, 0.0
    %v9322 = vmax.f32 %v9142, 0.0
    %v9323 = vmax.f32 %v9147, 0.0
    %v9324 = vmax.f32 %v9150, 0.0
    %v9325 = vmax.f32 %v9155, 0.0
    %v9326 = vmax.f32 %v9158, 0.0
    %v9327 = vmax.f32 %v9163, 0.0
    %v9328 = vmax.f32 %v9166, 0.0
    %v9329 = vmax.f32 %v9171, 0.0
    %v9330 = vmax.f32 %v9174, 0.0
    %v9331 = vmax.f32 %v9179, 0.0
    %v9332 = vmax.f32 %v9182, 0.0
    %v9333 = vmax.f32 %v9187, 0.0
    %v9334 = vmax.f32 %v9190, 0.0
    %v9335 = vmax.f32 %v9195, 0.0
    %v9336 = vmax.f32 %v9198, 0.0
    %v9337 = vmax.f32 %v9203, 0.0
    %v9338 = vmax.f32 %v9206, 0.0
    %v9339 = vmax.f32 %v9211, 0.0
    %v9340 = vmax.f32 %v9214, 0.0
    %v9341 = vmax.f32 %v9219, 0.0
    %v9342 = vmax.f32 %v9222, 0.0
    %v9343 = vmax.f32 %v9227, 0.0
    %v9344 = vmax.f32 %v9230, 0.0
    %v9345 = vmax.f32 %v9235, 0.0
    %v9346 = vmax.f32 %v9238, 0.0
    %v9347 = vmax.f32 %v9243, 0.0
    %v9348 = vmax.f32 %v9246, 0.0
    %v9349 = vmax.f32 %v9251, 0.0
    %v9350 = vmax.f32 %v9254, 0.0
    %v9351 = vmax.f32 %v9259, 0.0
    %v9352 = vmax.f32 %v9262, 0.0
    %v9353 = vmax.f32 %v9267, 0.0
    %v9354 = vmax.f32 %v9270, 0.0
    %v9355 = vmax.f32 %v9275, 0.0
    %v9356 = vmax.f32 %v9278, 0.0
    %v9357 = vmax.f32 %v9283, 0.0
    %v9358 = vmax.f32 %v9286, 0.0
    %v9359 = vmax.f32 %v9291, 0.0
    %v9360 = vmax.f32 %v9294, 0.0
    %v9361 = vld [vmem:[#allocation15] sm:$0x1]
    %v9363 = vlaneseq
    %v9364 = vshrl.u32 %v9363, 7
    %v9365 = vsub.s32 0, %v9364
    %v9366 = vrot.slane %v9361, %v9365
    %v9368 = vmul.f32 %v9297, %v9366
    %v9369 = vmul.f32 %v9298, %v9366
    %v9370 = vmul.f32 %v9299, %v9366
    %v9371 = vmul.f32 %v9300, %v9366
    %v9372 = vmul.f32 %v9301, %v9366
    %v9373 = vmul.f32 %v9302, %v9366
    %v9374 = vmul.f32 %v9303, %v9366
    %v9375 = vmul.f32 %v9304, %v9366
    %v9376 = vmul.f32 %v9305, %v9366
    %v9377 = vmul.f32 %v9306, %v9366
    %v9378 = vmul.f32 %v9307, %v9366
    %v9379 = vmul.f32 %v9308, %v9366
    %v9380 = vmul.f32 %v9309, %v9366
    %v9381 = vmul.f32 %v9310, %v9366
    %v9382 = vmul.f32 %v9311, %v9366
    %v9383 = vmul.f32 %v9312, %v9366
    %v9384 = vmul.f32 %v9313, %v9366
    %v9385 = vmul.f32 %v9314, %v9366
    %v9386 = vmul.f32 %v9315, %v9366
    %v9387 = vmul.f32 %v9316, %v9366
    %v9388 = vmul.f32 %v9317, %v9366
    %v9389 = vmul.f32 %v9318, %v9366
    %v9390 = vmul.f32 %v9319, %v9366
    %v9391 = vmul.f32 %v9320, %v9366
    %v9392 = vmul.f32 %v9321, %v9366
    %v9393 = vmul.f32 %v9322, %v9366
    %v9394 = vmul.f32 %v9323, %v9366
    %v9395 = vmul.f32 %v9324, %v9366
    %v9396 = vmul.f32 %v9325, %v9366
    %v9397 = vmul.f32 %v9326, %v9366
    %v9398 = vmul.f32 %v9327, %v9366
    %v9399 = vmul.f32 %v9328, %v9366
    %v9400 = vmul.f32 %v9329, %v9366
    %v9401 = vmul.f32 %v9330, %v9366
    %v9402 = vmul.f32 %v9331, %v9366
    %v9403 = vmul.f32 %v9332, %v9366
    %v9404 = vmul.f32 %v9333, %v9366
    %v9405 = vmul.f32 %v9334, %v9366
    %v9406 = vmul.f32 %v9335, %v9366
    %v9407 = vmul.f32 %v9336, %v9366
    %v9408 = vmul.f32 %v9337, %v9366
    %v9409 = vmul.f32 %v9338, %v9366
    %v9410 = vmul.f32 %v9339, %v9366
    %v9411 = vmul.f32 %v9340, %v9366
    %v9412 = vmul.f32 %v9341, %v9366
    %v9413 = vmul.f32 %v9342, %v9366
    %v9414 = vmul.f32 %v9343, %v9366
    %v9415 = vmul.f32 %v9344, %v9366
    %v9416 = vmul.f32 %v9345, %v9366
    %v9417 = vmul.f32 %v9346, %v9366
    %v9418 = vmul.f32 %v9347, %v9366
    %v9419 = vmul.f32 %v9348, %v9366
    %v9420 = vmul.f32 %v9349, %v9366
    %v9421 = vmul.f32 %v9350, %v9366
    %v9422 = vmul.f32 %v9351, %v9366
    %v9423 = vmul.f32 %v9352, %v9366
    %v9424 = vmul.f32 %v9353, %v9366
    %v9425 = vmul.f32 %v9354, %v9366
    %v9426 = vmul.f32 %v9355, %v9366
    %v9427 = vmul.f32 %v9356, %v9366
    %v9428 = vmul.f32 %v9357, %v9366
    %v9429 = vmul.f32 %v9358, %v9366
    %v9430 = vmul.f32 %v9359, %v9366
    %v9431 = vmul.f32 %v9360, %v9366
    %9432 = vadd.xlane.f32.xlu0 %v9368
    %v9433 = vpop.xlane.xlu0 %9432
    %9434 = vadd.xlane.f32.xlu0 %v9369
    %v9435 = vpop.xlane.xlu0 %9434
    %9436 = vadd.xlane.f32.xlu0 %v9370
    %v9437 = vpop.xlane.xlu0 %9436
    %9438 = vadd.xlane.f32.xlu0 %v9371
    %v9439 = vpop.xlane.xlu0 %9438
    %9440 = vadd.xlane.f32.xlu0 %v9372
    %v9441 = vpop.xlane.xlu0 %9440
    %9442 = vadd.xlane.f32.xlu0 %v9373
    %v9443 = vpop.xlane.xlu0 %9442
    %9444 = vadd.xlane.f32.xlu0 %v9374
    %v9445 = vpop.xlane.xlu0 %9444
    %9446 = vadd.xlane.f32.xlu0 %v9375
    %v9447 = vpop.xlane.xlu0 %9446
    %9448 = vadd.xlane.f32.xlu0 %v9376
    %v9449 = vpop.xlane.xlu0 %9448
    %9450 = vadd.xlane.f32.xlu0 %v9377
    %v9451 = vpop.xlane.xlu0 %9450
    %9452 = vadd.xlane.f32.xlu0 %v9378
    %v9453 = vpop.xlane.xlu0 %9452
    %9454 = vadd.xlane.f32.xlu0 %v9379
    %v9455 = vpop.xlane.xlu0 %9454
    %9456 = vadd.xlane.f32.xlu0 %v9380
    %v9457 = vpop.xlane.xlu0 %9456
    %9458 = vadd.xlane.f32.xlu0 %v9381
    %v9459 = vpop.xlane.xlu0 %9458
    %9460 = vadd.xlane.f32.xlu0 %v9382
    %v9461 = vpop.xlane.xlu0 %9460
    %9462 = vadd.xlane.f32.xlu0 %v9383
    %v9463 = vpop.xlane.xlu0 %9462
    %9464 = vadd.xlane.f32.xlu0 %v9384
    %v9465 = vpop.xlane.xlu0 %9464
    %9466 = vadd.xlane.f32.xlu0 %v9385
    %v9467 = vpop.xlane.xlu0 %9466
    %9468 = vadd.xlane.f32.xlu0 %v9386
    %v9469 = vpop.xlane.xlu0 %9468
    %9470 = vadd.xlane.f32.xlu0 %v9387
    %v9471 = vpop.xlane.xlu0 %9470
    %9472 = vadd.xlane.f32.xlu0 %v9388
    %v9473 = vpop.xlane.xlu0 %9472
    %9474 = vadd.xlane.f32.xlu0 %v9389
    %v9475 = vpop.xlane.xlu0 %9474
    %9476 = vadd.xlane.f32.xlu0 %v9390
    %v9477 = vpop.xlane.xlu0 %9476
    %9478 = vadd.xlane.f32.xlu0 %v9391
    %v9479 = vpop.xlane.xlu0 %9478
    %9480 = vadd.xlane.f32.xlu0 %v9392
    %v9481 = vpop.xlane.xlu0 %9480
    %9482 = vadd.xlane.f32.xlu0 %v9393
    %v9483 = vpop.xlane.xlu0 %9482
    %9484 = vadd.xlane.f32.xlu0 %v9394
    %v9485 = vpop.xlane.xlu0 %9484
    %9486 = vadd.xlane.f32.xlu0 %v9395
    %v9487 = vpop.xlane.xlu0 %9486
    %9488 = vadd.xlane.f32.xlu0 %v9396
    %v9489 = vpop.xlane.xlu0 %9488
    %9490 = vadd.xlane.f32.xlu0 %v9397
    %v9491 = vpop.xlane.xlu0 %9490
    %9492 = vadd.xlane.f32.xlu0 %v9398
    %v9493 = vpop.xlane.xlu0 %9492
    %9494 = vadd.xlane.f32.xlu0 %v9399
    %v9495 = vpop.xlane.xlu0 %9494
    %9496 = vadd.xlane.f32.xlu0 %v9400
    %v9497 = vpop.xlane.xlu0 %9496
    %9498 = vadd.xlane.f32.xlu0 %v9401
    %v9499 = vpop.xlane.xlu0 %9498
    %9500 = vadd.xlane.f32.xlu0 %v9402
    %v9501 = vpop.xlane.xlu0 %9500
    %9502 = vadd.xlane.f32.xlu0 %v9403
    %v9503 = vpop.xlane.xlu0 %9502
    %9504 = vadd.xlane.f32.xlu0 %v9404
    %v9505 = vpop.xlane.xlu0 %9504
    %9506 = vadd.xlane.f32.xlu0 %v9405
    %v9507 = vpop.xlane.xlu0 %9506
    %9508 = vadd.xlane.f32.xlu0 %v9406
    %v9509 = vpop.xlane.xlu0 %9508
    %9510 = vadd.xlane.f32.xlu0 %v9407
    %v9511 = vpop.xlane.xlu0 %9510
    %9512 = vadd.xlane.f32.xlu0 %v9408
    %v9513 = vpop.xlane.xlu0 %9512
    %9514 = vadd.xlane.f32.xlu0 %v9409
    %v9515 = vpop.xlane.xlu0 %9514
    %9516 = vadd.xlane.f32.xlu0 %v9410
    %v9517 = vpop.xlane.xlu0 %9516
    %9518 = vadd.xlane.f32.xlu0 %v9411
    %v9519 = vpop.xlane.xlu0 %9518
    %9520 = vadd.xlane.f32.xlu0 %v9412
    %v9521 = vpop.xlane.xlu0 %9520
    %9522 = vadd.xlane.f32.xlu0 %v9413
    %v9523 = vpop.xlane.xlu0 %9522
    %9524 = vadd.xlane.f32.xlu0 %v9414
    %v9525 = vpop.xlane.xlu0 %9524
    %9526 = vadd.xlane.f32.xlu0 %v9415
    %v9527 = vpop.xlane.xlu0 %9526
    %9528 = vadd.xlane.f32.xlu0 %v9416
    %v9529 = vpop.xlane.xlu0 %9528
    %9530 = vadd.xlane.f32.xlu0 %v9417
    %v9531 = vpop.xlane.xlu0 %9530
    %9532 = vadd.xlane.f32.xlu0 %v9418
    %v9533 = vpop.xlane.xlu0 %9532
    %9534 = vadd.xlane.f32.xlu0 %v9419
    %v9535 = vpop.xlane.xlu0 %9534
    %9536 = vadd.xlane.f32.xlu0 %v9420
    %v9537 = vpop.xlane.xlu0 %9536
    %9538 = vadd.xlane.f32.xlu0 %v9421
    %v9539 = vpop.xlane.xlu0 %9538
    %9540 = vadd.xlane.f32.xlu0 %v9422
    %v9541 = vpop.xlane.xlu0 %9540
    %9542 = vadd.xlane.f32.xlu0 %v9423
    %v9543 = vpop.xlane.xlu0 %9542
    %9544 = vadd.xlane.f32.xlu0 %v9424
    %v9545 = vpop.xlane.xlu0 %9544
    %9546 = vadd.xlane.f32.xlu0 %v9425
    %v9547 = vpop.xlane.xlu0 %9546
    %9548 = vadd.xlane.f32.xlu0 %v9426
    %v9549 = vpop.xlane.xlu0 %9548
    %9550 = vadd.xlane.f32.xlu0 %v9427
    %v9551 = vpop.xlane.xlu0 %9550
    %9552 = vadd.xlane.f32.xlu0 %v9428
    %v9553 = vpop.xlane.xlu0 %9552
    %9554 = vadd.xlane.f32.xlu0 %v9429
    %v9555 = vpop.xlane.xlu0 %9554
    %9556 = vadd.xlane.f32.xlu0 %v9430
    %v9557 = vpop.xlane.xlu0 %9556
    %9558 = vadd.xlane.f32.xlu0 %v9431
    %v9559 = vpop.xlane.xlu0 %9558
    %v9560 = vld [vmem:[#allocation2] sm:$0x1]
    %v9562 = vlaneseq
    %v9563 = vshrl.u32 %v9562, 7
    %v9564 = vsub.s32 0, %v9563
    %v9565 = vrot.slane %v9560, %v9564
    %v9567 = vadd.f32 %v9433, %v9565
    %v9568 = vadd.f32 %v9435, %v9565
    %v9569 = vadd.f32 %v9437, %v9565
    %v9570 = vadd.f32 %v9439, %v9565
    %v9571 = vadd.f32 %v9441, %v9565
    %v9572 = vadd.f32 %v9443, %v9565
    %v9573 = vadd.f32 %v9445, %v9565
    %v9574 = vadd.f32 %v9447, %v9565
    %v9575 = vadd.f32 %v9449, %v9565
    %v9576 = vadd.f32 %v9451, %v9565
    %v9577 = vadd.f32 %v9453, %v9565
    %v9578 = vadd.f32 %v9455, %v9565
    %v9579 = vadd.f32 %v9457, %v9565
    %v9580 = vadd.f32 %v9459, %v9565
    %v9581 = vadd.f32 %v9461, %v9565
    %v9582 = vadd.f32 %v9463, %v9565
    %v9583 = vadd.f32 %v9465, %v9565
    %v9584 = vadd.f32 %v9467, %v9565
    %v9585 = vadd.f32 %v9469, %v9565
    %v9586 = vadd.f32 %v9471, %v9565
    %v9587 = vadd.f32 %v9473, %v9565
    %v9588 = vadd.f32 %v9475, %v9565
    %v9589 = vadd.f32 %v9477, %v9565
    %v9590 = vadd.f32 %v9479, %v9565
    %v9591 = vadd.f32 %v9481, %v9565
    %v9592 = vadd.f32 %v9483, %v9565
    %v9593 = vadd.f32 %v9485, %v9565
    %v9594 = vadd.f32 %v9487, %v9565
    %v9595 = vadd.f32 %v9489, %v9565
    %v9596 = vadd.f32 %v9491, %v9565
    %v9597 = vadd.f32 %v9493, %v9565
    %v9598 = vadd.f32 %v9495, %v9565
    %v9599 = vadd.f32 %v9497, %v9565
    %v9600 = vadd.f32 %v9499, %v9565
    %v9601 = vadd.f32 %v9501, %v9565
    %v9602 = vadd.f32 %v9503, %v9565
    %v9603 = vadd.f32 %v9505, %v9565
    %v9604 = vadd.f32 %v9507, %v9565
    %v9605 = vadd.f32 %v9509, %v9565
    %v9606 = vadd.f32 %v9511, %v9565
    %v9607 = vadd.f32 %v9513, %v9565
    %v9608 = vadd.f32 %v9515, %v9565
    %v9609 = vadd.f32 %v9517, %v9565
    %v9610 = vadd.f32 %v9519, %v9565
    %v9611 = vadd.f32 %v9521, %v9565
    %v9612 = vadd.f32 %v9523, %v9565
    %v9613 = vadd.f32 %v9525, %v9565
    %v9614 = vadd.f32 %v9527, %v9565
    %v9615 = vadd.f32 %v9529, %v9565
    %v9616 = vadd.f32 %v9531, %v9565
    %v9617 = vadd.f32 %v9533, %v9565
    %v9618 = vadd.f32 %v9535, %v9565
    %v9619 = vadd.f32 %v9537, %v9565
    %v9620 = vadd.f32 %v9539, %v9565
    %v9621 = vadd.f32 %v9541, %v9565
    %v9622 = vadd.f32 %v9543, %v9565
    %v9623 = vadd.f32 %v9545, %v9565
    %v9624 = vadd.f32 %v9547, %v9565
    %v9625 = vadd.f32 %v9549, %v9565
    %v9626 = vadd.f32 %v9551, %v9565
    %v9627 = vadd.f32 %v9553, %v9565
    %v9628 = vadd.f32 %v9555, %v9565
    %v9629 = vadd.f32 %v9557, %v9565
    %v9630 = vadd.f32 %v9559, %v9565
    %v9631 = vxor.u32 %v9567, 2147483648
    %v9632 = vxor.u32 %v9568, 2147483648
    %v9633 = vxor.u32 %v9569, 2147483648
    %v9634 = vxor.u32 %v9570, 2147483648
    %v9635 = vxor.u32 %v9571, 2147483648
    %v9636 = vxor.u32 %v9572, 2147483648
    %v9637 = vxor.u32 %v9573, 2147483648
    %v9638 = vxor.u32 %v9574, 2147483648
    %v9639 = vxor.u32 %v9575, 2147483648
    %v9640 = vxor.u32 %v9576, 2147483648
    %v9641 = vxor.u32 %v9577, 2147483648
    %v9642 = vxor.u32 %v9578, 2147483648
    %v9643 = vxor.u32 %v9579, 2147483648
    %v9644 = vxor.u32 %v9580, 2147483648
    %v9645 = vxor.u32 %v9581, 2147483648
    %v9646 = vxor.u32 %v9582, 2147483648
    %v9647 = vxor.u32 %v9583, 2147483648
    %v9648 = vxor.u32 %v9584, 2147483648
    %v9649 = vxor.u32 %v9585, 2147483648
    %v9650 = vxor.u32 %v9586, 2147483648
    %v9651 = vxor.u32 %v9587, 2147483648
    %v9652 = vxor.u32 %v9588, 2147483648
    %v9653 = vxor.u32 %v9589, 2147483648
    %v9654 = vxor.u32 %v9590, 2147483648
    %v9655 = vxor.u32 %v9591, 2147483648
    %v9656 = vxor.u32 %v9592, 2147483648
    %v9657 = vxor.u32 %v9593, 2147483648
    %v9658 = vxor.u32 %v9594, 2147483648
    %v9659 = vxor.u32 %v9595, 2147483648
    %v9660 = vxor.u32 %v9596, 2147483648
    %v9661 = vxor.u32 %v9597, 2147483648
    %v9662 = vxor.u32 %v9598, 2147483648
    %v9663 = vxor.u32 %v9599, 2147483648
    %v9664 = vxor.u32 %v9600, 2147483648
    %v9665 = vxor.u32 %v9601, 2147483648
    %v9666 = vxor.u32 %v9602, 2147483648
    %v9667 = vxor.u32 %v9603, 2147483648
    %v9668 = vxor.u32 %v9604, 2147483648
    %v9669 = vxor.u32 %v9605, 2147483648
    %v9670 = vxor.u32 %v9606, 2147483648
    %v9671 = vxor.u32 %v9607, 2147483648
    %v9672 = vxor.u32 %v9608, 2147483648
    %v9673 = vxor.u32 %v9609, 2147483648
    %v9674 = vxor.u32 %v9610, 2147483648
    %v9675 = vxor.u32 %v9611, 2147483648
    %v9676 = vxor.u32 %v9612, 2147483648
    %v9677 = vxor.u32 %v9613, 2147483648
    %v9678 = vxor.u32 %v9614, 2147483648
    %v9679 = vxor.u32 %v9615, 2147483648
    %v9680 = vxor.u32 %v9616, 2147483648
    %v9681 = vxor.u32 %v9617, 2147483648
    %v9682 = vxor.u32 %v9618, 2147483648
    %v9683 = vxor.u32 %v9619, 2147483648
    %v9684 = vxor.u32 %v9620, 2147483648
    %v9685 = vxor.u32 %v9621, 2147483648
    %v9686 = vxor.u32 %v9622, 2147483648
    %v9687 = vxor.u32 %v9623, 2147483648
    %v9688 = vxor.u32 %v9624, 2147483648
    %v9689 = vxor.u32 %v9625, 2147483648
    %v9690 = vxor.u32 %v9626, 2147483648
    %v9691 = vxor.u32 %v9627, 2147483648
    %v9692 = vxor.u32 %v9628, 2147483648
    %v9693 = vxor.u32 %v9629, 2147483648
    %v9694 = vxor.u32 %v9630, 2147483648
    %v9695 = vmul.f32 %v9631, 1.442695
    %v9696 = vpow.pop %v9695
    %v9697 = vmul.f32 %v9632, 1.442695
    %v9698 = vpow.pop %v9697
    %v9699 = vmul.f32 %v9633, 1.442695
    %v9700 = vpow.pop %v9699
    %v9701 = vmul.f32 %v9634, 1.442695
    %v9702 = vpow.pop %v9701
    %v9703 = vmul.f32 %v9635, 1.442695
    %v9704 = vpow.pop %v9703
    %v9705 = vmul.f32 %v9636, 1.442695
    %v9706 = vpow.pop %v9705
    %v9707 = vmul.f32 %v9637, 1.442695
    %v9708 = vpow.pop %v9707
    %v9709 = vmul.f32 %v9638, 1.442695
    %v9710 = vpow.pop %v9709
    %v9711 = vmul.f32 %v9639, 1.442695
    %v9712 = vpow.pop %v9711
    %v9713 = vmul.f32 %v9640, 1.442695
    %v9714 = vpow.pop %v9713
    %v9715 = vmul.f32 %v9641, 1.442695
    %v9716 = vpow.pop %v9715
    %v9717 = vmul.f32 %v9642, 1.442695
    %v9718 = vpow.pop %v9717
    %v9719 = vmul.f32 %v9643, 1.442695
    %v9720 = vpow.pop %v9719
    %v9721 = vmul.f32 %v9644, 1.442695
    %v9722 = vpow.pop %v9721
    %v9723 = vmul.f32 %v9645, 1.442695
    %v9724 = vpow.pop %v9723
    %v9725 = vmul.f32 %v9646, 1.442695
    %v9726 = vpow.pop %v9725
    %v9727 = vmul.f32 %v9647, 1.442695
    %v9728 = vpow.pop %v9727
    %v9729 = vmul.f32 %v9648, 1.442695
    %v9730 = vpow.pop %v9729
    %v9731 = vmul.f32 %v9649, 1.442695
    %v9732 = vpow.pop %v9731
    %v9733 = vmul.f32 %v9650, 1.442695
    %v9734 = vpow.pop %v9733
    %v9735 = vmul.f32 %v9651, 1.442695
    %v9736 = vpow.pop %v9735
    %v9737 = vmul.f32 %v9652, 1.442695
    %v9738 = vpow.pop %v9737
    %v9739 = vmul.f32 %v9653, 1.442695
    %v9740 = vpow.pop %v9739
    %v9741 = vmul.f32 %v9654, 1.442695
    %v9742 = vpow.pop %v9741
    %v9743 = vmul.f32 %v9655, 1.442695
    %v9744 = vpow.pop %v9743
    %v9745 = vmul.f32 %v9656, 1.442695
    %v9746 = vpow.pop %v9745
    %v9747 = vmul.f32 %v9657, 1.442695
    %v9748 = vpow.pop %v9747
    %v9749 = vmul.f32 %v9658, 1.442695
    %v9750 = vpow.pop %v9749
    %v9751 = vmul.f32 %v9659, 1.442695
    %v9752 = vpow.pop %v9751
    %v9753 = vmul.f32 %v9660, 1.442695
    %v9754 = vpow.pop %v9753
    %v9755 = vmul.f32 %v9661, 1.442695
    %v9756 = vpow.pop %v9755
    %v9757 = vmul.f32 %v9662, 1.442695
    %v9758 = vpow.pop %v9757
    %v9759 = vmul.f32 %v9663, 1.442695
    %v9760 = vpow.pop %v9759
    %v9761 = vmul.f32 %v9664, 1.442695
    %v9762 = vpow.pop %v9761
    %v9763 = vmul.f32 %v9665, 1.442695
    %v9764 = vpow.pop %v9763
    %v9765 = vmul.f32 %v9666, 1.442695
    %v9766 = vpow.pop %v9765
    %v9767 = vmul.f32 %v9667, 1.442695
    %v9768 = vpow.pop %v9767
    %v9769 = vmul.f32 %v9668, 1.442695
    %v9770 = vpow.pop %v9769
    %v9771 = vmul.f32 %v9669, 1.442695
    %v9772 = vpow.pop %v9771
    %v9773 = vmul.f32 %v9670, 1.442695
    %v9774 = vpow.pop %v9773
    %v9775 = vmul.f32 %v9671, 1.442695
    %v9776 = vpow.pop %v9775
    %v9777 = vmul.f32 %v9672, 1.442695
    %v9778 = vpow.pop %v9777
    %v9779 = vmul.f32 %v9673, 1.442695
    %v9780 = vpow.pop %v9779
    %v9781 = vmul.f32 %v9674, 1.442695
    %v9782 = vpow.pop %v9781
    %v9783 = vmul.f32 %v9675, 1.442695
    %v9784 = vpow.pop %v9783
    %v9785 = vmul.f32 %v9676, 1.442695
    %v9786 = vpow.pop %v9785
    %v9787 = vmul.f32 %v9677, 1.442695
    %v9788 = vpow.pop %v9787
    %v9789 = vmul.f32 %v9678, 1.442695
    %v9790 = vpow.pop %v9789
    %v9791 = vmul.f32 %v9679, 1.442695
    %v9792 = vpow.pop %v9791
    %v9793 = vmul.f32 %v9680, 1.442695
    %v9794 = vpow.pop %v9793
    %v9795 = vmul.f32 %v9681, 1.442695
    %v9796 = vpow.pop %v9795
    %v9797 = vmul.f32 %v9682, 1.442695
    %v9798 = vpow.pop %v9797
    %v9799 = vmul.f32 %v9683, 1.442695
    %v9800 = vpow.pop %v9799
    %v9801 = vmul.f32 %v9684, 1.442695
    %v9802 = vpow.pop %v9801
    %v9803 = vmul.f32 %v9685, 1.442695
    %v9804 = vpow.pop %v9803
    %v9805 = vmul.f32 %v9686, 1.442695
    %v9806 = vpow.pop %v9805
    %v9807 = vmul.f32 %v9687, 1.442695
    %v9808 = vpow.pop %v9807
    %v9809 = vmul.f32 %v9688, 1.442695
    %v9810 = vpow.pop %v9809
    %v9811 = vmul.f32 %v9689, 1.442695
    %v9812 = vpow.pop %v9811
    %v9813 = vmul.f32 %v9690, 1.442695
    %v9814 = vpow.pop %v9813
    %v9815 = vmul.f32 %v9691, 1.442695
    %v9816 = vpow.pop %v9815
    %v9817 = vmul.f32 %v9692, 1.442695
    %v9818 = vpow.pop %v9817
    %v9819 = vmul.f32 %v9693, 1.442695
    %v9820 = vpow.pop %v9819
    %v9821 = vmul.f32 %v9694, 1.442695
    %v9822 = vpow.pop %v9821
    %v9823 = vadd.f32 %v9696, 1.0
    %v9824 = vadd.f32 %v9698, 1.0
    %v9825 = vadd.f32 %v9700, 1.0
    %v9826 = vadd.f32 %v9702, 1.0
    %v9827 = vadd.f32 %v9704, 1.0
    %v9828 = vadd.f32 %v9706, 1.0
    %v9829 = vadd.f32 %v9708, 1.0
    %v9830 = vadd.f32 %v9710, 1.0
    %v9831 = vadd.f32 %v9712, 1.0
    %v9832 = vadd.f32 %v9714, 1.0
    %v9833 = vadd.f32 %v9716, 1.0
    %v9834 = vadd.f32 %v9718, 1.0
    %v9835 = vadd.f32 %v9720, 1.0
    %v9836 = vadd.f32 %v9722, 1.0
    %v9837 = vadd.f32 %v9724, 1.0
    %v9838 = vadd.f32 %v9726, 1.0
    %v9839 = vadd.f32 %v9728, 1.0
    %v9840 = vadd.f32 %v9730, 1.0
    %v9841 = vadd.f32 %v9732, 1.0
    %v9842 = vadd.f32 %v9734, 1.0
    %v9843 = vadd.f32 %v9736, 1.0
    %v9844 = vadd.f32 %v9738, 1.0
    %v9845 = vadd.f32 %v9740, 1.0
    %v9846 = vadd.f32 %v9742, 1.0
    %v9847 = vadd.f32 %v9744, 1.0
    %v9848 = vadd.f32 %v9746, 1.0
    %v9849 = vadd.f32 %v9748, 1.0
    %v9850 = vadd.f32 %v9750, 1.0
    %v9851 = vadd.f32 %v9752, 1.0
    %v9852 = vadd.f32 %v9754, 1.0
    %v9853 = vadd.f32 %v9756, 1.0
    %v9854 = vadd.f32 %v9758, 1.0
    %v9855 = vadd.f32 %v9760, 1.0
    %v9856 = vadd.f32 %v9762, 1.0
    %v9857 = vadd.f32 %v9764, 1.0
    %v9858 = vadd.f32 %v9766, 1.0
    %v9859 = vadd.f32 %v9768, 1.0
    %v9860 = vadd.f32 %v9770, 1.0
    %v9861 = vadd.f32 %v9772, 1.0
    %v9862 = vadd.f32 %v9774, 1.0
    %v9863 = vadd.f32 %v9776, 1.0
    %v9864 = vadd.f32 %v9778, 1.0
    %v9865 = vadd.f32 %v9780, 1.0
    %v9866 = vadd.f32 %v9782, 1.0
    %v9867 = vadd.f32 %v9784, 1.0
    %v9868 = vadd.f32 %v9786, 1.0
    %v9869 = vadd.f32 %v9788, 1.0
    %v9870 = vadd.f32 %v9790, 1.0
    %v9871 = vadd.f32 %v9792, 1.0
    %v9872 = vadd.f32 %v9794, 1.0
    %v9873 = vadd.f32 %v9796, 1.0
    %v9874 = vadd.f32 %v9798, 1.0
    %v9875 = vadd.f32 %v9800, 1.0
    %v9876 = vadd.f32 %v9802, 1.0
    %v9877 = vadd.f32 %v9804, 1.0
    %v9878 = vadd.f32 %v9806, 1.0
    %v9879 = vadd.f32 %v9808, 1.0
    %v9880 = vadd.f32 %v9810, 1.0
    %v9881 = vadd.f32 %v9812, 1.0
    %v9882 = vadd.f32 %v9814, 1.0
    %v9883 = vadd.f32 %v9816, 1.0
    %v9884 = vadd.f32 %v9818, 1.0
    %v9885 = vadd.f32 %v9820, 1.0
    %v9886 = vadd.f32 %v9822, 1.0
    %v9887 = vrcp.pop %v9823
    %v9888 = vmul.f32 1.0, %v9887
    %v9889 = vrcp.pop %v9824
    %v9890 = vmul.f32 1.0, %v9889
    %v9891 = vrcp.pop %v9825
    %v9892 = vmul.f32 1.0, %v9891
    %v9893 = vrcp.pop %v9826
    %v9894 = vmul.f32 1.0, %v9893
    %v9895 = vrcp.pop %v9827
    %v9896 = vmul.f32 1.0, %v9895
    %v9897 = vrcp.pop %v9828
    %v9898 = vmul.f32 1.0, %v9897
    %v9899 = vrcp.pop %v9829
    %v9900 = vmul.f32 1.0, %v9899
    %v9901 = vrcp.pop %v9830
    %v9902 = vmul.f32 1.0, %v9901
    %v9903 = vrcp.pop %v9831
    %v9904 = vmul.f32 1.0, %v9903
    %v9905 = vrcp.pop %v9832
    %v9906 = vmul.f32 1.0, %v9905
    %v9907 = vrcp.pop %v9833
    %v9908 = vmul.f32 1.0, %v9907
    %v9909 = vrcp.pop %v9834
    %v9910 = vmul.f32 1.0, %v9909
    %v9911 = vrcp.pop %v9835
    %v9912 = vmul.f32 1.0, %v9911
    %v9913 = vrcp.pop %v9836
    %v9914 = vmul.f32 1.0, %v9913
    %v9915 = vrcp.pop %v9837
    %v9916 = vmul.f32 1.0, %v9915
    %v9917 = vrcp.pop %v9838
    %v9918 = vmul.f32 1.0, %v9917
    %v9919 = vrcp.pop %v9839
    %v9920 = vmul.f32 1.0, %v9919
    %v9921 = vrcp.pop %v9840
    %v9922 = vmul.f32 1.0, %v9921
    %v9923 = vrcp.pop %v9841
    %v9924 = vmul.f32 1.0, %v9923
    %v9925 = vrcp.pop %v9842
    %v9926 = vmul.f32 1.0, %v9925
    %v9927 = vrcp.pop %v9843
    %v9928 = vmul.f32 1.0, %v9927
    %v9929 = vrcp.pop %v9844
    %v9930 = vmul.f32 1.0, %v9929
    %v9931 = vrcp.pop %v9845
    %v9932 = vmul.f32 1.0, %v9931
    %v9933 = vrcp.pop %v9846
    %v9934 = vmul.f32 1.0, %v9933
    %v9935 = vrcp.pop %v9847
    %v9936 = vmul.f32 1.0, %v9935
    %v9937 = vrcp.pop %v9848
    %v9938 = vmul.f32 1.0, %v9937
    %v9939 = vrcp.pop %v9849
    %v9940 = vmul.f32 1.0, %v9939
    %v9941 = vrcp.pop %v9850
    %v9942 = vmul.f32 1.0, %v9941
    %v9943 = vrcp.pop %v9851
    %v9944 = vmul.f32 1.0, %v9943
    %v9945 = vrcp.pop %v9852
    %v9946 = vmul.f32 1.0, %v9945
    %v9947 = vrcp.pop %v9853
    %v9948 = vmul.f32 1.0, %v9947
    %v9949 = vrcp.pop %v9854
    %v9950 = vmul.f32 1.0, %v9949
    %v9951 = vrcp.pop %v9855
    %v9952 = vmul.f32 1.0, %v9951
    %v9953 = vrcp.pop %v9856
    %v9954 = vmul.f32 1.0, %v9953
    %v9955 = vrcp.pop %v9857
    %v9956 = vmul.f32 1.0, %v9955
    %v9957 = vrcp.pop %v9858
    %v9958 = vmul.f32 1.0, %v9957
    %v9959 = vrcp.pop %v9859
    %v9960 = vmul.f32 1.0, %v9959
    %v9961 = vrcp.pop %v9860
    %v9962 = vmul.f32 1.0, %v9961
    %v9963 = vrcp.pop %v9861
    %v9964 = vmul.f32 1.0, %v9963
    %v9965 = vrcp.pop %v9862
    %v9966 = vmul.f32 1.0, %v9965
    %v9967 = vrcp.pop %v9863
    %v9968 = vmul.f32 1.0, %v9967
    %v9969 = vrcp.pop %v9864
    %v9970 = vmul.f32 1.0, %v9969
    %v9971 = vrcp.pop %v9865
    %v9972 = vmul.f32 1.0, %v9971
    %v9973 = vrcp.pop %v9866
    %v9974 = vmul.f32 1.0, %v9973
    %v9975 = vrcp.pop %v9867
    %v9976 = vmul.f32 1.0, %v9975
    %v9977 = vrcp.pop %v9868
    %v9978 = vmul.f32 1.0, %v9977
    %v9979 = vrcp.pop %v9869
    %v9980 = vmul.f32 1.0, %v9979
    %v9981 = vrcp.pop %v9870
    %v9982 = vmul.f32 1.0, %v9981
    %v9983 = vrcp.pop %v9871
    %v9984 = vmul.f32 1.0, %v9983
    %v9985 = vrcp.pop %v9872
    %v9986 = vmul.f32 1.0, %v9985
    %v9987 = vrcp.pop %v9873
    %v9988 = vmul.f32 1.0, %v9987
    %v9989 = vrcp.pop %v9874
    %v9990 = vmul.f32 1.0, %v9989
    %v9991 = vrcp.pop %v9875
    %v9992 = vmul.f32 1.0, %v9991
    %v9993 = vrcp.pop %v9876
    %v9994 = vmul.f32 1.0, %v9993
    %v9995 = vrcp.pop %v9877
    %v9996 = vmul.f32 1.0, %v9995
    %v9997 = vrcp.pop %v9878
    %v9998 = vmul.f32 1.0, %v9997
    %v9999 = vrcp.pop %v9879
    %v10000 = vmul.f32 1.0, %v9999
    %v10001 = vrcp.pop %v9880
    %v10002 = vmul.f32 1.0, %v10001
    %v10003 = vrcp.pop %v9881
    %v10004 = vmul.f32 1.0, %v10003
    %v10005 = vrcp.pop %v9882
    %v10006 = vmul.f32 1.0, %v10005
    %v10007 = vrcp.pop %v9883
    %v10008 = vmul.f32 1.0, %v10007
    %v10009 = vrcp.pop %v9884
    %v10010 = vmul.f32 1.0, %v10009
    %v10011 = vrcp.pop %v9885
    %v10012 = vmul.f32 1.0, %v10011
    %v10013 = vrcp.pop %v9886
    %v10014 = vmul.f32 1.0, %v10013
    %vm10015 = vcmask 7168
    %10016 = vst.msk [vmem:[#allocation17] sm:$0xff] %vm10015, %v9888
    %10017 = vst.msk [vmem:[#allocation17 + $0x8] sm:$0xff] %vm10015, %v9890
    %10018 = vst.msk [vmem:[#allocation17 + $0x10] sm:$0xff] %vm10015, %v9892
    %10019 = vst.msk [vmem:[#allocation17 + $0x18] sm:$0xff] %vm10015, %v9894
    %10020 = vst.msk [vmem:[#allocation17 + $0x20] sm:$0xff] %vm10015, %v9896
    %10021 = vst.msk [vmem:[#allocation17 + $0x28] sm:$0xff] %vm10015, %v9898
    %10022 = vst.msk [vmem:[#allocation17 + $0x30] sm:$0xff] %vm10015, %v9900
    %10023 = vst.msk [vmem:[#allocation17 + $0x38] sm:$0xff] %vm10015, %v9902
    %10024 = vst.msk [vmem:[#allocation17 + $0x40] sm:$0xff] %vm10015, %v9904
    %10025 = vst.msk [vmem:[#allocation17 + $0x48] sm:$0xff] %vm10015, %v9906
    %10026 = vst.msk [vmem:[#allocation17 + $0x50] sm:$0xff] %vm10015, %v9908
    %10027 = vst.msk [vmem:[#allocation17 + $0x58] sm:$0xff] %vm10015, %v9910
    %10028 = vst.msk [vmem:[#allocation17 + $0x60] sm:$0xff] %vm10015, %v9912
    %10029 = vst.msk [vmem:[#allocation17 + $0x68] sm:$0xff] %vm10015, %v9914
    %10030 = vst.msk [vmem:[#allocation17 + $0x70] sm:$0xff] %vm10015, %v9916
    %10031 = vst.msk [vmem:[#allocation17 + $0x78] sm:$0xff] %vm10015, %v9918
    %10032 = vst.msk [vmem:[#allocation17 + $0x80] sm:$0xff] %vm10015, %v9920
    %10033 = vst.msk [vmem:[#allocation17 + $0x88] sm:$0xff] %vm10015, %v9922
    %10034 = vst.msk [vmem:[#allocation17 + $0x90] sm:$0xff] %vm10015, %v9924
    %10035 = vst.msk [vmem:[#allocation17 + $0x98] sm:$0xff] %vm10015, %v9926
    %10036 = vst.msk [vmem:[#allocation17 + $0xa0] sm:$0xff] %vm10015, %v9928
    %10037 = vst.msk [vmem:[#allocation17 + $0xa8] sm:$0xff] %vm10015, %v9930
    %10038 = vst.msk [vmem:[#allocation17 + $0xb0] sm:$0xff] %vm10015, %v9932
    %10039 = vst.msk [vmem:[#allocation17 + $0xb8] sm:$0xff] %vm10015, %v9934
    %10040 = vst.msk [vmem:[#allocation17 + $0xc0] sm:$0xff] %vm10015, %v9936
    %10041 = vst.msk [vmem:[#allocation17 + $0xc8] sm:$0xff] %vm10015, %v9938
    %10042 = vst.msk [vmem:[#allocation17 + $0xd0] sm:$0xff] %vm10015, %v9940
    %10043 = vst.msk [vmem:[#allocation17 + $0xd8] sm:$0xff] %vm10015, %v9942
    %10044 = vst.msk [vmem:[#allocation17 + $0xe0] sm:$0xff] %vm10015, %v9944
    %10045 = vst.msk [vmem:[#allocation17 + $0xe8] sm:$0xff] %vm10015, %v9946
    %10046 = vst.msk [vmem:[#allocation17 + $0xf0] sm:$0xff] %vm10015, %v9948
    %10047 = vst.msk [vmem:[#allocation17 + $0xf8] sm:$0xff] %vm10015, %v9950
    %10048 = vst.msk [vmem:[#allocation17 + $0x100] sm:$0xff] %vm10015, %v9952
    %10049 = vst.msk [vmem:[#allocation17 + $0x108] sm:$0xff] %vm10015, %v9954
    %10050 = vst.msk [vmem:[#allocation17 + $0x110] sm:$0xff] %vm10015, %v9956
    %10051 = vst.msk [vmem:[#allocation17 + $0x118] sm:$0xff] %vm10015, %v9958
    %10052 = vst.msk [vmem:[#allocation17 + $0x120] sm:$0xff] %vm10015, %v9960
    %10053 = vst.msk [vmem:[#allocation17 + $0x128] sm:$0xff] %vm10015, %v9962
    %10054 = vst.msk [vmem:[#allocation17 + $0x130] sm:$0xff] %vm10015, %v9964
    %10055 = vst.msk [vmem:[#allocation17 + $0x138] sm:$0xff] %vm10015, %v9966
    %10056 = vst.msk [vmem:[#allocation17 + $0x140] sm:$0xff] %vm10015, %v9968
    %10057 = vst.msk [vmem:[#allocation17 + $0x148] sm:$0xff] %vm10015, %v9970
    %10058 = vst.msk [vmem:[#allocation17 + $0x150] sm:$0xff] %vm10015, %v9972
    %10059 = vst.msk [vmem:[#allocation17 + $0x158] sm:$0xff] %vm10015, %v9974
    %10060 = vst.msk [vmem:[#allocation17 + $0x160] sm:$0xff] %vm10015, %v9976
    %10061 = vst.msk [vmem:[#allocation17 + $0x168] sm:$0xff] %vm10015, %v9978
    %10062 = vst.msk [vmem:[#allocation17 + $0x170] sm:$0xff] %vm10015, %v9980
    %10063 = vst.msk [vmem:[#allocation17 + $0x178] sm:$0xff] %vm10015, %v9982
    %10064 = vst.msk [vmem:[#allocation17 + $0x180] sm:$0xff] %vm10015, %v9984
    %10065 = vst.msk [vmem:[#allocation17 + $0x188] sm:$0xff] %vm10015, %v9986
    %10066 = vst.msk [vmem:[#allocation17 + $0x190] sm:$0xff] %vm10015, %v9988
    %10067 = vst.msk [vmem:[#allocation17 + $0x198] sm:$0xff] %vm10015, %v9990
    %10068 = vst.msk [vmem:[#allocation17 + $0x1a0] sm:$0xff] %vm10015, %v9992
    %10069 = vst.msk [vmem:[#allocation17 + $0x1a8] sm:$0xff] %vm10015, %v9994
    %10070 = vst.msk [vmem:[#allocation17 + $0x1b0] sm:$0xff] %vm10015, %v9996
    %10071 = vst.msk [vmem:[#allocation17 + $0x1b8] sm:$0xff] %vm10015, %v9998
    %10072 = vst.msk [vmem:[#allocation17 + $0x1c0] sm:$0xff] %vm10015, %v10000
    %10073 = vst.msk [vmem:[#allocation17 + $0x1c8] sm:$0xff] %vm10015, %v10002
    %10074 = vst.msk [vmem:[#allocation17 + $0x1d0] sm:$0xff] %vm10015, %v10004
    %10075 = vst.msk [vmem:[#allocation17 + $0x1d8] sm:$0xff] %vm10015, %v10006
    %10076 = vst.msk [vmem:[#allocation17 + $0x1e0] sm:$0xff] %vm10015, %v10008
    %10077 = vst.msk [vmem:[#allocation17 + $0x1e8] sm:$0xff] %vm10015, %v10010
    %10078 = vst.msk [vmem:[#allocation17 + $0x1f0] sm:$0xff] %vm10015, %v10012
    %10079 = vst.msk [vmem:[#allocation17 + $0x1f8] sm:$0xff] %vm10015, %v10014
    // Predicated region
    $region70: #{mlp_forward.1} parent=1 // pred_check
      _
    $region71: #{mlp_forward.1} parent=1 // pred_check_branch
      %10081 = sbr.rel (0) target = $region73
    $region72: #{mlp_forward.1} parent=1 // pred_region
      %s10083 = ssub.s32 8192, 8192
      %10084 = vsyncadd [#allocation5], %s10083
      %s10085 = sshll.u32 [#allocation17], 4
      %s10086 = int_to_ptr.vmem [resolvable:$true] %s10085
      %10091 = dma.vmem_to_hbm [thread:$0]  %s10086, 8192, %s9, [#allocation5], 128, 128, 8
    $region73: #{mlp_forward.1} parent=1 // pred_fallthru
      _
    // Predicated region
    $region74: #{mlp_forward.1} parent=1 // pred_check
      _
    $region75: #{mlp_forward.1} parent=1 // pred_check_branch
      %10093 = sbr.rel (0) target = $region77
    $region76: #{mlp_forward.1} parent=1 // pred_region
      %10094 = dma.done [#allocation5], 8192
    $region77: #{mlp_forward.1} parent=1 // pred_fallthru
      _
    %10095 = vsyncpa [#allocation4], 1
    %10096 = vsyncpa [#allocation7], 1
    %10097 = vsyncpa [#allocation10], 1
    %10098 = vsyncpa [#allocation13], 1
    %10099 = vsyncpa [#allocation16], 1
    %10100 = vsyncpa [#allocation5], 1

</llo_original>
